<compile_context>
chip_gen: v5e
topology: v5e:2x2
jax: 0.10.0
libtpu: 0.0.40
codegen_flags: <defaults>
</compile_context>

<pallas_src>
import functools
import math

import jax
import jax.numpy as jnp
from jax.experimental import pallas as pl
from jax.experimental.pallas import tpu as pltpu


CFG = dict(vocab=128, d_model=32, n_heads=4, d_kv=8, d_ff=64, n_layers=2,
           rel_buckets=32, rel_max_distance=128)

_VMEM = pl.BlockSpec(memory_space=pltpu.MemorySpace.VMEM)


# ------------------------- in-kernel building blocks -------------------------

def _rms(x, w, eps=1e-6):
    # T5 LayerNorm: no mean subtraction, no bias.  Kept in f32 on the VPU.
    xf = x.astype(jnp.float32)
    var = jnp.mean(xf * xf, axis=-1, keepdims=True)
    return xf * jax.lax.rsqrt(var + eps) * w


def _mm(a, b):
    return jnp.dot(a, b, preferred_element_type=jnp.float32)


def _embed_lookup(ids, embed, vocab):
    """ids: [M, 1] int32, embed: [V, D] -> [M, D] via one-hot MXU matmul.

    Avoids XLA gathers / HBM intermediates: the residual stream is born in VMEM.
    """
    m = ids.shape[0]
    iota = jax.lax.broadcasted_iota(jnp.int32, (m, vocab), 1)
    onehot = (iota == ids).astype(jnp.float32)
    return _mm(onehot, embed)


def _mha(xq, xkv, wq, wk, wv, wo, bias, *, B, Lq, Lk, H, dk):
    """Multi-head attention, vectorized over batch with 3-D einsums.

    xq: [B*Lq, D], xkv: [B*Lk, D]; wq/wk/wv: [H, D, dk]; wo: [H, dk, D];
    bias: [H, Lq, Lk] or None.  Returns the output-projected [B*Lq, D].
    Heads are accumulated through wo[h] -> no concatenates / lane reassembly,
    and no column slicing of activations.  T5 uses NO 1/sqrt(dk) scaling.
    """
    out = None
    for h in range(H):
        q = _mm(xq, wq[h]).reshape(B, Lq, dk)     # tile-aligned leading-dim split
        k = _mm(xkv, wk[h]).reshape(B, Lk, dk)
        v = _mm(xkv, wv[h]).reshape(B, Lk, dk)
        # scores via contraction on the last dims (no explicit k.T / vxpose).
        s = jnp.einsum('bqd,bkd->bqk', q, k, preferred_element_type=jnp.float32)
        if bias is not None:
            s = s + bias[h][None]
        m = jnp.max(s, axis=-1, keepdims=True)
        p = jnp.exp(s - m)
        denom = jnp.sum(p, axis=-1, keepdims=True)
        probs = p * pl.reciprocal(denom, approx=True)   # EUP slot, frees VALU
        o = jnp.einsum('bqk,bkd->bqd', probs, v, preferred_element_type=jnp.float32)
        proj = _mm(o.reshape(B * Lq, dk), wo[h])        # fuse head-concat into wo
        out = proj if out is None else out + proj
    return out


# ------------------------------- fused kernel --------------------------------

def _t5_kernel(enc_ids_ref, dec_ids_ref, embed_ref, enc_bias_ref, dec_bias_ref,
               e_ln1_ref, e_wq_ref, e_wk_ref, e_wv_ref, e_wo_ref,
               e_ln2_ref, e_wi_ref, e_wo_ff_ref, e_lnf_ref,
               d_ln1_ref, d_wq_ref, d_wk_ref, d_wv_ref, d_wo_ref,
               d_ln2_ref, d_wq_c_ref, d_wk_c_ref, d_wv_c_ref, d_wo_c_ref,
               d_ln3_ref, d_wi_ref, d_wo_ff_ref, d_lnf_ref, lm_ref,
               o_ref, *, n_layers, B, Ls, Lt, H, dk, d_model, vocab):
    embed = embed_ref[...]                               # [V, D], VMEM-resident

    # ------------------------------- encoder ---------------------------------
    x = _embed_lookup(enc_ids_ref[...], embed, vocab)    # [B*Ls, D]
    enc_bias = enc_bias_ref[...]                         # [H, Ls, Ls]
    for l in range(n_layers):
        h = _rms(x, e_ln1_ref[l])
        x = x + _mha(h, h, e_wq_ref[l], e_wk_ref[l], e_wv_ref[l], e_wo_ref[l],
                     enc_bias, B=B, Lq=Ls, Lk=Ls, H=H, dk=dk)
        h = _rms(x, e_ln2_ref[l])
        x = x + _mm(jnp.maximum(_mm(h, e_wi_ref[l]), 0.0), e_wo_ff_ref[l])
    enc_out = _rms(x, e_lnf_ref[...])                    # stays in VMEM (no HBM trip)

    # ------------------------------- decoder ---------------------------------
    y = _embed_lookup(dec_ids_ref[...], embed, vocab)    # [B*Lt, D]
    dec_bias = dec_bias_ref[...]                         # rel-pos bias + causal mask
    for l in range(n_layers):
        # causal self-attention
        h = _rms(y, d_ln1_ref[l])
        y = y + _mha(h, h, d_wq_ref[l], d_wk_ref[l], d_wv_ref[l], d_wo_ref[l],
                     dec_bias, B=B, Lq=Lt, Lk=Lt, H=H, dk=dk)
        # cross-attention (bias is zero for full-length batches -> omitted)
        h = _rms(y, d_ln2_ref[l])
        y = y + _mha(h, enc_out, d_wq_c_ref[l], d_wk_c_ref[l], d_wv_c_ref[l],
                     d_wo_c_ref[l], None, B=B, Lq=Lt, Lk=Ls, H=H, dk=dk)
        # feed-forward (fused ReLU)
        h = _rms(y, d_ln3_ref[l])
        y = y + _mm(jnp.maximum(_mm(h, d_wi_ref[l]), 0.0), d_wo_ff_ref[l])

    # final LN + tied lm head (T5 scales by d_model**-0.5; lm_ref is [D, vocab]).
    y = _rms(y, d_lnf_ref[...]) * (d_model ** -0.5)
    o_ref[...] = _mm(y, lm_ref[...]).astype(o_ref.dtype)   # lane-dense [B*Lt, 128]


# ------------------------------ Pallas wrapper --------------------------------

def t5_forward(params, biases, input_ids, decoder_input_ids, cfg):
    B, Ls = input_ids.shape
    Lt = decoder_input_ids.shape[1]
    D, V = cfg["d_model"], cfg["vocab"]
    enc, dec = params["enc"], params["dec"]

    kernel = functools.partial(
        _t5_kernel, n_layers=cfg["n_layers"], B=B, Ls=Ls, Lt=Lt,
        H=cfg["n_heads"], dk=cfg["d_kv"], d_model=D, vocab=V)

    args = (input_ids.reshape(B * Ls, 1), decoder_input_ids.reshape(B * Lt, 1),
            params["embed"], biases["enc"], biases["dec"],
            enc["ln1"], enc["wq"], enc["wk"], enc["wv"], enc["wo"],
            enc["ln2"], enc["wi"], enc["wo_ff"], enc["lnf"],
            dec["ln1"], dec["wq"], dec["wk"], dec["wv"], dec["wo"],
            dec["ln2"], dec["wq_c"], dec["wk_c"], dec["wv_c"], dec["wo_c"],
            dec["ln3"], dec["wi"], dec["wo_ff"], dec["lnf"],
            params["lm_head"])

    logits = pl.pallas_call(
        kernel,
        out_shape=jax.ShapeDtypeStruct((B * Lt, V), jnp.float32),
        in_specs=[_VMEM] * len(args),
        out_specs=_VMEM,
    )(*args)
    return logits.reshape(B, Lt, V)


# ----------------------- init-time glue (runs ONCE) ---------------------------

def _relative_position_bucket(relative_position, bidirectional, num_buckets, max_distance):
    relative_buckets = jnp.zeros_like(relative_position)
    if bidirectional:
        num_buckets //= 2
        relative_buckets = relative_buckets + (relative_position > 0).astype(jnp.int32) * num_buckets
        relative_position = jnp.abs(relative_position)
    else:
        relative_position = -jnp.minimum(relative_position, 0)
    max_exact = num_buckets // 2
    is_small = relative_position < max_exact
    rel_if_large = max_exact + (
        jnp.log(jnp.maximum(relative_position, 1).astype(jnp.float32) / max_exact)
        / math.log(max_distance / max_exact)
        * (num_buckets - max_exact)
    ).astype(jnp.int32)
    rel_if_large = jnp.minimum(rel_if_large, num_buckets - 1)
    return relative_buckets + jnp.where(is_small, relative_position, rel_if_large)


def compute_position_bias(qlen, klen, bidirectional, rel_emb, cfg):
    ctx = jnp.arange(qlen, dtype=jnp.int32)[:, None]
    mem = jnp.arange(klen, dtype=jnp.int32)[None, :]
    buckets = _relative_position_bucket(mem - ctx, bidirectional,
                                        cfg["rel_buckets"], cfg["rel_max_distance"])
    values = rel_emb[buckets]                   # [qlen, klen, H]
    return jnp.transpose(values, (2, 0, 1))     # [H, qlen, klen]


def precompute_biases(params, cfg, Ls, Lt):
    """Position biases + causal mask are params/static-shape only -> hoisted to init."""
    enc_bias = compute_position_bias(Ls, Ls, True, params["enc_rel_bias"], cfg)
    dec_bias = compute_position_bias(Lt, Lt, False, params["dec_rel_bias"], cfg)
    causal = jnp.where(jnp.arange(Lt)[None, :] <= jnp.arange(Lt)[:, None], 0.0, -1e9)
    # TODO(synk): no padding attention mask (fixed-length toy batch, as in original).
    return {"enc": enc_bias, "dec": dec_bias + causal[None]}


def init_t5_params(key, cfg):
    V, D, H, dk, dff, nL = (cfg["vocab"], cfg["d_model"], cfg["n_heads"],
                            cfg["d_kv"], cfg["d_ff"], cfg["n_layers"])
    keys = iter(jax.random.split(key, 32))

    def dense(shape):
        return jax.random.normal(next(keys), shape, jnp.float32) * 0.02

    def ones(*s):
        return jnp.ones(s, jnp.float32)

    # Attention weights stored per-head ([H, D, dk] / [H, dk, D]) so the kernel
    # indexes leading dims (free) instead of slicing 8-lane activation columns.
    enc = {
        "ln1": ones(nL, 1, D),
        "wq": dense((nL, H, D, dk)), "wk": dense((nL, H, D, dk)), "wv": dense((nL, H, D, dk)),
        "wo": dense((nL, H, dk, D)),
        "ln2": ones(nL, 1, D), "wi": dense((nL, D, dff)), "wo_ff": dense((nL, dff, D)),
        "lnf": ones(1, D),
    }
    dec = {
        "ln1": ones(nL, 1, D),
        "wq": dense((nL, H, D, dk)), "wk": dense((nL, H, D, dk)), "wv": dense((nL, H, D, dk)),
        "wo": dense((nL, H, dk, D)),
        "ln2": ones(nL, 1, D),
        "wq_c": dense((nL, H, D, dk)), "wk_c": dense((nL, H, D, dk)), "wv_c": dense((nL, H, D, dk)),
        "wo_c": dense((nL, H, dk, D)),
        "ln3": ones(nL, 1, D), "wi": dense((nL, D, dff)), "wo_ff": dense((nL, dff, D)),
        "lnf": ones(1, D),
    }
    embed = dense((V, D))
    return {
        "embed": embed,
        # tied lm head, pre-transposed ONCE at init (lane-dense [D, V=128]).
        "lm_head": jnp.transpose(embed),
        "enc_rel_bias": dense((cfg["rel_buckets"], H)),
        "dec_rel_bias": dense((cfg["rel_buckets"], H)),
        "enc": enc, "dec": dec,
    }


# --------------------------------- main --------------------------------------

if __name__ == "__main__":
    key = jax.random.PRNGKey(0)
    k_param, k_in, k_dec = jax.random.split(key, 3)

    params = init_t5_params(k_param, CFG)

    B, Ls, Lt = 2, 8, 8
    input_ids = jax.random.randint(k_in, (B, Ls), 0, CFG["vocab"], dtype=jnp.int32)
    decoder_input_ids = jax.random.randint(k_dec, (B, Lt), 0, CFG["vocab"], dtype=jnp.int32)

    # Precomputed once, off the per-forward critical path.
    biases = precompute_biases(params, CFG, Ls, Lt)

    logits = t5_forward(params, biases, input_ids, decoder_input_ids, CFG)
    logits = jax.block_until_ready(logits)

    assert logits.shape == (B, Lt, CFG["vocab"])
    assert bool(jnp.all(jnp.isfinite(logits)))
    print("KERNEL_OK")
</pallas_src>

<mosaic_0001>
module attributes {stable_mosaic.version = 11 : i64} {
  func.func @_t5_kernel(%arg0: memref<16x1xi32, #tpu.memory_space<vmem>>, %arg1: memref<16x1xi32, #tpu.memory_space<vmem>>, %arg2: memref<128x32xf32, #tpu.memory_space<vmem>>, %arg3: memref<4x8x8xf32, #tpu.memory_space<vmem>>, %arg4: memref<4x8x8xf32, #tpu.memory_space<vmem>>, %arg5: memref<2x1x32xf32, #tpu.memory_space<vmem>>, %arg6: memref<2x4x32x8xf32, #tpu.memory_space<vmem>>, %arg7: memref<2x4x32x8xf32, #tpu.memory_space<vmem>>, %arg8: memref<2x4x32x8xf32, #tpu.memory_space<vmem>>, %arg9: memref<2x4x8x32xf32, #tpu.memory_space<vmem>>, %arg10: memref<2x1x32xf32, #tpu.memory_space<vmem>>, %arg11: memref<2x32x64xf32, #tpu.memory_space<vmem>>, %arg12: memref<2x64x32xf32, #tpu.memory_space<vmem>>, %arg13: memref<1x32xf32, #tpu.memory_space<vmem>>, %arg14: memref<2x1x32xf32, #tpu.memory_space<vmem>>, %arg15: memref<2x4x32x8xf32, #tpu.memory_space<vmem>>, %arg16: memref<2x4x32x8xf32, #tpu.memory_space<vmem>>, %arg17: memref<2x4x32x8xf32, #tpu.memory_space<vmem>>, %arg18: memref<2x4x8x32xf32, #tpu.memory_space<vmem>>, %arg19: memref<2x1x32xf32, #tpu.memory_space<vmem>>, %arg20: memref<2x4x32x8xf32, #tpu.memory_space<vmem>>, %arg21: memref<2x4x32x8xf32, #tpu.memory_space<vmem>>, %arg22: memref<2x4x32x8xf32, #tpu.memory_space<vmem>>, %arg23: memref<2x4x8x32xf32, #tpu.memory_space<vmem>>, %arg24: memref<2x1x32xf32, #tpu.memory_space<vmem>>, %arg25: memref<2x32x64xf32, #tpu.memory_space<vmem>>, %arg26: memref<2x64x32xf32, #tpu.memory_space<vmem>>, %arg27: memref<1x32xf32, #tpu.memory_space<vmem>>, %arg28: memref<32x128xf32, #tpu.memory_space<vmem>>, %arg29: memref<16x128xf32, #tpu.memory_space<vmem>>) attributes {dimension_semantics = [], scalar_prefetch = 0 : i64, scratch_operands = 0 : i64, tpu.core_type = #tpu.core_type<tc>} {
    %c0 = arith.constant 0 : index
    %c0_0 = arith.constant 0 : index
    %0 = vector.load %arg2[%c0, %c0_0] : memref<128x32xf32, #tpu.memory_space<vmem>>, vector<128x32xf32>
    %c0_1 = arith.constant 0 : index
    %c0_2 = arith.constant 0 : index
    %1 = vector.load %arg0[%c0_1, %c0_2] : memref<16x1xi32, #tpu.memory_space<vmem>>, vector<16x1xi32>
    %2 = tpu.iota {dimensions = array<i32: 1>} : vector<16x128xi32>
    %3 = vector.broadcast %1 : vector<16x1xi32> to vector<16x128xi32>
    %4 = arith.cmpi eq, %2, %3 : vector<16x128xi32>
    %5 = arith.extui %4 : vector<16x128xi1> to vector<16x128xi32>
    %6 = arith.sitofp %5 : vector<16x128xi32> to vector<16x128xf32>
    %cst = arith.constant dense<0.000000e+00> : vector<16x32xf32>
    %7 = tpu.matmul %6, %0, %cst {dimension_numbers = #tpu.dot_dimension_numbers<[1], [0], [0], [1], [0, 0, 1, 1], [], []>} : vector<16x128xf32>, vector<128x32xf32>, vector<16x32xf32> -> vector<16x32xf32>
    %c0_3 = arith.constant 0 : index
    %c0_4 = arith.constant 0 : index
    %c0_5 = arith.constant 0 : index
    %8 = vector.load %arg3[%c0_3, %c0_4, %c0_5] : memref<4x8x8xf32, #tpu.memory_space<vmem>>, vector<4x8x8xf32>
    %c0_6 = arith.constant 0 : index
    %c0_7 = arith.constant 0 : index
    %c0_8 = arith.constant 0 : index
    %9 = vector.load %arg5[%c0_6, %c0_7, %c0_8] : memref<2x1x32xf32, #tpu.memory_space<vmem>>, vector<1x1x32xf32>
    %10 = vector.shape_cast %9 : vector<1x1x32xf32> to vector<1x32xf32>
    %11 = arith.mulf %7, %7 : vector<16x32xf32>
    %cst_9 = arith.constant dense<0.000000e+00> : vector<16xf32>
    %12 = vector.multi_reduction <add>, %11, %cst_9 [1] : vector<16x32xf32> to vector<16xf32>
    %13 = vector.shape_cast %12 : vector<16xf32> to vector<16x1xf32>
    %cst_10 = arith.constant 3.200000e+01 : f32
    %14 = vector.broadcast %cst_10 : f32 to vector<16x1xf32>
    %15 = arith.divf %13, %14 : vector<16x1xf32>
    %cst_11 = arith.constant 9.99999997E-7 : f32
    %16 = vector.broadcast %cst_11 : f32 to vector<16x1xf32>
    %17 = arith.addf %15, %16 : vector<16x1xf32>
    %18 = math.rsqrt %17 : vector<16x1xf32>
    %19 = vector.broadcast %18 : vector<16x1xf32> to vector<16x32xf32>
    %20 = arith.mulf %7, %19 : vector<16x32xf32>
    %21 = vector.broadcast %10 : vector<1x32xf32> to vector<16x32xf32>
    %22 = arith.mulf %20, %21 : vector<16x32xf32>
    %c0_12 = arith.constant 0 : index
    %c0_13 = arith.constant 0 : index
    %c0_14 = arith.constant 0 : index
    %c0_15 = arith.constant 0 : index
    %23 = vector.load %arg6[%c0_12, %c0_13, %c0_14, %c0_15] : memref<2x4x32x8xf32, #tpu.memory_space<vmem>>, vector<1x4x32x8xf32>
    %24 = vector.shape_cast %23 : vector<1x4x32x8xf32> to vector<4x32x8xf32>
    %c0_16 = arith.constant 0 : index
    %c0_17 = arith.constant 0 : index
    %c0_18 = arith.constant 0 : index
    %c0_19 = arith.constant 0 : index
    %25 = vector.load %arg7[%c0_16, %c0_17, %c0_18, %c0_19] : memref<2x4x32x8xf32, #tpu.memory_space<vmem>>, vector<1x4x32x8xf32>
    %26 = vector.shape_cast %25 : vector<1x4x32x8xf32> to vector<4x32x8xf32>
    %c0_20 = arith.constant 0 : index
    %c0_21 = arith.constant 0 : index
    %c0_22 = arith.constant 0 : index
    %c0_23 = arith.constant 0 : index
    %27 = vector.load %arg8[%c0_20, %c0_21, %c0_22, %c0_23] : memref<2x4x32x8xf32, #tpu.memory_space<vmem>>, vector<1x4x32x8xf32>
    %28 = vector.shape_cast %27 : vector<1x4x32x8xf32> to vector<4x32x8xf32>
    %c0_24 = arith.constant 0 : index
    %c0_25 = arith.constant 0 : index
    %c0_26 = arith.constant 0 : index
    %c0_27 = arith.constant 0 : index
    %29 = vector.load %arg9[%c0_24, %c0_25, %c0_26, %c0_27] : memref<2x4x8x32xf32, #tpu.memory_space<vmem>>, vector<1x4x8x32xf32>
    %30 = vector.shape_cast %29 : vector<1x4x8x32xf32> to vector<4x8x32xf32>
    %31 = vector.extract_strided_slice %24 {offsets = [0, 0, 0], sizes = [1, 32, 8], strides = [1, 1, 1]} : vector<4x32x8xf32> to vector<1x32x8xf32>
    %32 = vector.shape_cast %31 : vector<1x32x8xf32> to vector<32x8xf32>
    %cst_28 = arith.constant dense<0.000000e+00> : vector<16x8xf32>
    %33 = tpu.matmul %22, %32, %cst_28 {dimension_numbers = #tpu.dot_dimension_numbers<[1], [0], [0], [1], [0, 0, 1, 1], [], []>} : vector<16x32xf32>, vector<32x8xf32>, vector<16x8xf32> -> vector<16x8xf32>
    %34 = vector.shape_cast %33 : vector<16x8xf32> to vector<2x8x8xf32>
    %35 = vector.extract_strided_slice %26 {offsets = [0, 0, 0], sizes = [1, 32, 8], strides = [1, 1, 1]} : vector<4x32x8xf32> to vector<1x32x8xf32>
    %36 = vector.shape_cast %35 : vector<1x32x8xf32> to vector<32x8xf32>
    %cst_29 = arith.constant dense<0.000000e+00> : vector<16x8xf32>
    %37 = tpu.matmul %22, %36, %cst_29 {dimension_numbers = #tpu.dot_dimension_numbers<[1], [0], [0], [1], [0, 0, 1, 1], [], []>} : vector<16x32xf32>, vector<32x8xf32>, vector<16x8xf32> -> vector<16x8xf32>
    %38 = vector.shape_cast %37 : vector<16x8xf32> to vector<2x8x8xf32>
    %39 = vector.extract_strided_slice %28 {offsets = [0, 0, 0], sizes = [1, 32, 8], strides = [1, 1, 1]} : vector<4x32x8xf32> to vector<1x32x8xf32>
    %40 = vector.shape_cast %39 : vector<1x32x8xf32> to vector<32x8xf32>
    %cst_30 = arith.constant dense<0.000000e+00> : vector<16x8xf32>
    %41 = tpu.matmul %22, %40, %cst_30 {dimension_numbers = #tpu.dot_dimension_numbers<[1], [0], [0], [1], [0, 0, 1, 1], [], []>} : vector<16x32xf32>, vector<32x8xf32>, vector<16x8xf32> -> vector<16x8xf32>
    %42 = vector.shape_cast %41 : vector<16x8xf32> to vector<2x8x8xf32>
    "tpu.trace_start"() <{level = 10 : i32, message = "bqd,bkd->bqk"}> : () -> ()
    %cst_31 = arith.constant dense<0.000000e+00> : vector<2x8x8xf32>
    %43 = tpu.matmul %34, %38, %cst_31 {dimension_numbers = #tpu.dot_dimension_numbers<[2], [2], [1], [1], [0, 0, 0, 1, 1, 1], [0], [0]>} : vector<2x8x8xf32>, vector<2x8x8xf32>, vector<2x8x8xf32> -> vector<2x8x8xf32>
    "tpu.trace_stop"() : () -> ()
    %44 = vector.extract_strided_slice %8 {offsets = [0, 0, 0], sizes = [1, 8, 8], strides = [1, 1, 1]} : vector<4x8x8xf32> to vector<1x8x8xf32>
    %45 = vector.shape_cast %44 : vector<1x8x8xf32> to vector<8x8xf32>
    %46 = vector.shape_cast %45 : vector<8x8xf32> to vector<1x8x8xf32>
    %47 = vector.broadcast %46 : vector<1x8x8xf32> to vector<2x8x8xf32>
    %48 = arith.addf %43, %47 : vector<2x8x8xf32>
    %cst_32 = arith.constant dense<0xFF800000> : vector<2x8xf32>
    %49 = vector.multi_reduction <maximumf>, %48, %cst_32 [2] : vector<2x8x8xf32> to vector<2x8xf32>
    %50 = vector.shape_cast %49 : vector<2x8xf32> to vector<2x8x1xf32>
    %51 = vector.broadcast %50 : vector<2x8x1xf32> to vector<2x8x8xf32>
    %52 = arith.subf %48, %51 : vector<2x8x8xf32>
    %53 = math.exp %52 : vector<2x8x8xf32>
    %cst_33 = arith.constant dense<0.000000e+00> : vector<2x8xf32>
    %54 = vector.multi_reduction <add>, %53, %cst_33 [2] : vector<2x8x8xf32> to vector<2x8xf32>
    %55 = vector.shape_cast %54 : vector<2x8xf32> to vector<2x8x1xf32>
    %56 = tpu.reciprocal %55 {approx = true} : vector<2x8x1xf32> -> vector<2x8x1xf32>
    %57 = vector.broadcast %56 : vector<2x8x1xf32> to vector<2x8x8xf32>
    %58 = arith.mulf %53, %57 : vector<2x8x8xf32>
    "tpu.trace_start"() <{level = 10 : i32, message = "bqk,bkd->bqd"}> : () -> ()
    %cst_34 = arith.constant dense<0.000000e+00> : vector<2x8x8xf32>
    %59 = tpu.matmul %58, %42, %cst_34 {dimension_numbers = #tpu.dot_dimension_numbers<[2], [1], [1], [2], [0, 0, 0, 1, 1, 2], [0], [0]>} : vector<2x8x8xf32>, vector<2x8x8xf32>, vector<2x8x8xf32> -> vector<2x8x8xf32>
    "tpu.trace_stop"() : () -> ()
    %60 = vector.shape_cast %59 : vector<2x8x8xf32> to vector<16x8xf32>
    %61 = vector.extract_strided_slice %30 {offsets = [0, 0, 0], sizes = [1, 8, 32], strides = [1, 1, 1]} : vector<4x8x32xf32> to vector<1x8x32xf32>
    %62 = vector.shape_cast %61 : vector<1x8x32xf32> to vector<8x32xf32>
    %cst_35 = arith.constant dense<0.000000e+00> : vector<16x32xf32>
    %63 = tpu.matmul %60, %62, %cst_35 {dimension_numbers = #tpu.dot_dimension_numbers<[1], [0], [0], [1], [0, 0, 1, 1], [], []>} : vector<16x8xf32>, vector<8x32xf32>, vector<16x32xf32> -> vector<16x32xf32>
    %64 = vector.extract_strided_slice %24 {offsets = [1, 0, 0], sizes = [1, 32, 8], strides = [1, 1, 1]} : vector<4x32x8xf32> to vector<1x32x8xf32>
    %65 = vector.shape_cast %64 : vector<1x32x8xf32> to vector<32x8xf32>
    %cst_36 = arith.constant dense<0.000000e+00> : vector<16x8xf32>
    %66 = tpu.matmul %22, %65, %cst_36 {dimension_numbers = #tpu.dot_dimension_numbers<[1], [0], [0], [1], [0, 0, 1, 1], [], []>} : vector<16x32xf32>, vector<32x8xf32>, vector<16x8xf32> -> vector<16x8xf32>
    %67 = vector.shape_cast %66 : vector<16x8xf32> to vector<2x8x8xf32>
    %68 = vector.extract_strided_slice %26 {offsets = [1, 0, 0], sizes = [1, 32, 8], strides = [1, 1, 1]} : vector<4x32x8xf32> to vector<1x32x8xf32>
    %69 = vector.shape_cast %68 : vector<1x32x8xf32> to vector<32x8xf32>
    %cst_37 = arith.constant dense<0.000000e+00> : vector<16x8xf32>
    %70 = tpu.matmul %22, %69, %cst_37 {dimension_numbers = #tpu.dot_dimension_numbers<[1], [0], [0], [1], [0, 0, 1, 1], [], []>} : vector<16x32xf32>, vector<32x8xf32>, vector<16x8xf32> -> vector<16x8xf32>
    %71 = vector.shape_cast %70 : vector<16x8xf32> to vector<2x8x8xf32>
    %72 = vector.extract_strided_slice %28 {offsets = [1, 0, 0], sizes = [1, 32, 8], strides = [1, 1, 1]} : vector<4x32x8xf32> to vector<1x32x8xf32>
    %73 = vector.shape_cast %72 : vector<1x32x8xf32> to vector<32x8xf32>
    %cst_38 = arith.constant dense<0.000000e+00> : vector<16x8xf32>
    %74 = tpu.matmul %22, %73, %cst_38 {dimension_numbers = #tpu.dot_dimension_numbers<[1], [0], [0], [1], [0, 0, 1, 1], [], []>} : vector<16x32xf32>, vector<32x8xf32>, vector<16x8xf32> -> vector<16x8xf32>
    %75 = vector.shape_cast %74 : vector<16x8xf32> to vector<2x8x8xf32>
    "tpu.trace_start"() <{level = 10 : i32, message = "bqd,bkd->bqk"}> : () -> ()
    %cst_39 = arith.constant dense<0.000000e+00> : vector<2x8x8xf32>
    %76 = tpu.matmul %67, %71, %cst_39 {dimension_numbers = #tpu.dot_dimension_numbers<[2], [2], [1], [1], [0, 0, 0, 1, 1, 1], [0], [0]>} : vector<2x8x8xf32>, vector<2x8x8xf32>, vector<2x8x8xf32> -> vector<2x8x8xf32>
    "tpu.trace_stop"() : () -> ()
    %77 = vector.extract_strided_slice %8 {offsets = [1, 0, 0], sizes = [1, 8, 8], strides = [1, 1, 1]} : vector<4x8x8xf32> to vector<1x8x8xf32>
    %78 = vector.shape_cast %77 : vector<1x8x8xf32> to vector<8x8xf32>
    %79 = vector.shape_cast %78 : vector<8x8xf32> to vector<1x8x8xf32>
    %80 = vector.broadcast %79 : vector<1x8x8xf32> to vector<2x8x8xf32>
    %81 = arith.addf %76, %80 : vector<2x8x8xf32>
    %cst_40 = arith.constant dense<0xFF800000> : vector<2x8xf32>
    %82 = vector.multi_reduction <maximumf>, %81, %cst_40 [2] : vector<2x8x8xf32> to vector<2x8xf32>
    %83 = vector.shape_cast %82 : vector<2x8xf32> to vector<2x8x1xf32>
    %84 = vector.broadcast %83 : vector<2x8x1xf32> to vector<2x8x8xf32>
    %85 = arith.subf %81, %84 : vector<2x8x8xf32>
    %86 = math.exp %85 : vector<2x8x8xf32>
    %cst_41 = arith.constant dense<0.000000e+00> : vector<2x8xf32>
    %87 = vector.multi_reduction <add>, %86, %cst_41 [2] : vector<2x8x8xf32> to vector<2x8xf32>
    %88 = vector.shape_cast %87 : vector<2x8xf32> to vector<2x8x1xf32>
    %89 = tpu.reciprocal %88 {approx = true} : vector<2x8x1xf32> -> vector<2x8x1xf32>
    %90 = vector.broadcast %89 : vector<2x8x1xf32> to vector<2x8x8xf32>
    %91 = arith.mulf %86, %90 : vector<2x8x8xf32>
    "tpu.trace_start"() <{level = 10 : i32, message = "bqk,bkd->bqd"}> : () -> ()
    %cst_42 = arith.constant dense<0.000000e+00> : vector<2x8x8xf32>
    %92 = tpu.matmul %91, %75, %cst_42 {dimension_numbers = #tpu.dot_dimension_numbers<[2], [1], [1], [2], [0, 0, 0, 1, 1, 2], [0], [0]>} : vector<2x8x8xf32>, vector<2x8x8xf32>, vector<2x8x8xf32> -> vector<2x8x8xf32>
    "tpu.trace_stop"() : () -> ()
    %93 = vector.shape_cast %92 : vector<2x8x8xf32> to vector<16x8xf32>
    %94 = vector.extract_strided_slice %30 {offsets = [1, 0, 0], sizes = [1, 8, 32], strides = [1, 1, 1]} : vector<4x8x32xf32> to vector<1x8x32xf32>
    %95 = vector.shape_cast %94 : vector<1x8x32xf32> to vector<8x32xf32>
    %cst_43 = arith.constant dense<0.000000e+00> : vector<16x32xf32>
    %96 = tpu.matmul %93, %95, %cst_43 {dimension_numbers = #tpu.dot_dimension_numbers<[1], [0], [0], [1], [0, 0, 1, 1], [], []>} : vector<16x8xf32>, vector<8x32xf32>, vector<16x32xf32> -> vector<16x32xf32>
    %97 = arith.addf %63, %96 : vector<16x32xf32>
    %98 = vector.extract_strided_slice %24 {offsets = [2, 0, 0], sizes = [1, 32, 8], strides = [1, 1, 1]} : vector<4x32x8xf32> to vector<1x32x8xf32>
    %99 = vector.shape_cast %98 : vector<1x32x8xf32> to vector<32x8xf32>
    %cst_44 = arith.constant dense<0.000000e+00> : vector<16x8xf32>
    %100 = tpu.matmul %22, %99, %cst_44 {dimension_numbers = #tpu.dot_dimension_numbers<[1], [0], [0], [1], [0, 0, 1, 1], [], []>} : vector<16x32xf32>, vector<32x8xf32>, vector<16x8xf32> -> vector<16x8xf32>
    %101 = vector.shape_cast %100 : vector<16x8xf32> to vector<2x8x8xf32>
    %102 = vector.extract_strided_slice %26 {offsets = [2, 0, 0], sizes = [1, 32, 8], strides = [1, 1, 1]} : vector<4x32x8xf32> to vector<1x32x8xf32>
    %103 = vector.shape_cast %102 : vector<1x32x8xf32> to vector<32x8xf32>
    %cst_45 = arith.constant dense<0.000000e+00> : vector<16x8xf32>
    %104 = tpu.matmul %22, %103, %cst_45 {dimension_numbers = #tpu.dot_dimension_numbers<[1], [0], [0], [1], [0, 0, 1, 1], [], []>} : vector<16x32xf32>, vector<32x8xf32>, vector<16x8xf32> -> vector<16x8xf32>
    %105 = vector.shape_cast %104 : vector<16x8xf32> to vector<2x8x8xf32>
    %106 = vector.extract_strided_slice %28 {offsets = [2, 0, 0], sizes = [1, 32, 8], strides = [1, 1, 1]} : vector<4x32x8xf32> to vector<1x32x8xf32>
    %107 = vector.shape_cast %106 : vector<1x32x8xf32> to vector<32x8xf32>
    %cst_46 = arith.constant dense<0.000000e+00> : vector<16x8xf32>
    %108 = tpu.matmul %22, %107, %cst_46 {dimension_numbers = #tpu.dot_dimension_numbers<[1], [0], [0], [1], [0, 0, 1, 1], [], []>} : vector<16x32xf32>, vector<32x8xf32>, vector<16x8xf32> -> vector<16x8xf32>
    %109 = vector.shape_cast %108 : vector<16x8xf32> to vector<2x8x8xf32>
    "tpu.trace_start"() <{level = 10 : i32, message = "bqd,bkd->bqk"}> : () -> ()
    %cst_47 = arith.constant dense<0.000000e+00> : vector<2x8x8xf32>
    %110 = tpu.matmul %101, %105, %cst_47 {dimension_numbers = #tpu.dot_dimension_numbers<[2], [2], [1], [1], [0, 0, 0, 1, 1, 1], [0], [0]>} : vector<2x8x8xf32>, vector<2x8x8xf32>, vector<2x8x8xf32> -> vector<2x8x8xf32>
    "tpu.trace_stop"() : () -> ()
    %111 = vector.extract_strided_slice %8 {offsets = [2, 0, 0], sizes = [1, 8, 8], strides = [1, 1, 1]} : vector<4x8x8xf32> to vector<1x8x8xf32>
    %112 = vector.shape_cast %111 : vector<1x8x8xf32> to vector<8x8xf32>
    %113 = vector.shape_cast %112 : vector<8x8xf32> to vector<1x8x8xf32>
    %114 = vector.broadcast %113 : vector<1x8x8xf32> to vector<2x8x8xf32>
    %115 = arith.addf %110, %114 : vector<2x8x8xf32>
    %cst_48 = arith.constant dense<0xFF800000> : vector<2x8xf32>
    %116 = vector.multi_reduction <maximumf>, %115, %cst_48 [2] : vector<2x8x8xf32> to vector<2x8xf32>
    %117 = vector.shape_cast %116 : vector<2x8xf32> to vector<2x8x1xf32>
    %118 = vector.broadcast %117 : vector<2x8x1xf32> to vector<2x8x8xf32>
    %119 = arith.subf %115, %118 : vector<2x8x8xf32>
    %120 = math.exp %119 : vector<2x8x8xf32>
    %cst_49 = arith.constant dense<0.000000e+00> : vector<2x8xf32>
    %121 = vector.multi_reduction <add>, %120, %cst_49 [2] : vector<2x8x8xf32> to vector<2x8xf32>
    %122 = vector.shape_cast %121 : vector<2x8xf32> to vector<2x8x1xf32>
    %123 = tpu.reciprocal %122 {approx = true} : vector<2x8x1xf32> -> vector<2x8x1xf32>
    %124 = vector.broadcast %123 : vector<2x8x1xf32> to vector<2x8x8xf32>
    %125 = arith.mulf %120, %124 : vector<2x8x8xf32>
    "tpu.trace_start"() <{level = 10 : i32, message = "bqk,bkd->bqd"}> : () -> ()
    %cst_50 = arith.constant dense<0.000000e+00> : vector<2x8x8xf32>
    %126 = tpu.matmul %125, %109, %cst_50 {dimension_numbers = #tpu.dot_dimension_numbers<[2], [1], [1], [2], [0, 0, 0, 1, 1, 2], [0], [0]>} : vector<2x8x8xf32>, vector<2x8x8xf32>, vector<2x8x8xf32> -> vector<2x8x8xf32>
    "tpu.trace_stop"() : () -> ()
    %127 = vector.shape_cast %126 : vector<2x8x8xf32> to vector<16x8xf32>
    %128 = vector.extract_strided_slice %30 {offsets = [2, 0, 0], sizes = [1, 8, 32], strides = [1, 1, 1]} : vector<4x8x32xf32> to vector<1x8x32xf32>
    %129 = vector.shape_cast %128 : vector<1x8x32xf32> to vector<8x32xf32>
    %cst_51 = arith.constant dense<0.000000e+00> : vector<16x32xf32>
    %130 = tpu.matmul %127, %129, %cst_51 {dimension_numbers = #tpu.dot_dimension_numbers<[1], [0], [0], [1], [0, 0, 1, 1], [], []>} : vector<16x8xf32>, vector<8x32xf32>, vector<16x32xf32> -> vector<16x32xf32>
    %131 = arith.addf %97, %130 : vector<16x32xf32>
    %132 = vector.extract_strided_slice %24 {offsets = [3, 0, 0], sizes = [1, 32, 8], strides = [1, 1, 1]} : vector<4x32x8xf32> to vector<1x32x8xf32>
    %133 = vector.shape_cast %132 : vector<1x32x8xf32> to vector<32x8xf32>
    %cst_52 = arith.constant dense<0.000000e+00> : vector<16x8xf32>
    %134 = tpu.matmul %22, %133, %cst_52 {dimension_numbers = #tpu.dot_dimension_numbers<[1], [0], [0], [1], [0, 0, 1, 1], [], []>} : vector<16x32xf32>, vector<32x8xf32>, vector<16x8xf32> -> vector<16x8xf32>
    %135 = vector.shape_cast %134 : vector<16x8xf32> to vector<2x8x8xf32>
    %136 = vector.extract_strided_slice %26 {offsets = [3, 0, 0], sizes = [1, 32, 8], strides = [1, 1, 1]} : vector<4x32x8xf32> to vector<1x32x8xf32>
    %137 = vector.shape_cast %136 : vector<1x32x8xf32> to vector<32x8xf32>
    %cst_53 = arith.constant dense<0.000000e+00> : vector<16x8xf32>
    %138 = tpu.matmul %22, %137, %cst_53 {dimension_numbers = #tpu.dot_dimension_numbers<[1], [0], [0], [1], [0, 0, 1, 1], [], []>} : vector<16x32xf32>, vector<32x8xf32>, vector<16x8xf32> -> vector<16x8xf32>
    %139 = vector.shape_cast %138 : vector<16x8xf32> to vector<2x8x8xf32>
    %140 = vector.extract_strided_slice %28 {offsets = [3, 0, 0], sizes = [1, 32, 8], strides = [1, 1, 1]} : vector<4x32x8xf32> to vector<1x32x8xf32>
    %141 = vector.shape_cast %140 : vector<1x32x8xf32> to vector<32x8xf32>
    %cst_54 = arith.constant dense<0.000000e+00> : vector<16x8xf32>
    %142 = tpu.matmul %22, %141, %cst_54 {dimension_numbers = #tpu.dot_dimension_numbers<[1], [0], [0], [1], [0, 0, 1, 1], [], []>} : vector<16x32xf32>, vector<32x8xf32>, vector<16x8xf32> -> vector<16x8xf32>
    %143 = vector.shape_cast %142 : vector<16x8xf32> to vector<2x8x8xf32>
    "tpu.trace_start"() <{level = 10 : i32, message = "bqd,bkd->bqk"}> : () -> ()
    %cst_55 = arith.constant dense<0.000000e+00> : vector<2x8x8xf32>
    %144 = tpu.matmul %135, %139, %cst_55 {dimension_numbers = #tpu.dot_dimension_numbers<[2], [2], [1], [1], [0, 0, 0, 1, 1, 1], [0], [0]>} : vector<2x8x8xf32>, vector<2x8x8xf32>, vector<2x8x8xf32> -> vector<2x8x8xf32>
    "tpu.trace_stop"() : () -> ()
    %145 = vector.extract_strided_slice %8 {offsets = [3, 0, 0], sizes = [1, 8, 8], strides = [1, 1, 1]} : vector<4x8x8xf32> to vector<1x8x8xf32>
    %146 = vector.shape_cast %145 : vector<1x8x8xf32> to vector<8x8xf32>
    %147 = vector.shape_cast %146 : vector<8x8xf32> to vector<1x8x8xf32>
    %148 = vector.broadcast %147 : vector<1x8x8xf32> to vector<2x8x8xf32>
    %149 = arith.addf %144, %148 : vector<2x8x8xf32>
    %cst_56 = arith.constant dense<0xFF800000> : vector<2x8xf32>
    %150 = vector.multi_reduction <maximumf>, %149, %cst_56 [2] : vector<2x8x8xf32> to vector<2x8xf32>
    %151 = vector.shape_cast %150 : vector<2x8xf32> to vector<2x8x1xf32>
    %152 = vector.broadcast %151 : vector<2x8x1xf32> to vector<2x8x8xf32>
    %153 = arith.subf %149, %152 : vector<2x8x8xf32>
    %154 = math.exp %153 : vector<2x8x8xf32>
    %cst_57 = arith.constant dense<0.000000e+00> : vector<2x8xf32>
    %155 = vector.multi_reduction <add>, %154, %cst_57 [2] : vector<2x8x8xf32> to vector<2x8xf32>
    %156 = vector.shape_cast %155 : vector<2x8xf32> to vector<2x8x1xf32>
    %157 = tpu.reciprocal %156 {approx = true} : vector<2x8x1xf32> -> vector<2x8x1xf32>
    %158 = vector.broadcast %157 : vector<2x8x1xf32> to vector<2x8x8xf32>
    %159 = arith.mulf %154, %158 : vector<2x8x8xf32>
    "tpu.trace_start"() <{level = 10 : i32, message = "bqk,bkd->bqd"}> : () -> ()
    %cst_58 = arith.constant dense<0.000000e+00> : vector<2x8x8xf32>
    %160 = tpu.matmul %159, %143, %cst_58 {dimension_numbers = #tpu.dot_dimension_numbers<[2], [1], [1], [2], [0, 0, 0, 1, 1, 2], [0], [0]>} : vector<2x8x8xf32>, vector<2x8x8xf32>, vector<2x8x8xf32> -> vector<2x8x8xf32>
    "tpu.trace_stop"() : () -> ()
    %161 = vector.shape_cast %160 : vector<2x8x8xf32> to vector<16x8xf32>
    %162 = vector.extract_strided_slice %30 {offsets = [3, 0, 0], sizes = [1, 8, 32], strides = [1, 1, 1]} : vector<4x8x32xf32> to vector<1x8x32xf32>
    %163 = vector.shape_cast %162 : vector<1x8x32xf32> to vector<8x32xf32>
    %cst_59 = arith.constant dense<0.000000e+00> : vector<16x32xf32>
    %164 = tpu.matmul %161, %163, %cst_59 {dimension_numbers = #tpu.dot_dimension_numbers<[1], [0], [0], [1], [0, 0, 1, 1], [], []>} : vector<16x8xf32>, vector<8x32xf32>, vector<16x32xf32> -> vector<16x32xf32>
    %165 = arith.addf %131, %164 : vector<16x32xf32>
    %166 = arith.addf %7, %165 : vector<16x32xf32>
    %c0_60 = arith.constant 0 : index
    %c0_61 = arith.constant 0 : index
    %c0_62 = arith.constant 0 : index
    %167 = vector.load %arg10[%c0_60, %c0_61, %c0_62] : memref<2x1x32xf32, #tpu.memory_space<vmem>>, vector<1x1x32xf32>
    %168 = vector.shape_cast %167 : vector<1x1x32xf32> to vector<1x32xf32>
    %169 = arith.mulf %166, %166 : vector<16x32xf32>
    %cst_63 = arith.constant dense<0.000000e+00> : vector<16xf32>
    %170 = vector.multi_reduction <add>, %169, %cst_63 [1] : vector<16x32xf32> to vector<16xf32>
    %171 = vector.shape_cast %170 : vector<16xf32> to vector<16x1xf32>
    %cst_64 = arith.constant 3.200000e+01 : f32
    %172 = vector.broadcast %cst_64 : f32 to vector<16x1xf32>
    %173 = arith.divf %171, %172 : vector<16x1xf32>
    %cst_65 = arith.constant 9.99999997E-7 : f32
    %174 = vector.broadcast %cst_65 : f32 to vector<16x1xf32>
    %175 = arith.addf %173, %174 : vector<16x1xf32>
    %176 = math.rsqrt %175 : vector<16x1xf32>
    %177 = vector.broadcast %176 : vector<16x1xf32> to vector<16x32xf32>
    %178 = arith.mulf %166, %177 : vector<16x32xf32>
    %179 = vector.broadcast %168 : vector<1x32xf32> to vector<16x32xf32>
    %180 = arith.mulf %178, %179 : vector<16x32xf32>
    %c0_66 = arith.constant 0 : index
    %c0_67 = arith.constant 0 : index
    %c0_68 = arith.constant 0 : index
    %181 = vector.load %arg11[%c0_66, %c0_67, %c0_68] : memref<2x32x64xf32, #tpu.memory_space<vmem>>, vector<1x32x64xf32>
    %182 = vector.shape_cast %181 : vector<1x32x64xf32> to vector<32x64xf32>
    %cst_69 = arith.constant dense<0.000000e+00> : vector<16x64xf32>
    %183 = tpu.matmul %180, %182, %cst_69 {dimension_numbers = #tpu.dot_dimension_numbers<[1], [0], [0], [1], [0, 0, 1, 1], [], []>} : vector<16x32xf32>, vector<32x64xf32>, vector<16x64xf32> -> vector<16x64xf32>
    %cst_70 = arith.constant 0.000000e+00 : f32
    %184 = vector.broadcast %cst_70 : f32 to vector<16x64xf32>
    %185 = arith.maximumf %183, %184 : vector<16x64xf32>
    %c0_71 = arith.constant 0 : index
    %c0_72 = arith.constant 0 : index
    %c0_73 = arith.constant 0 : index
    %186 = vector.load %arg12[%c0_71, %c0_72, %c0_73] : memref<2x64x32xf32, #tpu.memory_space<vmem>>, vector<1x64x32xf32>
    %187 = vector.shape_cast %186 : vector<1x64x32xf32> to vector<64x32xf32>
    %cst_74 = arith.constant dense<0.000000e+00> : vector<16x32xf32>
    %188 = tpu.matmul %185, %187, %cst_74 {dimension_numbers = #tpu.dot_dimension_numbers<[1], [0], [0], [1], [0, 0, 1, 1], [], []>} : vector<16x64xf32>, vector<64x32xf32>, vector<16x32xf32> -> vector<16x32xf32>
    %189 = arith.addf %166, %188 : vector<16x32xf32>
    %c1 = arith.constant 1 : index
    %c0_75 = arith.constant 0 : index
    %c0_76 = arith.constant 0 : index
    %190 = vector.load %arg5[%c1, %c0_75, %c0_76] : memref<2x1x32xf32, #tpu.memory_space<vmem>>, vector<1x1x32xf32>
    %191 = vector.shape_cast %190 : vector<1x1x32xf32> to vector<1x32xf32>
    %192 = arith.mulf %189, %189 : vector<16x32xf32>
    %cst_77 = arith.constant dense<0.000000e+00> : vector<16xf32>
    %193 = vector.multi_reduction <add>, %192, %cst_77 [1] : vector<16x32xf32> to vector<16xf32>
    %194 = vector.shape_cast %193 : vector<16xf32> to vector<16x1xf32>
    %cst_78 = arith.constant 3.200000e+01 : f32
    %195 = vector.broadcast %cst_78 : f32 to vector<16x1xf32>
    %196 = arith.divf %194, %195 : vector<16x1xf32>
    %cst_79 = arith.constant 9.99999997E-7 : f32
    %197 = vector.broadcast %cst_79 : f32 to vector<16x1xf32>
    %198 = arith.addf %196, %197 : vector<16x1xf32>
    %199 = math.rsqrt %198 : vector<16x1xf32>
    %200 = vector.broadcast %199 : vector<16x1xf32> to vector<16x32xf32>
    %201 = arith.mulf %189, %200 : vector<16x32xf32>
    %202 = vector.broadcast %191 : vector<1x32xf32> to vector<16x32xf32>
    %203 = arith.mulf %201, %202 : vector<16x32xf32>
    %c1_80 = arith.constant 1 : index
    %c0_81 = arith.constant 0 : index
    %c0_82 = arith.constant 0 : index
    %c0_83 = arith.constant 0 : index
    %204 = vector.load %arg6[%c1_80, %c0_81, %c0_82, %c0_83] : memref<2x4x32x8xf32, #tpu.memory_space<vmem>>, vector<1x4x32x8xf32>
    %205 = vector.shape_cast %204 : vector<1x4x32x8xf32> to vector<4x32x8xf32>
    %c1_84 = arith.constant 1 : index
    %c0_85 = arith.constant 0 : index
    %c0_86 = arith.constant 0 : index
    %c0_87 = arith.constant 0 : index
    %206 = vector.load %arg7[%c1_84, %c0_85, %c0_86, %c0_87] : memref<2x4x32x8xf32, #tpu.memory_space<vmem>>, vector<1x4x32x8xf32>
    %207 = vector.shape_cast %206 : vector<1x4x32x8xf32> to vector<4x32x8xf32>
    %c1_88 = arith.constant 1 : index
    %c0_89 = arith.constant 0 : index
    %c0_90 = arith.constant 0 : index
    %c0_91 = arith.constant 0 : index
    %208 = vector.load %arg8[%c1_88, %c0_89, %c0_90, %c0_91] : memref<2x4x32x8xf32, #tpu.memory_space<vmem>>, vector<1x4x32x8xf32>
    %209 = vector.shape_cast %208 : vector<1x4x32x8xf32> to vector<4x32x8xf32>
    %c1_92 = arith.constant 1 : index
    %c0_93 = arith.constant 0 : index
    %c0_94 = arith.constant 0 : index
    %c0_95 = arith.constant 0 : index
    %210 = vector.load %arg9[%c1_92, %c0_93, %c0_94, %c0_95] : memref<2x4x8x32xf32, #tpu.memory_space<vmem>>, vector<1x4x8x32xf32>
    %211 = vector.shape_cast %210 : vector<1x4x8x32xf32> to vector<4x8x32xf32>
    %212 = vector.extract_strided_slice %205 {offsets = [0, 0, 0], sizes = [1, 32, 8], strides = [1, 1, 1]} : vector<4x32x8xf32> to vector<1x32x8xf32>
    %213 = vector.shape_cast %212 : vector<1x32x8xf32> to vector<32x8xf32>
    %cst_96 = arith.constant dense<0.000000e+00> : vector<16x8xf32>
    %214 = tpu.matmul %203, %213, %cst_96 {dimension_numbers = #tpu.dot_dimension_numbers<[1], [0], [0], [1], [0, 0, 1, 1], [], []>} : vector<16x32xf32>, vector<32x8xf32>, vector<16x8xf32> -> vector<16x8xf32>
    %215 = vector.shape_cast %214 : vector<16x8xf32> to vector<2x8x8xf32>
    %216 = vector.extract_strided_slice %207 {offsets = [0, 0, 0], sizes = [1, 32, 8], strides = [1, 1, 1]} : vector<4x32x8xf32> to vector<1x32x8xf32>
    %217 = vector.shape_cast %216 : vector<1x32x8xf32> to vector<32x8xf32>
    %cst_97 = arith.constant dense<0.000000e+00> : vector<16x8xf32>
    %218 = tpu.matmul %203, %217, %cst_97 {dimension_numbers = #tpu.dot_dimension_numbers<[1], [0], [0], [1], [0, 0, 1, 1], [], []>} : vector<16x32xf32>, vector<32x8xf32>, vector<16x8xf32> -> vector<16x8xf32>
    %219 = vector.shape_cast %218 : vector<16x8xf32> to vector<2x8x8xf32>
    %220 = vector.extract_strided_slice %209 {offsets = [0, 0, 0], sizes = [1, 32, 8], strides = [1, 1, 1]} : vector<4x32x8xf32> to vector<1x32x8xf32>
    %221 = vector.shape_cast %220 : vector<1x32x8xf32> to vector<32x8xf32>
    %cst_98 = arith.constant dense<0.000000e+00> : vector<16x8xf32>
    %222 = tpu.matmul %203, %221, %cst_98 {dimension_numbers = #tpu.dot_dimension_numbers<[1], [0], [0], [1], [0, 0, 1, 1], [], []>} : vector<16x32xf32>, vector<32x8xf32>, vector<16x8xf32> -> vector<16x8xf32>
    %223 = vector.shape_cast %222 : vector<16x8xf32> to vector<2x8x8xf32>
    "tpu.trace_start"() <{level = 10 : i32, message = "bqd,bkd->bqk"}> : () -> ()
    %cst_99 = arith.constant dense<0.000000e+00> : vector<2x8x8xf32>
    %224 = tpu.matmul %215, %219, %cst_99 {dimension_numbers = #tpu.dot_dimension_numbers<[2], [2], [1], [1], [0, 0, 0, 1, 1, 1], [0], [0]>} : vector<2x8x8xf32>, vector<2x8x8xf32>, vector<2x8x8xf32> -> vector<2x8x8xf32>
    "tpu.trace_stop"() : () -> ()
    %225 = vector.extract_strided_slice %8 {offsets = [0, 0, 0], sizes = [1, 8, 8], strides = [1, 1, 1]} : vector<4x8x8xf32> to vector<1x8x8xf32>
    %226 = vector.shape_cast %225 : vector<1x8x8xf32> to vector<8x8xf32>
    %227 = vector.shape_cast %226 : vector<8x8xf32> to vector<1x8x8xf32>
    %228 = vector.broadcast %227 : vector<1x8x8xf32> to vector<2x8x8xf32>
    %229 = arith.addf %224, %228 : vector<2x8x8xf32>
    %cst_100 = arith.constant dense<0xFF800000> : vector<2x8xf32>
    %230 = vector.multi_reduction <maximumf>, %229, %cst_100 [2] : vector<2x8x8xf32> to vector<2x8xf32>
    %231 = vector.shape_cast %230 : vector<2x8xf32> to vector<2x8x1xf32>
    %232 = vector.broadcast %231 : vector<2x8x1xf32> to vector<2x8x8xf32>
    %233 = arith.subf %229, %232 : vector<2x8x8xf32>
    %234 = math.exp %233 : vector<2x8x8xf32>
    %cst_101 = arith.constant dense<0.000000e+00> : vector<2x8xf32>
    %235 = vector.multi_reduction <add>, %234, %cst_101 [2] : vector<2x8x8xf32> to vector<2x8xf32>
    %236 = vector.shape_cast %235 : vector<2x8xf32> to vector<2x8x1xf32>
    %237 = tpu.reciprocal %236 {approx = true} : vector<2x8x1xf32> -> vector<2x8x1xf32>
    %238 = vector.broadcast %237 : vector<2x8x1xf32> to vector<2x8x8xf32>
    %239 = arith.mulf %234, %238 : vector<2x8x8xf32>
    "tpu.trace_start"() <{level = 10 : i32, message = "bqk,bkd->bqd"}> : () -> ()
    %cst_102 = arith.constant dense<0.000000e+00> : vector<2x8x8xf32>
    %240 = tpu.matmul %239, %223, %cst_102 {dimension_numbers = #tpu.dot_dimension_numbers<[2], [1], [1], [2], [0, 0, 0, 1, 1, 2], [0], [0]>} : vector<2x8x8xf32>, vector<2x8x8xf32>, vector<2x8x8xf32> -> vector<2x8x8xf32>
    "tpu.trace_stop"() : () -> ()
    %241 = vector.shape_cast %240 : vector<2x8x8xf32> to vector<16x8xf32>
    %242 = vector.extract_strided_slice %211 {offsets = [0, 0, 0], sizes = [1, 8, 32], strides = [1, 1, 1]} : vector<4x8x32xf32> to vector<1x8x32xf32>
    %243 = vector.shape_cast %242 : vector<1x8x32xf32> to vector<8x32xf32>
    %cst_103 = arith.constant dense<0.000000e+00> : vector<16x32xf32>
    %244 = tpu.matmul %241, %243, %cst_103 {dimension_numbers = #tpu.dot_dimension_numbers<[1], [0], [0], [1], [0, 0, 1, 1], [], []>} : vector<16x8xf32>, vector<8x32xf32>, vector<16x32xf32> -> vector<16x32xf32>
    %245 = vector.extract_strided_slice %205 {offsets = [1, 0, 0], sizes = [1, 32, 8], strides = [1, 1, 1]} : vector<4x32x8xf32> to vector<1x32x8xf32>
    %246 = vector.shape_cast %245 : vector<1x32x8xf32> to vector<32x8xf32>
    %cst_104 = arith.constant dense<0.000000e+00> : vector<16x8xf32>
    %247 = tpu.matmul %203, %246, %cst_104 {dimension_numbers = #tpu.dot_dimension_numbers<[1], [0], [0], [1], [0, 0, 1, 1], [], []>} : vector<16x32xf32>, vector<32x8xf32>, vector<16x8xf32> -> vector<16x8xf32>
    %248 = vector.shape_cast %247 : vector<16x8xf32> to vector<2x8x8xf32>
    %249 = vector.extract_strided_slice %207 {offsets = [1, 0, 0], sizes = [1, 32, 8], strides = [1, 1, 1]} : vector<4x32x8xf32> to vector<1x32x8xf32>
    %250 = vector.shape_cast %249 : vector<1x32x8xf32> to vector<32x8xf32>
    %cst_105 = arith.constant dense<0.000000e+00> : vector<16x8xf32>
    %251 = tpu.matmul %203, %250, %cst_105 {dimension_numbers = #tpu.dot_dimension_numbers<[1], [0], [0], [1], [0, 0, 1, 1], [], []>} : vector<16x32xf32>, vector<32x8xf32>, vector<16x8xf32> -> vector<16x8xf32>
    %252 = vector.shape_cast %251 : vector<16x8xf32> to vector<2x8x8xf32>
    %253 = vector.extract_strided_slice %209 {offsets = [1, 0, 0], sizes = [1, 32, 8], strides = [1, 1, 1]} : vector<4x32x8xf32> to vector<1x32x8xf32>
    %254 = vector.shape_cast %253 : vector<1x32x8xf32> to vector<32x8xf32>
    %cst_106 = arith.constant dense<0.000000e+00> : vector<16x8xf32>
    %255 = tpu.matmul %203, %254, %cst_106 {dimension_numbers = #tpu.dot_dimension_numbers<[1], [0], [0], [1], [0, 0, 1, 1], [], []>} : vector<16x32xf32>, vector<32x8xf32>, vector<16x8xf32> -> vector<16x8xf32>
    %256 = vector.shape_cast %255 : vector<16x8xf32> to vector<2x8x8xf32>
    "tpu.trace_start"() <{level = 10 : i32, message = "bqd,bkd->bqk"}> : () -> ()
    %cst_107 = arith.constant dense<0.000000e+00> : vector<2x8x8xf32>
    %257 = tpu.matmul %248, %252, %cst_107 {dimension_numbers = #tpu.dot_dimension_numbers<[2], [2], [1], [1], [0, 0, 0, 1, 1, 1], [0], [0]>} : vector<2x8x8xf32>, vector<2x8x8xf32>, vector<2x8x8xf32> -> vector<2x8x8xf32>
    "tpu.trace_stop"() : () -> ()
    %258 = vector.extract_strided_slice %8 {offsets = [1, 0, 0], sizes = [1, 8, 8], strides = [1, 1, 1]} : vector<4x8x8xf32> to vector<1x8x8xf32>
    %259 = vector.shape_cast %258 : vector<1x8x8xf32> to vector<8x8xf32>
    %260 = vector.shape_cast %259 : vector<8x8xf32> to vector<1x8x8xf32>
    %261 = vector.broadcast %260 : vector<1x8x8xf32> to vector<2x8x8xf32>
    %262 = arith.addf %257, %261 : vector<2x8x8xf32>
    %cst_108 = arith.constant dense<0xFF800000> : vector<2x8xf32>
    %263 = vector.multi_reduction <maximumf>, %262, %cst_108 [2] : vector<2x8x8xf32> to vector<2x8xf32>
    %264 = vector.shape_cast %263 : vector<2x8xf32> to vector<2x8x1xf32>
    %265 = vector.broadcast %264 : vector<2x8x1xf32> to vector<2x8x8xf32>
    %266 = arith.subf %262, %265 : vector<2x8x8xf32>
    %267 = math.exp %266 : vector<2x8x8xf32>
    %cst_109 = arith.constant dense<0.000000e+00> : vector<2x8xf32>
    %268 = vector.multi_reduction <add>, %267, %cst_109 [2] : vector<2x8x8xf32> to vector<2x8xf32>
    %269 = vector.shape_cast %268 : vector<2x8xf32> to vector<2x8x1xf32>
    %270 = tpu.reciprocal %269 {approx = true} : vector<2x8x1xf32> -> vector<2x8x1xf32>
    %271 = vector.broadcast %270 : vector<2x8x1xf32> to vector<2x8x8xf32>
    %272 = arith.mulf %267, %271 : vector<2x8x8xf32>
    "tpu.trace_start"() <{level = 10 : i32, message = "bqk,bkd->bqd"}> : () -> ()
    %cst_110 = arith.constant dense<0.000000e+00> : vector<2x8x8xf32>
    %273 = tpu.matmul %272, %256, %cst_110 {dimension_numbers = #tpu.dot_dimension_numbers<[2], [1], [1], [2], [0, 0, 0, 1, 1, 2], [0], [0]>} : vector<2x8x8xf32>, vector<2x8x8xf32>, vector<2x8x8xf32> -> vector<2x8x8xf32>
    "tpu.trace_stop"() : () -> ()
    %274 = vector.shape_cast %273 : vector<2x8x8xf32> to vector<16x8xf32>
    %275 = vector.extract_strided_slice %211 {offsets = [1, 0, 0], sizes = [1, 8, 32], strides = [1, 1, 1]} : vector<4x8x32xf32> to vector<1x8x32xf32>
    %276 = vector.shape_cast %275 : vector<1x8x32xf32> to vector<8x32xf32>
    %cst_111 = arith.constant dense<0.000000e+00> : vector<16x32xf32>
    %277 = tpu.matmul %274, %276, %cst_111 {dimension_numbers = #tpu.dot_dimension_numbers<[1], [0], [0], [1], [0, 0, 1, 1], [], []>} : vector<16x8xf32>, vector<8x32xf32>, vector<16x32xf32> -> vector<16x32xf32>
    %278 = arith.addf %244, %277 : vector<16x32xf32>
    %279 = vector.extract_strided_slice %205 {offsets = [2, 0, 0], sizes = [1, 32, 8], strides = [1, 1, 1]} : vector<4x32x8xf32> to vector<1x32x8xf32>
    %280 = vector.shape_cast %279 : vector<1x32x8xf32> to vector<32x8xf32>
    %cst_112 = arith.constant dense<0.000000e+00> : vector<16x8xf32>
    %281 = tpu.matmul %203, %280, %cst_112 {dimension_numbers = #tpu.dot_dimension_numbers<[1], [0], [0], [1], [0, 0, 1, 1], [], []>} : vector<16x32xf32>, vector<32x8xf32>, vector<16x8xf32> -> vector<16x8xf32>
    %282 = vector.shape_cast %281 : vector<16x8xf32> to vector<2x8x8xf32>
    %283 = vector.extract_strided_slice %207 {offsets = [2, 0, 0], sizes = [1, 32, 8], strides = [1, 1, 1]} : vector<4x32x8xf32> to vector<1x32x8xf32>
    %284 = vector.shape_cast %283 : vector<1x32x8xf32> to vector<32x8xf32>
    %cst_113 = arith.constant dense<0.000000e+00> : vector<16x8xf32>
    %285 = tpu.matmul %203, %284, %cst_113 {dimension_numbers = #tpu.dot_dimension_numbers<[1], [0], [0], [1], [0, 0, 1, 1], [], []>} : vector<16x32xf32>, vector<32x8xf32>, vector<16x8xf32> -> vector<16x8xf32>
    %286 = vector.shape_cast %285 : vector<16x8xf32> to vector<2x8x8xf32>
    %287 = vector.extract_strided_slice %209 {offsets = [2, 0, 0], sizes = [1, 32, 8], strides = [1, 1, 1]} : vector<4x32x8xf32> to vector<1x32x8xf32>
    %288 = vector.shape_cast %287 : vector<1x32x8xf32> to vector<32x8xf32>
    %cst_114 = arith.constant dense<0.000000e+00> : vector<16x8xf32>
    %289 = tpu.matmul %203, %288, %cst_114 {dimension_numbers = #tpu.dot_dimension_numbers<[1], [0], [0], [1], [0, 0, 1, 1], [], []>} : vector<16x32xf32>, vector<32x8xf32>, vector<16x8xf32> -> vector<16x8xf32>
    %290 = vector.shape_cast %289 : vector<16x8xf32> to vector<2x8x8xf32>
    "tpu.trace_start"() <{level = 10 : i32, message = "bqd,bkd->bqk"}> : () -> ()
    %cst_115 = arith.constant dense<0.000000e+00> : vector<2x8x8xf32>
    %291 = tpu.matmul %282, %286, %cst_115 {dimension_numbers = #tpu.dot_dimension_numbers<[2], [2], [1], [1], [0, 0, 0, 1, 1, 1], [0], [0]>} : vector<2x8x8xf32>, vector<2x8x8xf32>, vector<2x8x8xf32> -> vector<2x8x8xf32>
    "tpu.trace_stop"() : () -> ()
    %292 = vector.extract_strided_slice %8 {offsets = [2, 0, 0], sizes = [1, 8, 8], strides = [1, 1, 1]} : vector<4x8x8xf32> to vector<1x8x8xf32>
    %293 = vector.shape_cast %292 : vector<1x8x8xf32> to vector<8x8xf32>
    %294 = vector.shape_cast %293 : vector<8x8xf32> to vector<1x8x8xf32>
    %295 = vector.broadcast %294 : vector<1x8x8xf32> to vector<2x8x8xf32>
    %296 = arith.addf %291, %295 : vector<2x8x8xf32>
    %cst_116 = arith.constant dense<0xFF800000> : vector<2x8xf32>
    %297 = vector.multi_reduction <maximumf>, %296, %cst_116 [2] : vector<2x8x8xf32> to vector<2x8xf32>
    %298 = vector.shape_cast %297 : vector<2x8xf32> to vector<2x8x1xf32>
    %299 = vector.broadcast %298 : vector<2x8x1xf32> to vector<2x8x8xf32>
    %300 = arith.subf %296, %299 : vector<2x8x8xf32>
    %301 = math.exp %300 : vector<2x8x8xf32>
    %cst_117 = arith.constant dense<0.000000e+00> : vector<2x8xf32>
    %302 = vector.multi_reduction <add>, %301, %cst_117 [2] : vector<2x8x8xf32> to vector<2x8xf32>
    %303 = vector.shape_cast %302 : vector<2x8xf32> to vector<2x8x1xf32>
    %304 = tpu.reciprocal %303 {approx = true} : vector<2x8x1xf32> -> vector<2x8x1xf32>
    %305 = vector.broadcast %304 : vector<2x8x1xf32> to vector<2x8x8xf32>
    %306 = arith.mulf %301, %305 : vector<2x8x8xf32>
    "tpu.trace_start"() <{level = 10 : i32, message = "bqk,bkd->bqd"}> : () -> ()
    %cst_118 = arith.constant dense<0.000000e+00> : vector<2x8x8xf32>
    %307 = tpu.matmul %306, %290, %cst_118 {dimension_numbers = #tpu.dot_dimension_numbers<[2], [1], [1], [2], [0, 0, 0, 1, 1, 2], [0], [0]>} : vector<2x8x8xf32>, vector<2x8x8xf32>, vector<2x8x8xf32> -> vector<2x8x8xf32>
    "tpu.trace_stop"() : () -> ()
    %308 = vector.shape_cast %307 : vector<2x8x8xf32> to vector<16x8xf32>
    %309 = vector.extract_strided_slice %211 {offsets = [2, 0, 0], sizes = [1, 8, 32], strides = [1, 1, 1]} : vector<4x8x32xf32> to vector<1x8x32xf32>
    %310 = vector.shape_cast %309 : vector<1x8x32xf32> to vector<8x32xf32>
    %cst_119 = arith.constant dense<0.000000e+00> : vector<16x32xf32>
    %311 = tpu.matmul %308, %310, %cst_119 {dimension_numbers = #tpu.dot_dimension_numbers<[1], [0], [0], [1], [0, 0, 1, 1], [], []>} : vector<16x8xf32>, vector<8x32xf32>, vector<16x32xf32> -> vector<16x32xf32>
    %312 = arith.addf %278, %311 : vector<16x32xf32>
    %313 = vector.extract_strided_slice %205 {offsets = [3, 0, 0], sizes = [1, 32, 8], strides = [1, 1, 1]} : vector<4x32x8xf32> to vector<1x32x8xf32>
    %314 = vector.shape_cast %313 : vector<1x32x8xf32> to vector<32x8xf32>
    %cst_120 = arith.constant dense<0.000000e+00> : vector<16x8xf32>
    %315 = tpu.matmul %203, %314, %cst_120 {dimension_numbers = #tpu.dot_dimension_numbers<[1], [0], [0], [1], [0, 0, 1, 1], [], []>} : vector<16x32xf32>, vector<32x8xf32>, vector<16x8xf32> -> vector<16x8xf32>
    %316 = vector.shape_cast %315 : vector<16x8xf32> to vector<2x8x8xf32>
    %317 = vector.extract_strided_slice %207 {offsets = [3, 0, 0], sizes = [1, 32, 8], strides = [1, 1, 1]} : vector<4x32x8xf32> to vector<1x32x8xf32>
    %318 = vector.shape_cast %317 : vector<1x32x8xf32> to vector<32x8xf32>
    %cst_121 = arith.constant dense<0.000000e+00> : vector<16x8xf32>
    %319 = tpu.matmul %203, %318, %cst_121 {dimension_numbers = #tpu.dot_dimension_numbers<[1], [0], [0], [1], [0, 0, 1, 1], [], []>} : vector<16x32xf32>, vector<32x8xf32>, vector<16x8xf32> -> vector<16x8xf32>
    %320 = vector.shape_cast %319 : vector<16x8xf32> to vector<2x8x8xf32>
    %321 = vector.extract_strided_slice %209 {offsets = [3, 0, 0], sizes = [1, 32, 8], strides = [1, 1, 1]} : vector<4x32x8xf32> to vector<1x32x8xf32>
    %322 = vector.shape_cast %321 : vector<1x32x8xf32> to vector<32x8xf32>
    %cst_122 = arith.constant dense<0.000000e+00> : vector<16x8xf32>
    %323 = tpu.matmul %203, %322, %cst_122 {dimension_numbers = #tpu.dot_dimension_numbers<[1], [0], [0], [1], [0, 0, 1, 1], [], []>} : vector<16x32xf32>, vector<32x8xf32>, vector<16x8xf32> -> vector<16x8xf32>
    %324 = vector.shape_cast %323 : vector<16x8xf32> to vector<2x8x8xf32>
    "tpu.trace_start"() <{level = 10 : i32, message = "bqd,bkd->bqk"}> : () -> ()
    %cst_123 = arith.constant dense<0.000000e+00> : vector<2x8x8xf32>
    %325 = tpu.matmul %316, %320, %cst_123 {dimension_numbers = #tpu.dot_dimension_numbers<[2], [2], [1], [1], [0, 0, 0, 1, 1, 1], [0], [0]>} : vector<2x8x8xf32>, vector<2x8x8xf32>, vector<2x8x8xf32> -> vector<2x8x8xf32>
    "tpu.trace_stop"() : () -> ()
    %326 = vector.extract_strided_slice %8 {offsets = [3, 0, 0], sizes = [1, 8, 8], strides = [1, 1, 1]} : vector<4x8x8xf32> to vector<1x8x8xf32>
    %327 = vector.shape_cast %326 : vector<1x8x8xf32> to vector<8x8xf32>
    %328 = vector.shape_cast %327 : vector<8x8xf32> to vector<1x8x8xf32>
    %329 = vector.broadcast %328 : vector<1x8x8xf32> to vector<2x8x8xf32>
    %330 = arith.addf %325, %329 : vector<2x8x8xf32>
    %cst_124 = arith.constant dense<0xFF800000> : vector<2x8xf32>
    %331 = vector.multi_reduction <maximumf>, %330, %cst_124 [2] : vector<2x8x8xf32> to vector<2x8xf32>
    %332 = vector.shape_cast %331 : vector<2x8xf32> to vector<2x8x1xf32>
    %333 = vector.broadcast %332 : vector<2x8x1xf32> to vector<2x8x8xf32>
    %334 = arith.subf %330, %333 : vector<2x8x8xf32>
    %335 = math.exp %334 : vector<2x8x8xf32>
    %cst_125 = arith.constant dense<0.000000e+00> : vector<2x8xf32>
    %336 = vector.multi_reduction <add>, %335, %cst_125 [2] : vector<2x8x8xf32> to vector<2x8xf32>
    %337 = vector.shape_cast %336 : vector<2x8xf32> to vector<2x8x1xf32>
    %338 = tpu.reciprocal %337 {approx = true} : vector<2x8x1xf32> -> vector<2x8x1xf32>
    %339 = vector.broadcast %338 : vector<2x8x1xf32> to vector<2x8x8xf32>
    %340 = arith.mulf %335, %339 : vector<2x8x8xf32>
    "tpu.trace_start"() <{level = 10 : i32, message = "bqk,bkd->bqd"}> : () -> ()
    %cst_126 = arith.constant dense<0.000000e+00> : vector<2x8x8xf32>
    %341 = tpu.matmul %340, %324, %cst_126 {dimension_numbers = #tpu.dot_dimension_numbers<[2], [1], [1], [2], [0, 0, 0, 1, 1, 2], [0], [0]>} : vector<2x8x8xf32>, vector<2x8x8xf32>, vector<2x8x8xf32> -> vector<2x8x8xf32>
    "tpu.trace_stop"() : () -> ()
    %342 = vector.shape_cast %341 : vector<2x8x8xf32> to vector<16x8xf32>
    %343 = vector.extract_strided_slice %211 {offsets = [3, 0, 0], sizes = [1, 8, 32], strides = [1, 1, 1]} : vector<4x8x32xf32> to vector<1x8x32xf32>
    %344 = vector.shape_cast %343 : vector<1x8x32xf32> to vector<8x32xf32>
    %cst_127 = arith.constant dense<0.000000e+00> : vector<16x32xf32>
    %345 = tpu.matmul %342, %344, %cst_127 {dimension_numbers = #tpu.dot_dimension_numbers<[1], [0], [0], [1], [0, 0, 1, 1], [], []>} : vector<16x8xf32>, vector<8x32xf32>, vector<16x32xf32> -> vector<16x32xf32>
    %346 = arith.addf %312, %345 : vector<16x32xf32>
    %347 = arith.addf %189, %346 : vector<16x32xf32>
    %c1_128 = arith.constant 1 : index
    %c0_129 = arith.constant 0 : index
    %c0_130 = arith.constant 0 : index
    %348 = vector.load %arg10[%c1_128, %c0_129, %c0_130] : memref<2x1x32xf32, #tpu.memory_space<vmem>>, vector<1x1x32xf32>
    %349 = vector.shape_cast %348 : vector<1x1x32xf32> to vector<1x32xf32>
    %350 = arith.mulf %347, %347 : vector<16x32xf32>
    %cst_131 = arith.constant dense<0.000000e+00> : vector<16xf32>
    %351 = vector.multi_reduction <add>, %350, %cst_131 [1] : vector<16x32xf32> to vector<16xf32>
    %352 = vector.shape_cast %351 : vector<16xf32> to vector<16x1xf32>
    %cst_132 = arith.constant 3.200000e+01 : f32
    %353 = vector.broadcast %cst_132 : f32 to vector<16x1xf32>
    %354 = arith.divf %352, %353 : vector<16x1xf32>
    %cst_133 = arith.constant 9.99999997E-7 : f32
    %355 = vector.broadcast %cst_133 : f32 to vector<16x1xf32>
    %356 = arith.addf %354, %355 : vector<16x1xf32>
    %357 = math.rsqrt %356 : vector<16x1xf32>
    %358 = vector.broadcast %357 : vector<16x1xf32> to vector<16x32xf32>
    %359 = arith.mulf %347, %358 : vector<16x32xf32>
    %360 = vector.broadcast %349 : vector<1x32xf32> to vector<16x32xf32>
    %361 = arith.mulf %359, %360 : vector<16x32xf32>
    %c1_134 = arith.constant 1 : index
    %c0_135 = arith.constant 0 : index
    %c0_136 = arith.constant 0 : index
    %362 = vector.load %arg11[%c1_134, %c0_135, %c0_136] : memref<2x32x64xf32, #tpu.memory_space<vmem>>, vector<1x32x64xf32>
    %363 = vector.shape_cast %362 : vector<1x32x64xf32> to vector<32x64xf32>
    %cst_137 = arith.constant dense<0.000000e+00> : vector<16x64xf32>
    %364 = tpu.matmul %361, %363, %cst_137 {dimension_numbers = #tpu.dot_dimension_numbers<[1], [0], [0], [1], [0, 0, 1, 1], [], []>} : vector<16x32xf32>, vector<32x64xf32>, vector<16x64xf32> -> vector<16x64xf32>
    %cst_138 = arith.constant 0.000000e+00 : f32
    %365 = vector.broadcast %cst_138 : f32 to vector<16x64xf32>
    %366 = arith.maximumf %364, %365 : vector<16x64xf32>
    %c1_139 = arith.constant 1 : index
    %c0_140 = arith.constant 0 : index
    %c0_141 = arith.constant 0 : index
    %367 = vector.load %arg12[%c1_139, %c0_140, %c0_141] : memref<2x64x32xf32, #tpu.memory_space<vmem>>, vector<1x64x32xf32>
    %368 = vector.shape_cast %367 : vector<1x64x32xf32> to vector<64x32xf32>
    %cst_142 = arith.constant dense<0.000000e+00> : vector<16x32xf32>
    %369 = tpu.matmul %366, %368, %cst_142 {dimension_numbers = #tpu.dot_dimension_numbers<[1], [0], [0], [1], [0, 0, 1, 1], [], []>} : vector<16x64xf32>, vector<64x32xf32>, vector<16x32xf32> -> vector<16x32xf32>
    %370 = arith.addf %347, %369 : vector<16x32xf32>
    %c0_143 = arith.constant 0 : index
    %c0_144 = arith.constant 0 : index
    %371 = vector.load %arg13[%c0_143, %c0_144] : memref<1x32xf32, #tpu.memory_space<vmem>>, vector<1x32xf32>
    %372 = arith.mulf %370, %370 : vector<16x32xf32>
    %cst_145 = arith.constant dense<0.000000e+00> : vector<16xf32>
    %373 = vector.multi_reduction <add>, %372, %cst_145 [1] : vector<16x32xf32> to vector<16xf32>
    %374 = vector.shape_cast %373 : vector<16xf32> to vector<16x1xf32>
    %cst_146 = arith.constant 3.200000e+01 : f32
    %375 = vector.broadcast %cst_146 : f32 to vector<16x1xf32>
    %376 = arith.divf %374, %375 : vector<16x1xf32>
    %cst_147 = arith.constant 9.99999997E-7 : f32
    %377 = vector.broadcast %cst_147 : f32 to vector<16x1xf32>
    %378 = arith.addf %376, %377 : vector<16x1xf32>
    %379 = math.rsqrt %378 : vector<16x1xf32>
    %380 = vector.broadcast %379 : vector<16x1xf32> to vector<16x32xf32>
    %381 = arith.mulf %370, %380 : vector<16x32xf32>
    %382 = vector.broadcast %371 : vector<1x32xf32> to vector<16x32xf32>
    %383 = arith.mulf %381, %382 : vector<16x32xf32>
    %c0_148 = arith.constant 0 : index
    %c0_149 = arith.constant 0 : index
    %384 = vector.load %arg1[%c0_148, %c0_149] : memref<16x1xi32, #tpu.memory_space<vmem>>, vector<16x1xi32>
    %385 = tpu.iota {dimensions = array<i32: 1>} : vector<16x128xi32>
    %386 = vector.broadcast %384 : vector<16x1xi32> to vector<16x128xi32>
    %387 = arith.cmpi eq, %385, %386 : vector<16x128xi32>
    %388 = arith.extui %387 : vector<16x128xi1> to vector<16x128xi32>
    %389 = arith.sitofp %388 : vector<16x128xi32> to vector<16x128xf32>
    %cst_150 = arith.constant dense<0.000000e+00> : vector<16x32xf32>
    %390 = tpu.matmul %389, %0, %cst_150 {dimension_numbers = #tpu.dot_dimension_numbers<[1], [0], [0], [1], [0, 0, 1, 1], [], []>} : vector<16x128xf32>, vector<128x32xf32>, vector<16x32xf32> -> vector<16x32xf32>
    %c0_151 = arith.constant 0 : index
    %c0_152 = arith.constant 0 : index
    %c0_153 = arith.constant 0 : index
    %391 = vector.load %arg4[%c0_151, %c0_152, %c0_153] : memref<4x8x8xf32, #tpu.memory_space<vmem>>, vector<4x8x8xf32>
    %c0_154 = arith.constant 0 : index
    %c0_155 = arith.constant 0 : index
    %c0_156 = arith.constant 0 : index
    %392 = vector.load %arg14[%c0_154, %c0_155, %c0_156] : memref<2x1x32xf32, #tpu.memory_space<vmem>>, vector<1x1x32xf32>
    %393 = vector.shape_cast %392 : vector<1x1x32xf32> to vector<1x32xf32>
    %394 = arith.mulf %390, %390 : vector<16x32xf32>
    %cst_157 = arith.constant dense<0.000000e+00> : vector<16xf32>
    %395 = vector.multi_reduction <add>, %394, %cst_157 [1] : vector<16x32xf32> to vector<16xf32>
    %396 = vector.shape_cast %395 : vector<16xf32> to vector<16x1xf32>
    %cst_158 = arith.constant 3.200000e+01 : f32
    %397 = vector.broadcast %cst_158 : f32 to vector<16x1xf32>
    %398 = arith.divf %396, %397 : vector<16x1xf32>
    %cst_159 = arith.constant 9.99999997E-7 : f32
    %399 = vector.broadcast %cst_159 : f32 to vector<16x1xf32>
    %400 = arith.addf %398, %399 : vector<16x1xf32>
    %401 = math.rsqrt %400 : vector<16x1xf32>
    %402 = vector.broadcast %401 : vector<16x1xf32> to vector<16x32xf32>
    %403 = arith.mulf %390, %402 : vector<16x32xf32>
    %404 = vector.broadcast %393 : vector<1x32xf32> to vector<16x32xf32>
    %405 = arith.mulf %403, %404 : vector<16x32xf32>
    %c0_160 = arith.constant 0 : index
    %c0_161 = arith.constant 0 : index
    %c0_162 = arith.constant 0 : index
    %c0_163 = arith.constant 0 : index
    %406 = vector.load %arg15[%c0_160, %c0_161, %c0_162, %c0_163] : memref<2x4x32x8xf32, #tpu.memory_space<vmem>>, vector<1x4x32x8xf32>
    %407 = vector.shape_cast %406 : vector<1x4x32x8xf32> to vector<4x32x8xf32>
    %c0_164 = arith.constant 0 : index
    %c0_165 = arith.constant 0 : index
    %c0_166 = arith.constant 0 : index
    %c0_167 = arith.constant 0 : index
    %408 = vector.load %arg16[%c0_164, %c0_165, %c0_166, %c0_167] : memref<2x4x32x8xf32, #tpu.memory_space<vmem>>, vector<1x4x32x8xf32>
    %409 = vector.shape_cast %408 : vector<1x4x32x8xf32> to vector<4x32x8xf32>
    %c0_168 = arith.constant 0 : index
    %c0_169 = arith.constant 0 : index
    %c0_170 = arith.constant 0 : index
    %c0_171 = arith.constant 0 : index
    %410 = vector.load %arg17[%c0_168, %c0_169, %c0_170, %c0_171] : memref<2x4x32x8xf32, #tpu.memory_space<vmem>>, vector<1x4x32x8xf32>
    %411 = vector.shape_cast %410 : vector<1x4x32x8xf32> to vector<4x32x8xf32>
    %c0_172 = arith.constant 0 : index
    %c0_173 = arith.constant 0 : index
    %c0_174 = arith.constant 0 : index
    %c0_175 = arith.constant 0 : index
    %412 = vector.load %arg18[%c0_172, %c0_173, %c0_174, %c0_175] : memref<2x4x8x32xf32, #tpu.memory_space<vmem>>, vector<1x4x8x32xf32>
    %413 = vector.shape_cast %412 : vector<1x4x8x32xf32> to vector<4x8x32xf32>
    %414 = vector.extract_strided_slice %407 {offsets = [0, 0, 0], sizes = [1, 32, 8], strides = [1, 1, 1]} : vector<4x32x8xf32> to vector<1x32x8xf32>
    %415 = vector.shape_cast %414 : vector<1x32x8xf32> to vector<32x8xf32>
    %cst_176 = arith.constant dense<0.000000e+00> : vector<16x8xf32>
    %416 = tpu.matmul %405, %415, %cst_176 {dimension_numbers = #tpu.dot_dimension_numbers<[1], [0], [0], [1], [0, 0, 1, 1], [], []>} : vector<16x32xf32>, vector<32x8xf32>, vector<16x8xf32> -> vector<16x8xf32>
    %417 = vector.shape_cast %416 : vector<16x8xf32> to vector<2x8x8xf32>
    %418 = vector.extract_strided_slice %409 {offsets = [0, 0, 0], sizes = [1, 32, 8], strides = [1, 1, 1]} : vector<4x32x8xf32> to vector<1x32x8xf32>
    %419 = vector.shape_cast %418 : vector<1x32x8xf32> to vector<32x8xf32>
    %cst_177 = arith.constant dense<0.000000e+00> : vector<16x8xf32>
    %420 = tpu.matmul %405, %419, %cst_177 {dimension_numbers = #tpu.dot_dimension_numbers<[1], [0], [0], [1], [0, 0, 1, 1], [], []>} : vector<16x32xf32>, vector<32x8xf32>, vector<16x8xf32> -> vector<16x8xf32>
    %421 = vector.shape_cast %420 : vector<16x8xf32> to vector<2x8x8xf32>
    %422 = vector.extract_strided_slice %411 {offsets = [0, 0, 0], sizes = [1, 32, 8], strides = [1, 1, 1]} : vector<4x32x8xf32> to vector<1x32x8xf32>
    %423 = vector.shape_cast %422 : vector<1x32x8xf32> to vector<32x8xf32>
    %cst_178 = arith.constant dense<0.000000e+00> : vector<16x8xf32>
    %424 = tpu.matmul %405, %423, %cst_178 {dimension_numbers = #tpu.dot_dimension_numbers<[1], [0], [0], [1], [0, 0, 1, 1], [], []>} : vector<16x32xf32>, vector<32x8xf32>, vector<16x8xf32> -> vector<16x8xf32>
    %425 = vector.shape_cast %424 : vector<16x8xf32> to vector<2x8x8xf32>
    "tpu.trace_start"() <{level = 10 : i32, message = "bqd,bkd->bqk"}> : () -> ()
    %cst_179 = arith.constant dense<0.000000e+00> : vector<2x8x8xf32>
    %426 = tpu.matmul %417, %421, %cst_179 {dimension_numbers = #tpu.dot_dimension_numbers<[2], [2], [1], [1], [0, 0, 0, 1, 1, 1], [0], [0]>} : vector<2x8x8xf32>, vector<2x8x8xf32>, vector<2x8x8xf32> -> vector<2x8x8xf32>
    "tpu.trace_stop"() : () -> ()
    %427 = vector.extract_strided_slice %391 {offsets = [0, 0, 0], sizes = [1, 8, 8], strides = [1, 1, 1]} : vector<4x8x8xf32> to vector<1x8x8xf32>
    %428 = vector.shape_cast %427 : vector<1x8x8xf32> to vector<8x8xf32>
    %429 = vector.shape_cast %428 : vector<8x8xf32> to vector<1x8x8xf32>
    %430 = vector.broadcast %429 : vector<1x8x8xf32> to vector<2x8x8xf32>
    %431 = arith.addf %426, %430 : vector<2x8x8xf32>
    %cst_180 = arith.constant dense<0xFF800000> : vector<2x8xf32>
    %432 = vector.multi_reduction <maximumf>, %431, %cst_180 [2] : vector<2x8x8xf32> to vector<2x8xf32>
    %433 = vector.shape_cast %432 : vector<2x8xf32> to vector<2x8x1xf32>
    %434 = vector.broadcast %433 : vector<2x8x1xf32> to vector<2x8x8xf32>
    %435 = arith.subf %431, %434 : vector<2x8x8xf32>
    %436 = math.exp %435 : vector<2x8x8xf32>
    %cst_181 = arith.constant dense<0.000000e+00> : vector<2x8xf32>
    %437 = vector.multi_reduction <add>, %436, %cst_181 [2] : vector<2x8x8xf32> to vector<2x8xf32>
    %438 = vector.shape_cast %437 : vector<2x8xf32> to vector<2x8x1xf32>
    %439 = tpu.reciprocal %438 {approx = true} : vector<2x8x1xf32> -> vector<2x8x1xf32>
    %440 = vector.broadcast %439 : vector<2x8x1xf32> to vector<2x8x8xf32>
    %441 = arith.mulf %436, %440 : vector<2x8x8xf32>
    "tpu.trace_start"() <{level = 10 : i32, message = "bqk,bkd->bqd"}> : () -> ()
    %cst_182 = arith.constant dense<0.000000e+00> : vector<2x8x8xf32>
    %442 = tpu.matmul %441, %425, %cst_182 {dimension_numbers = #tpu.dot_dimension_numbers<[2], [1], [1], [2], [0, 0, 0, 1, 1, 2], [0], [0]>} : vector<2x8x8xf32>, vector<2x8x8xf32>, vector<2x8x8xf32> -> vector<2x8x8xf32>
    "tpu.trace_stop"() : () -> ()
    %443 = vector.shape_cast %442 : vector<2x8x8xf32> to vector<16x8xf32>
    %444 = vector.extract_strided_slice %413 {offsets = [0, 0, 0], sizes = [1, 8, 32], strides = [1, 1, 1]} : vector<4x8x32xf32> to vector<1x8x32xf32>
    %445 = vector.shape_cast %444 : vector<1x8x32xf32> to vector<8x32xf32>
    %cst_183 = arith.constant dense<0.000000e+00> : vector<16x32xf32>
    %446 = tpu.matmul %443, %445, %cst_183 {dimension_numbers = #tpu.dot_dimension_numbers<[1], [0], [0], [1], [0, 0, 1, 1], [], []>} : vector<16x8xf32>, vector<8x32xf32>, vector<16x32xf32> -> vector<16x32xf32>
    %447 = vector.extract_strided_slice %407 {offsets = [1, 0, 0], sizes = [1, 32, 8], strides = [1, 1, 1]} : vector<4x32x8xf32> to vector<1x32x8xf32>
    %448 = vector.shape_cast %447 : vector<1x32x8xf32> to vector<32x8xf32>
    %cst_184 = arith.constant dense<0.000000e+00> : vector<16x8xf32>
    %449 = tpu.matmul %405, %448, %cst_184 {dimension_numbers = #tpu.dot_dimension_numbers<[1], [0], [0], [1], [0, 0, 1, 1], [], []>} : vector<16x32xf32>, vector<32x8xf32>, vector<16x8xf32> -> vector<16x8xf32>
    %450 = vector.shape_cast %449 : vector<16x8xf32> to vector<2x8x8xf32>
    %451 = vector.extract_strided_slice %409 {offsets = [1, 0, 0], sizes = [1, 32, 8], strides = [1, 1, 1]} : vector<4x32x8xf32> to vector<1x32x8xf32>
    %452 = vector.shape_cast %451 : vector<1x32x8xf32> to vector<32x8xf32>
    %cst_185 = arith.constant dense<0.000000e+00> : vector<16x8xf32>
    %453 = tpu.matmul %405, %452, %cst_185 {dimension_numbers = #tpu.dot_dimension_numbers<[1], [0], [0], [1], [0, 0, 1, 1], [], []>} : vector<16x32xf32>, vector<32x8xf32>, vector<16x8xf32> -> vector<16x8xf32>
    %454 = vector.shape_cast %453 : vector<16x8xf32> to vector<2x8x8xf32>
    %455 = vector.extract_strided_slice %411 {offsets = [1, 0, 0], sizes = [1, 32, 8], strides = [1, 1, 1]} : vector<4x32x8xf32> to vector<1x32x8xf32>
    %456 = vector.shape_cast %455 : vector<1x32x8xf32> to vector<32x8xf32>
    %cst_186 = arith.constant dense<0.000000e+00> : vector<16x8xf32>
    %457 = tpu.matmul %405, %456, %cst_186 {dimension_numbers = #tpu.dot_dimension_numbers<[1], [0], [0], [1], [0, 0, 1, 1], [], []>} : vector<16x32xf32>, vector<32x8xf32>, vector<16x8xf32> -> vector<16x8xf32>
    %458 = vector.shape_cast %457 : vector<16x8xf32> to vector<2x8x8xf32>
    "tpu.trace_start"() <{level = 10 : i32, message = "bqd,bkd->bqk"}> : () -> ()
    %cst_187 = arith.constant dense<0.000000e+00> : vector<2x8x8xf32>
    %459 = tpu.matmul %450, %454, %cst_187 {dimension_numbers = #tpu.dot_dimension_numbers<[2], [2], [1], [1], [0, 0, 0, 1, 1, 1], [0], [0]>} : vector<2x8x8xf32>, vector<2x8x8xf32>, vector<2x8x8xf32> -> vector<2x8x8xf32>
    "tpu.trace_stop"() : () -> ()
    %460 = vector.extract_strided_slice %391 {offsets = [1, 0, 0], sizes = [1, 8, 8], strides = [1, 1, 1]} : vector<4x8x8xf32> to vector<1x8x8xf32>
    %461 = vector.shape_cast %460 : vector<1x8x8xf32> to vector<8x8xf32>
    %462 = vector.shape_cast %461 : vector<8x8xf32> to vector<1x8x8xf32>
    %463 = vector.broadcast %462 : vector<1x8x8xf32> to vector<2x8x8xf32>
    %464 = arith.addf %459, %463 : vector<2x8x8xf32>
    %cst_188 = arith.constant dense<0xFF800000> : vector<2x8xf32>
    %465 = vector.multi_reduction <maximumf>, %464, %cst_188 [2] : vector<2x8x8xf32> to vector<2x8xf32>
    %466 = vector.shape_cast %465 : vector<2x8xf32> to vector<2x8x1xf32>
    %467 = vector.broadcast %466 : vector<2x8x1xf32> to vector<2x8x8xf32>
    %468 = arith.subf %464, %467 : vector<2x8x8xf32>
    %469 = math.exp %468 : vector<2x8x8xf32>
    %cst_189 = arith.constant dense<0.000000e+00> : vector<2x8xf32>
    %470 = vector.multi_reduction <add>, %469, %cst_189 [2] : vector<2x8x8xf32> to vector<2x8xf32>
    %471 = vector.shape_cast %470 : vector<2x8xf32> to vector<2x8x1xf32>
    %472 = tpu.reciprocal %471 {approx = true} : vector<2x8x1xf32> -> vector<2x8x1xf32>
    %473 = vector.broadcast %472 : vector<2x8x1xf32> to vector<2x8x8xf32>
    %474 = arith.mulf %469, %473 : vector<2x8x8xf32>
    "tpu.trace_start"() <{level = 10 : i32, message = "bqk,bkd->bqd"}> : () -> ()
    %cst_190 = arith.constant dense<0.000000e+00> : vector<2x8x8xf32>
    %475 = tpu.matmul %474, %458, %cst_190 {dimension_numbers = #tpu.dot_dimension_numbers<[2], [1], [1], [2], [0, 0, 0, 1, 1, 2], [0], [0]>} : vector<2x8x8xf32>, vector<2x8x8xf32>, vector<2x8x8xf32> -> vector<2x8x8xf32>
    "tpu.trace_stop"() : () -> ()
    %476 = vector.shape_cast %475 : vector<2x8x8xf32> to vector<16x8xf32>
    %477 = vector.extract_strided_slice %413 {offsets = [1, 0, 0], sizes = [1, 8, 32], strides = [1, 1, 1]} : vector<4x8x32xf32> to vector<1x8x32xf32>
    %478 = vector.shape_cast %477 : vector<1x8x32xf32> to vector<8x32xf32>
    %cst_191 = arith.constant dense<0.000000e+00> : vector<16x32xf32>
    %479 = tpu.matmul %476, %478, %cst_191 {dimension_numbers = #tpu.dot_dimension_numbers<[1], [0], [0], [1], [0, 0, 1, 1], [], []>} : vector<16x8xf32>, vector<8x32xf32>, vector<16x32xf32> -> vector<16x32xf32>
    %480 = arith.addf %446, %479 : vector<16x32xf32>
    %481 = vector.extract_strided_slice %407 {offsets = [2, 0, 0], sizes = [1, 32, 8], strides = [1, 1, 1]} : vector<4x32x8xf32> to vector<1x32x8xf32>
    %482 = vector.shape_cast %481 : vector<1x32x8xf32> to vector<32x8xf32>
    %cst_192 = arith.constant dense<0.000000e+00> : vector<16x8xf32>
    %483 = tpu.matmul %405, %482, %cst_192 {dimension_numbers = #tpu.dot_dimension_numbers<[1], [0], [0], [1], [0, 0, 1, 1], [], []>} : vector<16x32xf32>, vector<32x8xf32>, vector<16x8xf32> -> vector<16x8xf32>
    %484 = vector.shape_cast %483 : vector<16x8xf32> to vector<2x8x8xf32>
    %485 = vector.extract_strided_slice %409 {offsets = [2, 0, 0], sizes = [1, 32, 8], strides = [1, 1, 1]} : vector<4x32x8xf32> to vector<1x32x8xf32>
    %486 = vector.shape_cast %485 : vector<1x32x8xf32> to vector<32x8xf32>
    %cst_193 = arith.constant dense<0.000000e+00> : vector<16x8xf32>
    %487 = tpu.matmul %405, %486, %cst_193 {dimension_numbers = #tpu.dot_dimension_numbers<[1], [0], [0], [1], [0, 0, 1, 1], [], []>} : vector<16x32xf32>, vector<32x8xf32>, vector<16x8xf32> -> vector<16x8xf32>
    %488 = vector.shape_cast %487 : vector<16x8xf32> to vector<2x8x8xf32>
    %489 = vector.extract_strided_slice %411 {offsets = [2, 0, 0], sizes = [1, 32, 8], strides = [1, 1, 1]} : vector<4x32x8xf32> to vector<1x32x8xf32>
    %490 = vector.shape_cast %489 : vector<1x32x8xf32> to vector<32x8xf32>
    %cst_194 = arith.constant dense<0.000000e+00> : vector<16x8xf32>
    %491 = tpu.matmul %405, %490, %cst_194 {dimension_numbers = #tpu.dot_dimension_numbers<[1], [0], [0], [1], [0, 0, 1, 1], [], []>} : vector<16x32xf32>, vector<32x8xf32>, vector<16x8xf32> -> vector<16x8xf32>
    %492 = vector.shape_cast %491 : vector<16x8xf32> to vector<2x8x8xf32>
    "tpu.trace_start"() <{level = 10 : i32, message = "bqd,bkd->bqk"}> : () -> ()
    %cst_195 = arith.constant dense<0.000000e+00> : vector<2x8x8xf32>
    %493 = tpu.matmul %484, %488, %cst_195 {dimension_numbers = #tpu.dot_dimension_numbers<[2], [2], [1], [1], [0, 0, 0, 1, 1, 1], [0], [0]>} : vector<2x8x8xf32>, vector<2x8x8xf32>, vector<2x8x8xf32> -> vector<2x8x8xf32>
    "tpu.trace_stop"() : () -> ()
    %494 = vector.extract_strided_slice %391 {offsets = [2, 0, 0], sizes = [1, 8, 8], strides = [1, 1, 1]} : vector<4x8x8xf32> to vector<1x8x8xf32>
    %495 = vector.shape_cast %494 : vector<1x8x8xf32> to vector<8x8xf32>
    %496 = vector.shape_cast %495 : vector<8x8xf32> to vector<1x8x8xf32>
    %497 = vector.broadcast %496 : vector<1x8x8xf32> to vector<2x8x8xf32>
    %498 = arith.addf %493, %497 : vector<2x8x8xf32>
    %cst_196 = arith.constant dense<0xFF800000> : vector<2x8xf32>
    %499 = vector.multi_reduction <maximumf>, %498, %cst_196 [2] : vector<2x8x8xf32> to vector<2x8xf32>
    %500 = vector.shape_cast %499 : vector<2x8xf32> to vector<2x8x1xf32>
    %501 = vector.broadcast %500 : vector<2x8x1xf32> to vector<2x8x8xf32>
    %502 = arith.subf %498, %501 : vector<2x8x8xf32>
    %503 = math.exp %502 : vector<2x8x8xf32>
    %cst_197 = arith.constant dense<0.000000e+00> : vector<2x8xf32>
    %504 = vector.multi_reduction <add>, %503, %cst_197 [2] : vector<2x8x8xf32> to vector<2x8xf32>
    %505 = vector.shape_cast %504 : vector<2x8xf32> to vector<2x8x1xf32>
    %506 = tpu.reciprocal %505 {approx = true} : vector<2x8x1xf32> -> vector<2x8x1xf32>
    %507 = vector.broadcast %506 : vector<2x8x1xf32> to vector<2x8x8xf32>
    %508 = arith.mulf %503, %507 : vector<2x8x8xf32>
    "tpu.trace_start"() <{level = 10 : i32, message = "bqk,bkd->bqd"}> : () -> ()
    %cst_198 = arith.constant dense<0.000000e+00> : vector<2x8x8xf32>
    %509 = tpu.matmul %508, %492, %cst_198 {dimension_numbers = #tpu.dot_dimension_numbers<[2], [1], [1], [2], [0, 0, 0, 1, 1, 2], [0], [0]>} : vector<2x8x8xf32>, vector<2x8x8xf32>, vector<2x8x8xf32> -> vector<2x8x8xf32>
    "tpu.trace_stop"() : () -> ()
    %510 = vector.shape_cast %509 : vector<2x8x8xf32> to vector<16x8xf32>
    %511 = vector.extract_strided_slice %413 {offsets = [2, 0, 0], sizes = [1, 8, 32], strides = [1, 1, 1]} : vector<4x8x32xf32> to vector<1x8x32xf32>
    %512 = vector.shape_cast %511 : vector<1x8x32xf32> to vector<8x32xf32>
    %cst_199 = arith.constant dense<0.000000e+00> : vector<16x32xf32>
    %513 = tpu.matmul %510, %512, %cst_199 {dimension_numbers = #tpu.dot_dimension_numbers<[1], [0], [0], [1], [0, 0, 1, 1], [], []>} : vector<16x8xf32>, vector<8x32xf32>, vector<16x32xf32> -> vector<16x32xf32>
    %514 = arith.addf %480, %513 : vector<16x32xf32>
    %515 = vector.extract_strided_slice %407 {offsets = [3, 0, 0], sizes = [1, 32, 8], strides = [1, 1, 1]} : vector<4x32x8xf32> to vector<1x32x8xf32>
    %516 = vector.shape_cast %515 : vector<1x32x8xf32> to vector<32x8xf32>
    %cst_200 = arith.constant dense<0.000000e+00> : vector<16x8xf32>
    %517 = tpu.matmul %405, %516, %cst_200 {dimension_numbers = #tpu.dot_dimension_numbers<[1], [0], [0], [1], [0, 0, 1, 1], [], []>} : vector<16x32xf32>, vector<32x8xf32>, vector<16x8xf32> -> vector<16x8xf32>
    %518 = vector.shape_cast %517 : vector<16x8xf32> to vector<2x8x8xf32>
    %519 = vector.extract_strided_slice %409 {offsets = [3, 0, 0], sizes = [1, 32, 8], strides = [1, 1, 1]} : vector<4x32x8xf32> to vector<1x32x8xf32>
    %520 = vector.shape_cast %519 : vector<1x32x8xf32> to vector<32x8xf32>
    %cst_201 = arith.constant dense<0.000000e+00> : vector<16x8xf32>
    %521 = tpu.matmul %405, %520, %cst_201 {dimension_numbers = #tpu.dot_dimension_numbers<[1], [0], [0], [1], [0, 0, 1, 1], [], []>} : vector<16x32xf32>, vector<32x8xf32>, vector<16x8xf32> -> vector<16x8xf32>
    %522 = vector.shape_cast %521 : vector<16x8xf32> to vector<2x8x8xf32>
    %523 = vector.extract_strided_slice %411 {offsets = [3, 0, 0], sizes = [1, 32, 8], strides = [1, 1, 1]} : vector<4x32x8xf32> to vector<1x32x8xf32>
    %524 = vector.shape_cast %523 : vector<1x32x8xf32> to vector<32x8xf32>
    %cst_202 = arith.constant dense<0.000000e+00> : vector<16x8xf32>
    %525 = tpu.matmul %405, %524, %cst_202 {dimension_numbers = #tpu.dot_dimension_numbers<[1], [0], [0], [1], [0, 0, 1, 1], [], []>} : vector<16x32xf32>, vector<32x8xf32>, vector<16x8xf32> -> vector<16x8xf32>
    %526 = vector.shape_cast %525 : vector<16x8xf32> to vector<2x8x8xf32>
    "tpu.trace_start"() <{level = 10 : i32, message = "bqd,bkd->bqk"}> : () -> ()
    %cst_203 = arith.constant dense<0.000000e+00> : vector<2x8x8xf32>
    %527 = tpu.matmul %518, %522, %cst_203 {dimension_numbers = #tpu.dot_dimension_numbers<[2], [2], [1], [1], [0, 0, 0, 1, 1, 1], [0], [0]>} : vector<2x8x8xf32>, vector<2x8x8xf32>, vector<2x8x8xf32> -> vector<2x8x8xf32>
    "tpu.trace_stop"() : () -> ()
    %528 = vector.extract_strided_slice %391 {offsets = [3, 0, 0], sizes = [1, 8, 8], strides = [1, 1, 1]} : vector<4x8x8xf32> to vector<1x8x8xf32>
    %529 = vector.shape_cast %528 : vector<1x8x8xf32> to vector<8x8xf32>
    %530 = vector.shape_cast %529 : vector<8x8xf32> to vector<1x8x8xf32>
    %531 = vector.broadcast %530 : vector<1x8x8xf32> to vector<2x8x8xf32>
    %532 = arith.addf %527, %531 : vector<2x8x8xf32>
    %cst_204 = arith.constant dense<0xFF800000> : vector<2x8xf32>
    %533 = vector.multi_reduction <maximumf>, %532, %cst_204 [2] : vector<2x8x8xf32> to vector<2x8xf32>
    %534 = vector.shape_cast %533 : vector<2x8xf32> to vector<2x8x1xf32>
    %535 = vector.broadcast %534 : vector<2x8x1xf32> to vector<2x8x8xf32>
    %536 = arith.subf %532, %535 : vector<2x8x8xf32>
    %537 = math.exp %536 : vector<2x8x8xf32>
    %cst_205 = arith.constant dense<0.000000e+00> : vector<2x8xf32>
    %538 = vector.multi_reduction <add>, %537, %cst_205 [2] : vector<2x8x8xf32> to vector<2x8xf32>
    %539 = vector.shape_cast %538 : vector<2x8xf32> to vector<2x8x1xf32>
    %540 = tpu.reciprocal %539 {approx = true} : vector<2x8x1xf32> -> vector<2x8x1xf32>
    %541 = vector.broadcast %540 : vector<2x8x1xf32> to vector<2x8x8xf32>
    %542 = arith.mulf %537, %541 : vector<2x8x8xf32>
    "tpu.trace_start"() <{level = 10 : i32, message = "bqk,bkd->bqd"}> : () -> ()
    %cst_206 = arith.constant dense<0.000000e+00> : vector<2x8x8xf32>
    %543 = tpu.matmul %542, %526, %cst_206 {dimension_numbers = #tpu.dot_dimension_numbers<[2], [1], [1], [2], [0, 0, 0, 1, 1, 2], [0], [0]>} : vector<2x8x8xf32>, vector<2x8x8xf32>, vector<2x8x8xf32> -> vector<2x8x8xf32>
    "tpu.trace_stop"() : () -> ()
    %544 = vector.shape_cast %543 : vector<2x8x8xf32> to vector<16x8xf32>
    %545 = vector.extract_strided_slice %413 {offsets = [3, 0, 0], sizes = [1, 8, 32], strides = [1, 1, 1]} : vector<4x8x32xf32> to vector<1x8x32xf32>
    %546 = vector.shape_cast %545 : vector<1x8x32xf32> to vector<8x32xf32>
    %cst_207 = arith.constant dense<0.000000e+00> : vector<16x32xf32>
    %547 = tpu.matmul %544, %546, %cst_207 {dimension_numbers = #tpu.dot_dimension_numbers<[1], [0], [0], [1], [0, 0, 1, 1], [], []>} : vector<16x8xf32>, vector<8x32xf32>, vector<16x32xf32> -> vector<16x32xf32>
    %548 = arith.addf %514, %547 : vector<16x32xf32>
    %549 = arith.addf %390, %548 : vector<16x32xf32>
    %c0_208 = arith.constant 0 : index
    %c0_209 = arith.constant 0 : index
    %c0_210 = arith.constant 0 : index
    %550 = vector.load %arg19[%c0_208, %c0_209, %c0_210] : memref<2x1x32xf32, #tpu.memory_space<vmem>>, vector<1x1x32xf32>
    %551 = vector.shape_cast %550 : vector<1x1x32xf32> to vector<1x32xf32>
    %552 = arith.mulf %549, %549 : vector<16x32xf32>
    %cst_211 = arith.constant dense<0.000000e+00> : vector<16xf32>
    %553 = vector.multi_reduction <add>, %552, %cst_211 [1] : vector<16x32xf32> to vector<16xf32>
    %554 = vector.shape_cast %553 : vector<16xf32> to vector<16x1xf32>
    %cst_212 = arith.constant 3.200000e+01 : f32
    %555 = vector.broadcast %cst_212 : f32 to vector<16x1xf32>
    %556 = arith.divf %554, %555 : vector<16x1xf32>
    %cst_213 = arith.constant 9.99999997E-7 : f32
    %557 = vector.broadcast %cst_213 : f32 to vector<16x1xf32>
    %558 = arith.addf %556, %557 : vector<16x1xf32>
    %559 = math.rsqrt %558 : vector<16x1xf32>
    %560 = vector.broadcast %559 : vector<16x1xf32> to vector<16x32xf32>
    %561 = arith.mulf %549, %560 : vector<16x32xf32>
    %562 = vector.broadcast %551 : vector<1x32xf32> to vector<16x32xf32>
    %563 = arith.mulf %561, %562 : vector<16x32xf32>
    %c0_214 = arith.constant 0 : index
    %c0_215 = arith.constant 0 : index
    %c0_216 = arith.constant 0 : index
    %c0_217 = arith.constant 0 : index
    %564 = vector.load %arg20[%c0_214, %c0_215, %c0_216, %c0_217] : memref<2x4x32x8xf32, #tpu.memory_space<vmem>>, vector<1x4x32x8xf32>
    %565 = vector.shape_cast %564 : vector<1x4x32x8xf32> to vector<4x32x8xf32>
    %c0_218 = arith.constant 0 : index
    %c0_219 = arith.constant 0 : index
    %c0_220 = arith.constant 0 : index
    %c0_221 = arith.constant 0 : index
    %566 = vector.load %arg21[%c0_218, %c0_219, %c0_220, %c0_221] : memref<2x4x32x8xf32, #tpu.memory_space<vmem>>, vector<1x4x32x8xf32>
    %567 = vector.shape_cast %566 : vector<1x4x32x8xf32> to vector<4x32x8xf32>
    %c0_222 = arith.constant 0 : index
    %c0_223 = arith.constant 0 : index
    %c0_224 = arith.constant 0 : index
    %c0_225 = arith.constant 0 : index
    %568 = vector.load %arg22[%c0_222, %c0_223, %c0_224, %c0_225] : memref<2x4x32x8xf32, #tpu.memory_space<vmem>>, vector<1x4x32x8xf32>
    %569 = vector.shape_cast %568 : vector<1x4x32x8xf32> to vector<4x32x8xf32>
    %c0_226 = arith.constant 0 : index
    %c0_227 = arith.constant 0 : index
    %c0_228 = arith.constant 0 : index
    %c0_229 = arith.constant 0 : index
    %570 = vector.load %arg23[%c0_226, %c0_227, %c0_228, %c0_229] : memref<2x4x8x32xf32, #tpu.memory_space<vmem>>, vector<1x4x8x32xf32>
    %571 = vector.shape_cast %570 : vector<1x4x8x32xf32> to vector<4x8x32xf32>
    %572 = vector.extract_strided_slice %565 {offsets = [0, 0, 0], sizes = [1, 32, 8], strides = [1, 1, 1]} : vector<4x32x8xf32> to vector<1x32x8xf32>
    %573 = vector.shape_cast %572 : vector<1x32x8xf32> to vector<32x8xf32>
    %cst_230 = arith.constant dense<0.000000e+00> : vector<16x8xf32>
    %574 = tpu.matmul %563, %573, %cst_230 {dimension_numbers = #tpu.dot_dimension_numbers<[1], [0], [0], [1], [0, 0, 1, 1], [], []>} : vector<16x32xf32>, vector<32x8xf32>, vector<16x8xf32> -> vector<16x8xf32>
    %575 = vector.shape_cast %574 : vector<16x8xf32> to vector<2x8x8xf32>
    %576 = vector.extract_strided_slice %567 {offsets = [0, 0, 0], sizes = [1, 32, 8], strides = [1, 1, 1]} : vector<4x32x8xf32> to vector<1x32x8xf32>
    %577 = vector.shape_cast %576 : vector<1x32x8xf32> to vector<32x8xf32>
    %cst_231 = arith.constant dense<0.000000e+00> : vector<16x8xf32>
    %578 = tpu.matmul %383, %577, %cst_231 {dimension_numbers = #tpu.dot_dimension_numbers<[1], [0], [0], [1], [0, 0, 1, 1], [], []>} : vector<16x32xf32>, vector<32x8xf32>, vector<16x8xf32> -> vector<16x8xf32>
    %579 = vector.shape_cast %578 : vector<16x8xf32> to vector<2x8x8xf32>
    %580 = vector.extract_strided_slice %569 {offsets = [0, 0, 0], sizes = [1, 32, 8], strides = [1, 1, 1]} : vector<4x32x8xf32> to vector<1x32x8xf32>
    %581 = vector.shape_cast %580 : vector<1x32x8xf32> to vector<32x8xf32>
    %cst_232 = arith.constant dense<0.000000e+00> : vector<16x8xf32>
    %582 = tpu.matmul %383, %581, %cst_232 {dimension_numbers = #tpu.dot_dimension_numbers<[1], [0], [0], [1], [0, 0, 1, 1], [], []>} : vector<16x32xf32>, vector<32x8xf32>, vector<16x8xf32> -> vector<16x8xf32>
    %583 = vector.shape_cast %582 : vector<16x8xf32> to vector<2x8x8xf32>
    "tpu.trace_start"() <{level = 10 : i32, message = "bqd,bkd->bqk"}> : () -> ()
    %cst_233 = arith.constant dense<0.000000e+00> : vector<2x8x8xf32>
    %584 = tpu.matmul %575, %579, %cst_233 {dimension_numbers = #tpu.dot_dimension_numbers<[2], [2], [1], [1], [0, 0, 0, 1, 1, 1], [0], [0]>} : vector<2x8x8xf32>, vector<2x8x8xf32>, vector<2x8x8xf32> -> vector<2x8x8xf32>
    "tpu.trace_stop"() : () -> ()
    %cst_234 = arith.constant dense<0xFF800000> : vector<2x8xf32>
    %585 = vector.multi_reduction <maximumf>, %584, %cst_234 [2] : vector<2x8x8xf32> to vector<2x8xf32>
    %586 = vector.shape_cast %585 : vector<2x8xf32> to vector<2x8x1xf32>
    %587 = vector.broadcast %586 : vector<2x8x1xf32> to vector<2x8x8xf32>
    %588 = arith.subf %584, %587 : vector<2x8x8xf32>
    %589 = math.exp %588 : vector<2x8x8xf32>
    %cst_235 = arith.constant dense<0.000000e+00> : vector<2x8xf32>
    %590 = vector.multi_reduction <add>, %589, %cst_235 [2] : vector<2x8x8xf32> to vector<2x8xf32>
    %591 = vector.shape_cast %590 : vector<2x8xf32> to vector<2x8x1xf32>
    %592 = tpu.reciprocal %591 {approx = true} : vector<2x8x1xf32> -> vector<2x8x1xf32>
    %593 = vector.broadcast %592 : vector<2x8x1xf32> to vector<2x8x8xf32>
    %594 = arith.mulf %589, %593 : vector<2x8x8xf32>
    "tpu.trace_start"() <{level = 10 : i32, message = "bqk,bkd->bqd"}> : () -> ()
    %cst_236 = arith.constant dense<0.000000e+00> : vector<2x8x8xf32>
    %595 = tpu.matmul %594, %583, %cst_236 {dimension_numbers = #tpu.dot_dimension_numbers<[2], [1], [1], [2], [0, 0, 0, 1, 1, 2], [0], [0]>} : vector<2x8x8xf32>, vector<2x8x8xf32>, vector<2x8x8xf32> -> vector<2x8x8xf32>
    "tpu.trace_stop"() : () -> ()
    %596 = vector.shape_cast %595 : vector<2x8x8xf32> to vector<16x8xf32>
    %597 = vector.extract_strided_slice %571 {offsets = [0, 0, 0], sizes = [1, 8, 32], strides = [1, 1, 1]} : vector<4x8x32xf32> to vector<1x8x32xf32>
    %598 = vector.shape_cast %597 : vector<1x8x32xf32> to vector<8x32xf32>
    %cst_237 = arith.constant dense<0.000000e+00> : vector<16x32xf32>
    %599 = tpu.matmul %596, %598, %cst_237 {dimension_numbers = #tpu.dot_dimension_numbers<[1], [0], [0], [1], [0, 0, 1, 1], [], []>} : vector<16x8xf32>, vector<8x32xf32>, vector<16x32xf32> -> vector<16x32xf32>
    %600 = vector.extract_strided_slice %565 {offsets = [1, 0, 0], sizes = [1, 32, 8], strides = [1, 1, 1]} : vector<4x32x8xf32> to vector<1x32x8xf32>
    %601 = vector.shape_cast %600 : vector<1x32x8xf32> to vector<32x8xf32>
    %cst_238 = arith.constant dense<0.000000e+00> : vector<16x8xf32>
    %602 = tpu.matmul %563, %601, %cst_238 {dimension_numbers = #tpu.dot_dimension_numbers<[1], [0], [0], [1], [0, 0, 1, 1], [], []>} : vector<16x32xf32>, vector<32x8xf32>, vector<16x8xf32> -> vector<16x8xf32>
    %603 = vector.shape_cast %602 : vector<16x8xf32> to vector<2x8x8xf32>
    %604 = vector.extract_strided_slice %567 {offsets = [1, 0, 0], sizes = [1, 32, 8], strides = [1, 1, 1]} : vector<4x32x8xf32> to vector<1x32x8xf32>
    %605 = vector.shape_cast %604 : vector<1x32x8xf32> to vector<32x8xf32>
    %cst_239 = arith.constant dense<0.000000e+00> : vector<16x8xf32>
    %606 = tpu.matmul %383, %605, %cst_239 {dimension_numbers = #tpu.dot_dimension_numbers<[1], [0], [0], [1], [0, 0, 1, 1], [], []>} : vector<16x32xf32>, vector<32x8xf32>, vector<16x8xf32> -> vector<16x8xf32>
    %607 = vector.shape_cast %606 : vector<16x8xf32> to vector<2x8x8xf32>
    %608 = vector.extract_strided_slice %569 {offsets = [1, 0, 0], sizes = [1, 32, 8], strides = [1, 1, 1]} : vector<4x32x8xf32> to vector<1x32x8xf32>
    %609 = vector.shape_cast %608 : vector<1x32x8xf32> to vector<32x8xf32>
    %cst_240 = arith.constant dense<0.000000e+00> : vector<16x8xf32>
    %610 = tpu.matmul %383, %609, %cst_240 {dimension_numbers = #tpu.dot_dimension_numbers<[1], [0], [0], [1], [0, 0, 1, 1], [], []>} : vector<16x32xf32>, vector<32x8xf32>, vector<16x8xf32> -> vector<16x8xf32>
    %611 = vector.shape_cast %610 : vector<16x8xf32> to vector<2x8x8xf32>
    "tpu.trace_start"() <{level = 10 : i32, message = "bqd,bkd->bqk"}> : () -> ()
    %cst_241 = arith.constant dense<0.000000e+00> : vector<2x8x8xf32>
    %612 = tpu.matmul %603, %607, %cst_241 {dimension_numbers = #tpu.dot_dimension_numbers<[2], [2], [1], [1], [0, 0, 0, 1, 1, 1], [0], [0]>} : vector<2x8x8xf32>, vector<2x8x8xf32>, vector<2x8x8xf32> -> vector<2x8x8xf32>
    "tpu.trace_stop"() : () -> ()
    %cst_242 = arith.constant dense<0xFF800000> : vector<2x8xf32>
    %613 = vector.multi_reduction <maximumf>, %612, %cst_242 [2] : vector<2x8x8xf32> to vector<2x8xf32>
    %614 = vector.shape_cast %613 : vector<2x8xf32> to vector<2x8x1xf32>
    %615 = vector.broadcast %614 : vector<2x8x1xf32> to vector<2x8x8xf32>
    %616 = arith.subf %612, %615 : vector<2x8x8xf32>
    %617 = math.exp %616 : vector<2x8x8xf32>
    %cst_243 = arith.constant dense<0.000000e+00> : vector<2x8xf32>
    %618 = vector.multi_reduction <add>, %617, %cst_243 [2] : vector<2x8x8xf32> to vector<2x8xf32>
    %619 = vector.shape_cast %618 : vector<2x8xf32> to vector<2x8x1xf32>
    %620 = tpu.reciprocal %619 {approx = true} : vector<2x8x1xf32> -> vector<2x8x1xf32>
    %621 = vector.broadcast %620 : vector<2x8x1xf32> to vector<2x8x8xf32>
    %622 = arith.mulf %617, %621 : vector<2x8x8xf32>
    "tpu.trace_start"() <{level = 10 : i32, message = "bqk,bkd->bqd"}> : () -> ()
    %cst_244 = arith.constant dense<0.000000e+00> : vector<2x8x8xf32>
    %623 = tpu.matmul %622, %611, %cst_244 {dimension_numbers = #tpu.dot_dimension_numbers<[2], [1], [1], [2], [0, 0, 0, 1, 1, 2], [0], [0]>} : vector<2x8x8xf32>, vector<2x8x8xf32>, vector<2x8x8xf32> -> vector<2x8x8xf32>
    "tpu.trace_stop"() : () -> ()
    %624 = vector.shape_cast %623 : vector<2x8x8xf32> to vector<16x8xf32>
    %625 = vector.extract_strided_slice %571 {offsets = [1, 0, 0], sizes = [1, 8, 32], strides = [1, 1, 1]} : vector<4x8x32xf32> to vector<1x8x32xf32>
    %626 = vector.shape_cast %625 : vector<1x8x32xf32> to vector<8x32xf32>
    %cst_245 = arith.constant dense<0.000000e+00> : vector<16x32xf32>
    %627 = tpu.matmul %624, %626, %cst_245 {dimension_numbers = #tpu.dot_dimension_numbers<[1], [0], [0], [1], [0, 0, 1, 1], [], []>} : vector<16x8xf32>, vector<8x32xf32>, vector<16x32xf32> -> vector<16x32xf32>
    %628 = arith.addf %599, %627 : vector<16x32xf32>
    %629 = vector.extract_strided_slice %565 {offsets = [2, 0, 0], sizes = [1, 32, 8], strides = [1, 1, 1]} : vector<4x32x8xf32> to vector<1x32x8xf32>
    %630 = vector.shape_cast %629 : vector<1x32x8xf32> to vector<32x8xf32>
    %cst_246 = arith.constant dense<0.000000e+00> : vector<16x8xf32>
    %631 = tpu.matmul %563, %630, %cst_246 {dimension_numbers = #tpu.dot_dimension_numbers<[1], [0], [0], [1], [0, 0, 1, 1], [], []>} : vector<16x32xf32>, vector<32x8xf32>, vector<16x8xf32> -> vector<16x8xf32>
    %632 = vector.shape_cast %631 : vector<16x8xf32> to vector<2x8x8xf32>
    %633 = vector.extract_strided_slice %567 {offsets = [2, 0, 0], sizes = [1, 32, 8], strides = [1, 1, 1]} : vector<4x32x8xf32> to vector<1x32x8xf32>
    %634 = vector.shape_cast %633 : vector<1x32x8xf32> to vector<32x8xf32>
    %cst_247 = arith.constant dense<0.000000e+00> : vector<16x8xf32>
    %635 = tpu.matmul %383, %634, %cst_247 {dimension_numbers = #tpu.dot_dimension_numbers<[1], [0], [0], [1], [0, 0, 1, 1], [], []>} : vector<16x32xf32>, vector<32x8xf32>, vector<16x8xf32> -> vector<16x8xf32>
    %636 = vector.shape_cast %635 : vector<16x8xf32> to vector<2x8x8xf32>
    %637 = vector.extract_strided_slice %569 {offsets = [2, 0, 0], sizes = [1, 32, 8], strides = [1, 1, 1]} : vector<4x32x8xf32> to vector<1x32x8xf32>
    %638 = vector.shape_cast %637 : vector<1x32x8xf32> to vector<32x8xf32>
    %cst_248 = arith.constant dense<0.000000e+00> : vector<16x8xf32>
    %639 = tpu.matmul %383, %638, %cst_248 {dimension_numbers = #tpu.dot_dimension_numbers<[1], [0], [0], [1], [0, 0, 1, 1], [], []>} : vector<16x32xf32>, vector<32x8xf32>, vector<16x8xf32> -> vector<16x8xf32>
    %640 = vector.shape_cast %639 : vector<16x8xf32> to vector<2x8x8xf32>
    "tpu.trace_start"() <{level = 10 : i32, message = "bqd,bkd->bqk"}> : () -> ()
    %cst_249 = arith.constant dense<0.000000e+00> : vector<2x8x8xf32>
    %641 = tpu.matmul %632, %636, %cst_249 {dimension_numbers = #tpu.dot_dimension_numbers<[2], [2], [1], [1], [0, 0, 0, 1, 1, 1], [0], [0]>} : vector<2x8x8xf32>, vector<2x8x8xf32>, vector<2x8x8xf32> -> vector<2x8x8xf32>
    "tpu.trace_stop"() : () -> ()
    %cst_250 = arith.constant dense<0xFF800000> : vector<2x8xf32>
    %642 = vector.multi_reduction <maximumf>, %641, %cst_250 [2] : vector<2x8x8xf32> to vector<2x8xf32>
    %643 = vector.shape_cast %642 : vector<2x8xf32> to vector<2x8x1xf32>
    %644 = vector.broadcast %643 : vector<2x8x1xf32> to vector<2x8x8xf32>
    %645 = arith.subf %641, %644 : vector<2x8x8xf32>
    %646 = math.exp %645 : vector<2x8x8xf32>
    %cst_251 = arith.constant dense<0.000000e+00> : vector<2x8xf32>
    %647 = vector.multi_reduction <add>, %646, %cst_251 [2] : vector<2x8x8xf32> to vector<2x8xf32>
    %648 = vector.shape_cast %647 : vector<2x8xf32> to vector<2x8x1xf32>
    %649 = tpu.reciprocal %648 {approx = true} : vector<2x8x1xf32> -> vector<2x8x1xf32>
    %650 = vector.broadcast %649 : vector<2x8x1xf32> to vector<2x8x8xf32>
    %651 = arith.mulf %646, %650 : vector<2x8x8xf32>
    "tpu.trace_start"() <{level = 10 : i32, message = "bqk,bkd->bqd"}> : () -> ()
    %cst_252 = arith.constant dense<0.000000e+00> : vector<2x8x8xf32>
    %652 = tpu.matmul %651, %640, %cst_252 {dimension_numbers = #tpu.dot_dimension_numbers<[2], [1], [1], [2], [0, 0, 0, 1, 1, 2], [0], [0]>} : vector<2x8x8xf32>, vector<2x8x8xf32>, vector<2x8x8xf32> -> vector<2x8x8xf32>
    "tpu.trace_stop"() : () -> ()
    %653 = vector.shape_cast %652 : vector<2x8x8xf32> to vector<16x8xf32>
    %654 = vector.extract_strided_slice %571 {offsets = [2, 0, 0], sizes = [1, 8, 32], strides = [1, 1, 1]} : vector<4x8x32xf32> to vector<1x8x32xf32>
    %655 = vector.shape_cast %654 : vector<1x8x32xf32> to vector<8x32xf32>
    %cst_253 = arith.constant dense<0.000000e+00> : vector<16x32xf32>
    %656 = tpu.matmul %653, %655, %cst_253 {dimension_numbers = #tpu.dot_dimension_numbers<[1], [0], [0], [1], [0, 0, 1, 1], [], []>} : vector<16x8xf32>, vector<8x32xf32>, vector<16x32xf32> -> vector<16x32xf32>
    %657 = arith.addf %628, %656 : vector<16x32xf32>
    %658 = vector.extract_strided_slice %565 {offsets = [3, 0, 0], sizes = [1, 32, 8], strides = [1, 1, 1]} : vector<4x32x8xf32> to vector<1x32x8xf32>
    %659 = vector.shape_cast %658 : vector<1x32x8xf32> to vector<32x8xf32>
    %cst_254 = arith.constant dense<0.000000e+00> : vector<16x8xf32>
    %660 = tpu.matmul %563, %659, %cst_254 {dimension_numbers = #tpu.dot_dimension_numbers<[1], [0], [0], [1], [0, 0, 1, 1], [], []>} : vector<16x32xf32>, vector<32x8xf32>, vector<16x8xf32> -> vector<16x8xf32>
    %661 = vector.shape_cast %660 : vector<16x8xf32> to vector<2x8x8xf32>
    %662 = vector.extract_strided_slice %567 {offsets = [3, 0, 0], sizes = [1, 32, 8], strides = [1, 1, 1]} : vector<4x32x8xf32> to vector<1x32x8xf32>
    %663 = vector.shape_cast %662 : vector<1x32x8xf32> to vector<32x8xf32>
    %cst_255 = arith.constant dense<0.000000e+00> : vector<16x8xf32>
    %664 = tpu.matmul %383, %663, %cst_255 {dimension_numbers = #tpu.dot_dimension_numbers<[1], [0], [0], [1], [0, 0, 1, 1], [], []>} : vector<16x32xf32>, vector<32x8xf32>, vector<16x8xf32> -> vector<16x8xf32>
    %665 = vector.shape_cast %664 : vector<16x8xf32> to vector<2x8x8xf32>
    %666 = vector.extract_strided_slice %569 {offsets = [3, 0, 0], sizes = [1, 32, 8], strides = [1, 1, 1]} : vector<4x32x8xf32> to vector<1x32x8xf32>
    %667 = vector.shape_cast %666 : vector<1x32x8xf32> to vector<32x8xf32>
    %cst_256 = arith.constant dense<0.000000e+00> : vector<16x8xf32>
    %668 = tpu.matmul %383, %667, %cst_256 {dimension_numbers = #tpu.dot_dimension_numbers<[1], [0], [0], [1], [0, 0, 1, 1], [], []>} : vector<16x32xf32>, vector<32x8xf32>, vector<16x8xf32> -> vector<16x8xf32>
    %669 = vector.shape_cast %668 : vector<16x8xf32> to vector<2x8x8xf32>
    "tpu.trace_start"() <{level = 10 : i32, message = "bqd,bkd->bqk"}> : () -> ()
    %cst_257 = arith.constant dense<0.000000e+00> : vector<2x8x8xf32>
    %670 = tpu.matmul %661, %665, %cst_257 {dimension_numbers = #tpu.dot_dimension_numbers<[2], [2], [1], [1], [0, 0, 0, 1, 1, 1], [0], [0]>} : vector<2x8x8xf32>, vector<2x8x8xf32>, vector<2x8x8xf32> -> vector<2x8x8xf32>
    "tpu.trace_stop"() : () -> ()
    %cst_258 = arith.constant dense<0xFF800000> : vector<2x8xf32>
    %671 = vector.multi_reduction <maximumf>, %670, %cst_258 [2] : vector<2x8x8xf32> to vector<2x8xf32>
    %672 = vector.shape_cast %671 : vector<2x8xf32> to vector<2x8x1xf32>
    %673 = vector.broadcast %672 : vector<2x8x1xf32> to vector<2x8x8xf32>
    %674 = arith.subf %670, %673 : vector<2x8x8xf32>
    %675 = math.exp %674 : vector<2x8x8xf32>
    %cst_259 = arith.constant dense<0.000000e+00> : vector<2x8xf32>
    %676 = vector.multi_reduction <add>, %675, %cst_259 [2] : vector<2x8x8xf32> to vector<2x8xf32>
    %677 = vector.shape_cast %676 : vector<2x8xf32> to vector<2x8x1xf32>
    %678 = tpu.reciprocal %677 {approx = true} : vector<2x8x1xf32> -> vector<2x8x1xf32>
    %679 = vector.broadcast %678 : vector<2x8x1xf32> to vector<2x8x8xf32>
    %680 = arith.mulf %675, %679 : vector<2x8x8xf32>
    "tpu.trace_start"() <{level = 10 : i32, message = "bqk,bkd->bqd"}> : () -> ()
    %cst_260 = arith.constant dense<0.000000e+00> : vector<2x8x8xf32>
    %681 = tpu.matmul %680, %669, %cst_260 {dimension_numbers = #tpu.dot_dimension_numbers<[2], [1], [1], [2], [0, 0, 0, 1, 1, 2], [0], [0]>} : vector<2x8x8xf32>, vector<2x8x8xf32>, vector<2x8x8xf32> -> vector<2x8x8xf32>
    "tpu.trace_stop"() : () -> ()
    %682 = vector.shape_cast %681 : vector<2x8x8xf32> to vector<16x8xf32>
    %683 = vector.extract_strided_slice %571 {offsets = [3, 0, 0], sizes = [1, 8, 32], strides = [1, 1, 1]} : vector<4x8x32xf32> to vector<1x8x32xf32>
    %684 = vector.shape_cast %683 : vector<1x8x32xf32> to vector<8x32xf32>
    %cst_261 = arith.constant dense<0.000000e+00> : vector<16x32xf32>
    %685 = tpu.matmul %682, %684, %cst_261 {dimension_numbers = #tpu.dot_dimension_numbers<[1], [0], [0], [1], [0, 0, 1, 1], [], []>} : vector<16x8xf32>, vector<8x32xf32>, vector<16x32xf32> -> vector<16x32xf32>
    %686 = arith.addf %657, %685 : vector<16x32xf32>
    %687 = arith.addf %549, %686 : vector<16x32xf32>
    %c0_262 = arith.constant 0 : index
    %c0_263 = arith.constant 0 : index
    %c0_264 = arith.constant 0 : index
    %688 = vector.load %arg24[%c0_262, %c0_263, %c0_264] : memref<2x1x32xf32, #tpu.memory_space<vmem>>, vector<1x1x32xf32>
    %689 = vector.shape_cast %688 : vector<1x1x32xf32> to vector<1x32xf32>
    %690 = arith.mulf %687, %687 : vector<16x32xf32>
    %cst_265 = arith.constant dense<0.000000e+00> : vector<16xf32>
    %691 = vector.multi_reduction <add>, %690, %cst_265 [1] : vector<16x32xf32> to vector<16xf32>
    %692 = vector.shape_cast %691 : vector<16xf32> to vector<16x1xf32>
    %cst_266 = arith.constant 3.200000e+01 : f32
    %693 = vector.broadcast %cst_266 : f32 to vector<16x1xf32>
    %694 = arith.divf %692, %693 : vector<16x1xf32>
    %cst_267 = arith.constant 9.99999997E-7 : f32
    %695 = vector.broadcast %cst_267 : f32 to vector<16x1xf32>
    %696 = arith.addf %694, %695 : vector<16x1xf32>
    %697 = math.rsqrt %696 : vector<16x1xf32>
    %698 = vector.broadcast %697 : vector<16x1xf32> to vector<16x32xf32>
    %699 = arith.mulf %687, %698 : vector<16x32xf32>
    %700 = vector.broadcast %689 : vector<1x32xf32> to vector<16x32xf32>
    %701 = arith.mulf %699, %700 : vector<16x32xf32>
    %c0_268 = arith.constant 0 : index
    %c0_269 = arith.constant 0 : index
    %c0_270 = arith.constant 0 : index
    %702 = vector.load %arg25[%c0_268, %c0_269, %c0_270] : memref<2x32x64xf32, #tpu.memory_space<vmem>>, vector<1x32x64xf32>
    %703 = vector.shape_cast %702 : vector<1x32x64xf32> to vector<32x64xf32>
    %cst_271 = arith.constant dense<0.000000e+00> : vector<16x64xf32>
    %704 = tpu.matmul %701, %703, %cst_271 {dimension_numbers = #tpu.dot_dimension_numbers<[1], [0], [0], [1], [0, 0, 1, 1], [], []>} : vector<16x32xf32>, vector<32x64xf32>, vector<16x64xf32> -> vector<16x64xf32>
    %cst_272 = arith.constant 0.000000e+00 : f32
    %705 = vector.broadcast %cst_272 : f32 to vector<16x64xf32>
    %706 = arith.maximumf %704, %705 : vector<16x64xf32>
    %c0_273 = arith.constant 0 : index
    %c0_274 = arith.constant 0 : index
    %c0_275 = arith.constant 0 : index
    %707 = vector.load %arg26[%c0_273, %c0_274, %c0_275] : memref<2x64x32xf32, #tpu.memory_space<vmem>>, vector<1x64x32xf32>
    %708 = vector.shape_cast %707 : vector<1x64x32xf32> to vector<64x32xf32>
    %cst_276 = arith.constant dense<0.000000e+00> : vector<16x32xf32>
    %709 = tpu.matmul %706, %708, %cst_276 {dimension_numbers = #tpu.dot_dimension_numbers<[1], [0], [0], [1], [0, 0, 1, 1], [], []>} : vector<16x64xf32>, vector<64x32xf32>, vector<16x32xf32> -> vector<16x32xf32>
    %710 = arith.addf %687, %709 : vector<16x32xf32>
    %c1_277 = arith.constant 1 : index
    %c0_278 = arith.constant 0 : index
    %c0_279 = arith.constant 0 : index
    %711 = vector.load %arg14[%c1_277, %c0_278, %c0_279] : memref<2x1x32xf32, #tpu.memory_space<vmem>>, vector<1x1x32xf32>
    %712 = vector.shape_cast %711 : vector<1x1x32xf32> to vector<1x32xf32>
    %713 = arith.mulf %710, %710 : vector<16x32xf32>
    %cst_280 = arith.constant dense<0.000000e+00> : vector<16xf32>
    %714 = vector.multi_reduction <add>, %713, %cst_280 [1] : vector<16x32xf32> to vector<16xf32>
    %715 = vector.shape_cast %714 : vector<16xf32> to vector<16x1xf32>
    %cst_281 = arith.constant 3.200000e+01 : f32
    %716 = vector.broadcast %cst_281 : f32 to vector<16x1xf32>
    %717 = arith.divf %715, %716 : vector<16x1xf32>
    %cst_282 = arith.constant 9.99999997E-7 : f32
    %718 = vector.broadcast %cst_282 : f32 to vector<16x1xf32>
    %719 = arith.addf %717, %718 : vector<16x1xf32>
    %720 = math.rsqrt %719 : vector<16x1xf32>
    %721 = vector.broadcast %720 : vector<16x1xf32> to vector<16x32xf32>
    %722 = arith.mulf %710, %721 : vector<16x32xf32>
    %723 = vector.broadcast %712 : vector<1x32xf32> to vector<16x32xf32>
    %724 = arith.mulf %722, %723 : vector<16x32xf32>
    %c1_283 = arith.constant 1 : index
    %c0_284 = arith.constant 0 : index
    %c0_285 = arith.constant 0 : index
    %c0_286 = arith.constant 0 : index
    %725 = vector.load %arg15[%c1_283, %c0_284, %c0_285, %c0_286] : memref<2x4x32x8xf32, #tpu.memory_space<vmem>>, vector<1x4x32x8xf32>
    %726 = vector.shape_cast %725 : vector<1x4x32x8xf32> to vector<4x32x8xf32>
    %c1_287 = arith.constant 1 : index
    %c0_288 = arith.constant 0 : index
    %c0_289 = arith.constant 0 : index
    %c0_290 = arith.constant 0 : index
    %727 = vector.load %arg16[%c1_287, %c0_288, %c0_289, %c0_290] : memref<2x4x32x8xf32, #tpu.memory_space<vmem>>, vector<1x4x32x8xf32>
    %728 = vector.shape_cast %727 : vector<1x4x32x8xf32> to vector<4x32x8xf32>
    %c1_291 = arith.constant 1 : index
    %c0_292 = arith.constant 0 : index
    %c0_293 = arith.constant 0 : index
    %c0_294 = arith.constant 0 : index
    %729 = vector.load %arg17[%c1_291, %c0_292, %c0_293, %c0_294] : memref<2x4x32x8xf32, #tpu.memory_space<vmem>>, vector<1x4x32x8xf32>
    %730 = vector.shape_cast %729 : vector<1x4x32x8xf32> to vector<4x32x8xf32>
    %c1_295 = arith.constant 1 : index
    %c0_296 = arith.constant 0 : index
    %c0_297 = arith.constant 0 : index
    %c0_298 = arith.constant 0 : index
    %731 = vector.load %arg18[%c1_295, %c0_296, %c0_297, %c0_298] : memref<2x4x8x32xf32, #tpu.memory_space<vmem>>, vector<1x4x8x32xf32>
    %732 = vector.shape_cast %731 : vector<1x4x8x32xf32> to vector<4x8x32xf32>
    %733 = vector.extract_strided_slice %726 {offsets = [0, 0, 0], sizes = [1, 32, 8], strides = [1, 1, 1]} : vector<4x32x8xf32> to vector<1x32x8xf32>
    %734 = vector.shape_cast %733 : vector<1x32x8xf32> to vector<32x8xf32>
    %cst_299 = arith.constant dense<0.000000e+00> : vector<16x8xf32>
    %735 = tpu.matmul %724, %734, %cst_299 {dimension_numbers = #tpu.dot_dimension_numbers<[1], [0], [0], [1], [0, 0, 1, 1], [], []>} : vector<16x32xf32>, vector<32x8xf32>, vector<16x8xf32> -> vector<16x8xf32>
    %736 = vector.shape_cast %735 : vector<16x8xf32> to vector<2x8x8xf32>
    %737 = vector.extract_strided_slice %728 {offsets = [0, 0, 0], sizes = [1, 32, 8], strides = [1, 1, 1]} : vector<4x32x8xf32> to vector<1x32x8xf32>
    %738 = vector.shape_cast %737 : vector<1x32x8xf32> to vector<32x8xf32>
    %cst_300 = arith.constant dense<0.000000e+00> : vector<16x8xf32>
    %739 = tpu.matmul %724, %738, %cst_300 {dimension_numbers = #tpu.dot_dimension_numbers<[1], [0], [0], [1], [0, 0, 1, 1], [], []>} : vector<16x32xf32>, vector<32x8xf32>, vector<16x8xf32> -> vector<16x8xf32>
    %740 = vector.shape_cast %739 : vector<16x8xf32> to vector<2x8x8xf32>
    %741 = vector.extract_strided_slice %730 {offsets = [0, 0, 0], sizes = [1, 32, 8], strides = [1, 1, 1]} : vector<4x32x8xf32> to vector<1x32x8xf32>
    %742 = vector.shape_cast %741 : vector<1x32x8xf32> to vector<32x8xf32>
    %cst_301 = arith.constant dense<0.000000e+00> : vector<16x8xf32>
    %743 = tpu.matmul %724, %742, %cst_301 {dimension_numbers = #tpu.dot_dimension_numbers<[1], [0], [0], [1], [0, 0, 1, 1], [], []>} : vector<16x32xf32>, vector<32x8xf32>, vector<16x8xf32> -> vector<16x8xf32>
    %744 = vector.shape_cast %743 : vector<16x8xf32> to vector<2x8x8xf32>
    "tpu.trace_start"() <{level = 10 : i32, message = "bqd,bkd->bqk"}> : () -> ()
    %cst_302 = arith.constant dense<0.000000e+00> : vector<2x8x8xf32>
    %745 = tpu.matmul %736, %740, %cst_302 {dimension_numbers = #tpu.dot_dimension_numbers<[2], [2], [1], [1], [0, 0, 0, 1, 1, 1], [0], [0]>} : vector<2x8x8xf32>, vector<2x8x8xf32>, vector<2x8x8xf32> -> vector<2x8x8xf32>
    "tpu.trace_stop"() : () -> ()
    %746 = vector.extract_strided_slice %391 {offsets = [0, 0, 0], sizes = [1, 8, 8], strides = [1, 1, 1]} : vector<4x8x8xf32> to vector<1x8x8xf32>
    %747 = vector.shape_cast %746 : vector<1x8x8xf32> to vector<8x8xf32>
    %748 = vector.shape_cast %747 : vector<8x8xf32> to vector<1x8x8xf32>
    %749 = vector.broadcast %748 : vector<1x8x8xf32> to vector<2x8x8xf32>
    %750 = arith.addf %745, %749 : vector<2x8x8xf32>
    %cst_303 = arith.constant dense<0xFF800000> : vector<2x8xf32>
    %751 = vector.multi_reduction <maximumf>, %750, %cst_303 [2] : vector<2x8x8xf32> to vector<2x8xf32>
    %752 = vector.shape_cast %751 : vector<2x8xf32> to vector<2x8x1xf32>
    %753 = vector.broadcast %752 : vector<2x8x1xf32> to vector<2x8x8xf32>
    %754 = arith.subf %750, %753 : vector<2x8x8xf32>
    %755 = math.exp %754 : vector<2x8x8xf32>
    %cst_304 = arith.constant dense<0.000000e+00> : vector<2x8xf32>
    %756 = vector.multi_reduction <add>, %755, %cst_304 [2] : vector<2x8x8xf32> to vector<2x8xf32>
    %757 = vector.shape_cast %756 : vector<2x8xf32> to vector<2x8x1xf32>
    %758 = tpu.reciprocal %757 {approx = true} : vector<2x8x1xf32> -> vector<2x8x1xf32>
    %759 = vector.broadcast %758 : vector<2x8x1xf32> to vector<2x8x8xf32>
    %760 = arith.mulf %755, %759 : vector<2x8x8xf32>
    "tpu.trace_start"() <{level = 10 : i32, message = "bqk,bkd->bqd"}> : () -> ()
    %cst_305 = arith.constant dense<0.000000e+00> : vector<2x8x8xf32>
    %761 = tpu.matmul %760, %744, %cst_305 {dimension_numbers = #tpu.dot_dimension_numbers<[2], [1], [1], [2], [0, 0, 0, 1, 1, 2], [0], [0]>} : vector<2x8x8xf32>, vector<2x8x8xf32>, vector<2x8x8xf32> -> vector<2x8x8xf32>
    "tpu.trace_stop"() : () -> ()
    %762 = vector.shape_cast %761 : vector<2x8x8xf32> to vector<16x8xf32>
    %763 = vector.extract_strided_slice %732 {offsets = [0, 0, 0], sizes = [1, 8, 32], strides = [1, 1, 1]} : vector<4x8x32xf32> to vector<1x8x32xf32>
    %764 = vector.shape_cast %763 : vector<1x8x32xf32> to vector<8x32xf32>
    %cst_306 = arith.constant dense<0.000000e+00> : vector<16x32xf32>
    %765 = tpu.matmul %762, %764, %cst_306 {dimension_numbers = #tpu.dot_dimension_numbers<[1], [0], [0], [1], [0, 0, 1, 1], [], []>} : vector<16x8xf32>, vector<8x32xf32>, vector<16x32xf32> -> vector<16x32xf32>
    %766 = vector.extract_strided_slice %726 {offsets = [1, 0, 0], sizes = [1, 32, 8], strides = [1, 1, 1]} : vector<4x32x8xf32> to vector<1x32x8xf32>
    %767 = vector.shape_cast %766 : vector<1x32x8xf32> to vector<32x8xf32>
    %cst_307 = arith.constant dense<0.000000e+00> : vector<16x8xf32>
    %768 = tpu.matmul %724, %767, %cst_307 {dimension_numbers = #tpu.dot_dimension_numbers<[1], [0], [0], [1], [0, 0, 1, 1], [], []>} : vector<16x32xf32>, vector<32x8xf32>, vector<16x8xf32> -> vector<16x8xf32>
    %769 = vector.shape_cast %768 : vector<16x8xf32> to vector<2x8x8xf32>
    %770 = vector.extract_strided_slice %728 {offsets = [1, 0, 0], sizes = [1, 32, 8], strides = [1, 1, 1]} : vector<4x32x8xf32> to vector<1x32x8xf32>
    %771 = vector.shape_cast %770 : vector<1x32x8xf32> to vector<32x8xf32>
    %cst_308 = arith.constant dense<0.000000e+00> : vector<16x8xf32>
    %772 = tpu.matmul %724, %771, %cst_308 {dimension_numbers = #tpu.dot_dimension_numbers<[1], [0], [0], [1], [0, 0, 1, 1], [], []>} : vector<16x32xf32>, vector<32x8xf32>, vector<16x8xf32> -> vector<16x8xf32>
    %773 = vector.shape_cast %772 : vector<16x8xf32> to vector<2x8x8xf32>
    %774 = vector.extract_strided_slice %730 {offsets = [1, 0, 0], sizes = [1, 32, 8], strides = [1, 1, 1]} : vector<4x32x8xf32> to vector<1x32x8xf32>
    %775 = vector.shape_cast %774 : vector<1x32x8xf32> to vector<32x8xf32>
    %cst_309 = arith.constant dense<0.000000e+00> : vector<16x8xf32>
    %776 = tpu.matmul %724, %775, %cst_309 {dimension_numbers = #tpu.dot_dimension_numbers<[1], [0], [0], [1], [0, 0, 1, 1], [], []>} : vector<16x32xf32>, vector<32x8xf32>, vector<16x8xf32> -> vector<16x8xf32>
    %777 = vector.shape_cast %776 : vector<16x8xf32> to vector<2x8x8xf32>
    "tpu.trace_start"() <{level = 10 : i32, message = "bqd,bkd->bqk"}> : () -> ()
    %cst_310 = arith.constant dense<0.000000e+00> : vector<2x8x8xf32>
    %778 = tpu.matmul %769, %773, %cst_310 {dimension_numbers = #tpu.dot_dimension_numbers<[2], [2], [1], [1], [0, 0, 0, 1, 1, 1], [0], [0]>} : vector<2x8x8xf32>, vector<2x8x8xf32>, vector<2x8x8xf32> -> vector<2x8x8xf32>
    "tpu.trace_stop"() : () -> ()
    %779 = vector.extract_strided_slice %391 {offsets = [1, 0, 0], sizes = [1, 8, 8], strides = [1, 1, 1]} : vector<4x8x8xf32> to vector<1x8x8xf32>
    %780 = vector.shape_cast %779 : vector<1x8x8xf32> to vector<8x8xf32>
    %781 = vector.shape_cast %780 : vector<8x8xf32> to vector<1x8x8xf32>
    %782 = vector.broadcast %781 : vector<1x8x8xf32> to vector<2x8x8xf32>
    %783 = arith.addf %778, %782 : vector<2x8x8xf32>
    %cst_311 = arith.constant dense<0xFF800000> : vector<2x8xf32>
    %784 = vector.multi_reduction <maximumf>, %783, %cst_311 [2] : vector<2x8x8xf32> to vector<2x8xf32>
    %785 = vector.shape_cast %784 : vector<2x8xf32> to vector<2x8x1xf32>
    %786 = vector.broadcast %785 : vector<2x8x1xf32> to vector<2x8x8xf32>
    %787 = arith.subf %783, %786 : vector<2x8x8xf32>
    %788 = math.exp %787 : vector<2x8x8xf32>
    %cst_312 = arith.constant dense<0.000000e+00> : vector<2x8xf32>
    %789 = vector.multi_reduction <add>, %788, %cst_312 [2] : vector<2x8x8xf32> to vector<2x8xf32>
    %790 = vector.shape_cast %789 : vector<2x8xf32> to vector<2x8x1xf32>
    %791 = tpu.reciprocal %790 {approx = true} : vector<2x8x1xf32> -> vector<2x8x1xf32>
    %792 = vector.broadcast %791 : vector<2x8x1xf32> to vector<2x8x8xf32>
    %793 = arith.mulf %788, %792 : vector<2x8x8xf32>
    "tpu.trace_start"() <{level = 10 : i32, message = "bqk,bkd->bqd"}> : () -> ()
    %cst_313 = arith.constant dense<0.000000e+00> : vector<2x8x8xf32>
    %794 = tpu.matmul %793, %777, %cst_313 {dimension_numbers = #tpu.dot_dimension_numbers<[2], [1], [1], [2], [0, 0, 0, 1, 1, 2], [0], [0]>} : vector<2x8x8xf32>, vector<2x8x8xf32>, vector<2x8x8xf32> -> vector<2x8x8xf32>
    "tpu.trace_stop"() : () -> ()
    %795 = vector.shape_cast %794 : vector<2x8x8xf32> to vector<16x8xf32>
    %796 = vector.extract_strided_slice %732 {offsets = [1, 0, 0], sizes = [1, 8, 32], strides = [1, 1, 1]} : vector<4x8x32xf32> to vector<1x8x32xf32>
    %797 = vector.shape_cast %796 : vector<1x8x32xf32> to vector<8x32xf32>
    %cst_314 = arith.constant dense<0.000000e+00> : vector<16x32xf32>
    %798 = tpu.matmul %795, %797, %cst_314 {dimension_numbers = #tpu.dot_dimension_numbers<[1], [0], [0], [1], [0, 0, 1, 1], [], []>} : vector<16x8xf32>, vector<8x32xf32>, vector<16x32xf32> -> vector<16x32xf32>
    %799 = arith.addf %765, %798 : vector<16x32xf32>
    %800 = vector.extract_strided_slice %726 {offsets = [2, 0, 0], sizes = [1, 32, 8], strides = [1, 1, 1]} : vector<4x32x8xf32> to vector<1x32x8xf32>
    %801 = vector.shape_cast %800 : vector<1x32x8xf32> to vector<32x8xf32>
    %cst_315 = arith.constant dense<0.000000e+00> : vector<16x8xf32>
    %802 = tpu.matmul %724, %801, %cst_315 {dimension_numbers = #tpu.dot_dimension_numbers<[1], [0], [0], [1], [0, 0, 1, 1], [], []>} : vector<16x32xf32>, vector<32x8xf32>, vector<16x8xf32> -> vector<16x8xf32>
    %803 = vector.shape_cast %802 : vector<16x8xf32> to vector<2x8x8xf32>
    %804 = vector.extract_strided_slice %728 {offsets = [2, 0, 0], sizes = [1, 32, 8], strides = [1, 1, 1]} : vector<4x32x8xf32> to vector<1x32x8xf32>
    %805 = vector.shape_cast %804 : vector<1x32x8xf32> to vector<32x8xf32>
    %cst_316 = arith.constant dense<0.000000e+00> : vector<16x8xf32>
    %806 = tpu.matmul %724, %805, %cst_316 {dimension_numbers = #tpu.dot_dimension_numbers<[1], [0], [0], [1], [0, 0, 1, 1], [], []>} : vector<16x32xf32>, vector<32x8xf32>, vector<16x8xf32> -> vector<16x8xf32>
    %807 = vector.shape_cast %806 : vector<16x8xf32> to vector<2x8x8xf32>
    %808 = vector.extract_strided_slice %730 {offsets = [2, 0, 0], sizes = [1, 32, 8], strides = [1, 1, 1]} : vector<4x32x8xf32> to vector<1x32x8xf32>
    %809 = vector.shape_cast %808 : vector<1x32x8xf32> to vector<32x8xf32>
    %cst_317 = arith.constant dense<0.000000e+00> : vector<16x8xf32>
    %810 = tpu.matmul %724, %809, %cst_317 {dimension_numbers = #tpu.dot_dimension_numbers<[1], [0], [0], [1], [0, 0, 1, 1], [], []>} : vector<16x32xf32>, vector<32x8xf32>, vector<16x8xf32> -> vector<16x8xf32>
    %811 = vector.shape_cast %810 : vector<16x8xf32> to vector<2x8x8xf32>
    "tpu.trace_start"() <{level = 10 : i32, message = "bqd,bkd->bqk"}> : () -> ()
    %cst_318 = arith.constant dense<0.000000e+00> : vector<2x8x8xf32>
    %812 = tpu.matmul %803, %807, %cst_318 {dimension_numbers = #tpu.dot_dimension_numbers<[2], [2], [1], [1], [0, 0, 0, 1, 1, 1], [0], [0]>} : vector<2x8x8xf32>, vector<2x8x8xf32>, vector<2x8x8xf32> -> vector<2x8x8xf32>
    "tpu.trace_stop"() : () -> ()
    %813 = vector.extract_strided_slice %391 {offsets = [2, 0, 0], sizes = [1, 8, 8], strides = [1, 1, 1]} : vector<4x8x8xf32> to vector<1x8x8xf32>
    %814 = vector.shape_cast %813 : vector<1x8x8xf32> to vector<8x8xf32>
    %815 = vector.shape_cast %814 : vector<8x8xf32> to vector<1x8x8xf32>
    %816 = vector.broadcast %815 : vector<1x8x8xf32> to vector<2x8x8xf32>
    %817 = arith.addf %812, %816 : vector<2x8x8xf32>
    %cst_319 = arith.constant dense<0xFF800000> : vector<2x8xf32>
    %818 = vector.multi_reduction <maximumf>, %817, %cst_319 [2] : vector<2x8x8xf32> to vector<2x8xf32>
    %819 = vector.shape_cast %818 : vector<2x8xf32> to vector<2x8x1xf32>
    %820 = vector.broadcast %819 : vector<2x8x1xf32> to vector<2x8x8xf32>
    %821 = arith.subf %817, %820 : vector<2x8x8xf32>
    %822 = math.exp %821 : vector<2x8x8xf32>
    %cst_320 = arith.constant dense<0.000000e+00> : vector<2x8xf32>
    %823 = vector.multi_reduction <add>, %822, %cst_320 [2] : vector<2x8x8xf32> to vector<2x8xf32>
    %824 = vector.shape_cast %823 : vector<2x8xf32> to vector<2x8x1xf32>
    %825 = tpu.reciprocal %824 {approx = true} : vector<2x8x1xf32> -> vector<2x8x1xf32>
    %826 = vector.broadcast %825 : vector<2x8x1xf32> to vector<2x8x8xf32>
    %827 = arith.mulf %822, %826 : vector<2x8x8xf32>
    "tpu.trace_start"() <{level = 10 : i32, message = "bqk,bkd->bqd"}> : () -> ()
    %cst_321 = arith.constant dense<0.000000e+00> : vector<2x8x8xf32>
    %828 = tpu.matmul %827, %811, %cst_321 {dimension_numbers = #tpu.dot_dimension_numbers<[2], [1], [1], [2], [0, 0, 0, 1, 1, 2], [0], [0]>} : vector<2x8x8xf32>, vector<2x8x8xf32>, vector<2x8x8xf32> -> vector<2x8x8xf32>
    "tpu.trace_stop"() : () -> ()
    %829 = vector.shape_cast %828 : vector<2x8x8xf32> to vector<16x8xf32>
    %830 = vector.extract_strided_slice %732 {offsets = [2, 0, 0], sizes = [1, 8, 32], strides = [1, 1, 1]} : vector<4x8x32xf32> to vector<1x8x32xf32>
    %831 = vector.shape_cast %830 : vector<1x8x32xf32> to vector<8x32xf32>
    %cst_322 = arith.constant dense<0.000000e+00> : vector<16x32xf32>
    %832 = tpu.matmul %829, %831, %cst_322 {dimension_numbers = #tpu.dot_dimension_numbers<[1], [0], [0], [1], [0, 0, 1, 1], [], []>} : vector<16x8xf32>, vector<8x32xf32>, vector<16x32xf32> -> vector<16x32xf32>
    %833 = arith.addf %799, %832 : vector<16x32xf32>
    %834 = vector.extract_strided_slice %726 {offsets = [3, 0, 0], sizes = [1, 32, 8], strides = [1, 1, 1]} : vector<4x32x8xf32> to vector<1x32x8xf32>
    %835 = vector.shape_cast %834 : vector<1x32x8xf32> to vector<32x8xf32>
    %cst_323 = arith.constant dense<0.000000e+00> : vector<16x8xf32>
    %836 = tpu.matmul %724, %835, %cst_323 {dimension_numbers = #tpu.dot_dimension_numbers<[1], [0], [0], [1], [0, 0, 1, 1], [], []>} : vector<16x32xf32>, vector<32x8xf32>, vector<16x8xf32> -> vector<16x8xf32>
    %837 = vector.shape_cast %836 : vector<16x8xf32> to vector<2x8x8xf32>
    %838 = vector.extract_strided_slice %728 {offsets = [3, 0, 0], sizes = [1, 32, 8], strides = [1, 1, 1]} : vector<4x32x8xf32> to vector<1x32x8xf32>
    %839 = vector.shape_cast %838 : vector<1x32x8xf32> to vector<32x8xf32>
    %cst_324 = arith.constant dense<0.000000e+00> : vector<16x8xf32>
    %840 = tpu.matmul %724, %839, %cst_324 {dimension_numbers = #tpu.dot_dimension_numbers<[1], [0], [0], [1], [0, 0, 1, 1], [], []>} : vector<16x32xf32>, vector<32x8xf32>, vector<16x8xf32> -> vector<16x8xf32>
    %841 = vector.shape_cast %840 : vector<16x8xf32> to vector<2x8x8xf32>
    %842 = vector.extract_strided_slice %730 {offsets = [3, 0, 0], sizes = [1, 32, 8], strides = [1, 1, 1]} : vector<4x32x8xf32> to vector<1x32x8xf32>
    %843 = vector.shape_cast %842 : vector<1x32x8xf32> to vector<32x8xf32>
    %cst_325 = arith.constant dense<0.000000e+00> : vector<16x8xf32>
    %844 = tpu.matmul %724, %843, %cst_325 {dimension_numbers = #tpu.dot_dimension_numbers<[1], [0], [0], [1], [0, 0, 1, 1], [], []>} : vector<16x32xf32>, vector<32x8xf32>, vector<16x8xf32> -> vector<16x8xf32>
    %845 = vector.shape_cast %844 : vector<16x8xf32> to vector<2x8x8xf32>
    "tpu.trace_start"() <{level = 10 : i32, message = "bqd,bkd->bqk"}> : () -> ()
    %cst_326 = arith.constant dense<0.000000e+00> : vector<2x8x8xf32>
    %846 = tpu.matmul %837, %841, %cst_326 {dimension_numbers = #tpu.dot_dimension_numbers<[2], [2], [1], [1], [0, 0, 0, 1, 1, 1], [0], [0]>} : vector<2x8x8xf32>, vector<2x8x8xf32>, vector<2x8x8xf32> -> vector<2x8x8xf32>
    "tpu.trace_stop"() : () -> ()
    %847 = vector.extract_strided_slice %391 {offsets = [3, 0, 0], sizes = [1, 8, 8], strides = [1, 1, 1]} : vector<4x8x8xf32> to vector<1x8x8xf32>
    %848 = vector.shape_cast %847 : vector<1x8x8xf32> to vector<8x8xf32>
    %849 = vector.shape_cast %848 : vector<8x8xf32> to vector<1x8x8xf32>
    %850 = vector.broadcast %849 : vector<1x8x8xf32> to vector<2x8x8xf32>
    %851 = arith.addf %846, %850 : vector<2x8x8xf32>
    %cst_327 = arith.constant dense<0xFF800000> : vector<2x8xf32>
    %852 = vector.multi_reduction <maximumf>, %851, %cst_327 [2] : vector<2x8x8xf32> to vector<2x8xf32>
    %853 = vector.shape_cast %852 : vector<2x8xf32> to vector<2x8x1xf32>
    %854 = vector.broadcast %853 : vector<2x8x1xf32> to vector<2x8x8xf32>
    %855 = arith.subf %851, %854 : vector<2x8x8xf32>
    %856 = math.exp %855 : vector<2x8x8xf32>
    %cst_328 = arith.constant dense<0.000000e+00> : vector<2x8xf32>
    %857 = vector.multi_reduction <add>, %856, %cst_328 [2] : vector<2x8x8xf32> to vector<2x8xf32>
    %858 = vector.shape_cast %857 : vector<2x8xf32> to vector<2x8x1xf32>
    %859 = tpu.reciprocal %858 {approx = true} : vector<2x8x1xf32> -> vector<2x8x1xf32>
    %860 = vector.broadcast %859 : vector<2x8x1xf32> to vector<2x8x8xf32>
    %861 = arith.mulf %856, %860 : vector<2x8x8xf32>
    "tpu.trace_start"() <{level = 10 : i32, message = "bqk,bkd->bqd"}> : () -> ()
    %cst_329 = arith.constant dense<0.000000e+00> : vector<2x8x8xf32>
    %862 = tpu.matmul %861, %845, %cst_329 {dimension_numbers = #tpu.dot_dimension_numbers<[2], [1], [1], [2], [0, 0, 0, 1, 1, 2], [0], [0]>} : vector<2x8x8xf32>, vector<2x8x8xf32>, vector<2x8x8xf32> -> vector<2x8x8xf32>
    "tpu.trace_stop"() : () -> ()
    %863 = vector.shape_cast %862 : vector<2x8x8xf32> to vector<16x8xf32>
    %864 = vector.extract_strided_slice %732 {offsets = [3, 0, 0], sizes = [1, 8, 32], strides = [1, 1, 1]} : vector<4x8x32xf32> to vector<1x8x32xf32>
    %865 = vector.shape_cast %864 : vector<1x8x32xf32> to vector<8x32xf32>
    %cst_330 = arith.constant dense<0.000000e+00> : vector<16x32xf32>
    %866 = tpu.matmul %863, %865, %cst_330 {dimension_numbers = #tpu.dot_dimension_numbers<[1], [0], [0], [1], [0, 0, 1, 1], [], []>} : vector<16x8xf32>, vector<8x32xf32>, vector<16x32xf32> -> vector<16x32xf32>
    %867 = arith.addf %833, %866 : vector<16x32xf32>
    %868 = arith.addf %710, %867 : vector<16x32xf32>
    %c1_331 = arith.constant 1 : index
    %c0_332 = arith.constant 0 : index
    %c0_333 = arith.constant 0 : index
    %869 = vector.load %arg19[%c1_331, %c0_332, %c0_333] : memref<2x1x32xf32, #tpu.memory_space<vmem>>, vector<1x1x32xf32>
    %870 = vector.shape_cast %869 : vector<1x1x32xf32> to vector<1x32xf32>
    %871 = arith.mulf %868, %868 : vector<16x32xf32>
    %cst_334 = arith.constant dense<0.000000e+00> : vector<16xf32>
    %872 = vector.multi_reduction <add>, %871, %cst_334 [1] : vector<16x32xf32> to vector<16xf32>
    %873 = vector.shape_cast %872 : vector<16xf32> to vector<16x1xf32>
    %cst_335 = arith.constant 3.200000e+01 : f32
    %874 = vector.broadcast %cst_335 : f32 to vector<16x1xf32>
    %875 = arith.divf %873, %874 : vector<16x1xf32>
    %cst_336 = arith.constant 9.99999997E-7 : f32
    %876 = vector.broadcast %cst_336 : f32 to vector<16x1xf32>
    %877 = arith.addf %875, %876 : vector<16x1xf32>
    %878 = math.rsqrt %877 : vector<16x1xf32>
    %879 = vector.broadcast %878 : vector<16x1xf32> to vector<16x32xf32>
    %880 = arith.mulf %868, %879 : vector<16x32xf32>
    %881 = vector.broadcast %870 : vector<1x32xf32> to vector<16x32xf32>
    %882 = arith.mulf %880, %881 : vector<16x32xf32>
    %c1_337 = arith.constant 1 : index
    %c0_338 = arith.constant 0 : index
    %c0_339 = arith.constant 0 : index
    %c0_340 = arith.constant 0 : index
    %883 = vector.load %arg20[%c1_337, %c0_338, %c0_339, %c0_340] : memref<2x4x32x8xf32, #tpu.memory_space<vmem>>, vector<1x4x32x8xf32>
    %884 = vector.shape_cast %883 : vector<1x4x32x8xf32> to vector<4x32x8xf32>
    %c1_341 = arith.constant 1 : index
    %c0_342 = arith.constant 0 : index
    %c0_343 = arith.constant 0 : index
    %c0_344 = arith.constant 0 : index
    %885 = vector.load %arg21[%c1_341, %c0_342, %c0_343, %c0_344] : memref<2x4x32x8xf32, #tpu.memory_space<vmem>>, vector<1x4x32x8xf32>
    %886 = vector.shape_cast %885 : vector<1x4x32x8xf32> to vector<4x32x8xf32>
    %c1_345 = arith.constant 1 : index
    %c0_346 = arith.constant 0 : index
    %c0_347 = arith.constant 0 : index
    %c0_348 = arith.constant 0 : index
    %887 = vector.load %arg22[%c1_345, %c0_346, %c0_347, %c0_348] : memref<2x4x32x8xf32, #tpu.memory_space<vmem>>, vector<1x4x32x8xf32>
    %888 = vector.shape_cast %887 : vector<1x4x32x8xf32> to vector<4x32x8xf32>
    %c1_349 = arith.constant 1 : index
    %c0_350 = arith.constant 0 : index
    %c0_351 = arith.constant 0 : index
    %c0_352 = arith.constant 0 : index
    %889 = vector.load %arg23[%c1_349, %c0_350, %c0_351, %c0_352] : memref<2x4x8x32xf32, #tpu.memory_space<vmem>>, vector<1x4x8x32xf32>
    %890 = vector.shape_cast %889 : vector<1x4x8x32xf32> to vector<4x8x32xf32>
    %891 = vector.extract_strided_slice %884 {offsets = [0, 0, 0], sizes = [1, 32, 8], strides = [1, 1, 1]} : vector<4x32x8xf32> to vector<1x32x8xf32>
    %892 = vector.shape_cast %891 : vector<1x32x8xf32> to vector<32x8xf32>
    %cst_353 = arith.constant dense<0.000000e+00> : vector<16x8xf32>
    %893 = tpu.matmul %882, %892, %cst_353 {dimension_numbers = #tpu.dot_dimension_numbers<[1], [0], [0], [1], [0, 0, 1, 1], [], []>} : vector<16x32xf32>, vector<32x8xf32>, vector<16x8xf32> -> vector<16x8xf32>
    %894 = vector.shape_cast %893 : vector<16x8xf32> to vector<2x8x8xf32>
    %895 = vector.extract_strided_slice %886 {offsets = [0, 0, 0], sizes = [1, 32, 8], strides = [1, 1, 1]} : vector<4x32x8xf32> to vector<1x32x8xf32>
    %896 = vector.shape_cast %895 : vector<1x32x8xf32> to vector<32x8xf32>
    %cst_354 = arith.constant dense<0.000000e+00> : vector<16x8xf32>
    %897 = tpu.matmul %383, %896, %cst_354 {dimension_numbers = #tpu.dot_dimension_numbers<[1], [0], [0], [1], [0, 0, 1, 1], [], []>} : vector<16x32xf32>, vector<32x8xf32>, vector<16x8xf32> -> vector<16x8xf32>
    %898 = vector.shape_cast %897 : vector<16x8xf32> to vector<2x8x8xf32>
    %899 = vector.extract_strided_slice %888 {offsets = [0, 0, 0], sizes = [1, 32, 8], strides = [1, 1, 1]} : vector<4x32x8xf32> to vector<1x32x8xf32>
    %900 = vector.shape_cast %899 : vector<1x32x8xf32> to vector<32x8xf32>
    %cst_355 = arith.constant dense<0.000000e+00> : vector<16x8xf32>
    %901 = tpu.matmul %383, %900, %cst_355 {dimension_numbers = #tpu.dot_dimension_numbers<[1], [0], [0], [1], [0, 0, 1, 1], [], []>} : vector<16x32xf32>, vector<32x8xf32>, vector<16x8xf32> -> vector<16x8xf32>
    %902 = vector.shape_cast %901 : vector<16x8xf32> to vector<2x8x8xf32>
    "tpu.trace_start"() <{level = 10 : i32, message = "bqd,bkd->bqk"}> : () -> ()
    %cst_356 = arith.constant dense<0.000000e+00> : vector<2x8x8xf32>
    %903 = tpu.matmul %894, %898, %cst_356 {dimension_numbers = #tpu.dot_dimension_numbers<[2], [2], [1], [1], [0, 0, 0, 1, 1, 1], [0], [0]>} : vector<2x8x8xf32>, vector<2x8x8xf32>, vector<2x8x8xf32> -> vector<2x8x8xf32>
    "tpu.trace_stop"() : () -> ()
    %cst_357 = arith.constant dense<0xFF800000> : vector<2x8xf32>
    %904 = vector.multi_reduction <maximumf>, %903, %cst_357 [2] : vector<2x8x8xf32> to vector<2x8xf32>
    %905 = vector.shape_cast %904 : vector<2x8xf32> to vector<2x8x1xf32>
    %906 = vector.broadcast %905 : vector<2x8x1xf32> to vector<2x8x8xf32>
    %907 = arith.subf %903, %906 : vector<2x8x8xf32>
    %908 = math.exp %907 : vector<2x8x8xf32>
    %cst_358 = arith.constant dense<0.000000e+00> : vector<2x8xf32>
    %909 = vector.multi_reduction <add>, %908, %cst_358 [2] : vector<2x8x8xf32> to vector<2x8xf32>
    %910 = vector.shape_cast %909 : vector<2x8xf32> to vector<2x8x1xf32>
    %911 = tpu.reciprocal %910 {approx = true} : vector<2x8x1xf32> -> vector<2x8x1xf32>
    %912 = vector.broadcast %911 : vector<2x8x1xf32> to vector<2x8x8xf32>
    %913 = arith.mulf %908, %912 : vector<2x8x8xf32>
    "tpu.trace_start"() <{level = 10 : i32, message = "bqk,bkd->bqd"}> : () -> ()
    %cst_359 = arith.constant dense<0.000000e+00> : vector<2x8x8xf32>
    %914 = tpu.matmul %913, %902, %cst_359 {dimension_numbers = #tpu.dot_dimension_numbers<[2], [1], [1], [2], [0, 0, 0, 1, 1, 2], [0], [0]>} : vector<2x8x8xf32>, vector<2x8x8xf32>, vector<2x8x8xf32> -> vector<2x8x8xf32>
    "tpu.trace_stop"() : () -> ()
    %915 = vector.shape_cast %914 : vector<2x8x8xf32> to vector<16x8xf32>
    %916 = vector.extract_strided_slice %890 {offsets = [0, 0, 0], sizes = [1, 8, 32], strides = [1, 1, 1]} : vector<4x8x32xf32> to vector<1x8x32xf32>
    %917 = vector.shape_cast %916 : vector<1x8x32xf32> to vector<8x32xf32>
    %cst_360 = arith.constant dense<0.000000e+00> : vector<16x32xf32>
    %918 = tpu.matmul %915, %917, %cst_360 {dimension_numbers = #tpu.dot_dimension_numbers<[1], [0], [0], [1], [0, 0, 1, 1], [], []>} : vector<16x8xf32>, vector<8x32xf32>, vector<16x32xf32> -> vector<16x32xf32>
    %919 = vector.extract_strided_slice %884 {offsets = [1, 0, 0], sizes = [1, 32, 8], strides = [1, 1, 1]} : vector<4x32x8xf32> to vector<1x32x8xf32>
    %920 = vector.shape_cast %919 : vector<1x32x8xf32> to vector<32x8xf32>
    %cst_361 = arith.constant dense<0.000000e+00> : vector<16x8xf32>
    %921 = tpu.matmul %882, %920, %cst_361 {dimension_numbers = #tpu.dot_dimension_numbers<[1], [0], [0], [1], [0, 0, 1, 1], [], []>} : vector<16x32xf32>, vector<32x8xf32>, vector<16x8xf32> -> vector<16x8xf32>
    %922 = vector.shape_cast %921 : vector<16x8xf32> to vector<2x8x8xf32>
    %923 = vector.extract_strided_slice %886 {offsets = [1, 0, 0], sizes = [1, 32, 8], strides = [1, 1, 1]} : vector<4x32x8xf32> to vector<1x32x8xf32>
    %924 = vector.shape_cast %923 : vector<1x32x8xf32> to vector<32x8xf32>
    %cst_362 = arith.constant dense<0.000000e+00> : vector<16x8xf32>
    %925 = tpu.matmul %383, %924, %cst_362 {dimension_numbers = #tpu.dot_dimension_numbers<[1], [0], [0], [1], [0, 0, 1, 1], [], []>} : vector<16x32xf32>, vector<32x8xf32>, vector<16x8xf32> -> vector<16x8xf32>
    %926 = vector.shape_cast %925 : vector<16x8xf32> to vector<2x8x8xf32>
    %927 = vector.extract_strided_slice %888 {offsets = [1, 0, 0], sizes = [1, 32, 8], strides = [1, 1, 1]} : vector<4x32x8xf32> to vector<1x32x8xf32>
    %928 = vector.shape_cast %927 : vector<1x32x8xf32> to vector<32x8xf32>
    %cst_363 = arith.constant dense<0.000000e+00> : vector<16x8xf32>
    %929 = tpu.matmul %383, %928, %cst_363 {dimension_numbers = #tpu.dot_dimension_numbers<[1], [0], [0], [1], [0, 0, 1, 1], [], []>} : vector<16x32xf32>, vector<32x8xf32>, vector<16x8xf32> -> vector<16x8xf32>
    %930 = vector.shape_cast %929 : vector<16x8xf32> to vector<2x8x8xf32>
    "tpu.trace_start"() <{level = 10 : i32, message = "bqd,bkd->bqk"}> : () -> ()
    %cst_364 = arith.constant dense<0.000000e+00> : vector<2x8x8xf32>
    %931 = tpu.matmul %922, %926, %cst_364 {dimension_numbers = #tpu.dot_dimension_numbers<[2], [2], [1], [1], [0, 0, 0, 1, 1, 1], [0], [0]>} : vector<2x8x8xf32>, vector<2x8x8xf32>, vector<2x8x8xf32> -> vector<2x8x8xf32>
    "tpu.trace_stop"() : () -> ()
    %cst_365 = arith.constant dense<0xFF800000> : vector<2x8xf32>
    %932 = vector.multi_reduction <maximumf>, %931, %cst_365 [2] : vector<2x8x8xf32> to vector<2x8xf32>
    %933 = vector.shape_cast %932 : vector<2x8xf32> to vector<2x8x1xf32>
    %934 = vector.broadcast %933 : vector<2x8x1xf32> to vector<2x8x8xf32>
    %935 = arith.subf %931, %934 : vector<2x8x8xf32>
    %936 = math.exp %935 : vector<2x8x8xf32>
    %cst_366 = arith.constant dense<0.000000e+00> : vector<2x8xf32>
    %937 = vector.multi_reduction <add>, %936, %cst_366 [2] : vector<2x8x8xf32> to vector<2x8xf32>
    %938 = vector.shape_cast %937 : vector<2x8xf32> to vector<2x8x1xf32>
    %939 = tpu.reciprocal %938 {approx = true} : vector<2x8x1xf32> -> vector<2x8x1xf32>
    %940 = vector.broadcast %939 : vector<2x8x1xf32> to vector<2x8x8xf32>
    %941 = arith.mulf %936, %940 : vector<2x8x8xf32>
    "tpu.trace_start"() <{level = 10 : i32, message = "bqk,bkd->bqd"}> : () -> ()
    %cst_367 = arith.constant dense<0.000000e+00> : vector<2x8x8xf32>
    %942 = tpu.matmul %941, %930, %cst_367 {dimension_numbers = #tpu.dot_dimension_numbers<[2], [1], [1], [2], [0, 0, 0, 1, 1, 2], [0], [0]>} : vector<2x8x8xf32>, vector<2x8x8xf32>, vector<2x8x8xf32> -> vector<2x8x8xf32>
    "tpu.trace_stop"() : () -> ()
    %943 = vector.shape_cast %942 : vector<2x8x8xf32> to vector<16x8xf32>
    %944 = vector.extract_strided_slice %890 {offsets = [1, 0, 0], sizes = [1, 8, 32], strides = [1, 1, 1]} : vector<4x8x32xf32> to vector<1x8x32xf32>
    %945 = vector.shape_cast %944 : vector<1x8x32xf32> to vector<8x32xf32>
    %cst_368 = arith.constant dense<0.000000e+00> : vector<16x32xf32>
    %946 = tpu.matmul %943, %945, %cst_368 {dimension_numbers = #tpu.dot_dimension_numbers<[1], [0], [0], [1], [0, 0, 1, 1], [], []>} : vector<16x8xf32>, vector<8x32xf32>, vector<16x32xf32> -> vector<16x32xf32>
    %947 = arith.addf %918, %946 : vector<16x32xf32>
    %948 = vector.extract_strided_slice %884 {offsets = [2, 0, 0], sizes = [1, 32, 8], strides = [1, 1, 1]} : vector<4x32x8xf32> to vector<1x32x8xf32>
    %949 = vector.shape_cast %948 : vector<1x32x8xf32> to vector<32x8xf32>
    %cst_369 = arith.constant dense<0.000000e+00> : vector<16x8xf32>
    %950 = tpu.matmul %882, %949, %cst_369 {dimension_numbers = #tpu.dot_dimension_numbers<[1], [0], [0], [1], [0, 0, 1, 1], [], []>} : vector<16x32xf32>, vector<32x8xf32>, vector<16x8xf32> -> vector<16x8xf32>
    %951 = vector.shape_cast %950 : vector<16x8xf32> to vector<2x8x8xf32>
    %952 = vector.extract_strided_slice %886 {offsets = [2, 0, 0], sizes = [1, 32, 8], strides = [1, 1, 1]} : vector<4x32x8xf32> to vector<1x32x8xf32>
    %953 = vector.shape_cast %952 : vector<1x32x8xf32> to vector<32x8xf32>
    %cst_370 = arith.constant dense<0.000000e+00> : vector<16x8xf32>
    %954 = tpu.matmul %383, %953, %cst_370 {dimension_numbers = #tpu.dot_dimension_numbers<[1], [0], [0], [1], [0, 0, 1, 1], [], []>} : vector<16x32xf32>, vector<32x8xf32>, vector<16x8xf32> -> vector<16x8xf32>
    %955 = vector.shape_cast %954 : vector<16x8xf32> to vector<2x8x8xf32>
    %956 = vector.extract_strided_slice %888 {offsets = [2, 0, 0], sizes = [1, 32, 8], strides = [1, 1, 1]} : vector<4x32x8xf32> to vector<1x32x8xf32>
    %957 = vector.shape_cast %956 : vector<1x32x8xf32> to vector<32x8xf32>
    %cst_371 = arith.constant dense<0.000000e+00> : vector<16x8xf32>
    %958 = tpu.matmul %383, %957, %cst_371 {dimension_numbers = #tpu.dot_dimension_numbers<[1], [0], [0], [1], [0, 0, 1, 1], [], []>} : vector<16x32xf32>, vector<32x8xf32>, vector<16x8xf32> -> vector<16x8xf32>
    %959 = vector.shape_cast %958 : vector<16x8xf32> to vector<2x8x8xf32>
    "tpu.trace_start"() <{level = 10 : i32, message = "bqd,bkd->bqk"}> : () -> ()
    %cst_372 = arith.constant dense<0.000000e+00> : vector<2x8x8xf32>
    %960 = tpu.matmul %951, %955, %cst_372 {dimension_numbers = #tpu.dot_dimension_numbers<[2], [2], [1], [1], [0, 0, 0, 1, 1, 1], [0], [0]>} : vector<2x8x8xf32>, vector<2x8x8xf32>, vector<2x8x8xf32> -> vector<2x8x8xf32>
    "tpu.trace_stop"() : () -> ()
    %cst_373 = arith.constant dense<0xFF800000> : vector<2x8xf32>
    %961 = vector.multi_reduction <maximumf>, %960, %cst_373 [2] : vector<2x8x8xf32> to vector<2x8xf32>
    %962 = vector.shape_cast %961 : vector<2x8xf32> to vector<2x8x1xf32>
    %963 = vector.broadcast %962 : vector<2x8x1xf32> to vector<2x8x8xf32>
    %964 = arith.subf %960, %963 : vector<2x8x8xf32>
    %965 = math.exp %964 : vector<2x8x8xf32>
    %cst_374 = arith.constant dense<0.000000e+00> : vector<2x8xf32>
    %966 = vector.multi_reduction <add>, %965, %cst_374 [2] : vector<2x8x8xf32> to vector<2x8xf32>
    %967 = vector.shape_cast %966 : vector<2x8xf32> to vector<2x8x1xf32>
    %968 = tpu.reciprocal %967 {approx = true} : vector<2x8x1xf32> -> vector<2x8x1xf32>
    %969 = vector.broadcast %968 : vector<2x8x1xf32> to vector<2x8x8xf32>
    %970 = arith.mulf %965, %969 : vector<2x8x8xf32>
    "tpu.trace_start"() <{level = 10 : i32, message = "bqk,bkd->bqd"}> : () -> ()
    %cst_375 = arith.constant dense<0.000000e+00> : vector<2x8x8xf32>
    %971 = tpu.matmul %970, %959, %cst_375 {dimension_numbers = #tpu.dot_dimension_numbers<[2], [1], [1], [2], [0, 0, 0, 1, 1, 2], [0], [0]>} : vector<2x8x8xf32>, vector<2x8x8xf32>, vector<2x8x8xf32> -> vector<2x8x8xf32>
    "tpu.trace_stop"() : () -> ()
    %972 = vector.shape_cast %971 : vector<2x8x8xf32> to vector<16x8xf32>
    %973 = vector.extract_strided_slice %890 {offsets = [2, 0, 0], sizes = [1, 8, 32], strides = [1, 1, 1]} : vector<4x8x32xf32> to vector<1x8x32xf32>
    %974 = vector.shape_cast %973 : vector<1x8x32xf32> to vector<8x32xf32>
    %cst_376 = arith.constant dense<0.000000e+00> : vector<16x32xf32>
    %975 = tpu.matmul %972, %974, %cst_376 {dimension_numbers = #tpu.dot_dimension_numbers<[1], [0], [0], [1], [0, 0, 1, 1], [], []>} : vector<16x8xf32>, vector<8x32xf32>, vector<16x32xf32> -> vector<16x32xf32>
    %976 = arith.addf %947, %975 : vector<16x32xf32>
    %977 = vector.extract_strided_slice %884 {offsets = [3, 0, 0], sizes = [1, 32, 8], strides = [1, 1, 1]} : vector<4x32x8xf32> to vector<1x32x8xf32>
    %978 = vector.shape_cast %977 : vector<1x32x8xf32> to vector<32x8xf32>
    %cst_377 = arith.constant dense<0.000000e+00> : vector<16x8xf32>
    %979 = tpu.matmul %882, %978, %cst_377 {dimension_numbers = #tpu.dot_dimension_numbers<[1], [0], [0], [1], [0, 0, 1, 1], [], []>} : vector<16x32xf32>, vector<32x8xf32>, vector<16x8xf32> -> vector<16x8xf32>
    %980 = vector.shape_cast %979 : vector<16x8xf32> to vector<2x8x8xf32>
    %981 = vector.extract_strided_slice %886 {offsets = [3, 0, 0], sizes = [1, 32, 8], strides = [1, 1, 1]} : vector<4x32x8xf32> to vector<1x32x8xf32>
    %982 = vector.shape_cast %981 : vector<1x32x8xf32> to vector<32x8xf32>
    %cst_378 = arith.constant dense<0.000000e+00> : vector<16x8xf32>
    %983 = tpu.matmul %383, %982, %cst_378 {dimension_numbers = #tpu.dot_dimension_numbers<[1], [0], [0], [1], [0, 0, 1, 1], [], []>} : vector<16x32xf32>, vector<32x8xf32>, vector<16x8xf32> -> vector<16x8xf32>
    %984 = vector.shape_cast %983 : vector<16x8xf32> to vector<2x8x8xf32>
    %985 = vector.extract_strided_slice %888 {offsets = [3, 0, 0], sizes = [1, 32, 8], strides = [1, 1, 1]} : vector<4x32x8xf32> to vector<1x32x8xf32>
    %986 = vector.shape_cast %985 : vector<1x32x8xf32> to vector<32x8xf32>
    %cst_379 = arith.constant dense<0.000000e+00> : vector<16x8xf32>
    %987 = tpu.matmul %383, %986, %cst_379 {dimension_numbers = #tpu.dot_dimension_numbers<[1], [0], [0], [1], [0, 0, 1, 1], [], []>} : vector<16x32xf32>, vector<32x8xf32>, vector<16x8xf32> -> vector<16x8xf32>
    %988 = vector.shape_cast %987 : vector<16x8xf32> to vector<2x8x8xf32>
    "tpu.trace_start"() <{level = 10 : i32, message = "bqd,bkd->bqk"}> : () -> ()
    %cst_380 = arith.constant dense<0.000000e+00> : vector<2x8x8xf32>
    %989 = tpu.matmul %980, %984, %cst_380 {dimension_numbers = #tpu.dot_dimension_numbers<[2], [2], [1], [1], [0, 0, 0, 1, 1, 1], [0], [0]>} : vector<2x8x8xf32>, vector<2x8x8xf32>, vector<2x8x8xf32> -> vector<2x8x8xf32>
    "tpu.trace_stop"() : () -> ()
    %cst_381 = arith.constant dense<0xFF800000> : vector<2x8xf32>
    %990 = vector.multi_reduction <maximumf>, %989, %cst_381 [2] : vector<2x8x8xf32> to vector<2x8xf32>
    %991 = vector.shape_cast %990 : vector<2x8xf32> to vector<2x8x1xf32>
    %992 = vector.broadcast %991 : vector<2x8x1xf32> to vector<2x8x8xf32>
    %993 = arith.subf %989, %992 : vector<2x8x8xf32>
    %994 = math.exp %993 : vector<2x8x8xf32>
    %cst_382 = arith.constant dense<0.000000e+00> : vector<2x8xf32>
    %995 = vector.multi_reduction <add>, %994, %cst_382 [2] : vector<2x8x8xf32> to vector<2x8xf32>
    %996 = vector.shape_cast %995 : vector<2x8xf32> to vector<2x8x1xf32>
    %997 = tpu.reciprocal %996 {approx = true} : vector<2x8x1xf32> -> vector<2x8x1xf32>
    %998 = vector.broadcast %997 : vector<2x8x1xf32> to vector<2x8x8xf32>
    %999 = arith.mulf %994, %998 : vector<2x8x8xf32>
    "tpu.trace_start"() <{level = 10 : i32, message = "bqk,bkd->bqd"}> : () -> ()
    %cst_383 = arith.constant dense<0.000000e+00> : vector<2x8x8xf32>
    %1000 = tpu.matmul %999, %988, %cst_383 {dimension_numbers = #tpu.dot_dimension_numbers<[2], [1], [1], [2], [0, 0, 0, 1, 1, 2], [0], [0]>} : vector<2x8x8xf32>, vector<2x8x8xf32>, vector<2x8x8xf32> -> vector<2x8x8xf32>
    "tpu.trace_stop"() : () -> ()
    %1001 = vector.shape_cast %1000 : vector<2x8x8xf32> to vector<16x8xf32>
    %1002 = vector.extract_strided_slice %890 {offsets = [3, 0, 0], sizes = [1, 8, 32], strides = [1, 1, 1]} : vector<4x8x32xf32> to vector<1x8x32xf32>
    %1003 = vector.shape_cast %1002 : vector<1x8x32xf32> to vector<8x32xf32>
    %cst_384 = arith.constant dense<0.000000e+00> : vector<16x32xf32>
    %1004 = tpu.matmul %1001, %1003, %cst_384 {dimension_numbers = #tpu.dot_dimension_numbers<[1], [0], [0], [1], [0, 0, 1, 1], [], []>} : vector<16x8xf32>, vector<8x32xf32>, vector<16x32xf32> -> vector<16x32xf32>
    %1005 = arith.addf %976, %1004 : vector<16x32xf32>
    %1006 = arith.addf %868, %1005 : vector<16x32xf32>
    %c1_385 = arith.constant 1 : index
    %c0_386 = arith.constant 0 : index
    %c0_387 = arith.constant 0 : index
    %1007 = vector.load %arg24[%c1_385, %c0_386, %c0_387] : memref<2x1x32xf32, #tpu.memory_space<vmem>>, vector<1x1x32xf32>
    %1008 = vector.shape_cast %1007 : vector<1x1x32xf32> to vector<1x32xf32>
    %1009 = arith.mulf %1006, %1006 : vector<16x32xf32>
    %cst_388 = arith.constant dense<0.000000e+00> : vector<16xf32>
    %1010 = vector.multi_reduction <add>, %1009, %cst_388 [1] : vector<16x32xf32> to vector<16xf32>
    %1011 = vector.shape_cast %1010 : vector<16xf32> to vector<16x1xf32>
    %cst_389 = arith.constant 3.200000e+01 : f32
    %1012 = vector.broadcast %cst_389 : f32 to vector<16x1xf32>
    %1013 = arith.divf %1011, %1012 : vector<16x1xf32>
    %cst_390 = arith.constant 9.99999997E-7 : f32
    %1014 = vector.broadcast %cst_390 : f32 to vector<16x1xf32>
    %1015 = arith.addf %1013, %1014 : vector<16x1xf32>
    %1016 = math.rsqrt %1015 : vector<16x1xf32>
    %1017 = vector.broadcast %1016 : vector<16x1xf32> to vector<16x32xf32>
    %1018 = arith.mulf %1006, %1017 : vector<16x32xf32>
    %1019 = vector.broadcast %1008 : vector<1x32xf32> to vector<16x32xf32>
    %1020 = arith.mulf %1018, %1019 : vector<16x32xf32>
    %c1_391 = arith.constant 1 : index
    %c0_392 = arith.constant 0 : index
    %c0_393 = arith.constant 0 : index
    %1021 = vector.load %arg25[%c1_391, %c0_392, %c0_393] : memref<2x32x64xf32, #tpu.memory_space<vmem>>, vector<1x32x64xf32>
    %1022 = vector.shape_cast %1021 : vector<1x32x64xf32> to vector<32x64xf32>
    %cst_394 = arith.constant dense<0.000000e+00> : vector<16x64xf32>
    %1023 = tpu.matmul %1020, %1022, %cst_394 {dimension_numbers = #tpu.dot_dimension_numbers<[1], [0], [0], [1], [0, 0, 1, 1], [], []>} : vector<16x32xf32>, vector<32x64xf32>, vector<16x64xf32> -> vector<16x64xf32>
    %cst_395 = arith.constant 0.000000e+00 : f32
    %1024 = vector.broadcast %cst_395 : f32 to vector<16x64xf32>
    %1025 = arith.maximumf %1023, %1024 : vector<16x64xf32>
    %c1_396 = arith.constant 1 : index
    %c0_397 = arith.constant 0 : index
    %c0_398 = arith.constant 0 : index
    %1026 = vector.load %arg26[%c1_396, %c0_397, %c0_398] : memref<2x64x32xf32, #tpu.memory_space<vmem>>, vector<1x64x32xf32>
    %1027 = vector.shape_cast %1026 : vector<1x64x32xf32> to vector<64x32xf32>
    %cst_399 = arith.constant dense<0.000000e+00> : vector<16x32xf32>
    %1028 = tpu.matmul %1025, %1027, %cst_399 {dimension_numbers = #tpu.dot_dimension_numbers<[1], [0], [0], [1], [0, 0, 1, 1], [], []>} : vector<16x64xf32>, vector<64x32xf32>, vector<16x32xf32> -> vector<16x32xf32>
    %1029 = arith.addf %1006, %1028 : vector<16x32xf32>
    %c0_400 = arith.constant 0 : index
    %c0_401 = arith.constant 0 : index
    %1030 = vector.load %arg27[%c0_400, %c0_401] : memref<1x32xf32, #tpu.memory_space<vmem>>, vector<1x32xf32>
    %1031 = arith.mulf %1029, %1029 : vector<16x32xf32>
    %cst_402 = arith.constant dense<0.000000e+00> : vector<16xf32>
    %1032 = vector.multi_reduction <add>, %1031, %cst_402 [1] : vector<16x32xf32> to vector<16xf32>
    %1033 = vector.shape_cast %1032 : vector<16xf32> to vector<16x1xf32>
    %cst_403 = arith.constant 3.200000e+01 : f32
    %1034 = vector.broadcast %cst_403 : f32 to vector<16x1xf32>
    %1035 = arith.divf %1033, %1034 : vector<16x1xf32>
    %cst_404 = arith.constant 9.99999997E-7 : f32
    %1036 = vector.broadcast %cst_404 : f32 to vector<16x1xf32>
    %1037 = arith.addf %1035, %1036 : vector<16x1xf32>
    %1038 = math.rsqrt %1037 : vector<16x1xf32>
    %1039 = vector.broadcast %1038 : vector<16x1xf32> to vector<16x32xf32>
    %1040 = arith.mulf %1029, %1039 : vector<16x32xf32>
    %1041 = vector.broadcast %1030 : vector<1x32xf32> to vector<16x32xf32>
    %1042 = arith.mulf %1040, %1041 : vector<16x32xf32>
    %cst_405 = arith.constant 0.176776692 : f32
    %1043 = vector.broadcast %cst_405 : f32 to vector<16x32xf32>
    %1044 = arith.mulf %1042, %1043 : vector<16x32xf32>
    %c0_406 = arith.constant 0 : index
    %c0_407 = arith.constant 0 : index
    %1045 = vector.load %arg28[%c0_406, %c0_407] : memref<32x128xf32, #tpu.memory_space<vmem>>, vector<32x128xf32>
    %cst_408 = arith.constant dense<0.000000e+00> : vector<16x128xf32>
    %1046 = tpu.matmul %1044, %1045, %cst_408 {dimension_numbers = #tpu.dot_dimension_numbers<[1], [0], [0], [1], [0, 0, 1, 1], [], []>} : vector<16x32xf32>, vector<32x128xf32>, vector<16x128xf32> -> vector<16x128xf32>
    %c0_409 = arith.constant 0 : index
    %c0_410 = arith.constant 0 : index
    %1047 = vector.load %arg29[%c0_409, %c0_410] : memref<16x128xf32, #tpu.memory_space<vmem>>, vector<16x128xf32>
    tpu.vector_store %arg29[%c0_409, %c0_410], %1046 {strides = array<i32>} : memref<16x128xf32, #tpu.memory_space<vmem>>, vector<16x128xf32>,
    return
  }
}

</mosaic_0001>

<llo_original>
// kernel: tpu_custom_call.1
$region0: #{tpu_custom_call.1}
  #allocation0 [shape = 'u32[]', space=smem, size = 0x4, offset = 0x4, fixed_abs, tag = 'smem constant byte address 0x4 - core index']
  #allocation1 [shape = 'u32[72,128]{1,0:T(1,128)}', space=vmem, size = 0x9000, scoped, tag = 'internal scratch']
  %s0 = inlined_call_operand.smem [shape: u32[30], index: -1, kind: input, shape index: {}]
  %s1 = sld [smem:[%s0]]
  %s2 = scalar_lea.smem %s0, 1
  %s3 = sld [smem:[%s2]]
  %s4 = scalar_lea.smem %s0, 2
  %s5 = sld [smem:[%s4]]
  %s6 = scalar_lea.smem %s0, 3
  %s7 = sld [smem:[%s6]]
  %s8 = scalar_lea.smem %s0, 4
  %s9 = sld [smem:[%s8]]
  %s10 = scalar_lea.smem %s0, 5
  %s11 = sld [smem:[%s10]]
  %s12 = scalar_lea.smem %s0, 6
  %s13 = sld [smem:[%s12]]
  %s14 = scalar_lea.smem %s0, 7
  %s15 = sld [smem:[%s14]]
  %s16 = scalar_lea.smem %s0, 8
  %s17 = sld [smem:[%s16]]
  %s18 = scalar_lea.smem %s0, 9
  %s19 = sld [smem:[%s18]]
  %s20 = scalar_lea.smem %s0, 10
  %s21 = sld [smem:[%s20]]
  %s22 = scalar_lea.smem %s0, 11
  %s23 = sld [smem:[%s22]]
  %s24 = scalar_lea.smem %s0, 12
  %s25 = sld [smem:[%s24]]
  %s26 = scalar_lea.smem %s0, 13
  %s27 = sld [smem:[%s26]]
  %s28 = scalar_lea.smem %s0, 14
  %s29 = sld [smem:[%s28]]
  %s30 = scalar_lea.smem %s0, 15
  %s31 = sld [smem:[%s30]]
  %s32 = scalar_lea.smem %s0, 16
  %s33 = sld [smem:[%s32]]
  %s34 = scalar_lea.smem %s0, 17
  %s35 = sld [smem:[%s34]]
  %s36 = scalar_lea.smem %s0, 18
  %s37 = sld [smem:[%s36]]
  %s38 = scalar_lea.smem %s0, 19
  %s39 = sld [smem:[%s38]]
  %s40 = scalar_lea.smem %s0, 20
  %s41 = sld [smem:[%s40]]
  %s42 = scalar_lea.smem %s0, 21
  %s43 = sld [smem:[%s42]]
  %s44 = scalar_lea.smem %s0, 22
  %s45 = sld [smem:[%s44]]
  %s46 = scalar_lea.smem %s0, 23
  %s47 = sld [smem:[%s46]]
  %s48 = scalar_lea.smem %s0, 24
  %s49 = sld [smem:[%s48]]
  %s50 = scalar_lea.smem %s0, 25
  %s51 = sld [smem:[%s50]]
  %s52 = scalar_lea.smem %s0, 26
  %s53 = sld [smem:[%s52]]
  %s54 = scalar_lea.smem %s0, 27
  %s55 = sld [smem:[%s54]]
  %s56 = scalar_lea.smem %s0, 28
  %s57 = sld [smem:[%s56]]
  %s58 = scalar_lea.smem %s0, 29
  %s59 = sld [smem:[%s58]]
  %s60 = sld [smem:[#allocation0]]
  $region126: #{tpu_custom_call.1} parent=0
    _
  %s62 = ssub.s32 1, %s60
  %s63 = scalar_select 0, %s62, %s60
  $region1: #{tpu_custom_call.1} parent=0
    #allocation2 [shape = 'u8[8192]{0}', space=vmem, size = 0x2000, scoped, tag = 'output window, operand 0, single buffered']
    #allocation3 [shape = 's32[1]{0}', space=sflag, size = 0x4, scoped, tag = 'scoped memory for tpu_custom_call.1']
    %64 = vsyncpa [#allocation3], 0
    // Predicated region
    $region2: #{tpu_custom_call.1} parent=1 // pred_check
      _
    $region3: #{tpu_custom_call.1} parent=1 // pred_check_branch
      %66 = sbr.rel (0) target = $region5
    $region4: #{tpu_custom_call.1} parent=1 // pred_region
      _
    $region5: #{tpu_custom_call.1} parent=1 // pred_fallthru
      _
    // Predicated region
    $region6: #{tpu_custom_call.1} parent=1 // pred_check
      _
    $region7: #{tpu_custom_call.1} parent=1 // pred_check_branch
      %68 = sbr.rel (0) target = $region9
    $region8: #{tpu_custom_call.1} parent=1 // pred_region
      _
    $region9: #{tpu_custom_call.1} parent=1 // pred_fallthru
      _
    // Predicated region
    $region10: #{tpu_custom_call.1} parent=1 // pred_check
      _
    $region11: #{tpu_custom_call.1} parent=1 // pred_check_branch
      %70 = sbr.rel (0) target = $region13
    $region12: #{tpu_custom_call.1} parent=1 // pred_region
      _
    $region13: #{tpu_custom_call.1} parent=1 // pred_fallthru
      _
    // Predicated region
    $region14: #{tpu_custom_call.1} parent=1 // pred_check
      _
    $region15: #{tpu_custom_call.1} parent=1 // pred_check_branch
      %72 = sbr.rel (0) target = $region17
    $region16: #{tpu_custom_call.1} parent=1 // pred_region
      _
    $region17: #{tpu_custom_call.1} parent=1 // pred_fallthru
      _
    // Predicated region
    $region18: #{tpu_custom_call.1} parent=1 // pred_check
      _
    $region19: #{tpu_custom_call.1} parent=1 // pred_check_branch
      %74 = sbr.rel (0) target = $region21
    $region20: #{tpu_custom_call.1} parent=1 // pred_region
      _
    $region21: #{tpu_custom_call.1} parent=1 // pred_fallthru
      _
    // Predicated region
    $region22: #{tpu_custom_call.1} parent=1 // pred_check
      _
    $region23: #{tpu_custom_call.1} parent=1 // pred_check_branch
      %76 = sbr.rel (0) target = $region25
    $region24: #{tpu_custom_call.1} parent=1 // pred_region
      _
    $region25: #{tpu_custom_call.1} parent=1 // pred_fallthru
      _
    // Predicated region
    $region26: #{tpu_custom_call.1} parent=1 // pred_check
      _
    $region27: #{tpu_custom_call.1} parent=1 // pred_check_branch
      %78 = sbr.rel (0) target = $region29
    $region28: #{tpu_custom_call.1} parent=1 // pred_region
      _
    $region29: #{tpu_custom_call.1} parent=1 // pred_fallthru
      _
    // Predicated region
    $region30: #{tpu_custom_call.1} parent=1 // pred_check
      _
    $region31: #{tpu_custom_call.1} parent=1 // pred_check_branch
      %80 = sbr.rel (0) target = $region33
    $region32: #{tpu_custom_call.1} parent=1 // pred_region
      _
    $region33: #{tpu_custom_call.1} parent=1 // pred_fallthru
      _
    // Predicated region
    $region34: #{tpu_custom_call.1} parent=1 // pred_check
      _
    $region35: #{tpu_custom_call.1} parent=1 // pred_check_branch
      %82 = sbr.rel (0) target = $region37
    $region36: #{tpu_custom_call.1} parent=1 // pred_region
      _
    $region37: #{tpu_custom_call.1} parent=1 // pred_fallthru
      _
    // Predicated region
    $region38: #{tpu_custom_call.1} parent=1 // pred_check
      _
    $region39: #{tpu_custom_call.1} parent=1 // pred_check_branch
      %84 = sbr.rel (0) target = $region41
    $region40: #{tpu_custom_call.1} parent=1 // pred_region
      _
    $region41: #{tpu_custom_call.1} parent=1 // pred_fallthru
      _
    // Predicated region
    $region42: #{tpu_custom_call.1} parent=1 // pred_check
      _
    $region43: #{tpu_custom_call.1} parent=1 // pred_check_branch
      %86 = sbr.rel (0) target = $region45
    $region44: #{tpu_custom_call.1} parent=1 // pred_region
      _
    $region45: #{tpu_custom_call.1} parent=1 // pred_fallthru
      _
    // Predicated region
    $region46: #{tpu_custom_call.1} parent=1 // pred_check
      _
    $region47: #{tpu_custom_call.1} parent=1 // pred_check_branch
      %88 = sbr.rel (0) target = $region49
    $region48: #{tpu_custom_call.1} parent=1 // pred_region
      _
    $region49: #{tpu_custom_call.1} parent=1 // pred_fallthru
      _
    // Predicated region
    $region50: #{tpu_custom_call.1} parent=1 // pred_check
      _
    $region51: #{tpu_custom_call.1} parent=1 // pred_check_branch
      %90 = sbr.rel (0) target = $region53
    $region52: #{tpu_custom_call.1} parent=1 // pred_region
      _
    $region53: #{tpu_custom_call.1} parent=1 // pred_fallthru
      _
    // Predicated region
    $region54: #{tpu_custom_call.1} parent=1 // pred_check
      _
    $region55: #{tpu_custom_call.1} parent=1 // pred_check_branch
      %92 = sbr.rel (0) target = $region57
    $region56: #{tpu_custom_call.1} parent=1 // pred_region
      _
    $region57: #{tpu_custom_call.1} parent=1 // pred_fallthru
      _
    // Predicated region
    $region58: #{tpu_custom_call.1} parent=1 // pred_check
      _
    $region59: #{tpu_custom_call.1} parent=1 // pred_check_branch
      %94 = sbr.rel (0) target = $region61
    $region60: #{tpu_custom_call.1} parent=1 // pred_region
      _
    $region61: #{tpu_custom_call.1} parent=1 // pred_fallthru
      _
    // Predicated region
    $region62: #{tpu_custom_call.1} parent=1 // pred_check
      _
    $region63: #{tpu_custom_call.1} parent=1 // pred_check_branch
      %96 = sbr.rel (0) target = $region65
    $region64: #{tpu_custom_call.1} parent=1 // pred_region
      _
    $region65: #{tpu_custom_call.1} parent=1 // pred_fallthru
      _
    // Predicated region
    $region66: #{tpu_custom_call.1} parent=1 // pred_check
      _
    $region67: #{tpu_custom_call.1} parent=1 // pred_check_branch
      %98 = sbr.rel (0) target = $region69
    $region68: #{tpu_custom_call.1} parent=1 // pred_region
      _
    $region69: #{tpu_custom_call.1} parent=1 // pred_fallthru
      _
    // Predicated region
    $region70: #{tpu_custom_call.1} parent=1 // pred_check
      _
    $region71: #{tpu_custom_call.1} parent=1 // pred_check_branch
      %100 = sbr.rel (0) target = $region73
    $region72: #{tpu_custom_call.1} parent=1 // pred_region
      _
    $region73: #{tpu_custom_call.1} parent=1 // pred_fallthru
      _
    // Predicated region
    $region74: #{tpu_custom_call.1} parent=1 // pred_check
      _
    $region75: #{tpu_custom_call.1} parent=1 // pred_check_branch
      %102 = sbr.rel (0) target = $region77
    $region76: #{tpu_custom_call.1} parent=1 // pred_region
      _
    $region77: #{tpu_custom_call.1} parent=1 // pred_fallthru
      _
    // Predicated region
    $region78: #{tpu_custom_call.1} parent=1 // pred_check
      _
    $region79: #{tpu_custom_call.1} parent=1 // pred_check_branch
      %104 = sbr.rel (0) target = $region81
    $region80: #{tpu_custom_call.1} parent=1 // pred_region
      _
    $region81: #{tpu_custom_call.1} parent=1 // pred_fallthru
      _
    // Predicated region
    $region82: #{tpu_custom_call.1} parent=1 // pred_check
      _
    $region83: #{tpu_custom_call.1} parent=1 // pred_check_branch
      %106 = sbr.rel (0) target = $region85
    $region84: #{tpu_custom_call.1} parent=1 // pred_region
      _
    $region85: #{tpu_custom_call.1} parent=1 // pred_fallthru
      _
    // Predicated region
    $region86: #{tpu_custom_call.1} parent=1 // pred_check
      _
    $region87: #{tpu_custom_call.1} parent=1 // pred_check_branch
      %108 = sbr.rel (0) target = $region89
    $region88: #{tpu_custom_call.1} parent=1 // pred_region
      _
    $region89: #{tpu_custom_call.1} parent=1 // pred_fallthru
      _
    // Predicated region
    $region90: #{tpu_custom_call.1} parent=1 // pred_check
      _
    $region91: #{tpu_custom_call.1} parent=1 // pred_check_branch
      %110 = sbr.rel (0) target = $region93
    $region92: #{tpu_custom_call.1} parent=1 // pred_region
      _
    $region93: #{tpu_custom_call.1} parent=1 // pred_fallthru
      _
    // Predicated region
    $region94: #{tpu_custom_call.1} parent=1 // pred_check
      _
    $region95: #{tpu_custom_call.1} parent=1 // pred_check_branch
      %112 = sbr.rel (0) target = $region97
    $region96: #{tpu_custom_call.1} parent=1 // pred_region
      _
    $region97: #{tpu_custom_call.1} parent=1 // pred_fallthru
      _
    // Predicated region
    $region98: #{tpu_custom_call.1} parent=1 // pred_check
      _
    $region99: #{tpu_custom_call.1} parent=1 // pred_check_branch
      %114 = sbr.rel (0) target = $region101
    $region100: #{tpu_custom_call.1} parent=1 // pred_region
      _
    $region101: #{tpu_custom_call.1} parent=1 // pred_fallthru
      _
    // Predicated region
    $region102: #{tpu_custom_call.1} parent=1 // pred_check
      _
    $region103: #{tpu_custom_call.1} parent=1 // pred_check_branch
      %116 = sbr.rel (0) target = $region105
    $region104: #{tpu_custom_call.1} parent=1 // pred_region
      _
    $region105: #{tpu_custom_call.1} parent=1 // pred_fallthru
      _
    // Predicated region
    $region106: #{tpu_custom_call.1} parent=1 // pred_check
      _
    $region107: #{tpu_custom_call.1} parent=1 // pred_check_branch
      %118 = sbr.rel (0) target = $region109
    $region108: #{tpu_custom_call.1} parent=1 // pred_region
      _
    $region109: #{tpu_custom_call.1} parent=1 // pred_fallthru
      _
    // Predicated region
    $region110: #{tpu_custom_call.1} parent=1 // pred_check
      _
    $region111: #{tpu_custom_call.1} parent=1 // pred_check_branch
      %120 = sbr.rel (0) target = $region113
    $region112: #{tpu_custom_call.1} parent=1 // pred_region
      _
    $region113: #{tpu_custom_call.1} parent=1 // pred_fallthru
      _
    // Predicated region
    $region114: #{tpu_custom_call.1} parent=1 // pred_check
      _
    $region115: #{tpu_custom_call.1} parent=1 // pred_check_branch
      %122 = sbr.rel (0) target = $region117
    $region116: #{tpu_custom_call.1} parent=1 // pred_region
      _
    $region117: #{tpu_custom_call.1} parent=1 // pred_fallthru
      _
    %v123 = vld [vmem:[%s5] sm:$0xff]
    %v124 = vld [vmem:[%s5 + $0x8] sm:$0xff]
    %v125 = vld [vmem:[%s5 + $0x10] sm:$0xff]
    %v126 = vld [vmem:[%s5 + $0x18] sm:$0xff]
    %v127 = vld [vmem:[%s5 + $0x20] sm:$0xff]
    %v128 = vld [vmem:[%s5 + $0x28] sm:$0xff]
    %v129 = vld [vmem:[%s5 + $0x30] sm:$0xff]
    %v130 = vld [vmem:[%s5 + $0x38] sm:$0xff]
    %v131 = vld [vmem:[%s5 + $0x40] sm:$0xff]
    %v132 = vld [vmem:[%s5 + $0x48] sm:$0xff]
    %v133 = vld [vmem:[%s5 + $0x50] sm:$0xff]
    %v134 = vld [vmem:[%s5 + $0x58] sm:$0xff]
    %v135 = vld [vmem:[%s5 + $0x60] sm:$0xff]
    %v136 = vld [vmem:[%s5 + $0x68] sm:$0xff]
    %v137 = vld [vmem:[%s5 + $0x70] sm:$0xff]
    %v138 = vld [vmem:[%s5 + $0x78] sm:$0xff]
    %v139 = vld [vmem:[%s1] sm:$0xff]
    %v140 = vld [vmem:[%s1 + $0x8] sm:$0xff]
    %v141 = vlaneseq
    %v142 = vand.u32 %v141, 127
    %143 = vset.pattern.permute.xlu0 0
    %144 = vperm.xlu0 %143, %v139
    %v145 = vpop.permute.xlu0 %144
    %146 = vset.pattern.permute.xlu0 0
    %147 = vperm.xlu0 %146, %v140
    %v148 = vpop.permute.xlu0 %147
    %vm149 = vcmp.eq.s32.totalorder %v142, %v145
    %vm150 = vcmp.eq.s32.totalorder %v142, %v148
    %v151 = vsel %vm149, 1, 0
    %v152 = vsel %vm150, 1, 0
    %v153 = vcvt.s32.f32 %v151
    %v154 = vcvt.s32.f32 %v152
    %155 = vmatpush.msra.mxu0 %v138
    %156 = vmatpush.msra.mxu0 %v137
    %157 = vmatpush.msra.mxu0 %v136
    %158 = vmatpush.msra.mxu0 %v135
    %159 = vmatpush.msra.mxu0 %v134
    %160 = vmatpush.msra.mxu0 %v133
    %161 = vmatpush.msra.mxu0 %v132
    %162 = vmatpush.msra.mxu0 %v131
    %163 = vmatpush.msra.mxu0 %v130
    %164 = vmatpush.msra.mxu0 %v129
    %165 = vmatpush.msra.mxu0 %v128
    %166 = vmatpush.msra.mxu0 %v127
    %167 = vmatpush.msra.mxu0 %v126
    %168 = vmatpush.msra.mxu0 %v125
    %169 = vmatpush.msra.mxu0 %v124
    %170 = vmatpush.msra.mxu0 %v123
    %171 = vmatmul.f32.gmra.mxu0 %v153
    %v172 = vpop.f32.mrf.mxu0
    %v173 = vadd.f32 0.0, %v172
    %174 = vmatmul.f32.gmra.mxu0 %v154
    %v175 = vpop.f32.mrf.mxu0
    %v176 = vadd.f32 0.0, %v175
    %177 = vdwg.mxu0
    %v178 = vld [vmem:[%s7] sm:$0xff]
    %v179 = vld [vmem:[%s7 + $0x8] sm:$0xff]
    %v180 = vld [vmem:[%s7 + $0x10] sm:$0xff]
    %v181 = vld [vmem:[%s7 + $0x18] sm:$0xff]
    %v182 = vld [vmem:[%s11] sm:$0x1]
    %v183 = vmul.f32 %v173, %v173
    %v184 = vmul.f32 %v176, %v176
    %vm185 = vcmask 261120
    %v186 = vsel %vm185, %v183, 0.0
    %187 = vadd.xlane.f32.xlu0 %v186
    %v188 = vpop.xlane.xlu0 %187
    %v189 = vsel %vm185, %v184, 0.0
    %190 = vadd.xlane.f32.xlu0 %v189
    %v191 = vpop.xlane.xlu0 %190
    %v192 = vrcp.pop 32.0
    %v193 = vmul.f32 32.0, %v192
    %v194 = vsub.f32 1.0, %v193
    %v195 = vmul.f32 %v192, %v194
    %v196 = vadd.f32 %v192, %v195
    %vm197 = vweird.f32 %v192
    %v198 = vsel %vm197, %v192, %v196
    %v199 = vmul.f32 %v188, %v198
    %v200 = vmul.f32 %v191, %v198
    %v201 = vadd.f32 %v199, 1e-06
    %v202 = vadd.f32 %v200, 1e-06
    %v203 = vrsqrt.pop %v201
    %v204 = vmul.f32 %v203, %v201
    %v205 = vmul.f32 %v204, %v203
    %v206 = vmul.f32 0.5, %v205
    %v207 = vsub.f32 1.5, %v206
    %v208 = vmul.f32 %v203, %v207
    %vm209 = vweird.f32 %v201
    %vm210 = vweird.f32 %v203
    %vm211 = vmor %vm209, %vm210
    %v212 = vsel %vm211, %v203, %v208
    %v213 = vrsqrt.pop %v202
    %v214 = vmul.f32 %v213, %v202
    %v215 = vmul.f32 %v214, %v213
    %v216 = vmul.f32 0.5, %v215
    %v217 = vsub.f32 1.5, %v216
    %v218 = vmul.f32 %v213, %v217
    %vm219 = vweird.f32 %v202
    %vm220 = vweird.f32 %v213
    %vm221 = vmor %vm219, %vm220
    %v222 = vsel %vm221, %v213, %v218
    %v223 = vmul.f32 %v173, %v212
    %v224 = vmul.f32 %v176, %v222
    %v226 = vperm.slane %v182, 0
    %v228 = vmul.f32 %v223, %v226
    %v229 = vmul.f32 %v224, %v226
    %v230 = vld [vmem:[%s13] sm:$0xff]
    %v231 = vld [vmem:[%s13 + $0x8] sm:$0xff]
    %v232 = vld [vmem:[%s13 + $0x10] sm:$0xff]
    %v233 = vld [vmem:[%s13 + $0x18] sm:$0xff]
    %v234 = vld [vmem:[%s13 + $0x20] sm:$0xff]
    %v235 = vld [vmem:[%s13 + $0x28] sm:$0xff]
    %v236 = vld [vmem:[%s13 + $0x30] sm:$0xff]
    %v237 = vld [vmem:[%s13 + $0x38] sm:$0xff]
    %v238 = vld [vmem:[%s13 + $0x40] sm:$0xff]
    %v239 = vld [vmem:[%s13 + $0x48] sm:$0xff]
    %v240 = vld [vmem:[%s13 + $0x50] sm:$0xff]
    %v241 = vld [vmem:[%s13 + $0x58] sm:$0xff]
    %v242 = vld [vmem:[%s13 + $0x60] sm:$0xff]
    %v243 = vld [vmem:[%s13 + $0x68] sm:$0xff]
    %v244 = vld [vmem:[%s13 + $0x70] sm:$0xff]
    %v245 = vld [vmem:[%s13 + $0x78] sm:$0xff]
    %v246 = vld [vmem:[%s15] sm:$0xff]
    %v247 = vld [vmem:[%s15 + $0x8] sm:$0xff]
    %v248 = vld [vmem:[%s15 + $0x10] sm:$0xff]
    %v249 = vld [vmem:[%s15 + $0x18] sm:$0xff]
    %v250 = vld [vmem:[%s15 + $0x20] sm:$0xff]
    %v251 = vld [vmem:[%s15 + $0x28] sm:$0xff]
    %v252 = vld [vmem:[%s15 + $0x30] sm:$0xff]
    %v253 = vld [vmem:[%s15 + $0x38] sm:$0xff]
    %v254 = vld [vmem:[%s15 + $0x40] sm:$0xff]
    %v255 = vld [vmem:[%s15 + $0x48] sm:$0xff]
    %v256 = vld [vmem:[%s15 + $0x50] sm:$0xff]
    %v257 = vld [vmem:[%s15 + $0x58] sm:$0xff]
    %v258 = vld [vmem:[%s15 + $0x60] sm:$0xff]
    %v259 = vld [vmem:[%s15 + $0x68] sm:$0xff]
    %v260 = vld [vmem:[%s15 + $0x70] sm:$0xff]
    %v261 = vld [vmem:[%s15 + $0x78] sm:$0xff]
    %v262 = vld [vmem:[%s17] sm:$0xff]
    %v263 = vld [vmem:[%s17 + $0x8] sm:$0xff]
    %v264 = vld [vmem:[%s17 + $0x10] sm:$0xff]
    %v265 = vld [vmem:[%s17 + $0x18] sm:$0xff]
    %v266 = vld [vmem:[%s17 + $0x20] sm:$0xff]
    %v267 = vld [vmem:[%s17 + $0x28] sm:$0xff]
    %v268 = vld [vmem:[%s17 + $0x30] sm:$0xff]
    %v269 = vld [vmem:[%s17 + $0x38] sm:$0xff]
    %v270 = vld [vmem:[%s17 + $0x40] sm:$0xff]
    %v271 = vld [vmem:[%s17 + $0x48] sm:$0xff]
    %v272 = vld [vmem:[%s17 + $0x50] sm:$0xff]
    %v273 = vld [vmem:[%s17 + $0x58] sm:$0xff]
    %v274 = vld [vmem:[%s17 + $0x60] sm:$0xff]
    %v275 = vld [vmem:[%s17 + $0x68] sm:$0xff]
    %v276 = vld [vmem:[%s17 + $0x70] sm:$0xff]
    %v277 = vld [vmem:[%s17 + $0x78] sm:$0xff]
    %v278 = vld [vmem:[%s19] sm:$0xff]
    %v279 = vld [vmem:[%s19 + $0x8] sm:$0xff]
    %v280 = vld [vmem:[%s19 + $0x10] sm:$0xff]
    %v281 = vld [vmem:[%s19 + $0x18] sm:$0xff]
    %v283 = vsel %vm185, %v228, 0
    %v286 = vsel %vm185, %v229, 0
    %288 = vmatpush.msra.mxu0 0.0
    %289 = vmatpush.msra.mxu0 0.0
    %290 = vmatpush.msra.mxu0 0.0
    %291 = vmatpush.msra.mxu0 0.0
    %292 = vmatpush.msra.mxu0 0.0
    %293 = vmatpush.msra.mxu0 0.0
    %294 = vmatpush.msra.mxu0 0.0
    %295 = vmatpush.msra.mxu0 0.0
    %296 = vmatpush.msra.mxu0 0.0
    %297 = vmatpush.msra.mxu0 0.0
    %298 = vmatpush.msra.mxu0 0.0
    %299 = vmatpush.msra.mxu0 0.0
    %300 = vmatpush.msra.mxu0 %v233
    %301 = vmatpush.msra.mxu0 %v232
    %302 = vmatpush.msra.mxu0 %v231
    %303 = vmatpush.msra.mxu0 %v230
    %304 = vmatmul.f32.gmra.mxu0 %v283
    %v305 = vpop.f32.mrf.mxu0
    %v306 = vadd.f32 0.0, %v305
    %307 = vmatmul.f32.gmra.mxu0 %v286
    %v308 = vpop.f32.mrf.mxu0
    %v309 = vadd.f32 0.0, %v308
    %310 = vdwg.mxu0
    %311 = vmatpush.msra.mxu0 0.0
    %312 = vmatpush.msra.mxu0 0.0
    %313 = vmatpush.msra.mxu0 0.0
    %314 = vmatpush.msra.mxu0 0.0
    %315 = vmatpush.msra.mxu0 0.0
    %316 = vmatpush.msra.mxu0 0.0
    %317 = vmatpush.msra.mxu0 0.0
    %318 = vmatpush.msra.mxu0 0.0
    %319 = vmatpush.msra.mxu0 0.0
    %320 = vmatpush.msra.mxu0 0.0
    %321 = vmatpush.msra.mxu0 0.0
    %322 = vmatpush.msra.mxu0 0.0
    %323 = vmatpush.msra.mxu0 %v249
    %324 = vmatpush.msra.mxu0 %v248
    %325 = vmatpush.msra.mxu0 %v247
    %326 = vmatpush.msra.mxu0 %v246
    %327 = vmatmul.f32.gmra.mxu0 %v283
    %v328 = vpop.f32.mrf.mxu0
    %v329 = vadd.f32 0.0, %v328
    %330 = vmatmul.f32.gmra.mxu0 %v286
    %v331 = vpop.f32.mrf.mxu0
    %v332 = vadd.f32 0.0, %v331
    %333 = vdwg.mxu0
    %334 = vmatpush.msra.mxu0 0.0
    %335 = vmatpush.msra.mxu0 0.0
    %336 = vmatpush.msra.mxu0 0.0
    %337 = vmatpush.msra.mxu0 0.0
    %338 = vmatpush.msra.mxu0 0.0
    %339 = vmatpush.msra.mxu0 0.0
    %340 = vmatpush.msra.mxu0 0.0
    %341 = vmatpush.msra.mxu0 0.0
    %342 = vmatpush.msra.mxu0 0.0
    %343 = vmatpush.msra.mxu0 0.0
    %344 = vmatpush.msra.mxu0 0.0
    %345 = vmatpush.msra.mxu0 0.0
    %346 = vmatpush.msra.mxu0 %v265
    %347 = vmatpush.msra.mxu0 %v264
    %348 = vmatpush.msra.mxu0 %v263
    %349 = vmatpush.msra.mxu0 %v262
    %350 = vmatmul.f32.gmra.mxu0 %v283
    %v351 = vpop.f32.mrf.mxu0
    %v352 = vadd.f32 0.0, %v351
    %353 = vmatmul.f32.gmra.mxu0 %v286
    %v354 = vpop.f32.mrf.mxu0
    %v355 = vadd.f32 0.0, %v354
    %356 = vdwg.mxu0
    %vm357 = vcmask 64512
    %v359 = vsel %vm357, %v306, 0
    %v362 = vsel %vm357, %v329, 0
    %364 = vmatpush.xpose.msra.mxu0 0.0
    %365 = vmatpush.xpose.msra.mxu0 0.0
    %366 = vmatpush.xpose.msra.mxu0 0.0
    %367 = vmatpush.xpose.msra.mxu0 0.0
    %368 = vmatpush.xpose.msra.mxu0 0.0
    %369 = vmatpush.xpose.msra.mxu0 0.0
    %370 = vmatpush.xpose.msra.mxu0 0.0
    %371 = vmatpush.xpose.msra.mxu0 0.0
    %372 = vmatpush.xpose.msra.mxu0 0.0
    %373 = vmatpush.xpose.msra.mxu0 0.0
    %374 = vmatpush.xpose.msra.mxu0 0.0
    %375 = vmatpush.xpose.msra.mxu0 0.0
    %376 = vmatpush.xpose.msra.mxu0 0.0
    %377 = vmatpush.xpose.msra.mxu0 0.0
    %378 = vmatpush.xpose.msra.mxu0 0.0
    %379 = vmatpush.xpose.msra.mxu0 %v362
    %380 = vmatmul.f32.gmra.mxu0 %v359
    %v381 = vpop.f32.mrf.mxu0
    %v382 = vadd.f32 %v178, %v381
    %383 = vdwg.mxu0
    %v385 = vsel %vm357, %v309, 0
    %v388 = vsel %vm357, %v332, 0
    %390 = vmatpush.xpose.msra.mxu0 0.0
    %391 = vmatpush.xpose.msra.mxu0 0.0
    %392 = vmatpush.xpose.msra.mxu0 0.0
    %393 = vmatpush.xpose.msra.mxu0 0.0
    %394 = vmatpush.xpose.msra.mxu0 0.0
    %395 = vmatpush.xpose.msra.mxu0 0.0
    %396 = vmatpush.xpose.msra.mxu0 0.0
    %397 = vmatpush.xpose.msra.mxu0 0.0
    %398 = vmatpush.xpose.msra.mxu0 0.0
    %399 = vmatpush.xpose.msra.mxu0 0.0
    %400 = vmatpush.xpose.msra.mxu0 0.0
    %401 = vmatpush.xpose.msra.mxu0 0.0
    %402 = vmatpush.xpose.msra.mxu0 0.0
    %403 = vmatpush.xpose.msra.mxu0 0.0
    %404 = vmatpush.xpose.msra.mxu0 0.0
    %405 = vmatpush.xpose.msra.mxu0 %v388
    %406 = vmatmul.f32.gmra.mxu0 %v385
    %v407 = vpop.f32.mrf.mxu0
    %v408 = vadd.f32 %v178, %v407
    %409 = vdwg.mxu0
    %v410 = vsel %vm357, %v382, -inf
    %411 = vmax.xlane.f32.xlu0 %v410
    %v412 = vpop.xlane.xlu0 %411
    %v413 = vsel %vm357, %v408, -inf
    %414 = vmax.xlane.f32.xlu0 %v413
    %v415 = vpop.xlane.xlu0 %414
    %v416 = vsub.f32 %v382, %v412
    %v417 = vsub.f32 %v408, %v415
    %v418 = vmul.f32 %v416, 1.442695
    %v419 = vpow.pop %v418
    %v420 = vmul.f32 %v417, 1.442695
    %v421 = vpow.pop %v420
    %v422 = vsel %vm357, %v419, 0.0
    %423 = vadd.xlane.f32.xlu0 %v422
    %v424 = vpop.xlane.xlu0 %423
    %v425 = vsel %vm357, %v421, 0.0
    %426 = vadd.xlane.f32.xlu0 %v425
    %v427 = vpop.xlane.xlu0 %426
    %v428 = vrcp.pop %v424
    %v429 = vrcp.pop %v427
    %v430 = vmul.f32 %v419, %v428
    %v431 = vmul.f32 %v421, %v429
    %v433 = vsel %vm357, %v430, 0
    %435 = vmatpush.msra.mxu0 0.0
    %436 = vmatpush.msra.mxu0 0.0
    %437 = vmatpush.msra.mxu0 0.0
    %438 = vmatpush.msra.mxu0 0.0
    %439 = vmatpush.msra.mxu0 0.0
    %440 = vmatpush.msra.mxu0 0.0
    %441 = vmatpush.msra.mxu0 0.0
    %442 = vmatpush.msra.mxu0 0.0
    %443 = vmatpush.msra.mxu0 0.0
    %444 = vmatpush.msra.mxu0 0.0
    %445 = vmatpush.msra.mxu0 0.0
    %446 = vmatpush.msra.mxu0 0.0
    %447 = vmatpush.msra.mxu0 0.0
    %448 = vmatpush.msra.mxu0 0.0
    %449 = vmatpush.msra.mxu0 0.0
    %450 = vmatpush.msra.mxu0 %v352
    %451 = vmatmul.f32.gmra.mxu0 %v433
    %v452 = vpop.f32.mrf.mxu0
    %v453 = vadd.f32 0.0, %v452
    %454 = vdwg.mxu0
    %v456 = vsel %vm357, %v431, 0
    %458 = vmatpush.msra.mxu0 0.0
    %459 = vmatpush.msra.mxu0 0.0
    %460 = vmatpush.msra.mxu0 0.0
    %461 = vmatpush.msra.mxu0 0.0
    %462 = vmatpush.msra.mxu0 0.0
    %463 = vmatpush.msra.mxu0 0.0
    %464 = vmatpush.msra.mxu0 0.0
    %465 = vmatpush.msra.mxu0 0.0
    %466 = vmatpush.msra.mxu0 0.0
    %467 = vmatpush.msra.mxu0 0.0
    %468 = vmatpush.msra.mxu0 0.0
    %469 = vmatpush.msra.mxu0 0.0
    %470 = vmatpush.msra.mxu0 0.0
    %471 = vmatpush.msra.mxu0 0.0
    %472 = vmatpush.msra.mxu0 0.0
    %473 = vmatpush.msra.mxu0 %v355
    %474 = vmatmul.f32.gmra.mxu0 %v456
    %v475 = vpop.f32.mrf.mxu0
    %v476 = vadd.f32 0.0, %v475
    %477 = vdwg.mxu0
    %478 = vmatpush.msra.mxu0 0.0
    %479 = vmatpush.msra.mxu0 0.0
    %480 = vmatpush.msra.mxu0 0.0
    %481 = vmatpush.msra.mxu0 0.0
    %482 = vmatpush.msra.mxu0 0.0
    %483 = vmatpush.msra.mxu0 0.0
    %484 = vmatpush.msra.mxu0 0.0
    %485 = vmatpush.msra.mxu0 0.0
    %486 = vmatpush.msra.mxu0 0.0
    %487 = vmatpush.msra.mxu0 0.0
    %488 = vmatpush.msra.mxu0 0.0
    %489 = vmatpush.msra.mxu0 0.0
    %490 = vmatpush.msra.mxu0 %v237
    %491 = vmatpush.msra.mxu0 %v236
    %492 = vmatpush.msra.mxu0 %v235
    %493 = vmatpush.msra.mxu0 %v234
    %494 = vmatmul.f32.gmra.mxu0 %v283
    %v495 = vpop.f32.mrf.mxu0
    %v496 = vadd.f32 0.0, %v495
    %497 = vmatmul.f32.gmra.mxu0 %v286
    %v498 = vpop.f32.mrf.mxu0
    %v499 = vadd.f32 0.0, %v498
    %500 = vdwg.mxu0
    %501 = vmatpush.msra.mxu0 0.0
    %502 = vmatpush.msra.mxu0 0.0
    %503 = vmatpush.msra.mxu0 0.0
    %504 = vmatpush.msra.mxu0 0.0
    %505 = vmatpush.msra.mxu0 0.0
    %506 = vmatpush.msra.mxu0 0.0
    %507 = vmatpush.msra.mxu0 0.0
    %508 = vmatpush.msra.mxu0 0.0
    %509 = vmatpush.msra.mxu0 0.0
    %510 = vmatpush.msra.mxu0 0.0
    %511 = vmatpush.msra.mxu0 0.0
    %512 = vmatpush.msra.mxu0 0.0
    %513 = vmatpush.msra.mxu0 %v253
    %514 = vmatpush.msra.mxu0 %v252
    %515 = vmatpush.msra.mxu0 %v251
    %516 = vmatpush.msra.mxu0 %v250
    %517 = vmatmul.f32.gmra.mxu0 %v283
    %v518 = vpop.f32.mrf.mxu0
    %v519 = vadd.f32 0.0, %v518
    %520 = vmatmul.f32.gmra.mxu0 %v286
    %v521 = vpop.f32.mrf.mxu0
    %v522 = vadd.f32 0.0, %v521
    %523 = vdwg.mxu0
    %524 = vmatpush.msra.mxu0 0.0
    %525 = vmatpush.msra.mxu0 0.0
    %526 = vmatpush.msra.mxu0 0.0
    %527 = vmatpush.msra.mxu0 0.0
    %528 = vmatpush.msra.mxu0 0.0
    %529 = vmatpush.msra.mxu0 0.0
    %530 = vmatpush.msra.mxu0 0.0
    %531 = vmatpush.msra.mxu0 0.0
    %532 = vmatpush.msra.mxu0 0.0
    %533 = vmatpush.msra.mxu0 0.0
    %534 = vmatpush.msra.mxu0 0.0
    %535 = vmatpush.msra.mxu0 0.0
    %536 = vmatpush.msra.mxu0 %v269
    %537 = vmatpush.msra.mxu0 %v268
    %538 = vmatpush.msra.mxu0 %v267
    %539 = vmatpush.msra.mxu0 %v266
    %540 = vmatmul.f32.gmra.mxu0 %v283
    %v541 = vpop.f32.mrf.mxu0
    %v542 = vadd.f32 0.0, %v541
    %543 = vmatmul.f32.gmra.mxu0 %v286
    %v544 = vpop.f32.mrf.mxu0
    %v545 = vadd.f32 0.0, %v544
    %546 = vdwg.mxu0
    %v548 = vsel %vm357, %v496, 0
    %v551 = vsel %vm357, %v519, 0
    %553 = vmatpush.xpose.msra.mxu0 0.0
    %554 = vmatpush.xpose.msra.mxu0 0.0
    %555 = vmatpush.xpose.msra.mxu0 0.0
    %556 = vmatpush.xpose.msra.mxu0 0.0
    %557 = vmatpush.xpose.msra.mxu0 0.0
    %558 = vmatpush.xpose.msra.mxu0 0.0
    %559 = vmatpush.xpose.msra.mxu0 0.0
    %560 = vmatpush.xpose.msra.mxu0 0.0
    %561 = vmatpush.xpose.msra.mxu0 0.0
    %562 = vmatpush.xpose.msra.mxu0 0.0
    %563 = vmatpush.xpose.msra.mxu0 0.0
    %564 = vmatpush.xpose.msra.mxu0 0.0
    %565 = vmatpush.xpose.msra.mxu0 0.0
    %566 = vmatpush.xpose.msra.mxu0 0.0
    %567 = vmatpush.xpose.msra.mxu0 0.0
    %568 = vmatpush.xpose.msra.mxu0 %v551
    %569 = vmatmul.f32.gmra.mxu0 %v548
    %v570 = vpop.f32.mrf.mxu0
    %v571 = vadd.f32 %v179, %v570
    %572 = vdwg.mxu0
    %v574 = vsel %vm357, %v499, 0
    %v577 = vsel %vm357, %v522, 0
    %579 = vmatpush.xpose.msra.mxu0 0.0
    %580 = vmatpush.xpose.msra.mxu0 0.0
    %581 = vmatpush.xpose.msra.mxu0 0.0
    %582 = vmatpush.xpose.msra.mxu0 0.0
    %583 = vmatpush.xpose.msra.mxu0 0.0
    %584 = vmatpush.xpose.msra.mxu0 0.0
    %585 = vmatpush.xpose.msra.mxu0 0.0
    %586 = vmatpush.xpose.msra.mxu0 0.0
    %587 = vmatpush.xpose.msra.mxu0 0.0
    %588 = vmatpush.xpose.msra.mxu0 0.0
    %589 = vmatpush.xpose.msra.mxu0 0.0
    %590 = vmatpush.xpose.msra.mxu0 0.0
    %591 = vmatpush.xpose.msra.mxu0 0.0
    %592 = vmatpush.xpose.msra.mxu0 0.0
    %593 = vmatpush.xpose.msra.mxu0 0.0
    %594 = vmatpush.xpose.msra.mxu0 %v577
    %595 = vmatmul.f32.gmra.mxu0 %v574
    %v596 = vpop.f32.mrf.mxu0
    %v597 = vadd.f32 %v179, %v596
    %598 = vdwg.mxu0
    %v599 = vsel %vm357, %v571, -inf
    %600 = vmax.xlane.f32.xlu0 %v599
    %v601 = vpop.xlane.xlu0 %600
    %v602 = vsel %vm357, %v597, -inf
    %603 = vmax.xlane.f32.xlu0 %v602
    %v604 = vpop.xlane.xlu0 %603
    %v605 = vsub.f32 %v571, %v601
    %v606 = vsub.f32 %v597, %v604
    %v607 = vmul.f32 %v605, 1.442695
    %v608 = vpow.pop %v607
    %v609 = vmul.f32 %v606, 1.442695
    %v610 = vpow.pop %v609
    %v611 = vsel %vm357, %v608, 0.0
    %612 = vadd.xlane.f32.xlu0 %v611
    %v613 = vpop.xlane.xlu0 %612
    %v614 = vsel %vm357, %v610, 0.0
    %615 = vadd.xlane.f32.xlu0 %v614
    %v616 = vpop.xlane.xlu0 %615
    %v617 = vrcp.pop %v613
    %v618 = vrcp.pop %v616
    %v619 = vmul.f32 %v608, %v617
    %v620 = vmul.f32 %v610, %v618
    %v622 = vsel %vm357, %v619, 0
    %624 = vmatpush.msra.mxu0 0.0
    %625 = vmatpush.msra.mxu0 0.0
    %626 = vmatpush.msra.mxu0 0.0
    %627 = vmatpush.msra.mxu0 0.0
    %628 = vmatpush.msra.mxu0 0.0
    %629 = vmatpush.msra.mxu0 0.0
    %630 = vmatpush.msra.mxu0 0.0
    %631 = vmatpush.msra.mxu0 0.0
    %632 = vmatpush.msra.mxu0 0.0
    %633 = vmatpush.msra.mxu0 0.0
    %634 = vmatpush.msra.mxu0 0.0
    %635 = vmatpush.msra.mxu0 0.0
    %636 = vmatpush.msra.mxu0 0.0
    %637 = vmatpush.msra.mxu0 0.0
    %638 = vmatpush.msra.mxu0 0.0
    %639 = vmatpush.msra.mxu0 %v542
    %640 = vmatmul.f32.gmra.mxu0 %v622
    %v641 = vpop.f32.mrf.mxu0
    %v642 = vadd.f32 0.0, %v641
    %643 = vdwg.mxu0
    %v645 = vsel %vm357, %v620, 0
    %647 = vmatpush.msra.mxu0 0.0
    %648 = vmatpush.msra.mxu0 0.0
    %649 = vmatpush.msra.mxu0 0.0
    %650 = vmatpush.msra.mxu0 0.0
    %651 = vmatpush.msra.mxu0 0.0
    %652 = vmatpush.msra.mxu0 0.0
    %653 = vmatpush.msra.mxu0 0.0
    %654 = vmatpush.msra.mxu0 0.0
    %655 = vmatpush.msra.mxu0 0.0
    %656 = vmatpush.msra.mxu0 0.0
    %657 = vmatpush.msra.mxu0 0.0
    %658 = vmatpush.msra.mxu0 0.0
    %659 = vmatpush.msra.mxu0 0.0
    %660 = vmatpush.msra.mxu0 0.0
    %661 = vmatpush.msra.mxu0 0.0
    %662 = vmatpush.msra.mxu0 %v545
    %663 = vmatmul.f32.gmra.mxu0 %v645
    %v664 = vpop.f32.mrf.mxu0
    %v665 = vadd.f32 0.0, %v664
    %666 = vdwg.mxu0
    %v668 = vsel %vm357, %v642, 0
    %v671 = vsel %vm357, %v665, 0
    %673 = vmatpush.msra.mxu0 0.0
    %674 = vmatpush.msra.mxu0 0.0
    %675 = vmatpush.msra.mxu0 0.0
    %676 = vmatpush.msra.mxu0 0.0
    %677 = vmatpush.msra.mxu0 0.0
    %678 = vmatpush.msra.mxu0 0.0
    %679 = vmatpush.msra.mxu0 0.0
    %680 = vmatpush.msra.mxu0 0.0
    %681 = vmatpush.msra.mxu0 0.0
    %682 = vmatpush.msra.mxu0 0.0
    %683 = vmatpush.msra.mxu0 0.0
    %684 = vmatpush.msra.mxu0 0.0
    %685 = vmatpush.msra.mxu0 0.0
    %686 = vmatpush.msra.mxu0 0.0
    %687 = vmatpush.msra.mxu0 0.0
    %688 = vmatpush.msra.mxu0 %v279
    %689 = vmatmul.f32.gmra.mxu0 %v668
    %v690 = vpop.f32.mrf.mxu0
    %v691 = vadd.f32 0.0, %v690
    %692 = vmatmul.f32.gmra.mxu0 %v671
    %v693 = vpop.f32.mrf.mxu0
    %v694 = vadd.f32 0.0, %v693
    %695 = vdwg.mxu0
    %v697 = vsel %vm357, %v453, 0
    %v700 = vsel %vm357, %v476, 0
    %702 = vmatpush.msra.mxu0 0.0
    %703 = vmatpush.msra.mxu0 0.0
    %704 = vmatpush.msra.mxu0 0.0
    %705 = vmatpush.msra.mxu0 0.0
    %706 = vmatpush.msra.mxu0 0.0
    %707 = vmatpush.msra.mxu0 0.0
    %708 = vmatpush.msra.mxu0 0.0
    %709 = vmatpush.msra.mxu0 0.0
    %710 = vmatpush.msra.mxu0 0.0
    %711 = vmatpush.msra.mxu0 0.0
    %712 = vmatpush.msra.mxu0 0.0
    %713 = vmatpush.msra.mxu0 0.0
    %714 = vmatpush.msra.mxu0 0.0
    %715 = vmatpush.msra.mxu0 0.0
    %716 = vmatpush.msra.mxu0 0.0
    %717 = vmatpush.msra.mxu0 %v278
    %718 = vmatmul.f32.gmra.mxu0 %v697
    %v719 = vpop.f32.mrf.mxu0
    %v720 = vadd.f32 %v691, %v719
    %721 = vmatmul.f32.gmra.mxu0 %v700
    %v722 = vpop.f32.mrf.mxu0
    %v723 = vadd.f32 %v694, %v722
    %724 = vdwg.mxu0
    %725 = vmatpush.msra.mxu0 0.0
    %726 = vmatpush.msra.mxu0 0.0
    %727 = vmatpush.msra.mxu0 0.0
    %728 = vmatpush.msra.mxu0 0.0
    %729 = vmatpush.msra.mxu0 0.0
    %730 = vmatpush.msra.mxu0 0.0
    %731 = vmatpush.msra.mxu0 0.0
    %732 = vmatpush.msra.mxu0 0.0
    %733 = vmatpush.msra.mxu0 0.0
    %734 = vmatpush.msra.mxu0 0.0
    %735 = vmatpush.msra.mxu0 0.0
    %736 = vmatpush.msra.mxu0 0.0
    %737 = vmatpush.msra.mxu0 %v241
    %738 = vmatpush.msra.mxu0 %v240
    %739 = vmatpush.msra.mxu0 %v239
    %740 = vmatpush.msra.mxu0 %v238
    %741 = vmatmul.f32.gmra.mxu0 %v283
    %v742 = vpop.f32.mrf.mxu0
    %v743 = vadd.f32 0.0, %v742
    %744 = vmatmul.f32.gmra.mxu0 %v286
    %v745 = vpop.f32.mrf.mxu0
    %v746 = vadd.f32 0.0, %v745
    %747 = vdwg.mxu0
    %748 = vmatpush.msra.mxu0 0.0
    %749 = vmatpush.msra.mxu0 0.0
    %750 = vmatpush.msra.mxu0 0.0
    %751 = vmatpush.msra.mxu0 0.0
    %752 = vmatpush.msra.mxu0 0.0
    %753 = vmatpush.msra.mxu0 0.0
    %754 = vmatpush.msra.mxu0 0.0
    %755 = vmatpush.msra.mxu0 0.0
    %756 = vmatpush.msra.mxu0 0.0
    %757 = vmatpush.msra.mxu0 0.0
    %758 = vmatpush.msra.mxu0 0.0
    %759 = vmatpush.msra.mxu0 0.0
    %760 = vmatpush.msra.mxu0 %v257
    %761 = vmatpush.msra.mxu0 %v256
    %762 = vmatpush.msra.mxu0 %v255
    %763 = vmatpush.msra.mxu0 %v254
    %764 = vmatmul.f32.gmra.mxu0 %v283
    %v765 = vpop.f32.mrf.mxu0
    %v766 = vadd.f32 0.0, %v765
    %767 = vmatmul.f32.gmra.mxu0 %v286
    %v768 = vpop.f32.mrf.mxu0
    %v769 = vadd.f32 0.0, %v768
    %770 = vdwg.mxu0
    %771 = vmatpush.msra.mxu0 0.0
    %772 = vmatpush.msra.mxu0 0.0
    %773 = vmatpush.msra.mxu0 0.0
    %774 = vmatpush.msra.mxu0 0.0
    %775 = vmatpush.msra.mxu0 0.0
    %776 = vmatpush.msra.mxu0 0.0
    %777 = vmatpush.msra.mxu0 0.0
    %778 = vmatpush.msra.mxu0 0.0
    %779 = vmatpush.msra.mxu0 0.0
    %780 = vmatpush.msra.mxu0 0.0
    %781 = vmatpush.msra.mxu0 0.0
    %782 = vmatpush.msra.mxu0 0.0
    %783 = vmatpush.msra.mxu0 %v273
    %784 = vmatpush.msra.mxu0 %v272
    %785 = vmatpush.msra.mxu0 %v271
    %786 = vmatpush.msra.mxu0 %v270
    %787 = vmatmul.f32.gmra.mxu0 %v283
    %v788 = vpop.f32.mrf.mxu0
    %v789 = vadd.f32 0.0, %v788
    %790 = vmatmul.f32.gmra.mxu0 %v286
    %v791 = vpop.f32.mrf.mxu0
    %v792 = vadd.f32 0.0, %v791
    %793 = vdwg.mxu0
    %v795 = vsel %vm357, %v743, 0
    %v798 = vsel %vm357, %v766, 0
    %800 = vmatpush.xpose.msra.mxu0 0.0
    %801 = vmatpush.xpose.msra.mxu0 0.0
    %802 = vmatpush.xpose.msra.mxu0 0.0
    %803 = vmatpush.xpose.msra.mxu0 0.0
    %804 = vmatpush.xpose.msra.mxu0 0.0
    %805 = vmatpush.xpose.msra.mxu0 0.0
    %806 = vmatpush.xpose.msra.mxu0 0.0
    %807 = vmatpush.xpose.msra.mxu0 0.0
    %808 = vmatpush.xpose.msra.mxu0 0.0
    %809 = vmatpush.xpose.msra.mxu0 0.0
    %810 = vmatpush.xpose.msra.mxu0 0.0
    %811 = vmatpush.xpose.msra.mxu0 0.0
    %812 = vmatpush.xpose.msra.mxu0 0.0
    %813 = vmatpush.xpose.msra.mxu0 0.0
    %814 = vmatpush.xpose.msra.mxu0 0.0
    %815 = vmatpush.xpose.msra.mxu0 %v798
    %816 = vmatmul.f32.gmra.mxu0 %v795
    %v817 = vpop.f32.mrf.mxu0
    %v818 = vadd.f32 %v180, %v817
    %819 = vdwg.mxu0
    %v821 = vsel %vm357, %v746, 0
    %v824 = vsel %vm357, %v769, 0
    %826 = vmatpush.xpose.msra.mxu0 0.0
    %827 = vmatpush.xpose.msra.mxu0 0.0
    %828 = vmatpush.xpose.msra.mxu0 0.0
    %829 = vmatpush.xpose.msra.mxu0 0.0
    %830 = vmatpush.xpose.msra.mxu0 0.0
    %831 = vmatpush.xpose.msra.mxu0 0.0
    %832 = vmatpush.xpose.msra.mxu0 0.0
    %833 = vmatpush.xpose.msra.mxu0 0.0
    %834 = vmatpush.xpose.msra.mxu0 0.0
    %835 = vmatpush.xpose.msra.mxu0 0.0
    %836 = vmatpush.xpose.msra.mxu0 0.0
    %837 = vmatpush.xpose.msra.mxu0 0.0
    %838 = vmatpush.xpose.msra.mxu0 0.0
    %839 = vmatpush.xpose.msra.mxu0 0.0
    %840 = vmatpush.xpose.msra.mxu0 0.0
    %841 = vmatpush.xpose.msra.mxu0 %v824
    %842 = vmatmul.f32.gmra.mxu0 %v821
    %v843 = vpop.f32.mrf.mxu0
    %v844 = vadd.f32 %v180, %v843
    %845 = vdwg.mxu0
    %v846 = vsel %vm357, %v818, -inf
    %847 = vmax.xlane.f32.xlu0 %v846
    %v848 = vpop.xlane.xlu0 %847
    %v849 = vsel %vm357, %v844, -inf
    %850 = vmax.xlane.f32.xlu0 %v849
    %v851 = vpop.xlane.xlu0 %850
    %v852 = vsub.f32 %v818, %v848
    %v853 = vsub.f32 %v844, %v851
    %v854 = vmul.f32 %v852, 1.442695
    %v855 = vpow.pop %v854
    %v856 = vmul.f32 %v853, 1.442695
    %v857 = vpow.pop %v856
    %v858 = vsel %vm357, %v855, 0.0
    %859 = vadd.xlane.f32.xlu0 %v858
    %v860 = vpop.xlane.xlu0 %859
    %v861 = vsel %vm357, %v857, 0.0
    %862 = vadd.xlane.f32.xlu0 %v861
    %v863 = vpop.xlane.xlu0 %862
    %v864 = vrcp.pop %v860
    %v865 = vrcp.pop %v863
    %v866 = vmul.f32 %v855, %v864
    %v867 = vmul.f32 %v857, %v865
    %v869 = vsel %vm357, %v866, 0
    %871 = vmatpush.msra.mxu0 0.0
    %872 = vmatpush.msra.mxu0 0.0
    %873 = vmatpush.msra.mxu0 0.0
    %874 = vmatpush.msra.mxu0 0.0
    %875 = vmatpush.msra.mxu0 0.0
    %876 = vmatpush.msra.mxu0 0.0
    %877 = vmatpush.msra.mxu0 0.0
    %878 = vmatpush.msra.mxu0 0.0
    %879 = vmatpush.msra.mxu0 0.0
    %880 = vmatpush.msra.mxu0 0.0
    %881 = vmatpush.msra.mxu0 0.0
    %882 = vmatpush.msra.mxu0 0.0
    %883 = vmatpush.msra.mxu0 0.0
    %884 = vmatpush.msra.mxu0 0.0
    %885 = vmatpush.msra.mxu0 0.0
    %886 = vmatpush.msra.mxu0 %v789
    %887 = vmatmul.f32.gmra.mxu0 %v869
    %v888 = vpop.f32.mrf.mxu0
    %v889 = vadd.f32 0.0, %v888
    %890 = vdwg.mxu0
    %v892 = vsel %vm357, %v867, 0
    %894 = vmatpush.msra.mxu0 0.0
    %895 = vmatpush.msra.mxu0 0.0
    %896 = vmatpush.msra.mxu0 0.0
    %897 = vmatpush.msra.mxu0 0.0
    %898 = vmatpush.msra.mxu0 0.0
    %899 = vmatpush.msra.mxu0 0.0
    %900 = vmatpush.msra.mxu0 0.0
    %901 = vmatpush.msra.mxu0 0.0
    %902 = vmatpush.msra.mxu0 0.0
    %903 = vmatpush.msra.mxu0 0.0
    %904 = vmatpush.msra.mxu0 0.0
    %905 = vmatpush.msra.mxu0 0.0
    %906 = vmatpush.msra.mxu0 0.0
    %907 = vmatpush.msra.mxu0 0.0
    %908 = vmatpush.msra.mxu0 0.0
    %909 = vmatpush.msra.mxu0 %v792
    %910 = vmatmul.f32.gmra.mxu0 %v892
    %v911 = vpop.f32.mrf.mxu0
    %v912 = vadd.f32 0.0, %v911
    %913 = vdwg.mxu0
    %v915 = vsel %vm357, %v889, 0
    %v918 = vsel %vm357, %v912, 0
    %920 = vmatpush.msra.mxu0 0.0
    %921 = vmatpush.msra.mxu0 0.0
    %922 = vmatpush.msra.mxu0 0.0
    %923 = vmatpush.msra.mxu0 0.0
    %924 = vmatpush.msra.mxu0 0.0
    %925 = vmatpush.msra.mxu0 0.0
    %926 = vmatpush.msra.mxu0 0.0
    %927 = vmatpush.msra.mxu0 0.0
    %928 = vmatpush.msra.mxu0 0.0
    %929 = vmatpush.msra.mxu0 0.0
    %930 = vmatpush.msra.mxu0 0.0
    %931 = vmatpush.msra.mxu0 0.0
    %932 = vmatpush.msra.mxu0 0.0
    %933 = vmatpush.msra.mxu0 0.0
    %934 = vmatpush.msra.mxu0 0.0
    %935 = vmatpush.msra.mxu0 %v280
    %936 = vmatmul.f32.gmra.mxu0 %v915
    %v937 = vpop.f32.mrf.mxu0
    %v938 = vadd.f32 0.0, %v937
    %939 = vmatmul.f32.gmra.mxu0 %v918
    %v940 = vpop.f32.mrf.mxu0
    %v941 = vadd.f32 0.0, %v940
    %942 = vdwg.mxu0
    %v943 = vadd.f32 %v720, %v938
    %v944 = vadd.f32 %v723, %v941
    %945 = vmatpush.msra.mxu0 0.0
    %946 = vmatpush.msra.mxu0 0.0
    %947 = vmatpush.msra.mxu0 0.0
    %948 = vmatpush.msra.mxu0 0.0
    %949 = vmatpush.msra.mxu0 0.0
    %950 = vmatpush.msra.mxu0 0.0
    %951 = vmatpush.msra.mxu0 0.0
    %952 = vmatpush.msra.mxu0 0.0
    %953 = vmatpush.msra.mxu0 0.0
    %954 = vmatpush.msra.mxu0 0.0
    %955 = vmatpush.msra.mxu0 0.0
    %956 = vmatpush.msra.mxu0 0.0
    %957 = vmatpush.msra.mxu0 %v245
    %958 = vmatpush.msra.mxu0 %v244
    %959 = vmatpush.msra.mxu0 %v243
    %960 = vmatpush.msra.mxu0 %v242
    %961 = vmatmul.f32.gmra.mxu0 %v283
    %v962 = vpop.f32.mrf.mxu0
    %v963 = vadd.f32 0.0, %v962
    %964 = vmatmul.f32.gmra.mxu0 %v286
    %v965 = vpop.f32.mrf.mxu0
    %v966 = vadd.f32 0.0, %v965
    %967 = vdwg.mxu0
    %968 = vmatpush.msra.mxu0 0.0
    %969 = vmatpush.msra.mxu0 0.0
    %970 = vmatpush.msra.mxu0 0.0
    %971 = vmatpush.msra.mxu0 0.0
    %972 = vmatpush.msra.mxu0 0.0
    %973 = vmatpush.msra.mxu0 0.0
    %974 = vmatpush.msra.mxu0 0.0
    %975 = vmatpush.msra.mxu0 0.0
    %976 = vmatpush.msra.mxu0 0.0
    %977 = vmatpush.msra.mxu0 0.0
    %978 = vmatpush.msra.mxu0 0.0
    %979 = vmatpush.msra.mxu0 0.0
    %980 = vmatpush.msra.mxu0 %v261
    %981 = vmatpush.msra.mxu0 %v260
    %982 = vmatpush.msra.mxu0 %v259
    %983 = vmatpush.msra.mxu0 %v258
    %984 = vmatmul.f32.gmra.mxu0 %v283
    %v985 = vpop.f32.mrf.mxu0
    %v986 = vadd.f32 0.0, %v985
    %987 = vmatmul.f32.gmra.mxu0 %v286
    %v988 = vpop.f32.mrf.mxu0
    %v989 = vadd.f32 0.0, %v988
    %990 = vdwg.mxu0
    %991 = vmatpush.msra.mxu0 0.0
    %992 = vmatpush.msra.mxu0 0.0
    %993 = vmatpush.msra.mxu0 0.0
    %994 = vmatpush.msra.mxu0 0.0
    %995 = vmatpush.msra.mxu0 0.0
    %996 = vmatpush.msra.mxu0 0.0
    %997 = vmatpush.msra.mxu0 0.0
    %998 = vmatpush.msra.mxu0 0.0
    %999 = vmatpush.msra.mxu0 0.0
    %1000 = vmatpush.msra.mxu0 0.0
    %1001 = vmatpush.msra.mxu0 0.0
    %1002 = vmatpush.msra.mxu0 0.0
    %1003 = vmatpush.msra.mxu0 %v277
    %1004 = vmatpush.msra.mxu0 %v276
    %1005 = vmatpush.msra.mxu0 %v275
    %1006 = vmatpush.msra.mxu0 %v274
    %1007 = vmatmul.f32.gmra.mxu0 %v283
    %v1008 = vpop.f32.mrf.mxu0
    %v1009 = vadd.f32 0.0, %v1008
    %1010 = vmatmul.f32.gmra.mxu0 %v286
    %v1011 = vpop.f32.mrf.mxu0
    %v1012 = vadd.f32 0.0, %v1011
    %1013 = vdwg.mxu0
    %v1015 = vsel %vm357, %v963, 0
    %v1018 = vsel %vm357, %v986, 0
    %1020 = vmatpush.xpose.msra.mxu0 0.0
    %1021 = vmatpush.xpose.msra.mxu0 0.0
    %1022 = vmatpush.xpose.msra.mxu0 0.0
    %1023 = vmatpush.xpose.msra.mxu0 0.0
    %1024 = vmatpush.xpose.msra.mxu0 0.0
    %1025 = vmatpush.xpose.msra.mxu0 0.0
    %1026 = vmatpush.xpose.msra.mxu0 0.0
    %1027 = vmatpush.xpose.msra.mxu0 0.0
    %1028 = vmatpush.xpose.msra.mxu0 0.0
    %1029 = vmatpush.xpose.msra.mxu0 0.0
    %1030 = vmatpush.xpose.msra.mxu0 0.0
    %1031 = vmatpush.xpose.msra.mxu0 0.0
    %1032 = vmatpush.xpose.msra.mxu0 0.0
    %1033 = vmatpush.xpose.msra.mxu0 0.0
    %1034 = vmatpush.xpose.msra.mxu0 0.0
    %1035 = vmatpush.xpose.msra.mxu0 %v1018
    %1036 = vmatmul.f32.gmra.mxu0 %v1015
    %v1037 = vpop.f32.mrf.mxu0
    %v1038 = vadd.f32 %v181, %v1037
    %1039 = vdwg.mxu0
    %v1041 = vsel %vm357, %v966, 0
    %v1044 = vsel %vm357, %v989, 0
    %1046 = vmatpush.xpose.msra.mxu0 0.0
    %1047 = vmatpush.xpose.msra.mxu0 0.0
    %1048 = vmatpush.xpose.msra.mxu0 0.0
    %1049 = vmatpush.xpose.msra.mxu0 0.0
    %1050 = vmatpush.xpose.msra.mxu0 0.0
    %1051 = vmatpush.xpose.msra.mxu0 0.0
    %1052 = vmatpush.xpose.msra.mxu0 0.0
    %1053 = vmatpush.xpose.msra.mxu0 0.0
    %1054 = vmatpush.xpose.msra.mxu0 0.0
    %1055 = vmatpush.xpose.msra.mxu0 0.0
    %1056 = vmatpush.xpose.msra.mxu0 0.0
    %1057 = vmatpush.xpose.msra.mxu0 0.0
    %1058 = vmatpush.xpose.msra.mxu0 0.0
    %1059 = vmatpush.xpose.msra.mxu0 0.0
    %1060 = vmatpush.xpose.msra.mxu0 0.0
    %1061 = vmatpush.xpose.msra.mxu0 %v1044
    %1062 = vmatmul.f32.gmra.mxu0 %v1041
    %v1063 = vpop.f32.mrf.mxu0
    %v1064 = vadd.f32 %v181, %v1063
    %1065 = vdwg.mxu0
    %v1066 = vsel %vm357, %v1038, -inf
    %1067 = vmax.xlane.f32.xlu0 %v1066
    %v1068 = vpop.xlane.xlu0 %1067
    %v1069 = vsel %vm357, %v1064, -inf
    %1070 = vmax.xlane.f32.xlu0 %v1069
    %v1071 = vpop.xlane.xlu0 %1070
    %v1072 = vsub.f32 %v1038, %v1068
    %v1073 = vsub.f32 %v1064, %v1071
    %v1074 = vmul.f32 %v1072, 1.442695
    %v1075 = vpow.pop %v1074
    %v1076 = vmul.f32 %v1073, 1.442695
    %v1077 = vpow.pop %v1076
    %v1078 = vsel %vm357, %v1075, 0.0
    %1079 = vadd.xlane.f32.xlu0 %v1078
    %v1080 = vpop.xlane.xlu0 %1079
    %v1081 = vsel %vm357, %v1077, 0.0
    %1082 = vadd.xlane.f32.xlu0 %v1081
    %v1083 = vpop.xlane.xlu0 %1082
    %v1084 = vrcp.pop %v1080
    %v1085 = vrcp.pop %v1083
    %v1086 = vmul.f32 %v1075, %v1084
    %v1087 = vmul.f32 %v1077, %v1085
    %v1089 = vsel %vm357, %v1086, 0
    %1091 = vmatpush.msra.mxu0 0.0
    %1092 = vmatpush.msra.mxu0 0.0
    %1093 = vmatpush.msra.mxu0 0.0
    %1094 = vmatpush.msra.mxu0 0.0
    %1095 = vmatpush.msra.mxu0 0.0
    %1096 = vmatpush.msra.mxu0 0.0
    %1097 = vmatpush.msra.mxu0 0.0
    %1098 = vmatpush.msra.mxu0 0.0
    %1099 = vmatpush.msra.mxu0 0.0
    %1100 = vmatpush.msra.mxu0 0.0
    %1101 = vmatpush.msra.mxu0 0.0
    %1102 = vmatpush.msra.mxu0 0.0
    %1103 = vmatpush.msra.mxu0 0.0
    %1104 = vmatpush.msra.mxu0 0.0
    %1105 = vmatpush.msra.mxu0 0.0
    %1106 = vmatpush.msra.mxu0 %v1009
    %1107 = vmatmul.f32.gmra.mxu0 %v1089
    %v1108 = vpop.f32.mrf.mxu0
    %v1109 = vadd.f32 0.0, %v1108
    %1110 = vdwg.mxu0
    %v1112 = vsel %vm357, %v1087, 0
    %1114 = vmatpush.msra.mxu0 0.0
    %1115 = vmatpush.msra.mxu0 0.0
    %1116 = vmatpush.msra.mxu0 0.0
    %1117 = vmatpush.msra.mxu0 0.0
    %1118 = vmatpush.msra.mxu0 0.0
    %1119 = vmatpush.msra.mxu0 0.0
    %1120 = vmatpush.msra.mxu0 0.0
    %1121 = vmatpush.msra.mxu0 0.0
    %1122 = vmatpush.msra.mxu0 0.0
    %1123 = vmatpush.msra.mxu0 0.0
    %1124 = vmatpush.msra.mxu0 0.0
    %1125 = vmatpush.msra.mxu0 0.0
    %1126 = vmatpush.msra.mxu0 0.0
    %1127 = vmatpush.msra.mxu0 0.0
    %1128 = vmatpush.msra.mxu0 0.0
    %1129 = vmatpush.msra.mxu0 %v1012
    %1130 = vmatmul.f32.gmra.mxu0 %v1112
    %v1131 = vpop.f32.mrf.mxu0
    %v1132 = vadd.f32 0.0, %v1131
    %1133 = vdwg.mxu0
    %v1135 = vsel %vm357, %v1109, 0
    %v1138 = vsel %vm357, %v1132, 0
    %1140 = vmatpush.msra.mxu0 0.0
    %1141 = vmatpush.msra.mxu0 0.0
    %1142 = vmatpush.msra.mxu0 0.0
    %1143 = vmatpush.msra.mxu0 0.0
    %1144 = vmatpush.msra.mxu0 0.0
    %1145 = vmatpush.msra.mxu0 0.0
    %1146 = vmatpush.msra.mxu0 0.0
    %1147 = vmatpush.msra.mxu0 0.0
    %1148 = vmatpush.msra.mxu0 0.0
    %1149 = vmatpush.msra.mxu0 0.0
    %1150 = vmatpush.msra.mxu0 0.0
    %1151 = vmatpush.msra.mxu0 0.0
    %1152 = vmatpush.msra.mxu0 0.0
    %1153 = vmatpush.msra.mxu0 0.0
    %1154 = vmatpush.msra.mxu0 0.0
    %1155 = vmatpush.msra.mxu0 %v281
    %1156 = vmatmul.f32.gmra.mxu0 %v1135
    %v1157 = vpop.f32.mrf.mxu0
    %v1158 = vadd.f32 0.0, %v1157
    %1159 = vmatmul.f32.gmra.mxu0 %v1138
    %v1160 = vpop.f32.mrf.mxu0
    %v1161 = vadd.f32 0.0, %v1160
    %1162 = vdwg.mxu0
    %v1163 = vadd.f32 %v943, %v1158
    %v1164 = vadd.f32 %v944, %v1161
    %v1165 = vadd.f32 %v173, %v1163
    %v1166 = vadd.f32 %v176, %v1164
    %v1167 = vld [vmem:[%s21] sm:$0x1]
    %v1168 = vmul.f32 %v1165, %v1165
    %v1169 = vmul.f32 %v1166, %v1166
    %v1170 = vsel %vm185, %v1168, 0.0
    %1171 = vadd.xlane.f32.xlu0 %v1170
    %v1172 = vpop.xlane.xlu0 %1171
    %v1173 = vsel %vm185, %v1169, 0.0
    %1174 = vadd.xlane.f32.xlu0 %v1173
    %v1175 = vpop.xlane.xlu0 %1174
    %v1176 = vmul.f32 %v1172, %v198
    %v1177 = vmul.f32 %v1175, %v198
    %v1178 = vadd.f32 %v1176, 1e-06
    %v1179 = vadd.f32 %v1177, 1e-06
    %v1180 = vrsqrt.pop %v1178
    %v1181 = vmul.f32 %v1180, %v1178
    %v1182 = vmul.f32 %v1181, %v1180
    %v1183 = vmul.f32 0.5, %v1182
    %v1184 = vsub.f32 1.5, %v1183
    %v1185 = vmul.f32 %v1180, %v1184
    %vm1186 = vweird.f32 %v1178
    %vm1187 = vweird.f32 %v1180
    %vm1188 = vmor %vm1186, %vm1187
    %v1189 = vsel %vm1188, %v1180, %v1185
    %v1190 = vrsqrt.pop %v1179
    %v1191 = vmul.f32 %v1190, %v1179
    %v1192 = vmul.f32 %v1191, %v1190
    %v1193 = vmul.f32 0.5, %v1192
    %v1194 = vsub.f32 1.5, %v1193
    %v1195 = vmul.f32 %v1190, %v1194
    %vm1196 = vweird.f32 %v1179
    %vm1197 = vweird.f32 %v1190
    %vm1198 = vmor %vm1196, %vm1197
    %v1199 = vsel %vm1198, %v1190, %v1195
    %v1200 = vmul.f32 %v1165, %v1189
    %v1201 = vmul.f32 %v1166, %v1199
    %v1203 = vperm.slane %v1167, 0
    %v1205 = vmul.f32 %v1200, %v1203
    %v1206 = vmul.f32 %v1201, %v1203
    %v1207 = vld [vmem:[%s23] sm:$0xff]
    %v1208 = vld [vmem:[%s23 + $0x8] sm:$0xff]
    %v1209 = vld [vmem:[%s23 + $0x10] sm:$0xff]
    %v1210 = vld [vmem:[%s23 + $0x18] sm:$0xff]
    %v1212 = vsel %vm185, %v1205, 0
    %v1215 = vsel %vm185, %v1206, 0
    %1217 = vmatpush.msra.mxu0 0.0
    %1218 = vmatpush.msra.mxu0 0.0
    %1219 = vmatpush.msra.mxu0 0.0
    %1220 = vmatpush.msra.mxu0 0.0
    %1221 = vmatpush.msra.mxu0 0.0
    %1222 = vmatpush.msra.mxu0 0.0
    %1223 = vmatpush.msra.mxu0 0.0
    %1224 = vmatpush.msra.mxu0 0.0
    %1225 = vmatpush.msra.mxu0 0.0
    %1226 = vmatpush.msra.mxu0 0.0
    %1227 = vmatpush.msra.mxu0 0.0
    %1228 = vmatpush.msra.mxu0 0.0
    %1229 = vmatpush.msra.mxu0 %v1210
    %1230 = vmatpush.msra.mxu0 %v1209
    %1231 = vmatpush.msra.mxu0 %v1208
    %1232 = vmatpush.msra.mxu0 %v1207
    %1233 = vmatmul.f32.gmra.mxu0 %v1212
    %v1234 = vpop.f32.mrf.mxu0
    %v1235 = vadd.f32 0.0, %v1234
    %1236 = vmatmul.f32.gmra.mxu0 %v1215
    %v1237 = vpop.f32.mrf.mxu0
    %v1238 = vadd.f32 0.0, %v1237
    %1239 = vdwg.mxu0
    %v1240 = vmax.f32 %v1235, 0.0
    %v1241 = vmax.f32 %v1238, 0.0
    %v1242 = vld [vmem:[%s25] sm:$0xff]
    %v1243 = vld [vmem:[%s25 + $0x8] sm:$0xff]
    %v1244 = vld [vmem:[%s25 + $0x10] sm:$0xff]
    %v1245 = vld [vmem:[%s25 + $0x18] sm:$0xff]
    %v1246 = vld [vmem:[%s25 + $0x20] sm:$0xff]
    %v1247 = vld [vmem:[%s25 + $0x28] sm:$0xff]
    %v1248 = vld [vmem:[%s25 + $0x30] sm:$0xff]
    %v1249 = vld [vmem:[%s25 + $0x38] sm:$0xff]
    %vm1250 = vcmask 523264
    %v1252 = vsel %vm1250, %v1240, 0
    %v1255 = vsel %vm1250, %v1241, 0
    %1257 = vmatpush.msra.mxu0 0.0
    %1258 = vmatpush.msra.mxu0 0.0
    %1259 = vmatpush.msra.mxu0 0.0
    %1260 = vmatpush.msra.mxu0 0.0
    %1261 = vmatpush.msra.mxu0 0.0
    %1262 = vmatpush.msra.mxu0 0.0
    %1263 = vmatpush.msra.mxu0 0.0
    %1264 = vmatpush.msra.mxu0 0.0
    %1265 = vmatpush.msra.mxu0 %v1249
    %1266 = vmatpush.msra.mxu0 %v1248
    %1267 = vmatpush.msra.mxu0 %v1247
    %1268 = vmatpush.msra.mxu0 %v1246
    %1269 = vmatpush.msra.mxu0 %v1245
    %1270 = vmatpush.msra.mxu0 %v1244
    %1271 = vmatpush.msra.mxu0 %v1243
    %1272 = vmatpush.msra.mxu0 %v1242
    %1273 = vmatmul.f32.gmra.mxu0 %v1252
    %v1274 = vpop.f32.mrf.mxu0
    %v1275 = vadd.f32 0.0, %v1274
    %1276 = vmatmul.f32.gmra.mxu0 %v1255
    %v1277 = vpop.f32.mrf.mxu0
    %v1278 = vadd.f32 0.0, %v1277
    %1279 = vdwg.mxu0
    %v1280 = vadd.f32 %v1165, %v1275
    %v1281 = vadd.f32 %v1166, %v1278
    %s1282 = scalar_lea.vmem %s11, 1
    %v1283 = vld [vmem:[%s1282] sm:$0x1]
    %v1284 = vmul.f32 %v1280, %v1280
    %v1285 = vmul.f32 %v1281, %v1281
    %v1286 = vsel %vm185, %v1284, 0.0
    %1287 = vadd.xlane.f32.xlu0 %v1286
    %v1288 = vpop.xlane.xlu0 %1287
    %v1289 = vsel %vm185, %v1285, 0.0
    %1290 = vadd.xlane.f32.xlu0 %v1289
    %v1291 = vpop.xlane.xlu0 %1290
    %v1292 = vmul.f32 %v1288, %v198
    %v1293 = vmul.f32 %v1291, %v198
    %v1294 = vadd.f32 %v1292, 1e-06
    %v1295 = vadd.f32 %v1293, 1e-06
    %v1296 = vrsqrt.pop %v1294
    %v1297 = vmul.f32 %v1296, %v1294
    %v1298 = vmul.f32 %v1297, %v1296
    %v1299 = vmul.f32 0.5, %v1298
    %v1300 = vsub.f32 1.5, %v1299
    %v1301 = vmul.f32 %v1296, %v1300
    %vm1302 = vweird.f32 %v1294
    %vm1303 = vweird.f32 %v1296
    %vm1304 = vmor %vm1302, %vm1303
    %v1305 = vsel %vm1304, %v1296, %v1301
    %v1306 = vrsqrt.pop %v1295
    %v1307 = vmul.f32 %v1306, %v1295
    %v1308 = vmul.f32 %v1307, %v1306
    %v1309 = vmul.f32 0.5, %v1308
    %v1310 = vsub.f32 1.5, %v1309
    %v1311 = vmul.f32 %v1306, %v1310
    %vm1312 = vweird.f32 %v1295
    %vm1313 = vweird.f32 %v1306
    %vm1314 = vmor %vm1312, %vm1313
    %v1315 = vsel %vm1314, %v1306, %v1311
    %v1316 = vmul.f32 %v1280, %v1305
    %v1317 = vmul.f32 %v1281, %v1315
    %v1319 = vperm.slane %v1283, 0
    %v1321 = vmul.f32 %v1316, %v1319
    %v1322 = vmul.f32 %v1317, %v1319
    %s1323 = scalar_lea.vmem %s13, 128
    %v1324 = vld [vmem:[%s1323] sm:$0xff]
    %v1325 = vld [vmem:[%s1323 + $0x8] sm:$0xff]
    %v1326 = vld [vmem:[%s1323 + $0x10] sm:$0xff]
    %v1327 = vld [vmem:[%s1323 + $0x18] sm:$0xff]
    %v1328 = vld [vmem:[%s1323 + $0x20] sm:$0xff]
    %v1329 = vld [vmem:[%s1323 + $0x28] sm:$0xff]
    %v1330 = vld [vmem:[%s1323 + $0x30] sm:$0xff]
    %v1331 = vld [vmem:[%s1323 + $0x38] sm:$0xff]
    %v1332 = vld [vmem:[%s1323 + $0x40] sm:$0xff]
    %v1333 = vld [vmem:[%s1323 + $0x48] sm:$0xff]
    %v1334 = vld [vmem:[%s1323 + $0x50] sm:$0xff]
    %v1335 = vld [vmem:[%s1323 + $0x58] sm:$0xff]
    %v1336 = vld [vmem:[%s1323 + $0x60] sm:$0xff]
    %v1337 = vld [vmem:[%s1323 + $0x68] sm:$0xff]
    %v1338 = vld [vmem:[%s1323 + $0x70] sm:$0xff]
    %v1339 = vld [vmem:[%s1323 + $0x78] sm:$0xff]
    %s1340 = scalar_lea.vmem %s15, 128
    %v1341 = vld [vmem:[%s1340] sm:$0xff]
    %v1342 = vld [vmem:[%s1340 + $0x8] sm:$0xff]
    %v1343 = vld [vmem:[%s1340 + $0x10] sm:$0xff]
    %v1344 = vld [vmem:[%s1340 + $0x18] sm:$0xff]
    %v1345 = vld [vmem:[%s1340 + $0x20] sm:$0xff]
    %v1346 = vld [vmem:[%s1340 + $0x28] sm:$0xff]
    %v1347 = vld [vmem:[%s1340 + $0x30] sm:$0xff]
    %v1348 = vld [vmem:[%s1340 + $0x38] sm:$0xff]
    %v1349 = vld [vmem:[%s1340 + $0x40] sm:$0xff]
    %v1350 = vld [vmem:[%s1340 + $0x48] sm:$0xff]
    %v1351 = vld [vmem:[%s1340 + $0x50] sm:$0xff]
    %v1352 = vld [vmem:[%s1340 + $0x58] sm:$0xff]
    %v1353 = vld [vmem:[%s1340 + $0x60] sm:$0xff]
    %v1354 = vld [vmem:[%s1340 + $0x68] sm:$0xff]
    %v1355 = vld [vmem:[%s1340 + $0x70] sm:$0xff]
    %v1356 = vld [vmem:[%s1340 + $0x78] sm:$0xff]
    %s1357 = scalar_lea.vmem %s17, 128
    %v1358 = vld [vmem:[%s1357] sm:$0xff]
    %v1359 = vld [vmem:[%s1357 + $0x8] sm:$0xff]
    %v1360 = vld [vmem:[%s1357 + $0x10] sm:$0xff]
    %v1361 = vld [vmem:[%s1357 + $0x18] sm:$0xff]
    %v1362 = vld [vmem:[%s1357 + $0x20] sm:$0xff]
    %v1363 = vld [vmem:[%s1357 + $0x28] sm:$0xff]
    %v1364 = vld [vmem:[%s1357 + $0x30] sm:$0xff]
    %v1365 = vld [vmem:[%s1357 + $0x38] sm:$0xff]
    %v1366 = vld [vmem:[%s1357 + $0x40] sm:$0xff]
    %v1367 = vld [vmem:[%s1357 + $0x48] sm:$0xff]
    %v1368 = vld [vmem:[%s1357 + $0x50] sm:$0xff]
    %v1369 = vld [vmem:[%s1357 + $0x58] sm:$0xff]
    %v1370 = vld [vmem:[%s1357 + $0x60] sm:$0xff]
    %v1371 = vld [vmem:[%s1357 + $0x68] sm:$0xff]
    %v1372 = vld [vmem:[%s1357 + $0x70] sm:$0xff]
    %v1373 = vld [vmem:[%s1357 + $0x78] sm:$0xff]
    %s1374 = scalar_lea.vmem %s19, 32
    %v1375 = vld [vmem:[%s1374] sm:$0xff]
    %v1376 = vld [vmem:[%s1374 + $0x8] sm:$0xff]
    %v1377 = vld [vmem:[%s1374 + $0x10] sm:$0xff]
    %v1378 = vld [vmem:[%s1374 + $0x18] sm:$0xff]
    %v1380 = vsel %vm185, %v1321, 0
    %v1383 = vsel %vm185, %v1322, 0
    %1385 = vmatpush.msra.mxu0 0.0
    %1386 = vmatpush.msra.mxu0 0.0
    %1387 = vmatpush.msra.mxu0 0.0
    %1388 = vmatpush.msra.mxu0 0.0
    %1389 = vmatpush.msra.mxu0 0.0
    %1390 = vmatpush.msra.mxu0 0.0
    %1391 = vmatpush.msra.mxu0 0.0
    %1392 = vmatpush.msra.mxu0 0.0
    %1393 = vmatpush.msra.mxu0 0.0
    %1394 = vmatpush.msra.mxu0 0.0
    %1395 = vmatpush.msra.mxu0 0.0
    %1396 = vmatpush.msra.mxu0 0.0
    %1397 = vmatpush.msra.mxu0 %v1327
    %1398 = vmatpush.msra.mxu0 %v1326
    %1399 = vmatpush.msra.mxu0 %v1325
    %1400 = vmatpush.msra.mxu0 %v1324
    %1401 = vmatmul.f32.gmra.mxu0 %v1380
    %v1402 = vpop.f32.mrf.mxu0
    %v1403 = vadd.f32 0.0, %v1402
    %1404 = vmatmul.f32.gmra.mxu0 %v1383
    %v1405 = vpop.f32.mrf.mxu0
    %v1406 = vadd.f32 0.0, %v1405
    %1407 = vdwg.mxu0
    %1408 = vmatpush.msra.mxu0 0.0
    %1409 = vmatpush.msra.mxu0 0.0
    %1410 = vmatpush.msra.mxu0 0.0
    %1411 = vmatpush.msra.mxu0 0.0
    %1412 = vmatpush.msra.mxu0 0.0
    %1413 = vmatpush.msra.mxu0 0.0
    %1414 = vmatpush.msra.mxu0 0.0
    %1415 = vmatpush.msra.mxu0 0.0
    %1416 = vmatpush.msra.mxu0 0.0
    %1417 = vmatpush.msra.mxu0 0.0
    %1418 = vmatpush.msra.mxu0 0.0
    %1419 = vmatpush.msra.mxu0 0.0
    %1420 = vmatpush.msra.mxu0 %v1344
    %1421 = vmatpush.msra.mxu0 %v1343
    %1422 = vmatpush.msra.mxu0 %v1342
    %1423 = vmatpush.msra.mxu0 %v1341
    %1424 = vmatmul.f32.gmra.mxu0 %v1380
    %v1425 = vpop.f32.mrf.mxu0
    %v1426 = vadd.f32 0.0, %v1425
    %1427 = vmatmul.f32.gmra.mxu0 %v1383
    %v1428 = vpop.f32.mrf.mxu0
    %v1429 = vadd.f32 0.0, %v1428
    %1430 = vdwg.mxu0
    %1431 = vmatpush.msra.mxu0 0.0
    %1432 = vmatpush.msra.mxu0 0.0
    %1433 = vmatpush.msra.mxu0 0.0
    %1434 = vmatpush.msra.mxu0 0.0
    %1435 = vmatpush.msra.mxu0 0.0
    %1436 = vmatpush.msra.mxu0 0.0
    %1437 = vmatpush.msra.mxu0 0.0
    %1438 = vmatpush.msra.mxu0 0.0
    %1439 = vmatpush.msra.mxu0 0.0
    %1440 = vmatpush.msra.mxu0 0.0
    %1441 = vmatpush.msra.mxu0 0.0
    %1442 = vmatpush.msra.mxu0 0.0
    %1443 = vmatpush.msra.mxu0 %v1361
    %1444 = vmatpush.msra.mxu0 %v1360
    %1445 = vmatpush.msra.mxu0 %v1359
    %1446 = vmatpush.msra.mxu0 %v1358
    %1447 = vmatmul.f32.gmra.mxu0 %v1380
    %v1448 = vpop.f32.mrf.mxu0
    %v1449 = vadd.f32 0.0, %v1448
    %1450 = vmatmul.f32.gmra.mxu0 %v1383
    %v1451 = vpop.f32.mrf.mxu0
    %v1452 = vadd.f32 0.0, %v1451
    %1453 = vdwg.mxu0
    %v1455 = vsel %vm357, %v1403, 0
    %v1458 = vsel %vm357, %v1426, 0
    %1460 = vmatpush.xpose.msra.mxu0 0.0
    %1461 = vmatpush.xpose.msra.mxu0 0.0
    %1462 = vmatpush.xpose.msra.mxu0 0.0
    %1463 = vmatpush.xpose.msra.mxu0 0.0
    %1464 = vmatpush.xpose.msra.mxu0 0.0
    %1465 = vmatpush.xpose.msra.mxu0 0.0
    %1466 = vmatpush.xpose.msra.mxu0 0.0
    %1467 = vmatpush.xpose.msra.mxu0 0.0
    %1468 = vmatpush.xpose.msra.mxu0 0.0
    %1469 = vmatpush.xpose.msra.mxu0 0.0
    %1470 = vmatpush.xpose.msra.mxu0 0.0
    %1471 = vmatpush.xpose.msra.mxu0 0.0
    %1472 = vmatpush.xpose.msra.mxu0 0.0
    %1473 = vmatpush.xpose.msra.mxu0 0.0
    %1474 = vmatpush.xpose.msra.mxu0 0.0
    %1475 = vmatpush.xpose.msra.mxu0 %v1458
    %1476 = vmatmul.f32.gmra.mxu0 %v1455
    %v1477 = vpop.f32.mrf.mxu0
    %v1478 = vadd.f32 %v178, %v1477
    %1479 = vdwg.mxu0
    %v1481 = vsel %vm357, %v1406, 0
    %v1484 = vsel %vm357, %v1429, 0
    %1486 = vmatpush.xpose.msra.mxu0 0.0
    %1487 = vmatpush.xpose.msra.mxu0 0.0
    %1488 = vmatpush.xpose.msra.mxu0 0.0
    %1489 = vmatpush.xpose.msra.mxu0 0.0
    %1490 = vmatpush.xpose.msra.mxu0 0.0
    %1491 = vmatpush.xpose.msra.mxu0 0.0
    %1492 = vmatpush.xpose.msra.mxu0 0.0
    %1493 = vmatpush.xpose.msra.mxu0 0.0
    %1494 = vmatpush.xpose.msra.mxu0 0.0
    %1495 = vmatpush.xpose.msra.mxu0 0.0
    %1496 = vmatpush.xpose.msra.mxu0 0.0
    %1497 = vmatpush.xpose.msra.mxu0 0.0
    %1498 = vmatpush.xpose.msra.mxu0 0.0
    %1499 = vmatpush.xpose.msra.mxu0 0.0
    %1500 = vmatpush.xpose.msra.mxu0 0.0
    %1501 = vmatpush.xpose.msra.mxu0 %v1484
    %1502 = vmatmul.f32.gmra.mxu0 %v1481
    %v1503 = vpop.f32.mrf.mxu0
    %v1504 = vadd.f32 %v178, %v1503
    %1505 = vdwg.mxu0
    %v1506 = vsel %vm357, %v1478, -inf
    %1507 = vmax.xlane.f32.xlu0 %v1506
    %v1508 = vpop.xlane.xlu0 %1507
    %v1509 = vsel %vm357, %v1504, -inf
    %1510 = vmax.xlane.f32.xlu0 %v1509
    %v1511 = vpop.xlane.xlu0 %1510
    %v1512 = vsub.f32 %v1478, %v1508
    %v1513 = vsub.f32 %v1504, %v1511
    %v1514 = vmul.f32 %v1512, 1.442695
    %v1515 = vpow.pop %v1514
    %v1516 = vmul.f32 %v1513, 1.442695
    %v1517 = vpow.pop %v1516
    %v1518 = vsel %vm357, %v1515, 0.0
    %1519 = vadd.xlane.f32.xlu0 %v1518
    %v1520 = vpop.xlane.xlu0 %1519
    %v1521 = vsel %vm357, %v1517, 0.0
    %1522 = vadd.xlane.f32.xlu0 %v1521
    %v1523 = vpop.xlane.xlu0 %1522
    %v1524 = vrcp.pop %v1520
    %v1525 = vrcp.pop %v1523
    %v1526 = vmul.f32 %v1515, %v1524
    %v1527 = vmul.f32 %v1517, %v1525
    %v1529 = vsel %vm357, %v1526, 0
    %1531 = vmatpush.msra.mxu0 0.0
    %1532 = vmatpush.msra.mxu0 0.0
    %1533 = vmatpush.msra.mxu0 0.0
    %1534 = vmatpush.msra.mxu0 0.0
    %1535 = vmatpush.msra.mxu0 0.0
    %1536 = vmatpush.msra.mxu0 0.0
    %1537 = vmatpush.msra.mxu0 0.0
    %1538 = vmatpush.msra.mxu0 0.0
    %1539 = vmatpush.msra.mxu0 0.0
    %1540 = vmatpush.msra.mxu0 0.0
    %1541 = vmatpush.msra.mxu0 0.0
    %1542 = vmatpush.msra.mxu0 0.0
    %1543 = vmatpush.msra.mxu0 0.0
    %1544 = vmatpush.msra.mxu0 0.0
    %1545 = vmatpush.msra.mxu0 0.0
    %1546 = vmatpush.msra.mxu0 %v1449
    %1547 = vmatmul.f32.gmra.mxu0 %v1529
    %v1548 = vpop.f32.mrf.mxu0
    %v1549 = vadd.f32 0.0, %v1548
    %1550 = vdwg.mxu0
    %v1552 = vsel %vm357, %v1527, 0
    %1554 = vmatpush.msra.mxu0 0.0
    %1555 = vmatpush.msra.mxu0 0.0
    %1556 = vmatpush.msra.mxu0 0.0
    %1557 = vmatpush.msra.mxu0 0.0
    %1558 = vmatpush.msra.mxu0 0.0
    %1559 = vmatpush.msra.mxu0 0.0
    %1560 = vmatpush.msra.mxu0 0.0
    %1561 = vmatpush.msra.mxu0 0.0
    %1562 = vmatpush.msra.mxu0 0.0
    %1563 = vmatpush.msra.mxu0 0.0
    %1564 = vmatpush.msra.mxu0 0.0
    %1565 = vmatpush.msra.mxu0 0.0
    %1566 = vmatpush.msra.mxu0 0.0
    %1567 = vmatpush.msra.mxu0 0.0
    %1568 = vmatpush.msra.mxu0 0.0
    %1569 = vmatpush.msra.mxu0 %v1452
    %1570 = vmatmul.f32.gmra.mxu0 %v1552
    %v1571 = vpop.f32.mrf.mxu0
    %v1572 = vadd.f32 0.0, %v1571
    %1573 = vdwg.mxu0
    %1574 = vmatpush.msra.mxu0 0.0
    %1575 = vmatpush.msra.mxu0 0.0
    %1576 = vmatpush.msra.mxu0 0.0
    %1577 = vmatpush.msra.mxu0 0.0
    %1578 = vmatpush.msra.mxu0 0.0
    %1579 = vmatpush.msra.mxu0 0.0
    %1580 = vmatpush.msra.mxu0 0.0
    %1581 = vmatpush.msra.mxu0 0.0
    %1582 = vmatpush.msra.mxu0 0.0
    %1583 = vmatpush.msra.mxu0 0.0
    %1584 = vmatpush.msra.mxu0 0.0
    %1585 = vmatpush.msra.mxu0 0.0
    %1586 = vmatpush.msra.mxu0 %v1331
    %1587 = vmatpush.msra.mxu0 %v1330
    %1588 = vmatpush.msra.mxu0 %v1329
    %1589 = vmatpush.msra.mxu0 %v1328
    %1590 = vmatmul.f32.gmra.mxu0 %v1380
    %v1591 = vpop.f32.mrf.mxu0
    %v1592 = vadd.f32 0.0, %v1591
    %1593 = vmatmul.f32.gmra.mxu0 %v1383
    %v1594 = vpop.f32.mrf.mxu0
    %v1595 = vadd.f32 0.0, %v1594
    %1596 = vdwg.mxu0
    %1597 = vmatpush.msra.mxu0 0.0
    %1598 = vmatpush.msra.mxu0 0.0
    %1599 = vmatpush.msra.mxu0 0.0
    %1600 = vmatpush.msra.mxu0 0.0
    %1601 = vmatpush.msra.mxu0 0.0
    %1602 = vmatpush.msra.mxu0 0.0
    %1603 = vmatpush.msra.mxu0 0.0
    %1604 = vmatpush.msra.mxu0 0.0
    %1605 = vmatpush.msra.mxu0 0.0
    %1606 = vmatpush.msra.mxu0 0.0
    %1607 = vmatpush.msra.mxu0 0.0
    %1608 = vmatpush.msra.mxu0 0.0
    %1609 = vmatpush.msra.mxu0 %v1348
    %1610 = vmatpush.msra.mxu0 %v1347
    %1611 = vmatpush.msra.mxu0 %v1346
    %1612 = vmatpush.msra.mxu0 %v1345
    %1613 = vmatmul.f32.gmra.mxu0 %v1380
    %v1614 = vpop.f32.mrf.mxu0
    %v1615 = vadd.f32 0.0, %v1614
    %1616 = vmatmul.f32.gmra.mxu0 %v1383
    %v1617 = vpop.f32.mrf.mxu0
    %v1618 = vadd.f32 0.0, %v1617
    %1619 = vdwg.mxu0
    %1620 = vmatpush.msra.mxu0 0.0
    %1621 = vmatpush.msra.mxu0 0.0
    %1622 = vmatpush.msra.mxu0 0.0
    %1623 = vmatpush.msra.mxu0 0.0
    %1624 = vmatpush.msra.mxu0 0.0
    %1625 = vmatpush.msra.mxu0 0.0
    %1626 = vmatpush.msra.mxu0 0.0
    %1627 = vmatpush.msra.mxu0 0.0
    %1628 = vmatpush.msra.mxu0 0.0
    %1629 = vmatpush.msra.mxu0 0.0
    %1630 = vmatpush.msra.mxu0 0.0
    %1631 = vmatpush.msra.mxu0 0.0
    %1632 = vmatpush.msra.mxu0 %v1365
    %1633 = vmatpush.msra.mxu0 %v1364
    %1634 = vmatpush.msra.mxu0 %v1363
    %1635 = vmatpush.msra.mxu0 %v1362
    %1636 = vmatmul.f32.gmra.mxu0 %v1380
    %v1637 = vpop.f32.mrf.mxu0
    %v1638 = vadd.f32 0.0, %v1637
    %1639 = vmatmul.f32.gmra.mxu0 %v1383
    %v1640 = vpop.f32.mrf.mxu0
    %v1641 = vadd.f32 0.0, %v1640
    %1642 = vdwg.mxu0
    %v1644 = vsel %vm357, %v1592, 0
    %v1647 = vsel %vm357, %v1615, 0
    %1649 = vmatpush.xpose.msra.mxu0 0.0
    %1650 = vmatpush.xpose.msra.mxu0 0.0
    %1651 = vmatpush.xpose.msra.mxu0 0.0
    %1652 = vmatpush.xpose.msra.mxu0 0.0
    %1653 = vmatpush.xpose.msra.mxu0 0.0
    %1654 = vmatpush.xpose.msra.mxu0 0.0
    %1655 = vmatpush.xpose.msra.mxu0 0.0
    %1656 = vmatpush.xpose.msra.mxu0 0.0
    %1657 = vmatpush.xpose.msra.mxu0 0.0
    %1658 = vmatpush.xpose.msra.mxu0 0.0
    %1659 = vmatpush.xpose.msra.mxu0 0.0
    %1660 = vmatpush.xpose.msra.mxu0 0.0
    %1661 = vmatpush.xpose.msra.mxu0 0.0
    %1662 = vmatpush.xpose.msra.mxu0 0.0
    %1663 = vmatpush.xpose.msra.mxu0 0.0
    %1664 = vmatpush.xpose.msra.mxu0 %v1647
    %1665 = vmatmul.f32.gmra.mxu0 %v1644
    %v1666 = vpop.f32.mrf.mxu0
    %v1667 = vadd.f32 %v179, %v1666
    %1668 = vdwg.mxu0
    %v1670 = vsel %vm357, %v1595, 0
    %v1673 = vsel %vm357, %v1618, 0
    %1675 = vmatpush.xpose.msra.mxu0 0.0
    %1676 = vmatpush.xpose.msra.mxu0 0.0
    %1677 = vmatpush.xpose.msra.mxu0 0.0
    %1678 = vmatpush.xpose.msra.mxu0 0.0
    %1679 = vmatpush.xpose.msra.mxu0 0.0
    %1680 = vmatpush.xpose.msra.mxu0 0.0
    %1681 = vmatpush.xpose.msra.mxu0 0.0
    %1682 = vmatpush.xpose.msra.mxu0 0.0
    %1683 = vmatpush.xpose.msra.mxu0 0.0
    %1684 = vmatpush.xpose.msra.mxu0 0.0
    %1685 = vmatpush.xpose.msra.mxu0 0.0
    %1686 = vmatpush.xpose.msra.mxu0 0.0
    %1687 = vmatpush.xpose.msra.mxu0 0.0
    %1688 = vmatpush.xpose.msra.mxu0 0.0
    %1689 = vmatpush.xpose.msra.mxu0 0.0
    %1690 = vmatpush.xpose.msra.mxu0 %v1673
    %1691 = vmatmul.f32.gmra.mxu0 %v1670
    %v1692 = vpop.f32.mrf.mxu0
    %v1693 = vadd.f32 %v179, %v1692
    %1694 = vdwg.mxu0
    %v1695 = vsel %vm357, %v1667, -inf
    %1696 = vmax.xlane.f32.xlu0 %v1695
    %v1697 = vpop.xlane.xlu0 %1696
    %v1698 = vsel %vm357, %v1693, -inf
    %1699 = vmax.xlane.f32.xlu0 %v1698
    %v1700 = vpop.xlane.xlu0 %1699
    %v1701 = vsub.f32 %v1667, %v1697
    %v1702 = vsub.f32 %v1693, %v1700
    %v1703 = vmul.f32 %v1701, 1.442695
    %v1704 = vpow.pop %v1703
    %v1705 = vmul.f32 %v1702, 1.442695
    %v1706 = vpow.pop %v1705
    %v1707 = vsel %vm357, %v1704, 0.0
    %1708 = vadd.xlane.f32.xlu0 %v1707
    %v1709 = vpop.xlane.xlu0 %1708
    %v1710 = vsel %vm357, %v1706, 0.0
    %1711 = vadd.xlane.f32.xlu0 %v1710
    %v1712 = vpop.xlane.xlu0 %1711
    %v1713 = vrcp.pop %v1709
    %v1714 = vrcp.pop %v1712
    %v1715 = vmul.f32 %v1704, %v1713
    %v1716 = vmul.f32 %v1706, %v1714
    %v1718 = vsel %vm357, %v1715, 0
    %1720 = vmatpush.msra.mxu0 0.0
    %1721 = vmatpush.msra.mxu0 0.0
    %1722 = vmatpush.msra.mxu0 0.0
    %1723 = vmatpush.msra.mxu0 0.0
    %1724 = vmatpush.msra.mxu0 0.0
    %1725 = vmatpush.msra.mxu0 0.0
    %1726 = vmatpush.msra.mxu0 0.0
    %1727 = vmatpush.msra.mxu0 0.0
    %1728 = vmatpush.msra.mxu0 0.0
    %1729 = vmatpush.msra.mxu0 0.0
    %1730 = vmatpush.msra.mxu0 0.0
    %1731 = vmatpush.msra.mxu0 0.0
    %1732 = vmatpush.msra.mxu0 0.0
    %1733 = vmatpush.msra.mxu0 0.0
    %1734 = vmatpush.msra.mxu0 0.0
    %1735 = vmatpush.msra.mxu0 %v1638
    %1736 = vmatmul.f32.gmra.mxu0 %v1718
    %v1737 = vpop.f32.mrf.mxu0
    %v1738 = vadd.f32 0.0, %v1737
    %1739 = vdwg.mxu0
    %v1741 = vsel %vm357, %v1716, 0
    %1743 = vmatpush.msra.mxu0 0.0
    %1744 = vmatpush.msra.mxu0 0.0
    %1745 = vmatpush.msra.mxu0 0.0
    %1746 = vmatpush.msra.mxu0 0.0
    %1747 = vmatpush.msra.mxu0 0.0
    %1748 = vmatpush.msra.mxu0 0.0
    %1749 = vmatpush.msra.mxu0 0.0
    %1750 = vmatpush.msra.mxu0 0.0
    %1751 = vmatpush.msra.mxu0 0.0
    %1752 = vmatpush.msra.mxu0 0.0
    %1753 = vmatpush.msra.mxu0 0.0
    %1754 = vmatpush.msra.mxu0 0.0
    %1755 = vmatpush.msra.mxu0 0.0
    %1756 = vmatpush.msra.mxu0 0.0
    %1757 = vmatpush.msra.mxu0 0.0
    %1758 = vmatpush.msra.mxu0 %v1641
    %1759 = vmatmul.f32.gmra.mxu0 %v1741
    %v1760 = vpop.f32.mrf.mxu0
    %v1761 = vadd.f32 0.0, %v1760
    %1762 = vdwg.mxu0
    %v1764 = vsel %vm357, %v1738, 0
    %v1767 = vsel %vm357, %v1761, 0
    %1769 = vmatpush.msra.mxu0 0.0
    %1770 = vmatpush.msra.mxu0 0.0
    %1771 = vmatpush.msra.mxu0 0.0
    %1772 = vmatpush.msra.mxu0 0.0
    %1773 = vmatpush.msra.mxu0 0.0
    %1774 = vmatpush.msra.mxu0 0.0
    %1775 = vmatpush.msra.mxu0 0.0
    %1776 = vmatpush.msra.mxu0 0.0
    %1777 = vmatpush.msra.mxu0 0.0
    %1778 = vmatpush.msra.mxu0 0.0
    %1779 = vmatpush.msra.mxu0 0.0
    %1780 = vmatpush.msra.mxu0 0.0
    %1781 = vmatpush.msra.mxu0 0.0
    %1782 = vmatpush.msra.mxu0 0.0
    %1783 = vmatpush.msra.mxu0 0.0
    %1784 = vmatpush.msra.mxu0 %v1376
    %1785 = vmatmul.f32.gmra.mxu0 %v1764
    %v1786 = vpop.f32.mrf.mxu0
    %v1787 = vadd.f32 0.0, %v1786
    %1788 = vmatmul.f32.gmra.mxu0 %v1767
    %v1789 = vpop.f32.mrf.mxu0
    %v1790 = vadd.f32 0.0, %v1789
    %1791 = vdwg.mxu0
    %v1793 = vsel %vm357, %v1549, 0
    %v1796 = vsel %vm357, %v1572, 0
    %1798 = vmatpush.msra.mxu0 0.0
    %1799 = vmatpush.msra.mxu0 0.0
    %1800 = vmatpush.msra.mxu0 0.0
    %1801 = vmatpush.msra.mxu0 0.0
    %1802 = vmatpush.msra.mxu0 0.0
    %1803 = vmatpush.msra.mxu0 0.0
    %1804 = vmatpush.msra.mxu0 0.0
    %1805 = vmatpush.msra.mxu0 0.0
    %1806 = vmatpush.msra.mxu0 0.0
    %1807 = vmatpush.msra.mxu0 0.0
    %1808 = vmatpush.msra.mxu0 0.0
    %1809 = vmatpush.msra.mxu0 0.0
    %1810 = vmatpush.msra.mxu0 0.0
    %1811 = vmatpush.msra.mxu0 0.0
    %1812 = vmatpush.msra.mxu0 0.0
    %1813 = vmatpush.msra.mxu0 %v1375
    %1814 = vmatmul.f32.gmra.mxu0 %v1793
    %v1815 = vpop.f32.mrf.mxu0
    %v1816 = vadd.f32 %v1787, %v1815
    %1817 = vmatmul.f32.gmra.mxu0 %v1796
    %v1818 = vpop.f32.mrf.mxu0
    %v1819 = vadd.f32 %v1790, %v1818
    %1820 = vdwg.mxu0
    %1821 = vmatpush.msra.mxu0 0.0
    %1822 = vmatpush.msra.mxu0 0.0
    %1823 = vmatpush.msra.mxu0 0.0
    %1824 = vmatpush.msra.mxu0 0.0
    %1825 = vmatpush.msra.mxu0 0.0
    %1826 = vmatpush.msra.mxu0 0.0
    %1827 = vmatpush.msra.mxu0 0.0
    %1828 = vmatpush.msra.mxu0 0.0
    %1829 = vmatpush.msra.mxu0 0.0
    %1830 = vmatpush.msra.mxu0 0.0
    %1831 = vmatpush.msra.mxu0 0.0
    %1832 = vmatpush.msra.mxu0 0.0
    %1833 = vmatpush.msra.mxu0 %v1335
    %1834 = vmatpush.msra.mxu0 %v1334
    %1835 = vmatpush.msra.mxu0 %v1333
    %1836 = vmatpush.msra.mxu0 %v1332
    %1837 = vmatmul.f32.gmra.mxu0 %v1380
    %v1838 = vpop.f32.mrf.mxu0
    %v1839 = vadd.f32 0.0, %v1838
    %1840 = vmatmul.f32.gmra.mxu0 %v1383
    %v1841 = vpop.f32.mrf.mxu0
    %v1842 = vadd.f32 0.0, %v1841
    %1843 = vdwg.mxu0
    %1844 = vmatpush.msra.mxu0 0.0
    %1845 = vmatpush.msra.mxu0 0.0
    %1846 = vmatpush.msra.mxu0 0.0
    %1847 = vmatpush.msra.mxu0 0.0
    %1848 = vmatpush.msra.mxu0 0.0
    %1849 = vmatpush.msra.mxu0 0.0
    %1850 = vmatpush.msra.mxu0 0.0
    %1851 = vmatpush.msra.mxu0 0.0
    %1852 = vmatpush.msra.mxu0 0.0
    %1853 = vmatpush.msra.mxu0 0.0
    %1854 = vmatpush.msra.mxu0 0.0
    %1855 = vmatpush.msra.mxu0 0.0
    %1856 = vmatpush.msra.mxu0 %v1352
    %1857 = vmatpush.msra.mxu0 %v1351
    %1858 = vmatpush.msra.mxu0 %v1350
    %1859 = vmatpush.msra.mxu0 %v1349
    %1860 = vmatmul.f32.gmra.mxu0 %v1380
    %v1861 = vpop.f32.mrf.mxu0
    %v1862 = vadd.f32 0.0, %v1861
    %1863 = vmatmul.f32.gmra.mxu0 %v1383
    %v1864 = vpop.f32.mrf.mxu0
    %v1865 = vadd.f32 0.0, %v1864
    %1866 = vdwg.mxu0
    %1867 = vmatpush.msra.mxu0 0.0
    %1868 = vmatpush.msra.mxu0 0.0
    %1869 = vmatpush.msra.mxu0 0.0
    %1870 = vmatpush.msra.mxu0 0.0
    %1871 = vmatpush.msra.mxu0 0.0
    %1872 = vmatpush.msra.mxu0 0.0
    %1873 = vmatpush.msra.mxu0 0.0
    %1874 = vmatpush.msra.mxu0 0.0
    %1875 = vmatpush.msra.mxu0 0.0
    %1876 = vmatpush.msra.mxu0 0.0
    %1877 = vmatpush.msra.mxu0 0.0
    %1878 = vmatpush.msra.mxu0 0.0
    %1879 = vmatpush.msra.mxu0 %v1369
    %1880 = vmatpush.msra.mxu0 %v1368
    %1881 = vmatpush.msra.mxu0 %v1367
    %1882 = vmatpush.msra.mxu0 %v1366
    %1883 = vmatmul.f32.gmra.mxu0 %v1380
    %v1884 = vpop.f32.mrf.mxu0
    %v1885 = vadd.f32 0.0, %v1884
    %1886 = vmatmul.f32.gmra.mxu0 %v1383
    %v1887 = vpop.f32.mrf.mxu0
    %v1888 = vadd.f32 0.0, %v1887
    %1889 = vdwg.mxu0
    %v1891 = vsel %vm357, %v1839, 0
    %v1894 = vsel %vm357, %v1862, 0
    %1896 = vmatpush.xpose.msra.mxu0 0.0
    %1897 = vmatpush.xpose.msra.mxu0 0.0
    %1898 = vmatpush.xpose.msra.mxu0 0.0
    %1899 = vmatpush.xpose.msra.mxu0 0.0
    %1900 = vmatpush.xpose.msra.mxu0 0.0
    %1901 = vmatpush.xpose.msra.mxu0 0.0
    %1902 = vmatpush.xpose.msra.mxu0 0.0
    %1903 = vmatpush.xpose.msra.mxu0 0.0
    %1904 = vmatpush.xpose.msra.mxu0 0.0
    %1905 = vmatpush.xpose.msra.mxu0 0.0
    %1906 = vmatpush.xpose.msra.mxu0 0.0
    %1907 = vmatpush.xpose.msra.mxu0 0.0
    %1908 = vmatpush.xpose.msra.mxu0 0.0
    %1909 = vmatpush.xpose.msra.mxu0 0.0
    %1910 = vmatpush.xpose.msra.mxu0 0.0
    %1911 = vmatpush.xpose.msra.mxu0 %v1894
    %1912 = vmatmul.f32.gmra.mxu0 %v1891
    %v1913 = vpop.f32.mrf.mxu0
    %v1914 = vadd.f32 %v180, %v1913
    %1915 = vdwg.mxu0
    %v1917 = vsel %vm357, %v1842, 0
    %v1920 = vsel %vm357, %v1865, 0
    %1922 = vmatpush.xpose.msra.mxu0 0.0
    %1923 = vmatpush.xpose.msra.mxu0 0.0
    %1924 = vmatpush.xpose.msra.mxu0 0.0
    %1925 = vmatpush.xpose.msra.mxu0 0.0
    %1926 = vmatpush.xpose.msra.mxu0 0.0
    %1927 = vmatpush.xpose.msra.mxu0 0.0
    %1928 = vmatpush.xpose.msra.mxu0 0.0
    %1929 = vmatpush.xpose.msra.mxu0 0.0
    %1930 = vmatpush.xpose.msra.mxu0 0.0
    %1931 = vmatpush.xpose.msra.mxu0 0.0
    %1932 = vmatpush.xpose.msra.mxu0 0.0
    %1933 = vmatpush.xpose.msra.mxu0 0.0
    %1934 = vmatpush.xpose.msra.mxu0 0.0
    %1935 = vmatpush.xpose.msra.mxu0 0.0
    %1936 = vmatpush.xpose.msra.mxu0 0.0
    %1937 = vmatpush.xpose.msra.mxu0 %v1920
    %1938 = vmatmul.f32.gmra.mxu0 %v1917
    %v1939 = vpop.f32.mrf.mxu0
    %v1940 = vadd.f32 %v180, %v1939
    %1941 = vdwg.mxu0
    %v1942 = vsel %vm357, %v1914, -inf
    %1943 = vmax.xlane.f32.xlu0 %v1942
    %v1944 = vpop.xlane.xlu0 %1943
    %v1945 = vsel %vm357, %v1940, -inf
    %1946 = vmax.xlane.f32.xlu0 %v1945
    %v1947 = vpop.xlane.xlu0 %1946
    %v1948 = vsub.f32 %v1914, %v1944
    %v1949 = vsub.f32 %v1940, %v1947
    %v1950 = vmul.f32 %v1948, 1.442695
    %v1951 = vpow.pop %v1950
    %v1952 = vmul.f32 %v1949, 1.442695
    %v1953 = vpow.pop %v1952
    %v1954 = vsel %vm357, %v1951, 0.0
    %1955 = vadd.xlane.f32.xlu0 %v1954
    %v1956 = vpop.xlane.xlu0 %1955
    %v1957 = vsel %vm357, %v1953, 0.0
    %1958 = vadd.xlane.f32.xlu0 %v1957
    %v1959 = vpop.xlane.xlu0 %1958
    %v1960 = vrcp.pop %v1956
    %v1961 = vrcp.pop %v1959
    %v1962 = vmul.f32 %v1951, %v1960
    %v1963 = vmul.f32 %v1953, %v1961
    %v1965 = vsel %vm357, %v1962, 0
    %1967 = vmatpush.msra.mxu0 0.0
    %1968 = vmatpush.msra.mxu0 0.0
    %1969 = vmatpush.msra.mxu0 0.0
    %1970 = vmatpush.msra.mxu0 0.0
    %1971 = vmatpush.msra.mxu0 0.0
    %1972 = vmatpush.msra.mxu0 0.0
    %1973 = vmatpush.msra.mxu0 0.0
    %1974 = vmatpush.msra.mxu0 0.0
    %1975 = vmatpush.msra.mxu0 0.0
    %1976 = vmatpush.msra.mxu0 0.0
    %1977 = vmatpush.msra.mxu0 0.0
    %1978 = vmatpush.msra.mxu0 0.0
    %1979 = vmatpush.msra.mxu0 0.0
    %1980 = vmatpush.msra.mxu0 0.0
    %1981 = vmatpush.msra.mxu0 0.0
    %1982 = vmatpush.msra.mxu0 %v1885
    %1983 = vmatmul.f32.gmra.mxu0 %v1965
    %v1984 = vpop.f32.mrf.mxu0
    %v1985 = vadd.f32 0.0, %v1984
    %1986 = vdwg.mxu0
    %v1988 = vsel %vm357, %v1963, 0
    %1990 = vmatpush.msra.mxu0 0.0
    %1991 = vmatpush.msra.mxu0 0.0
    %1992 = vmatpush.msra.mxu0 0.0
    %1993 = vmatpush.msra.mxu0 0.0
    %1994 = vmatpush.msra.mxu0 0.0
    %1995 = vmatpush.msra.mxu0 0.0
    %1996 = vmatpush.msra.mxu0 0.0
    %1997 = vmatpush.msra.mxu0 0.0
    %1998 = vmatpush.msra.mxu0 0.0
    %1999 = vmatpush.msra.mxu0 0.0
    %2000 = vmatpush.msra.mxu0 0.0
    %2001 = vmatpush.msra.mxu0 0.0
    %2002 = vmatpush.msra.mxu0 0.0
    %2003 = vmatpush.msra.mxu0 0.0
    %2004 = vmatpush.msra.mxu0 0.0
    %2005 = vmatpush.msra.mxu0 %v1888
    %2006 = vmatmul.f32.gmra.mxu0 %v1988
    %v2007 = vpop.f32.mrf.mxu0
    %v2008 = vadd.f32 0.0, %v2007
    %2009 = vdwg.mxu0
    %v2011 = vsel %vm357, %v1985, 0
    %v2014 = vsel %vm357, %v2008, 0
    %2016 = vmatpush.msra.mxu0 0.0
    %2017 = vmatpush.msra.mxu0 0.0
    %2018 = vmatpush.msra.mxu0 0.0
    %2019 = vmatpush.msra.mxu0 0.0
    %2020 = vmatpush.msra.mxu0 0.0
    %2021 = vmatpush.msra.mxu0 0.0
    %2022 = vmatpush.msra.mxu0 0.0
    %2023 = vmatpush.msra.mxu0 0.0
    %2024 = vmatpush.msra.mxu0 0.0
    %2025 = vmatpush.msra.mxu0 0.0
    %2026 = vmatpush.msra.mxu0 0.0
    %2027 = vmatpush.msra.mxu0 0.0
    %2028 = vmatpush.msra.mxu0 0.0
    %2029 = vmatpush.msra.mxu0 0.0
    %2030 = vmatpush.msra.mxu0 0.0
    %2031 = vmatpush.msra.mxu0 %v1377
    %2032 = vmatmul.f32.gmra.mxu0 %v2011
    %v2033 = vpop.f32.mrf.mxu0
    %v2034 = vadd.f32 0.0, %v2033
    %2035 = vmatmul.f32.gmra.mxu0 %v2014
    %v2036 = vpop.f32.mrf.mxu0
    %v2037 = vadd.f32 0.0, %v2036
    %2038 = vdwg.mxu0
    %v2039 = vadd.f32 %v1816, %v2034
    %v2040 = vadd.f32 %v1819, %v2037
    %2041 = vmatpush.msra.mxu0 0.0
    %2042 = vmatpush.msra.mxu0 0.0
    %2043 = vmatpush.msra.mxu0 0.0
    %2044 = vmatpush.msra.mxu0 0.0
    %2045 = vmatpush.msra.mxu0 0.0
    %2046 = vmatpush.msra.mxu0 0.0
    %2047 = vmatpush.msra.mxu0 0.0
    %2048 = vmatpush.msra.mxu0 0.0
    %2049 = vmatpush.msra.mxu0 0.0
    %2050 = vmatpush.msra.mxu0 0.0
    %2051 = vmatpush.msra.mxu0 0.0
    %2052 = vmatpush.msra.mxu0 0.0
    %2053 = vmatpush.msra.mxu0 %v1339
    %2054 = vmatpush.msra.mxu0 %v1338
    %2055 = vmatpush.msra.mxu0 %v1337
    %2056 = vmatpush.msra.mxu0 %v1336
    %2057 = vmatmul.f32.gmra.mxu0 %v1380
    %v2058 = vpop.f32.mrf.mxu0
    %v2059 = vadd.f32 0.0, %v2058
    %2060 = vmatmul.f32.gmra.mxu0 %v1383
    %v2061 = vpop.f32.mrf.mxu0
    %v2062 = vadd.f32 0.0, %v2061
    %2063 = vdwg.mxu0
    %2064 = vmatpush.msra.mxu0 0.0
    %2065 = vmatpush.msra.mxu0 0.0
    %2066 = vmatpush.msra.mxu0 0.0
    %2067 = vmatpush.msra.mxu0 0.0
    %2068 = vmatpush.msra.mxu0 0.0
    %2069 = vmatpush.msra.mxu0 0.0
    %2070 = vmatpush.msra.mxu0 0.0
    %2071 = vmatpush.msra.mxu0 0.0
    %2072 = vmatpush.msra.mxu0 0.0
    %2073 = vmatpush.msra.mxu0 0.0
    %2074 = vmatpush.msra.mxu0 0.0
    %2075 = vmatpush.msra.mxu0 0.0
    %2076 = vmatpush.msra.mxu0 %v1356
    %2077 = vmatpush.msra.mxu0 %v1355
    %2078 = vmatpush.msra.mxu0 %v1354
    %2079 = vmatpush.msra.mxu0 %v1353
    %2080 = vmatmul.f32.gmra.mxu0 %v1380
    %v2081 = vpop.f32.mrf.mxu0
    %v2082 = vadd.f32 0.0, %v2081
    %2083 = vmatmul.f32.gmra.mxu0 %v1383
    %v2084 = vpop.f32.mrf.mxu0
    %v2085 = vadd.f32 0.0, %v2084
    %2086 = vdwg.mxu0
    %2087 = vmatpush.msra.mxu0 0.0
    %2088 = vmatpush.msra.mxu0 0.0
    %2089 = vmatpush.msra.mxu0 0.0
    %2090 = vmatpush.msra.mxu0 0.0
    %2091 = vmatpush.msra.mxu0 0.0
    %2092 = vmatpush.msra.mxu0 0.0
    %2093 = vmatpush.msra.mxu0 0.0
    %2094 = vmatpush.msra.mxu0 0.0
    %2095 = vmatpush.msra.mxu0 0.0
    %2096 = vmatpush.msra.mxu0 0.0
    %2097 = vmatpush.msra.mxu0 0.0
    %2098 = vmatpush.msra.mxu0 0.0
    %2099 = vmatpush.msra.mxu0 %v1373
    %2100 = vmatpush.msra.mxu0 %v1372
    %2101 = vmatpush.msra.mxu0 %v1371
    %2102 = vmatpush.msra.mxu0 %v1370
    %2103 = vmatmul.f32.gmra.mxu0 %v1380
    %v2104 = vpop.f32.mrf.mxu0
    %v2105 = vadd.f32 0.0, %v2104
    %2106 = vmatmul.f32.gmra.mxu0 %v1383
    %v2107 = vpop.f32.mrf.mxu0
    %v2108 = vadd.f32 0.0, %v2107
    %2109 = vdwg.mxu0
    %v2111 = vsel %vm357, %v2059, 0
    %v2114 = vsel %vm357, %v2082, 0
    %2116 = vmatpush.xpose.msra.mxu0 0.0
    %2117 = vmatpush.xpose.msra.mxu0 0.0
    %2118 = vmatpush.xpose.msra.mxu0 0.0
    %2119 = vmatpush.xpose.msra.mxu0 0.0
    %2120 = vmatpush.xpose.msra.mxu0 0.0
    %2121 = vmatpush.xpose.msra.mxu0 0.0
    %2122 = vmatpush.xpose.msra.mxu0 0.0
    %2123 = vmatpush.xpose.msra.mxu0 0.0
    %2124 = vmatpush.xpose.msra.mxu0 0.0
    %2125 = vmatpush.xpose.msra.mxu0 0.0
    %2126 = vmatpush.xpose.msra.mxu0 0.0
    %2127 = vmatpush.xpose.msra.mxu0 0.0
    %2128 = vmatpush.xpose.msra.mxu0 0.0
    %2129 = vmatpush.xpose.msra.mxu0 0.0
    %2130 = vmatpush.xpose.msra.mxu0 0.0
    %2131 = vmatpush.xpose.msra.mxu0 %v2114
    %2132 = vmatmul.f32.gmra.mxu0 %v2111
    %v2133 = vpop.f32.mrf.mxu0
    %v2134 = vadd.f32 %v181, %v2133
    %2135 = vdwg.mxu0
    %v2137 = vsel %vm357, %v2062, 0
    %v2140 = vsel %vm357, %v2085, 0
    %2142 = vmatpush.xpose.msra.mxu0 0.0
    %2143 = vmatpush.xpose.msra.mxu0 0.0
    %2144 = vmatpush.xpose.msra.mxu0 0.0
    %2145 = vmatpush.xpose.msra.mxu0 0.0
    %2146 = vmatpush.xpose.msra.mxu0 0.0
    %2147 = vmatpush.xpose.msra.mxu0 0.0
    %2148 = vmatpush.xpose.msra.mxu0 0.0
    %2149 = vmatpush.xpose.msra.mxu0 0.0
    %2150 = vmatpush.xpose.msra.mxu0 0.0
    %2151 = vmatpush.xpose.msra.mxu0 0.0
    %2152 = vmatpush.xpose.msra.mxu0 0.0
    %2153 = vmatpush.xpose.msra.mxu0 0.0
    %2154 = vmatpush.xpose.msra.mxu0 0.0
    %2155 = vmatpush.xpose.msra.mxu0 0.0
    %2156 = vmatpush.xpose.msra.mxu0 0.0
    %2157 = vmatpush.xpose.msra.mxu0 %v2140
    %2158 = vmatmul.f32.gmra.mxu0 %v2137
    %v2159 = vpop.f32.mrf.mxu0
    %v2160 = vadd.f32 %v181, %v2159
    %2161 = vdwg.mxu0
    %v2162 = vsel %vm357, %v2134, -inf
    %2163 = vmax.xlane.f32.xlu0 %v2162
    %v2164 = vpop.xlane.xlu0 %2163
    %v2165 = vsel %vm357, %v2160, -inf
    %2166 = vmax.xlane.f32.xlu0 %v2165
    %v2167 = vpop.xlane.xlu0 %2166
    %v2168 = vsub.f32 %v2134, %v2164
    %v2169 = vsub.f32 %v2160, %v2167
    %v2170 = vmul.f32 %v2168, 1.442695
    %v2171 = vpow.pop %v2170
    %v2172 = vmul.f32 %v2169, 1.442695
    %v2173 = vpow.pop %v2172
    %v2174 = vsel %vm357, %v2171, 0.0
    %2175 = vadd.xlane.f32.xlu0 %v2174
    %v2176 = vpop.xlane.xlu0 %2175
    %v2177 = vsel %vm357, %v2173, 0.0
    %2178 = vadd.xlane.f32.xlu0 %v2177
    %v2179 = vpop.xlane.xlu0 %2178
    %v2180 = vrcp.pop %v2176
    %v2181 = vrcp.pop %v2179
    %v2182 = vmul.f32 %v2171, %v2180
    %v2183 = vmul.f32 %v2173, %v2181
    %v2185 = vsel %vm357, %v2182, 0
    %2187 = vmatpush.msra.mxu0 0.0
    %2188 = vmatpush.msra.mxu0 0.0
    %2189 = vmatpush.msra.mxu0 0.0
    %2190 = vmatpush.msra.mxu0 0.0
    %2191 = vmatpush.msra.mxu0 0.0
    %2192 = vmatpush.msra.mxu0 0.0
    %2193 = vmatpush.msra.mxu0 0.0
    %2194 = vmatpush.msra.mxu0 0.0
    %2195 = vmatpush.msra.mxu0 0.0
    %2196 = vmatpush.msra.mxu0 0.0
    %2197 = vmatpush.msra.mxu0 0.0
    %2198 = vmatpush.msra.mxu0 0.0
    %2199 = vmatpush.msra.mxu0 0.0
    %2200 = vmatpush.msra.mxu0 0.0
    %2201 = vmatpush.msra.mxu0 0.0
    %2202 = vmatpush.msra.mxu0 %v2105
    %2203 = vmatmul.f32.gmra.mxu0 %v2185
    %v2204 = vpop.f32.mrf.mxu0
    %v2205 = vadd.f32 0.0, %v2204
    %2206 = vdwg.mxu0
    %v2208 = vsel %vm357, %v2183, 0
    %2210 = vmatpush.msra.mxu0 0.0
    %2211 = vmatpush.msra.mxu0 0.0
    %2212 = vmatpush.msra.mxu0 0.0
    %2213 = vmatpush.msra.mxu0 0.0
    %2214 = vmatpush.msra.mxu0 0.0
    %2215 = vmatpush.msra.mxu0 0.0
    %2216 = vmatpush.msra.mxu0 0.0
    %2217 = vmatpush.msra.mxu0 0.0
    %2218 = vmatpush.msra.mxu0 0.0
    %2219 = vmatpush.msra.mxu0 0.0
    %2220 = vmatpush.msra.mxu0 0.0
    %2221 = vmatpush.msra.mxu0 0.0
    %2222 = vmatpush.msra.mxu0 0.0
    %2223 = vmatpush.msra.mxu0 0.0
    %2224 = vmatpush.msra.mxu0 0.0
    %2225 = vmatpush.msra.mxu0 %v2108
    %2226 = vmatmul.f32.gmra.mxu0 %v2208
    %v2227 = vpop.f32.mrf.mxu0
    %v2228 = vadd.f32 0.0, %v2227
    %2229 = vdwg.mxu0
    %v2231 = vsel %vm357, %v2205, 0
    %v2234 = vsel %vm357, %v2228, 0
    %2236 = vmatpush.msra.mxu0 0.0
    %2237 = vmatpush.msra.mxu0 0.0
    %2238 = vmatpush.msra.mxu0 0.0
    %2239 = vmatpush.msra.mxu0 0.0
    %2240 = vmatpush.msra.mxu0 0.0
    %2241 = vmatpush.msra.mxu0 0.0
    %2242 = vmatpush.msra.mxu0 0.0
    %2243 = vmatpush.msra.mxu0 0.0
    %2244 = vmatpush.msra.mxu0 0.0
    %2245 = vmatpush.msra.mxu0 0.0
    %2246 = vmatpush.msra.mxu0 0.0
    %2247 = vmatpush.msra.mxu0 0.0
    %2248 = vmatpush.msra.mxu0 0.0
    %2249 = vmatpush.msra.mxu0 0.0
    %2250 = vmatpush.msra.mxu0 0.0
    %2251 = vmatpush.msra.mxu0 %v1378
    %2252 = vmatmul.f32.gmra.mxu0 %v2231
    %v2253 = vpop.f32.mrf.mxu0
    %v2254 = vadd.f32 0.0, %v2253
    %2255 = vmatmul.f32.gmra.mxu0 %v2234
    %v2256 = vpop.f32.mrf.mxu0
    %v2257 = vadd.f32 0.0, %v2256
    %2258 = vdwg.mxu0
    %v2259 = vadd.f32 %v2039, %v2254
    %v2260 = vadd.f32 %v2040, %v2257
    %v2261 = vadd.f32 %v1280, %v2259
    %v2262 = vadd.f32 %v1281, %v2260
    %s2263 = scalar_lea.vmem %s21, 1
    %v2264 = vld [vmem:[%s2263] sm:$0x1]
    %v2265 = vmul.f32 %v2261, %v2261
    %v2266 = vmul.f32 %v2262, %v2262
    %v2267 = vsel %vm185, %v2265, 0.0
    %2268 = vadd.xlane.f32.xlu0 %v2267
    %v2269 = vpop.xlane.xlu0 %2268
    %v2270 = vsel %vm185, %v2266, 0.0
    %2271 = vadd.xlane.f32.xlu0 %v2270
    %v2272 = vpop.xlane.xlu0 %2271
    %v2273 = vmul.f32 %v2269, %v198
    %v2274 = vmul.f32 %v2272, %v198
    %v2275 = vadd.f32 %v2273, 1e-06
    %v2276 = vadd.f32 %v2274, 1e-06
    %v2277 = vrsqrt.pop %v2275
    %v2278 = vmul.f32 %v2277, %v2275
    %v2279 = vmul.f32 %v2278, %v2277
    %v2280 = vmul.f32 0.5, %v2279
    %v2281 = vsub.f32 1.5, %v2280
    %v2282 = vmul.f32 %v2277, %v2281
    %vm2283 = vweird.f32 %v2275
    %vm2284 = vweird.f32 %v2277
    %vm2285 = vmor %vm2283, %vm2284
    %v2286 = vsel %vm2285, %v2277, %v2282
    %v2287 = vrsqrt.pop %v2276
    %v2288 = vmul.f32 %v2287, %v2276
    %v2289 = vmul.f32 %v2288, %v2287
    %v2290 = vmul.f32 0.5, %v2289
    %v2291 = vsub.f32 1.5, %v2290
    %v2292 = vmul.f32 %v2287, %v2291
    %vm2293 = vweird.f32 %v2276
    %vm2294 = vweird.f32 %v2287
    %vm2295 = vmor %vm2293, %vm2294
    %v2296 = vsel %vm2295, %v2287, %v2292
    %v2297 = vmul.f32 %v2261, %v2286
    %v2298 = vmul.f32 %v2262, %v2296
    %v2300 = vperm.slane %v2264, 0
    %v2302 = vmul.f32 %v2297, %v2300
    %v2303 = vmul.f32 %v2298, %v2300
    %s2304 = scalar_lea.vmem %s23, 32
    %v2305 = vld [vmem:[%s2304] sm:$0xff]
    %v2306 = vld [vmem:[%s2304 + $0x8] sm:$0xff]
    %v2307 = vld [vmem:[%s2304 + $0x10] sm:$0xff]
    %v2308 = vld [vmem:[%s2304 + $0x18] sm:$0xff]
    %v2310 = vsel %vm185, %v2302, 0
    %v2313 = vsel %vm185, %v2303, 0
    %2315 = vmatpush.msra.mxu0 0.0
    %2316 = vmatpush.msra.mxu0 0.0
    %2317 = vmatpush.msra.mxu0 0.0
    %2318 = vmatpush.msra.mxu0 0.0
    %2319 = vmatpush.msra.mxu0 0.0
    %2320 = vmatpush.msra.mxu0 0.0
    %2321 = vmatpush.msra.mxu0 0.0
    %2322 = vmatpush.msra.mxu0 0.0
    %2323 = vmatpush.msra.mxu0 0.0
    %2324 = vmatpush.msra.mxu0 0.0
    %2325 = vmatpush.msra.mxu0 0.0
    %2326 = vmatpush.msra.mxu0 0.0
    %2327 = vmatpush.msra.mxu0 %v2308
    %2328 = vmatpush.msra.mxu0 %v2307
    %2329 = vmatpush.msra.mxu0 %v2306
    %2330 = vmatpush.msra.mxu0 %v2305
    %2331 = vmatmul.f32.gmra.mxu0 %v2310
    %v2332 = vpop.f32.mrf.mxu0
    %v2333 = vadd.f32 0.0, %v2332
    %2334 = vmatmul.f32.gmra.mxu0 %v2313
    %v2335 = vpop.f32.mrf.mxu0
    %v2336 = vadd.f32 0.0, %v2335
    %2337 = vdwg.mxu0
    %v2338 = vmax.f32 %v2333, 0.0
    %v2339 = vmax.f32 %v2336, 0.0
    %s2340 = scalar_lea.vmem %s25, 64
    %v2341 = vld [vmem:[%s2340] sm:$0xff]
    %v2342 = vld [vmem:[%s2340 + $0x8] sm:$0xff]
    %v2343 = vld [vmem:[%s2340 + $0x10] sm:$0xff]
    %v2344 = vld [vmem:[%s2340 + $0x18] sm:$0xff]
    %v2345 = vld [vmem:[%s2340 + $0x20] sm:$0xff]
    %v2346 = vld [vmem:[%s2340 + $0x28] sm:$0xff]
    %v2347 = vld [vmem:[%s2340 + $0x30] sm:$0xff]
    %v2348 = vld [vmem:[%s2340 + $0x38] sm:$0xff]
    %v2350 = vsel %vm1250, %v2338, 0
    %v2353 = vsel %vm1250, %v2339, 0
    %2355 = vmatpush.msra.mxu0 0.0
    %2356 = vmatpush.msra.mxu0 0.0
    %2357 = vmatpush.msra.mxu0 0.0
    %2358 = vmatpush.msra.mxu0 0.0
    %2359 = vmatpush.msra.mxu0 0.0
    %2360 = vmatpush.msra.mxu0 0.0
    %2361 = vmatpush.msra.mxu0 0.0
    %2362 = vmatpush.msra.mxu0 0.0
    %2363 = vmatpush.msra.mxu0 %v2348
    %2364 = vmatpush.msra.mxu0 %v2347
    %2365 = vmatpush.msra.mxu0 %v2346
    %2366 = vmatpush.msra.mxu0 %v2345
    %2367 = vmatpush.msra.mxu0 %v2344
    %2368 = vmatpush.msra.mxu0 %v2343
    %2369 = vmatpush.msra.mxu0 %v2342
    %2370 = vmatpush.msra.mxu0 %v2341
    %2371 = vmatmul.f32.gmra.mxu0 %v2350
    %v2372 = vpop.f32.mrf.mxu0
    %v2373 = vadd.f32 0.0, %v2372
    %2374 = vmatmul.f32.gmra.mxu0 %v2353
    %v2375 = vpop.f32.mrf.mxu0
    %v2376 = vadd.f32 0.0, %v2375
    %2377 = vdwg.mxu0
    %v2378 = vadd.f32 %v2261, %v2373
    %v2379 = vadd.f32 %v2262, %v2376
    %v2380 = vld [vmem:[%s27] sm:$0x1]
    %v2381 = vmul.f32 %v2378, %v2378
    %v2382 = vmul.f32 %v2379, %v2379
    %v2383 = vsel %vm185, %v2381, 0.0
    %2384 = vadd.xlane.f32.xlu0 %v2383
    %v2385 = vpop.xlane.xlu0 %2384
    %v2386 = vsel %vm185, %v2382, 0.0
    %2387 = vadd.xlane.f32.xlu0 %v2386
    %v2388 = vpop.xlane.xlu0 %2387
    %v2389 = vmul.f32 %v2385, %v198
    %v2390 = vmul.f32 %v2388, %v198
    %v2391 = vadd.f32 %v2389, 1e-06
    %v2392 = vadd.f32 %v2390, 1e-06
    %v2393 = vrsqrt.pop %v2391
    %v2394 = vmul.f32 %v2393, %v2391
    %v2395 = vmul.f32 %v2394, %v2393
    %v2396 = vmul.f32 0.5, %v2395
    %v2397 = vsub.f32 1.5, %v2396
    %v2398 = vmul.f32 %v2393, %v2397
    %vm2399 = vweird.f32 %v2391
    %vm2400 = vweird.f32 %v2393
    %vm2401 = vmor %vm2399, %vm2400
    %v2402 = vsel %vm2401, %v2393, %v2398
    %v2403 = vrsqrt.pop %v2392
    %v2404 = vmul.f32 %v2403, %v2392
    %v2405 = vmul.f32 %v2404, %v2403
    %v2406 = vmul.f32 0.5, %v2405
    %v2407 = vsub.f32 1.5, %v2406
    %v2408 = vmul.f32 %v2403, %v2407
    %vm2409 = vweird.f32 %v2392
    %vm2410 = vweird.f32 %v2403
    %vm2411 = vmor %vm2409, %vm2410
    %v2412 = vsel %vm2411, %v2403, %v2408
    %v2413 = vmul.f32 %v2378, %v2402
    %v2414 = vmul.f32 %v2379, %v2412
    %v2416 = vperm.slane %v2380, 0
    %v2418 = vmul.f32 %v2413, %v2416
    %v2419 = vmul.f32 %v2414, %v2416
    %v2420 = vld [vmem:[%s3] sm:$0xff]
    %v2421 = vld [vmem:[%s3 + $0x8] sm:$0xff]
    %2422 = vset.pattern.permute.xlu0 0
    %2423 = vperm.xlu0 %2422, %v2420
    %v2424 = vpop.permute.xlu0 %2423
    %2425 = vset.pattern.permute.xlu0 0
    %2426 = vperm.xlu0 %2425, %v2421
    %v2427 = vpop.permute.xlu0 %2426
    %vm2428 = vcmp.eq.s32.totalorder %v142, %v2424
    %vm2429 = vcmp.eq.s32.totalorder %v142, %v2427
    %v2430 = vsel %vm2428, 1, 0
    %v2431 = vsel %vm2429, 1, 0
    %v2432 = vcvt.s32.f32 %v2430
    %v2433 = vcvt.s32.f32 %v2431
    %2434 = vmatpush.msra.mxu0 %v138
    %2435 = vmatpush.msra.mxu0 %v137
    %2436 = vmatpush.msra.mxu0 %v136
    %2437 = vmatpush.msra.mxu0 %v135
    %2438 = vmatpush.msra.mxu0 %v134
    %2439 = vmatpush.msra.mxu0 %v133
    %2440 = vmatpush.msra.mxu0 %v132
    %2441 = vmatpush.msra.mxu0 %v131
    %2442 = vmatpush.msra.mxu0 %v130
    %2443 = vmatpush.msra.mxu0 %v129
    %2444 = vmatpush.msra.mxu0 %v128
    %2445 = vmatpush.msra.mxu0 %v127
    %2446 = vmatpush.msra.mxu0 %v126
    %2447 = vmatpush.msra.mxu0 %v125
    %2448 = vmatpush.msra.mxu0 %v124
    %2449 = vmatpush.msra.mxu0 %v123
    %2450 = vmatmul.f32.gmra.mxu0 %v2432
    %v2451 = vpop.f32.mrf.mxu0
    %v2452 = vadd.f32 0.0, %v2451
    %2453 = vmatmul.f32.gmra.mxu0 %v2433
    %v2454 = vpop.f32.mrf.mxu0
    %v2455 = vadd.f32 0.0, %v2454
    %2456 = vdwg.mxu0
    %v2457 = vld [vmem:[%s9] sm:$0xff]
    %v2458 = vld [vmem:[%s9 + $0x8] sm:$0xff]
    %v2459 = vld [vmem:[%s9 + $0x10] sm:$0xff]
    %v2460 = vld [vmem:[%s9 + $0x18] sm:$0xff]
    %v2461 = vld [vmem:[%s29] sm:$0x1]
    %v2462 = vmul.f32 %v2452, %v2452
    %v2463 = vmul.f32 %v2455, %v2455
    %v2464 = vsel %vm185, %v2462, 0.0
    %2465 = vadd.xlane.f32.xlu0 %v2464
    %v2466 = vpop.xlane.xlu0 %2465
    %v2467 = vsel %vm185, %v2463, 0.0
    %2468 = vadd.xlane.f32.xlu0 %v2467
    %v2469 = vpop.xlane.xlu0 %2468
    %v2470 = vmul.f32 %v2466, %v198
    %v2471 = vmul.f32 %v2469, %v198
    %v2472 = vadd.f32 %v2470, 1e-06
    %v2473 = vadd.f32 %v2471, 1e-06
    %v2474 = vrsqrt.pop %v2472
    %v2475 = vmul.f32 %v2474, %v2472
    %v2476 = vmul.f32 %v2475, %v2474
    %v2477 = vmul.f32 0.5, %v2476
    %v2478 = vsub.f32 1.5, %v2477
    %v2479 = vmul.f32 %v2474, %v2478
    %vm2480 = vweird.f32 %v2472
    %vm2481 = vweird.f32 %v2474
    %vm2482 = vmor %vm2480, %vm2481
    %v2483 = vsel %vm2482, %v2474, %v2479
    %v2484 = vrsqrt.pop %v2473
    %v2485 = vmul.f32 %v2484, %v2473
    %v2486 = vmul.f32 %v2485, %v2484
    %v2487 = vmul.f32 0.5, %v2486
    %v2488 = vsub.f32 1.5, %v2487
    %v2489 = vmul.f32 %v2484, %v2488
    %vm2490 = vweird.f32 %v2473
    %vm2491 = vweird.f32 %v2484
    %vm2492 = vmor %vm2490, %vm2491
    %v2493 = vsel %vm2492, %v2484, %v2489
    %v2494 = vmul.f32 %v2452, %v2483
    %v2495 = vmul.f32 %v2455, %v2493
    %v2497 = vperm.slane %v2461, 0
    %v2499 = vmul.f32 %v2494, %v2497
    %v2500 = vmul.f32 %v2495, %v2497
    %v2501 = vld [vmem:[%s31] sm:$0xff]
    %v2502 = vld [vmem:[%s31 + $0x8] sm:$0xff]
    %v2503 = vld [vmem:[%s31 + $0x10] sm:$0xff]
    %v2504 = vld [vmem:[%s31 + $0x18] sm:$0xff]
    %v2505 = vld [vmem:[%s31 + $0x20] sm:$0xff]
    %v2506 = vld [vmem:[%s31 + $0x28] sm:$0xff]
    %v2507 = vld [vmem:[%s31 + $0x30] sm:$0xff]
    %v2508 = vld [vmem:[%s31 + $0x38] sm:$0xff]
    %v2509 = vld [vmem:[%s31 + $0x40] sm:$0xff]
    %v2510 = vld [vmem:[%s31 + $0x48] sm:$0xff]
    %v2511 = vld [vmem:[%s31 + $0x50] sm:$0xff]
    %v2512 = vld [vmem:[%s31 + $0x58] sm:$0xff]
    %v2513 = vld [vmem:[%s31 + $0x60] sm:$0xff]
    %v2514 = vld [vmem:[%s31 + $0x68] sm:$0xff]
    %v2515 = vld [vmem:[%s31 + $0x70] sm:$0xff]
    %v2516 = vld [vmem:[%s31 + $0x78] sm:$0xff]
    %v2517 = vld [vmem:[%s33] sm:$0xff]
    %v2518 = vld [vmem:[%s33 + $0x8] sm:$0xff]
    %v2519 = vld [vmem:[%s33 + $0x10] sm:$0xff]
    %v2520 = vld [vmem:[%s33 + $0x18] sm:$0xff]
    %v2521 = vld [vmem:[%s33 + $0x20] sm:$0xff]
    %v2522 = vld [vmem:[%s33 + $0x28] sm:$0xff]
    %v2523 = vld [vmem:[%s33 + $0x30] sm:$0xff]
    %v2524 = vld [vmem:[%s33 + $0x38] sm:$0xff]
    %v2525 = vld [vmem:[%s33 + $0x40] sm:$0xff]
    %v2526 = vld [vmem:[%s33 + $0x48] sm:$0xff]
    %v2527 = vld [vmem:[%s33 + $0x50] sm:$0xff]
    %v2528 = vld [vmem:[%s33 + $0x58] sm:$0xff]
    %v2529 = vld [vmem:[%s33 + $0x60] sm:$0xff]
    %v2530 = vld [vmem:[%s33 + $0x68] sm:$0xff]
    %v2531 = vld [vmem:[%s33 + $0x70] sm:$0xff]
    %v2532 = vld [vmem:[%s33 + $0x78] sm:$0xff]
    %v2533 = vld [vmem:[%s35] sm:$0xff]
    %v2534 = vld [vmem:[%s35 + $0x8] sm:$0xff]
    %v2535 = vld [vmem:[%s35 + $0x10] sm:$0xff]
    %v2536 = vld [vmem:[%s35 + $0x18] sm:$0xff]
    %v2537 = vld [vmem:[%s35 + $0x20] sm:$0xff]
    %v2538 = vld [vmem:[%s35 + $0x28] sm:$0xff]
    %v2539 = vld [vmem:[%s35 + $0x30] sm:$0xff]
    %v2540 = vld [vmem:[%s35 + $0x38] sm:$0xff]
    %v2541 = vld [vmem:[%s35 + $0x40] sm:$0xff]
    %v2542 = vld [vmem:[%s35 + $0x48] sm:$0xff]
    %v2543 = vld [vmem:[%s35 + $0x50] sm:$0xff]
    %v2544 = vld [vmem:[%s35 + $0x58] sm:$0xff]
    %v2545 = vld [vmem:[%s35 + $0x60] sm:$0xff]
    %v2546 = vld [vmem:[%s35 + $0x68] sm:$0xff]
    %v2547 = vld [vmem:[%s35 + $0x70] sm:$0xff]
    %v2548 = vld [vmem:[%s35 + $0x78] sm:$0xff]
    %v2549 = vld [vmem:[%s37] sm:$0xff]
    %v2550 = vld [vmem:[%s37 + $0x8] sm:$0xff]
    %v2551 = vld [vmem:[%s37 + $0x10] sm:$0xff]
    %v2552 = vld [vmem:[%s37 + $0x18] sm:$0xff]
    %v2554 = vsel %vm185, %v2499, 0
    %v2557 = vsel %vm185, %v2500, 0
    %2559 = vmatpush.msra.mxu0 0.0
    %2560 = vmatpush.msra.mxu0 0.0
    %2561 = vmatpush.msra.mxu0 0.0
    %2562 = vmatpush.msra.mxu0 0.0
    %2563 = vmatpush.msra.mxu0 0.0
    %2564 = vmatpush.msra.mxu0 0.0
    %2565 = vmatpush.msra.mxu0 0.0
    %2566 = vmatpush.msra.mxu0 0.0
    %2567 = vmatpush.msra.mxu0 0.0
    %2568 = vmatpush.msra.mxu0 0.0
    %2569 = vmatpush.msra.mxu0 0.0
    %2570 = vmatpush.msra.mxu0 0.0
    %2571 = vmatpush.msra.mxu0 %v2504
    %2572 = vmatpush.msra.mxu0 %v2503
    %2573 = vmatpush.msra.mxu0 %v2502
    %2574 = vmatpush.msra.mxu0 %v2501
    %2575 = vmatmul.f32.gmra.mxu0 %v2554
    %v2576 = vpop.f32.mrf.mxu0
    %v2577 = vadd.f32 0.0, %v2576
    %2578 = vmatmul.f32.gmra.mxu0 %v2557
    %v2579 = vpop.f32.mrf.mxu0
    %v2580 = vadd.f32 0.0, %v2579
    %2581 = vdwg.mxu0
    %2582 = vmatpush.msra.mxu0 0.0
    %2583 = vmatpush.msra.mxu0 0.0
    %2584 = vmatpush.msra.mxu0 0.0
    %2585 = vmatpush.msra.mxu0 0.0
    %2586 = vmatpush.msra.mxu0 0.0
    %2587 = vmatpush.msra.mxu0 0.0
    %2588 = vmatpush.msra.mxu0 0.0
    %2589 = vmatpush.msra.mxu0 0.0
    %2590 = vmatpush.msra.mxu0 0.0
    %2591 = vmatpush.msra.mxu0 0.0
    %2592 = vmatpush.msra.mxu0 0.0
    %2593 = vmatpush.msra.mxu0 0.0
    %2594 = vmatpush.msra.mxu0 %v2520
    %2595 = vmatpush.msra.mxu0 %v2519
    %2596 = vmatpush.msra.mxu0 %v2518
    %2597 = vmatpush.msra.mxu0 %v2517
    %2598 = vmatmul.f32.gmra.mxu0 %v2554
    %v2599 = vpop.f32.mrf.mxu0
    %v2600 = vadd.f32 0.0, %v2599
    %2601 = vmatmul.f32.gmra.mxu0 %v2557
    %v2602 = vpop.f32.mrf.mxu0
    %v2603 = vadd.f32 0.0, %v2602
    %2604 = vdwg.mxu0
    %2605 = vmatpush.msra.mxu0 0.0
    %2606 = vmatpush.msra.mxu0 0.0
    %2607 = vmatpush.msra.mxu0 0.0
    %2608 = vmatpush.msra.mxu0 0.0
    %2609 = vmatpush.msra.mxu0 0.0
    %2610 = vmatpush.msra.mxu0 0.0
    %2611 = vmatpush.msra.mxu0 0.0
    %2612 = vmatpush.msra.mxu0 0.0
    %2613 = vmatpush.msra.mxu0 0.0
    %2614 = vmatpush.msra.mxu0 0.0
    %2615 = vmatpush.msra.mxu0 0.0
    %2616 = vmatpush.msra.mxu0 0.0
    %2617 = vmatpush.msra.mxu0 %v2536
    %2618 = vmatpush.msra.mxu0 %v2535
    %2619 = vmatpush.msra.mxu0 %v2534
    %2620 = vmatpush.msra.mxu0 %v2533
    %2621 = vmatmul.f32.gmra.mxu0 %v2554
    %v2622 = vpop.f32.mrf.mxu0
    %v2623 = vadd.f32 0.0, %v2622
    %2624 = vmatmul.f32.gmra.mxu0 %v2557
    %v2625 = vpop.f32.mrf.mxu0
    %v2626 = vadd.f32 0.0, %v2625
    %2627 = vdwg.mxu0
    %v2629 = vsel %vm357, %v2577, 0
    %v2632 = vsel %vm357, %v2600, 0
    %2634 = vmatpush.xpose.msra.mxu0 0.0
    %2635 = vmatpush.xpose.msra.mxu0 0.0
    %2636 = vmatpush.xpose.msra.mxu0 0.0
    %2637 = vmatpush.xpose.msra.mxu0 0.0
    %2638 = vmatpush.xpose.msra.mxu0 0.0
    %2639 = vmatpush.xpose.msra.mxu0 0.0
    %2640 = vmatpush.xpose.msra.mxu0 0.0
    %2641 = vmatpush.xpose.msra.mxu0 0.0
    %2642 = vmatpush.xpose.msra.mxu0 0.0
    %2643 = vmatpush.xpose.msra.mxu0 0.0
    %2644 = vmatpush.xpose.msra.mxu0 0.0
    %2645 = vmatpush.xpose.msra.mxu0 0.0
    %2646 = vmatpush.xpose.msra.mxu0 0.0
    %2647 = vmatpush.xpose.msra.mxu0 0.0
    %2648 = vmatpush.xpose.msra.mxu0 0.0
    %2649 = vmatpush.xpose.msra.mxu0 %v2632
    %2650 = vmatmul.f32.gmra.mxu0 %v2629
    %v2651 = vpop.f32.mrf.mxu0
    %v2652 = vadd.f32 %v2457, %v2651
    %2653 = vdwg.mxu0
    %v2655 = vsel %vm357, %v2580, 0
    %v2658 = vsel %vm357, %v2603, 0
    %2660 = vmatpush.xpose.msra.mxu0 0.0
    %2661 = vmatpush.xpose.msra.mxu0 0.0
    %2662 = vmatpush.xpose.msra.mxu0 0.0
    %2663 = vmatpush.xpose.msra.mxu0 0.0
    %2664 = vmatpush.xpose.msra.mxu0 0.0
    %2665 = vmatpush.xpose.msra.mxu0 0.0
    %2666 = vmatpush.xpose.msra.mxu0 0.0
    %2667 = vmatpush.xpose.msra.mxu0 0.0
    %2668 = vmatpush.xpose.msra.mxu0 0.0
    %2669 = vmatpush.xpose.msra.mxu0 0.0
    %2670 = vmatpush.xpose.msra.mxu0 0.0
    %2671 = vmatpush.xpose.msra.mxu0 0.0
    %2672 = vmatpush.xpose.msra.mxu0 0.0
    %2673 = vmatpush.xpose.msra.mxu0 0.0
    %2674 = vmatpush.xpose.msra.mxu0 0.0
    %2675 = vmatpush.xpose.msra.mxu0 %v2658
    %2676 = vmatmul.f32.gmra.mxu0 %v2655
    %v2677 = vpop.f32.mrf.mxu0
    %v2678 = vadd.f32 %v2457, %v2677
    %2679 = vdwg.mxu0
    %v2680 = vsel %vm357, %v2652, -inf
    %2681 = vmax.xlane.f32.xlu0 %v2680
    %v2682 = vpop.xlane.xlu0 %2681
    %v2683 = vsel %vm357, %v2678, -inf
    %2684 = vmax.xlane.f32.xlu0 %v2683
    %v2685 = vpop.xlane.xlu0 %2684
    %v2686 = vsub.f32 %v2652, %v2682
    %v2687 = vsub.f32 %v2678, %v2685
    %v2688 = vmul.f32 %v2686, 1.442695
    %v2689 = vpow.pop %v2688
    %v2690 = vmul.f32 %v2687, 1.442695
    %v2691 = vpow.pop %v2690
    %v2692 = vsel %vm357, %v2689, 0.0
    %2693 = vadd.xlane.f32.xlu0 %v2692
    %v2694 = vpop.xlane.xlu0 %2693
    %v2695 = vsel %vm357, %v2691, 0.0
    %2696 = vadd.xlane.f32.xlu0 %v2695
    %v2697 = vpop.xlane.xlu0 %2696
    %v2698 = vrcp.pop %v2694
    %v2699 = vrcp.pop %v2697
    %v2700 = vmul.f32 %v2689, %v2698
    %v2701 = vmul.f32 %v2691, %v2699
    %v2703 = vsel %vm357, %v2700, 0
    %2705 = vmatpush.msra.mxu0 0.0
    %2706 = vmatpush.msra.mxu0 0.0
    %2707 = vmatpush.msra.mxu0 0.0
    %2708 = vmatpush.msra.mxu0 0.0
    %2709 = vmatpush.msra.mxu0 0.0
    %2710 = vmatpush.msra.mxu0 0.0
    %2711 = vmatpush.msra.mxu0 0.0
    %2712 = vmatpush.msra.mxu0 0.0
    %2713 = vmatpush.msra.mxu0 0.0
    %2714 = vmatpush.msra.mxu0 0.0
    %2715 = vmatpush.msra.mxu0 0.0
    %2716 = vmatpush.msra.mxu0 0.0
    %2717 = vmatpush.msra.mxu0 0.0
    %2718 = vmatpush.msra.mxu0 0.0
    %2719 = vmatpush.msra.mxu0 0.0
    %2720 = vmatpush.msra.mxu0 %v2623
    %2721 = vmatmul.f32.gmra.mxu0 %v2703
    %v2722 = vpop.f32.mrf.mxu0
    %v2723 = vadd.f32 0.0, %v2722
    %2724 = vdwg.mxu0
    %v2726 = vsel %vm357, %v2701, 0
    %2728 = vmatpush.msra.mxu0 0.0
    %2729 = vmatpush.msra.mxu0 0.0
    %2730 = vmatpush.msra.mxu0 0.0
    %2731 = vmatpush.msra.mxu0 0.0
    %2732 = vmatpush.msra.mxu0 0.0
    %2733 = vmatpush.msra.mxu0 0.0
    %2734 = vmatpush.msra.mxu0 0.0
    %2735 = vmatpush.msra.mxu0 0.0
    %2736 = vmatpush.msra.mxu0 0.0
    %2737 = vmatpush.msra.mxu0 0.0
    %2738 = vmatpush.msra.mxu0 0.0
    %2739 = vmatpush.msra.mxu0 0.0
    %2740 = vmatpush.msra.mxu0 0.0
    %2741 = vmatpush.msra.mxu0 0.0
    %2742 = vmatpush.msra.mxu0 0.0
    %2743 = vmatpush.msra.mxu0 %v2626
    %2744 = vmatmul.f32.gmra.mxu0 %v2726
    %v2745 = vpop.f32.mrf.mxu0
    %v2746 = vadd.f32 0.0, %v2745
    %2747 = vdwg.mxu0
    %2748 = vmatpush.msra.mxu0 0.0
    %2749 = vmatpush.msra.mxu0 0.0
    %2750 = vmatpush.msra.mxu0 0.0
    %2751 = vmatpush.msra.mxu0 0.0
    %2752 = vmatpush.msra.mxu0 0.0
    %2753 = vmatpush.msra.mxu0 0.0
    %2754 = vmatpush.msra.mxu0 0.0
    %2755 = vmatpush.msra.mxu0 0.0
    %2756 = vmatpush.msra.mxu0 0.0
    %2757 = vmatpush.msra.mxu0 0.0
    %2758 = vmatpush.msra.mxu0 0.0
    %2759 = vmatpush.msra.mxu0 0.0
    %2760 = vmatpush.msra.mxu0 %v2508
    %2761 = vmatpush.msra.mxu0 %v2507
    %2762 = vmatpush.msra.mxu0 %v2506
    %2763 = vmatpush.msra.mxu0 %v2505
    %2764 = vmatmul.f32.gmra.mxu0 %v2554
    %v2765 = vpop.f32.mrf.mxu0
    %v2766 = vadd.f32 0.0, %v2765
    %2767 = vmatmul.f32.gmra.mxu0 %v2557
    %v2768 = vpop.f32.mrf.mxu0
    %v2769 = vadd.f32 0.0, %v2768
    %2770 = vdwg.mxu0
    %2771 = vmatpush.msra.mxu0 0.0
    %2772 = vmatpush.msra.mxu0 0.0
    %2773 = vmatpush.msra.mxu0 0.0
    %2774 = vmatpush.msra.mxu0 0.0
    %2775 = vmatpush.msra.mxu0 0.0
    %2776 = vmatpush.msra.mxu0 0.0
    %2777 = vmatpush.msra.mxu0 0.0
    %2778 = vmatpush.msra.mxu0 0.0
    %2779 = vmatpush.msra.mxu0 0.0
    %2780 = vmatpush.msra.mxu0 0.0
    %2781 = vmatpush.msra.mxu0 0.0
    %2782 = vmatpush.msra.mxu0 0.0
    %2783 = vmatpush.msra.mxu0 %v2524
    %2784 = vmatpush.msra.mxu0 %v2523
    %2785 = vmatpush.msra.mxu0 %v2522
    %2786 = vmatpush.msra.mxu0 %v2521
    %2787 = vmatmul.f32.gmra.mxu0 %v2554
    %v2788 = vpop.f32.mrf.mxu0
    %v2789 = vadd.f32 0.0, %v2788
    %2790 = vmatmul.f32.gmra.mxu0 %v2557
    %v2791 = vpop.f32.mrf.mxu0
    %v2792 = vadd.f32 0.0, %v2791
    %2793 = vdwg.mxu0
    %2794 = vmatpush.msra.mxu0 0.0
    %2795 = vmatpush.msra.mxu0 0.0
    %2796 = vmatpush.msra.mxu0 0.0
    %2797 = vmatpush.msra.mxu0 0.0
    %2798 = vmatpush.msra.mxu0 0.0
    %2799 = vmatpush.msra.mxu0 0.0
    %2800 = vmatpush.msra.mxu0 0.0
    %2801 = vmatpush.msra.mxu0 0.0
    %2802 = vmatpush.msra.mxu0 0.0
    %2803 = vmatpush.msra.mxu0 0.0
    %2804 = vmatpush.msra.mxu0 0.0
    %2805 = vmatpush.msra.mxu0 0.0
    %2806 = vmatpush.msra.mxu0 %v2540
    %2807 = vmatpush.msra.mxu0 %v2539
    %2808 = vmatpush.msra.mxu0 %v2538
    %2809 = vmatpush.msra.mxu0 %v2537
    %2810 = vmatmul.f32.gmra.mxu0 %v2554
    %v2811 = vpop.f32.mrf.mxu0
    %v2812 = vadd.f32 0.0, %v2811
    %2813 = vmatmul.f32.gmra.mxu0 %v2557
    %v2814 = vpop.f32.mrf.mxu0
    %v2815 = vadd.f32 0.0, %v2814
    %2816 = vdwg.mxu0
    %v2818 = vsel %vm357, %v2766, 0
    %v2821 = vsel %vm357, %v2789, 0
    %2823 = vmatpush.xpose.msra.mxu0 0.0
    %2824 = vmatpush.xpose.msra.mxu0 0.0
    %2825 = vmatpush.xpose.msra.mxu0 0.0
    %2826 = vmatpush.xpose.msra.mxu0 0.0
    %2827 = vmatpush.xpose.msra.mxu0 0.0
    %2828 = vmatpush.xpose.msra.mxu0 0.0
    %2829 = vmatpush.xpose.msra.mxu0 0.0
    %2830 = vmatpush.xpose.msra.mxu0 0.0
    %2831 = vmatpush.xpose.msra.mxu0 0.0
    %2832 = vmatpush.xpose.msra.mxu0 0.0
    %2833 = vmatpush.xpose.msra.mxu0 0.0
    %2834 = vmatpush.xpose.msra.mxu0 0.0
    %2835 = vmatpush.xpose.msra.mxu0 0.0
    %2836 = vmatpush.xpose.msra.mxu0 0.0
    %2837 = vmatpush.xpose.msra.mxu0 0.0
    %2838 = vmatpush.xpose.msra.mxu0 %v2821
    %2839 = vmatmul.f32.gmra.mxu0 %v2818
    %v2840 = vpop.f32.mrf.mxu0
    %v2841 = vadd.f32 %v2458, %v2840
    %2842 = vdwg.mxu0
    %v2844 = vsel %vm357, %v2769, 0
    %v2847 = vsel %vm357, %v2792, 0
    %2849 = vmatpush.xpose.msra.mxu0 0.0
    %2850 = vmatpush.xpose.msra.mxu0 0.0
    %2851 = vmatpush.xpose.msra.mxu0 0.0
    %2852 = vmatpush.xpose.msra.mxu0 0.0
    %2853 = vmatpush.xpose.msra.mxu0 0.0
    %2854 = vmatpush.xpose.msra.mxu0 0.0
    %2855 = vmatpush.xpose.msra.mxu0 0.0
    %2856 = vmatpush.xpose.msra.mxu0 0.0
    %2857 = vmatpush.xpose.msra.mxu0 0.0
    %2858 = vmatpush.xpose.msra.mxu0 0.0
    %2859 = vmatpush.xpose.msra.mxu0 0.0
    %2860 = vmatpush.xpose.msra.mxu0 0.0
    %2861 = vmatpush.xpose.msra.mxu0 0.0
    %2862 = vmatpush.xpose.msra.mxu0 0.0
    %2863 = vmatpush.xpose.msra.mxu0 0.0
    %2864 = vmatpush.xpose.msra.mxu0 %v2847
    %2865 = vmatmul.f32.gmra.mxu0 %v2844
    %v2866 = vpop.f32.mrf.mxu0
    %v2867 = vadd.f32 %v2458, %v2866
    %2868 = vdwg.mxu0
    %v2869 = vsel %vm357, %v2841, -inf
    %2870 = vmax.xlane.f32.xlu0 %v2869
    %v2871 = vpop.xlane.xlu0 %2870
    %v2872 = vsel %vm357, %v2867, -inf
    %2873 = vmax.xlane.f32.xlu0 %v2872
    %v2874 = vpop.xlane.xlu0 %2873
    %v2875 = vsub.f32 %v2841, %v2871
    %v2876 = vsub.f32 %v2867, %v2874
    %v2877 = vmul.f32 %v2875, 1.442695
    %v2878 = vpow.pop %v2877
    %v2879 = vmul.f32 %v2876, 1.442695
    %v2880 = vpow.pop %v2879
    %v2881 = vsel %vm357, %v2878, 0.0
    %2882 = vadd.xlane.f32.xlu0 %v2881
    %v2883 = vpop.xlane.xlu0 %2882
    %v2884 = vsel %vm357, %v2880, 0.0
    %2885 = vadd.xlane.f32.xlu0 %v2884
    %v2886 = vpop.xlane.xlu0 %2885
    %v2887 = vrcp.pop %v2883
    %v2888 = vrcp.pop %v2886
    %v2889 = vmul.f32 %v2878, %v2887
    %v2890 = vmul.f32 %v2880, %v2888
    %v2892 = vsel %vm357, %v2889, 0
    %2894 = vmatpush.msra.mxu0 0.0
    %2895 = vmatpush.msra.mxu0 0.0
    %2896 = vmatpush.msra.mxu0 0.0
    %2897 = vmatpush.msra.mxu0 0.0
    %2898 = vmatpush.msra.mxu0 0.0
    %2899 = vmatpush.msra.mxu0 0.0
    %2900 = vmatpush.msra.mxu0 0.0
    %2901 = vmatpush.msra.mxu0 0.0
    %2902 = vmatpush.msra.mxu0 0.0
    %2903 = vmatpush.msra.mxu0 0.0
    %2904 = vmatpush.msra.mxu0 0.0
    %2905 = vmatpush.msra.mxu0 0.0
    %2906 = vmatpush.msra.mxu0 0.0
    %2907 = vmatpush.msra.mxu0 0.0
    %2908 = vmatpush.msra.mxu0 0.0
    %2909 = vmatpush.msra.mxu0 %v2812
    %2910 = vmatmul.f32.gmra.mxu0 %v2892
    %v2911 = vpop.f32.mrf.mxu0
    %v2912 = vadd.f32 0.0, %v2911
    %2913 = vdwg.mxu0
    %v2915 = vsel %vm357, %v2890, 0
    %2917 = vmatpush.msra.mxu0 0.0
    %2918 = vmatpush.msra.mxu0 0.0
    %2919 = vmatpush.msra.mxu0 0.0
    %2920 = vmatpush.msra.mxu0 0.0
    %2921 = vmatpush.msra.mxu0 0.0
    %2922 = vmatpush.msra.mxu0 0.0
    %2923 = vmatpush.msra.mxu0 0.0
    %2924 = vmatpush.msra.mxu0 0.0
    %2925 = vmatpush.msra.mxu0 0.0
    %2926 = vmatpush.msra.mxu0 0.0
    %2927 = vmatpush.msra.mxu0 0.0
    %2928 = vmatpush.msra.mxu0 0.0
    %2929 = vmatpush.msra.mxu0 0.0
    %2930 = vmatpush.msra.mxu0 0.0
    %2931 = vmatpush.msra.mxu0 0.0
    %2932 = vmatpush.msra.mxu0 %v2815
    %2933 = vmatmul.f32.gmra.mxu0 %v2915
    %v2934 = vpop.f32.mrf.mxu0
    %v2935 = vadd.f32 0.0, %v2934
    %2936 = vdwg.mxu0
    %v2938 = vsel %vm357, %v2912, 0
    %v2941 = vsel %vm357, %v2935, 0
    %2943 = vmatpush.msra.mxu0 0.0
    %2944 = vmatpush.msra.mxu0 0.0
    %2945 = vmatpush.msra.mxu0 0.0
    %2946 = vmatpush.msra.mxu0 0.0
    %2947 = vmatpush.msra.mxu0 0.0
    %2948 = vmatpush.msra.mxu0 0.0
    %2949 = vmatpush.msra.mxu0 0.0
    %2950 = vmatpush.msra.mxu0 0.0
    %2951 = vmatpush.msra.mxu0 0.0
    %2952 = vmatpush.msra.mxu0 0.0
    %2953 = vmatpush.msra.mxu0 0.0
    %2954 = vmatpush.msra.mxu0 0.0
    %2955 = vmatpush.msra.mxu0 0.0
    %2956 = vmatpush.msra.mxu0 0.0
    %2957 = vmatpush.msra.mxu0 0.0
    %2958 = vmatpush.msra.mxu0 %v2550
    %2959 = vmatmul.f32.gmra.mxu0 %v2938
    %v2960 = vpop.f32.mrf.mxu0
    %v2961 = vadd.f32 0.0, %v2960
    %2962 = vmatmul.f32.gmra.mxu0 %v2941
    %v2963 = vpop.f32.mrf.mxu0
    %v2964 = vadd.f32 0.0, %v2963
    %2965 = vdwg.mxu0
    %v2967 = vsel %vm357, %v2723, 0
    %v2970 = vsel %vm357, %v2746, 0
    %2972 = vmatpush.msra.mxu0 0.0
    %2973 = vmatpush.msra.mxu0 0.0
    %2974 = vmatpush.msra.mxu0 0.0
    %2975 = vmatpush.msra.mxu0 0.0
    %2976 = vmatpush.msra.mxu0 0.0
    %2977 = vmatpush.msra.mxu0 0.0
    %2978 = vmatpush.msra.mxu0 0.0
    %2979 = vmatpush.msra.mxu0 0.0
    %2980 = vmatpush.msra.mxu0 0.0
    %2981 = vmatpush.msra.mxu0 0.0
    %2982 = vmatpush.msra.mxu0 0.0
    %2983 = vmatpush.msra.mxu0 0.0
    %2984 = vmatpush.msra.mxu0 0.0
    %2985 = vmatpush.msra.mxu0 0.0
    %2986 = vmatpush.msra.mxu0 0.0
    %2987 = vmatpush.msra.mxu0 %v2549
    %2988 = vmatmul.f32.gmra.mxu0 %v2967
    %v2989 = vpop.f32.mrf.mxu0
    %v2990 = vadd.f32 %v2961, %v2989
    %2991 = vmatmul.f32.gmra.mxu0 %v2970
    %v2992 = vpop.f32.mrf.mxu0
    %v2993 = vadd.f32 %v2964, %v2992
    %2994 = vdwg.mxu0
    %2995 = vmatpush.msra.mxu0 0.0
    %2996 = vmatpush.msra.mxu0 0.0
    %2997 = vmatpush.msra.mxu0 0.0
    %2998 = vmatpush.msra.mxu0 0.0
    %2999 = vmatpush.msra.mxu0 0.0
    %3000 = vmatpush.msra.mxu0 0.0
    %3001 = vmatpush.msra.mxu0 0.0
    %3002 = vmatpush.msra.mxu0 0.0
    %3003 = vmatpush.msra.mxu0 0.0
    %3004 = vmatpush.msra.mxu0 0.0
    %3005 = vmatpush.msra.mxu0 0.0
    %3006 = vmatpush.msra.mxu0 0.0
    %3007 = vmatpush.msra.mxu0 %v2512
    %3008 = vmatpush.msra.mxu0 %v2511
    %3009 = vmatpush.msra.mxu0 %v2510
    %3010 = vmatpush.msra.mxu0 %v2509
    %3011 = vmatmul.f32.gmra.mxu0 %v2554
    %v3012 = vpop.f32.mrf.mxu0
    %v3013 = vadd.f32 0.0, %v3012
    %3014 = vmatmul.f32.gmra.mxu0 %v2557
    %v3015 = vpop.f32.mrf.mxu0
    %v3016 = vadd.f32 0.0, %v3015
    %3017 = vdwg.mxu0
    %3018 = vmatpush.msra.mxu0 0.0
    %3019 = vmatpush.msra.mxu0 0.0
    %3020 = vmatpush.msra.mxu0 0.0
    %3021 = vmatpush.msra.mxu0 0.0
    %3022 = vmatpush.msra.mxu0 0.0
    %3023 = vmatpush.msra.mxu0 0.0
    %3024 = vmatpush.msra.mxu0 0.0
    %3025 = vmatpush.msra.mxu0 0.0
    %3026 = vmatpush.msra.mxu0 0.0
    %3027 = vmatpush.msra.mxu0 0.0
    %3028 = vmatpush.msra.mxu0 0.0
    %3029 = vmatpush.msra.mxu0 0.0
    %3030 = vmatpush.msra.mxu0 %v2528
    %3031 = vmatpush.msra.mxu0 %v2527
    %3032 = vmatpush.msra.mxu0 %v2526
    %3033 = vmatpush.msra.mxu0 %v2525
    %3034 = vmatmul.f32.gmra.mxu0 %v2554
    %v3035 = vpop.f32.mrf.mxu0
    %v3036 = vadd.f32 0.0, %v3035
    %3037 = vmatmul.f32.gmra.mxu0 %v2557
    %v3038 = vpop.f32.mrf.mxu0
    %v3039 = vadd.f32 0.0, %v3038
    %3040 = vdwg.mxu0
    %3041 = vmatpush.msra.mxu0 0.0
    %3042 = vmatpush.msra.mxu0 0.0
    %3043 = vmatpush.msra.mxu0 0.0
    %3044 = vmatpush.msra.mxu0 0.0
    %3045 = vmatpush.msra.mxu0 0.0
    %3046 = vmatpush.msra.mxu0 0.0
    %3047 = vmatpush.msra.mxu0 0.0
    %3048 = vmatpush.msra.mxu0 0.0
    %3049 = vmatpush.msra.mxu0 0.0
    %3050 = vmatpush.msra.mxu0 0.0
    %3051 = vmatpush.msra.mxu0 0.0
    %3052 = vmatpush.msra.mxu0 0.0
    %3053 = vmatpush.msra.mxu0 %v2544
    %3054 = vmatpush.msra.mxu0 %v2543
    %3055 = vmatpush.msra.mxu0 %v2542
    %3056 = vmatpush.msra.mxu0 %v2541
    %3057 = vmatmul.f32.gmra.mxu0 %v2554
    %v3058 = vpop.f32.mrf.mxu0
    %v3059 = vadd.f32 0.0, %v3058
    %3060 = vmatmul.f32.gmra.mxu0 %v2557
    %v3061 = vpop.f32.mrf.mxu0
    %v3062 = vadd.f32 0.0, %v3061
    %3063 = vdwg.mxu0
    %v3065 = vsel %vm357, %v3013, 0
    %v3068 = vsel %vm357, %v3036, 0
    %3070 = vmatpush.xpose.msra.mxu0 0.0
    %3071 = vmatpush.xpose.msra.mxu0 0.0
    %3072 = vmatpush.xpose.msra.mxu0 0.0
    %3073 = vmatpush.xpose.msra.mxu0 0.0
    %3074 = vmatpush.xpose.msra.mxu0 0.0
    %3075 = vmatpush.xpose.msra.mxu0 0.0
    %3076 = vmatpush.xpose.msra.mxu0 0.0
    %3077 = vmatpush.xpose.msra.mxu0 0.0
    %3078 = vmatpush.xpose.msra.mxu0 0.0
    %3079 = vmatpush.xpose.msra.mxu0 0.0
    %3080 = vmatpush.xpose.msra.mxu0 0.0
    %3081 = vmatpush.xpose.msra.mxu0 0.0
    %3082 = vmatpush.xpose.msra.mxu0 0.0
    %3083 = vmatpush.xpose.msra.mxu0 0.0
    %3084 = vmatpush.xpose.msra.mxu0 0.0
    %3085 = vmatpush.xpose.msra.mxu0 %v3068
    %3086 = vmatmul.f32.gmra.mxu0 %v3065
    %v3087 = vpop.f32.mrf.mxu0
    %v3088 = vadd.f32 %v2459, %v3087
    %3089 = vdwg.mxu0
    %v3091 = vsel %vm357, %v3016, 0
    %v3094 = vsel %vm357, %v3039, 0
    %3096 = vmatpush.xpose.msra.mxu0 0.0
    %3097 = vmatpush.xpose.msra.mxu0 0.0
    %3098 = vmatpush.xpose.msra.mxu0 0.0
    %3099 = vmatpush.xpose.msra.mxu0 0.0
    %3100 = vmatpush.xpose.msra.mxu0 0.0
    %3101 = vmatpush.xpose.msra.mxu0 0.0
    %3102 = vmatpush.xpose.msra.mxu0 0.0
    %3103 = vmatpush.xpose.msra.mxu0 0.0
    %3104 = vmatpush.xpose.msra.mxu0 0.0
    %3105 = vmatpush.xpose.msra.mxu0 0.0
    %3106 = vmatpush.xpose.msra.mxu0 0.0
    %3107 = vmatpush.xpose.msra.mxu0 0.0
    %3108 = vmatpush.xpose.msra.mxu0 0.0
    %3109 = vmatpush.xpose.msra.mxu0 0.0
    %3110 = vmatpush.xpose.msra.mxu0 0.0
    %3111 = vmatpush.xpose.msra.mxu0 %v3094
    %3112 = vmatmul.f32.gmra.mxu0 %v3091
    %v3113 = vpop.f32.mrf.mxu0
    %v3114 = vadd.f32 %v2459, %v3113
    %3115 = vdwg.mxu0
    %v3116 = vsel %vm357, %v3088, -inf
    %3117 = vmax.xlane.f32.xlu0 %v3116
    %v3118 = vpop.xlane.xlu0 %3117
    %v3119 = vsel %vm357, %v3114, -inf
    %3120 = vmax.xlane.f32.xlu0 %v3119
    %v3121 = vpop.xlane.xlu0 %3120
    %v3122 = vsub.f32 %v3088, %v3118
    %v3123 = vsub.f32 %v3114, %v3121
    %v3124 = vmul.f32 %v3122, 1.442695
    %v3125 = vpow.pop %v3124
    %v3126 = vmul.f32 %v3123, 1.442695
    %v3127 = vpow.pop %v3126
    %v3128 = vsel %vm357, %v3125, 0.0
    %3129 = vadd.xlane.f32.xlu0 %v3128
    %v3130 = vpop.xlane.xlu0 %3129
    %v3131 = vsel %vm357, %v3127, 0.0
    %3132 = vadd.xlane.f32.xlu0 %v3131
    %v3133 = vpop.xlane.xlu0 %3132
    %v3134 = vrcp.pop %v3130
    %v3135 = vrcp.pop %v3133
    %v3136 = vmul.f32 %v3125, %v3134
    %v3137 = vmul.f32 %v3127, %v3135
    %v3139 = vsel %vm357, %v3136, 0
    %3141 = vmatpush.msra.mxu0 0.0
    %3142 = vmatpush.msra.mxu0 0.0
    %3143 = vmatpush.msra.mxu0 0.0
    %3144 = vmatpush.msra.mxu0 0.0
    %3145 = vmatpush.msra.mxu0 0.0
    %3146 = vmatpush.msra.mxu0 0.0
    %3147 = vmatpush.msra.mxu0 0.0
    %3148 = vmatpush.msra.mxu0 0.0
    %3149 = vmatpush.msra.mxu0 0.0
    %3150 = vmatpush.msra.mxu0 0.0
    %3151 = vmatpush.msra.mxu0 0.0
    %3152 = vmatpush.msra.mxu0 0.0
    %3153 = vmatpush.msra.mxu0 0.0
    %3154 = vmatpush.msra.mxu0 0.0
    %3155 = vmatpush.msra.mxu0 0.0
    %3156 = vmatpush.msra.mxu0 %v3059
    %3157 = vmatmul.f32.gmra.mxu0 %v3139
    %v3158 = vpop.f32.mrf.mxu0
    %v3159 = vadd.f32 0.0, %v3158
    %3160 = vdwg.mxu0
    %v3162 = vsel %vm357, %v3137, 0
    %3164 = vmatpush.msra.mxu0 0.0
    %3165 = vmatpush.msra.mxu0 0.0
    %3166 = vmatpush.msra.mxu0 0.0
    %3167 = vmatpush.msra.mxu0 0.0
    %3168 = vmatpush.msra.mxu0 0.0
    %3169 = vmatpush.msra.mxu0 0.0
    %3170 = vmatpush.msra.mxu0 0.0
    %3171 = vmatpush.msra.mxu0 0.0
    %3172 = vmatpush.msra.mxu0 0.0
    %3173 = vmatpush.msra.mxu0 0.0
    %3174 = vmatpush.msra.mxu0 0.0
    %3175 = vmatpush.msra.mxu0 0.0
    %3176 = vmatpush.msra.mxu0 0.0
    %3177 = vmatpush.msra.mxu0 0.0
    %3178 = vmatpush.msra.mxu0 0.0
    %3179 = vmatpush.msra.mxu0 %v3062
    %3180 = vmatmul.f32.gmra.mxu0 %v3162
    %v3181 = vpop.f32.mrf.mxu0
    %v3182 = vadd.f32 0.0, %v3181
    %3183 = vdwg.mxu0
    %v3185 = vsel %vm357, %v3159, 0
    %v3188 = vsel %vm357, %v3182, 0
    %3190 = vmatpush.msra.mxu0 0.0
    %3191 = vmatpush.msra.mxu0 0.0
    %3192 = vmatpush.msra.mxu0 0.0
    %3193 = vmatpush.msra.mxu0 0.0
    %3194 = vmatpush.msra.mxu0 0.0
    %3195 = vmatpush.msra.mxu0 0.0
    %3196 = vmatpush.msra.mxu0 0.0
    %3197 = vmatpush.msra.mxu0 0.0
    %3198 = vmatpush.msra.mxu0 0.0
    %3199 = vmatpush.msra.mxu0 0.0
    %3200 = vmatpush.msra.mxu0 0.0
    %3201 = vmatpush.msra.mxu0 0.0
    %3202 = vmatpush.msra.mxu0 0.0
    %3203 = vmatpush.msra.mxu0 0.0
    %3204 = vmatpush.msra.mxu0 0.0
    %3205 = vmatpush.msra.mxu0 %v2551
    %3206 = vmatmul.f32.gmra.mxu0 %v3185
    %v3207 = vpop.f32.mrf.mxu0
    %v3208 = vadd.f32 0.0, %v3207
    %3209 = vmatmul.f32.gmra.mxu0 %v3188
    %v3210 = vpop.f32.mrf.mxu0
    %v3211 = vadd.f32 0.0, %v3210
    %3212 = vdwg.mxu0
    %v3213 = vadd.f32 %v2990, %v3208
    %v3214 = vadd.f32 %v2993, %v3211
    %3215 = vmatpush.msra.mxu0 0.0
    %3216 = vmatpush.msra.mxu0 0.0
    %3217 = vmatpush.msra.mxu0 0.0
    %3218 = vmatpush.msra.mxu0 0.0
    %3219 = vmatpush.msra.mxu0 0.0
    %3220 = vmatpush.msra.mxu0 0.0
    %3221 = vmatpush.msra.mxu0 0.0
    %3222 = vmatpush.msra.mxu0 0.0
    %3223 = vmatpush.msra.mxu0 0.0
    %3224 = vmatpush.msra.mxu0 0.0
    %3225 = vmatpush.msra.mxu0 0.0
    %3226 = vmatpush.msra.mxu0 0.0
    %3227 = vmatpush.msra.mxu0 %v2516
    %3228 = vmatpush.msra.mxu0 %v2515
    %3229 = vmatpush.msra.mxu0 %v2514
    %3230 = vmatpush.msra.mxu0 %v2513
    %3231 = vmatmul.f32.gmra.mxu0 %v2554
    %v3232 = vpop.f32.mrf.mxu0
    %v3233 = vadd.f32 0.0, %v3232
    %3234 = vmatmul.f32.gmra.mxu0 %v2557
    %v3235 = vpop.f32.mrf.mxu0
    %v3236 = vadd.f32 0.0, %v3235
    %3237 = vdwg.mxu0
    %3238 = vmatpush.msra.mxu0 0.0
    %3239 = vmatpush.msra.mxu0 0.0
    %3240 = vmatpush.msra.mxu0 0.0
    %3241 = vmatpush.msra.mxu0 0.0
    %3242 = vmatpush.msra.mxu0 0.0
    %3243 = vmatpush.msra.mxu0 0.0
    %3244 = vmatpush.msra.mxu0 0.0
    %3245 = vmatpush.msra.mxu0 0.0
    %3246 = vmatpush.msra.mxu0 0.0
    %3247 = vmatpush.msra.mxu0 0.0
    %3248 = vmatpush.msra.mxu0 0.0
    %3249 = vmatpush.msra.mxu0 0.0
    %3250 = vmatpush.msra.mxu0 %v2532
    %3251 = vmatpush.msra.mxu0 %v2531
    %3252 = vmatpush.msra.mxu0 %v2530
    %3253 = vmatpush.msra.mxu0 %v2529
    %3254 = vmatmul.f32.gmra.mxu0 %v2554
    %v3255 = vpop.f32.mrf.mxu0
    %v3256 = vadd.f32 0.0, %v3255
    %3257 = vmatmul.f32.gmra.mxu0 %v2557
    %v3258 = vpop.f32.mrf.mxu0
    %v3259 = vadd.f32 0.0, %v3258
    %3260 = vdwg.mxu0
    %3261 = vmatpush.msra.mxu0 0.0
    %3262 = vmatpush.msra.mxu0 0.0
    %3263 = vmatpush.msra.mxu0 0.0
    %3264 = vmatpush.msra.mxu0 0.0
    %3265 = vmatpush.msra.mxu0 0.0
    %3266 = vmatpush.msra.mxu0 0.0
    %3267 = vmatpush.msra.mxu0 0.0
    %3268 = vmatpush.msra.mxu0 0.0
    %3269 = vmatpush.msra.mxu0 0.0
    %3270 = vmatpush.msra.mxu0 0.0
    %3271 = vmatpush.msra.mxu0 0.0
    %3272 = vmatpush.msra.mxu0 0.0
    %3273 = vmatpush.msra.mxu0 %v2548
    %3274 = vmatpush.msra.mxu0 %v2547
    %3275 = vmatpush.msra.mxu0 %v2546
    %3276 = vmatpush.msra.mxu0 %v2545
    %3277 = vmatmul.f32.gmra.mxu0 %v2554
    %v3278 = vpop.f32.mrf.mxu0
    %v3279 = vadd.f32 0.0, %v3278
    %3280 = vmatmul.f32.gmra.mxu0 %v2557
    %v3281 = vpop.f32.mrf.mxu0
    %v3282 = vadd.f32 0.0, %v3281
    %3283 = vdwg.mxu0
    %v3285 = vsel %vm357, %v3233, 0
    %v3288 = vsel %vm357, %v3256, 0
    %3290 = vmatpush.xpose.msra.mxu0 0.0
    %3291 = vmatpush.xpose.msra.mxu0 0.0
    %3292 = vmatpush.xpose.msra.mxu0 0.0
    %3293 = vmatpush.xpose.msra.mxu0 0.0
    %3294 = vmatpush.xpose.msra.mxu0 0.0
    %3295 = vmatpush.xpose.msra.mxu0 0.0
    %3296 = vmatpush.xpose.msra.mxu0 0.0
    %3297 = vmatpush.xpose.msra.mxu0 0.0
    %3298 = vmatpush.xpose.msra.mxu0 0.0
    %3299 = vmatpush.xpose.msra.mxu0 0.0
    %3300 = vmatpush.xpose.msra.mxu0 0.0
    %3301 = vmatpush.xpose.msra.mxu0 0.0
    %3302 = vmatpush.xpose.msra.mxu0 0.0
    %3303 = vmatpush.xpose.msra.mxu0 0.0
    %3304 = vmatpush.xpose.msra.mxu0 0.0
    %3305 = vmatpush.xpose.msra.mxu0 %v3288
    %3306 = vmatmul.f32.gmra.mxu0 %v3285
    %v3307 = vpop.f32.mrf.mxu0
    %v3308 = vadd.f32 %v2460, %v3307
    %3309 = vdwg.mxu0
    %v3311 = vsel %vm357, %v3236, 0
    %v3314 = vsel %vm357, %v3259, 0
    %3316 = vmatpush.xpose.msra.mxu0 0.0
    %3317 = vmatpush.xpose.msra.mxu0 0.0
    %3318 = vmatpush.xpose.msra.mxu0 0.0
    %3319 = vmatpush.xpose.msra.mxu0 0.0
    %3320 = vmatpush.xpose.msra.mxu0 0.0
    %3321 = vmatpush.xpose.msra.mxu0 0.0
    %3322 = vmatpush.xpose.msra.mxu0 0.0
    %3323 = vmatpush.xpose.msra.mxu0 0.0
    %3324 = vmatpush.xpose.msra.mxu0 0.0
    %3325 = vmatpush.xpose.msra.mxu0 0.0
    %3326 = vmatpush.xpose.msra.mxu0 0.0
    %3327 = vmatpush.xpose.msra.mxu0 0.0
    %3328 = vmatpush.xpose.msra.mxu0 0.0
    %3329 = vmatpush.xpose.msra.mxu0 0.0
    %3330 = vmatpush.xpose.msra.mxu0 0.0
    %3331 = vmatpush.xpose.msra.mxu0 %v3314
    %3332 = vmatmul.f32.gmra.mxu0 %v3311
    %v3333 = vpop.f32.mrf.mxu0
    %v3334 = vadd.f32 %v2460, %v3333
    %3335 = vdwg.mxu0
    %v3336 = vsel %vm357, %v3308, -inf
    %3337 = vmax.xlane.f32.xlu0 %v3336
    %v3338 = vpop.xlane.xlu0 %3337
    %v3339 = vsel %vm357, %v3334, -inf
    %3340 = vmax.xlane.f32.xlu0 %v3339
    %v3341 = vpop.xlane.xlu0 %3340
    %v3342 = vsub.f32 %v3308, %v3338
    %v3343 = vsub.f32 %v3334, %v3341
    %v3344 = vmul.f32 %v3342, 1.442695
    %v3345 = vpow.pop %v3344
    %v3346 = vmul.f32 %v3343, 1.442695
    %v3347 = vpow.pop %v3346
    %v3348 = vsel %vm357, %v3345, 0.0
    %3349 = vadd.xlane.f32.xlu0 %v3348
    %v3350 = vpop.xlane.xlu0 %3349
    %v3351 = vsel %vm357, %v3347, 0.0
    %3352 = vadd.xlane.f32.xlu0 %v3351
    %v3353 = vpop.xlane.xlu0 %3352
    %v3354 = vrcp.pop %v3350
    %v3355 = vrcp.pop %v3353
    %v3356 = vmul.f32 %v3345, %v3354
    %v3357 = vmul.f32 %v3347, %v3355
    %v3359 = vsel %vm357, %v3356, 0
    %3361 = vmatpush.msra.mxu0 0.0
    %3362 = vmatpush.msra.mxu0 0.0
    %3363 = vmatpush.msra.mxu0 0.0
    %3364 = vmatpush.msra.mxu0 0.0
    %3365 = vmatpush.msra.mxu0 0.0
    %3366 = vmatpush.msra.mxu0 0.0
    %3367 = vmatpush.msra.mxu0 0.0
    %3368 = vmatpush.msra.mxu0 0.0
    %3369 = vmatpush.msra.mxu0 0.0
    %3370 = vmatpush.msra.mxu0 0.0
    %3371 = vmatpush.msra.mxu0 0.0
    %3372 = vmatpush.msra.mxu0 0.0
    %3373 = vmatpush.msra.mxu0 0.0
    %3374 = vmatpush.msra.mxu0 0.0
    %3375 = vmatpush.msra.mxu0 0.0
    %3376 = vmatpush.msra.mxu0 %v3279
    %3377 = vmatmul.f32.gmra.mxu0 %v3359
    %v3378 = vpop.f32.mrf.mxu0
    %v3379 = vadd.f32 0.0, %v3378
    %3380 = vdwg.mxu0
    %v3382 = vsel %vm357, %v3357, 0
    %3384 = vmatpush.msra.mxu0 0.0
    %3385 = vmatpush.msra.mxu0 0.0
    %3386 = vmatpush.msra.mxu0 0.0
    %3387 = vmatpush.msra.mxu0 0.0
    %3388 = vmatpush.msra.mxu0 0.0
    %3389 = vmatpush.msra.mxu0 0.0
    %3390 = vmatpush.msra.mxu0 0.0
    %3391 = vmatpush.msra.mxu0 0.0
    %3392 = vmatpush.msra.mxu0 0.0
    %3393 = vmatpush.msra.mxu0 0.0
    %3394 = vmatpush.msra.mxu0 0.0
    %3395 = vmatpush.msra.mxu0 0.0
    %3396 = vmatpush.msra.mxu0 0.0
    %3397 = vmatpush.msra.mxu0 0.0
    %3398 = vmatpush.msra.mxu0 0.0
    %3399 = vmatpush.msra.mxu0 %v3282
    %3400 = vmatmul.f32.gmra.mxu0 %v3382
    %v3401 = vpop.f32.mrf.mxu0
    %v3402 = vadd.f32 0.0, %v3401
    %3403 = vdwg.mxu0
    %v3405 = vsel %vm357, %v3379, 0
    %v3408 = vsel %vm357, %v3402, 0
    %3410 = vmatpush.msra.mxu0 0.0
    %3411 = vmatpush.msra.mxu0 0.0
    %3412 = vmatpush.msra.mxu0 0.0
    %3413 = vmatpush.msra.mxu0 0.0
    %3414 = vmatpush.msra.mxu0 0.0
    %3415 = vmatpush.msra.mxu0 0.0
    %3416 = vmatpush.msra.mxu0 0.0
    %3417 = vmatpush.msra.mxu0 0.0
    %3418 = vmatpush.msra.mxu0 0.0
    %3419 = vmatpush.msra.mxu0 0.0
    %3420 = vmatpush.msra.mxu0 0.0
    %3421 = vmatpush.msra.mxu0 0.0
    %3422 = vmatpush.msra.mxu0 0.0
    %3423 = vmatpush.msra.mxu0 0.0
    %3424 = vmatpush.msra.mxu0 0.0
    %3425 = vmatpush.msra.mxu0 %v2552
    %3426 = vmatmul.f32.gmra.mxu0 %v3405
    %v3427 = vpop.f32.mrf.mxu0
    %v3428 = vadd.f32 0.0, %v3427
    %3429 = vmatmul.f32.gmra.mxu0 %v3408
    %v3430 = vpop.f32.mrf.mxu0
    %v3431 = vadd.f32 0.0, %v3430
    %3432 = vdwg.mxu0
    %v3433 = vadd.f32 %v3213, %v3428
    %v3434 = vadd.f32 %v3214, %v3431
    %v3435 = vadd.f32 %v2452, %v3433
    %v3436 = vadd.f32 %v2455, %v3434
    %v3437 = vld [vmem:[%s39] sm:$0x1]
    %v3438 = vmul.f32 %v3435, %v3435
    %v3439 = vmul.f32 %v3436, %v3436
    %v3440 = vsel %vm185, %v3438, 0.0
    %3441 = vadd.xlane.f32.xlu0 %v3440
    %v3442 = vpop.xlane.xlu0 %3441
    %v3443 = vsel %vm185, %v3439, 0.0
    %3444 = vadd.xlane.f32.xlu0 %v3443
    %v3445 = vpop.xlane.xlu0 %3444
    %v3446 = vmul.f32 %v3442, %v198
    %v3447 = vmul.f32 %v3445, %v198
    %v3448 = vadd.f32 %v3446, 1e-06
    %v3449 = vadd.f32 %v3447, 1e-06
    %v3450 = vrsqrt.pop %v3448
    %v3451 = vmul.f32 %v3450, %v3448
    %v3452 = vmul.f32 %v3451, %v3450
    %v3453 = vmul.f32 0.5, %v3452
    %v3454 = vsub.f32 1.5, %v3453
    %v3455 = vmul.f32 %v3450, %v3454
    %vm3456 = vweird.f32 %v3448
    %vm3457 = vweird.f32 %v3450
    %vm3458 = vmor %vm3456, %vm3457
    %v3459 = vsel %vm3458, %v3450, %v3455
    %v3460 = vrsqrt.pop %v3449
    %v3461 = vmul.f32 %v3460, %v3449
    %v3462 = vmul.f32 %v3461, %v3460
    %v3463 = vmul.f32 0.5, %v3462
    %v3464 = vsub.f32 1.5, %v3463
    %v3465 = vmul.f32 %v3460, %v3464
    %vm3466 = vweird.f32 %v3449
    %vm3467 = vweird.f32 %v3460
    %vm3468 = vmor %vm3466, %vm3467
    %v3469 = vsel %vm3468, %v3460, %v3465
    %v3470 = vmul.f32 %v3435, %v3459
    %v3471 = vmul.f32 %v3436, %v3469
    %v3473 = vperm.slane %v3437, 0
    %v3475 = vmul.f32 %v3470, %v3473
    %v3476 = vmul.f32 %v3471, %v3473
    %v3477 = vld [vmem:[%s41] sm:$0xff]
    %v3478 = vld [vmem:[%s41 + $0x8] sm:$0xff]
    %v3479 = vld [vmem:[%s41 + $0x10] sm:$0xff]
    %v3480 = vld [vmem:[%s41 + $0x18] sm:$0xff]
    %v3481 = vld [vmem:[%s41 + $0x20] sm:$0xff]
    %v3482 = vld [vmem:[%s41 + $0x28] sm:$0xff]
    %v3483 = vld [vmem:[%s41 + $0x30] sm:$0xff]
    %v3484 = vld [vmem:[%s41 + $0x38] sm:$0xff]
    %v3485 = vld [vmem:[%s41 + $0x40] sm:$0xff]
    %v3486 = vld [vmem:[%s41 + $0x48] sm:$0xff]
    %v3487 = vld [vmem:[%s41 + $0x50] sm:$0xff]
    %v3488 = vld [vmem:[%s41 + $0x58] sm:$0xff]
    %v3489 = vld [vmem:[%s41 + $0x60] sm:$0xff]
    %v3490 = vld [vmem:[%s41 + $0x68] sm:$0xff]
    %v3491 = vld [vmem:[%s41 + $0x70] sm:$0xff]
    %v3492 = vld [vmem:[%s41 + $0x78] sm:$0xff]
    %v3493 = vld [vmem:[%s43] sm:$0xff]
    %v3494 = vld [vmem:[%s43 + $0x8] sm:$0xff]
    %v3495 = vld [vmem:[%s43 + $0x10] sm:$0xff]
    %v3496 = vld [vmem:[%s43 + $0x18] sm:$0xff]
    %v3497 = vld [vmem:[%s43 + $0x20] sm:$0xff]
    %v3498 = vld [vmem:[%s43 + $0x28] sm:$0xff]
    %v3499 = vld [vmem:[%s43 + $0x30] sm:$0xff]
    %v3500 = vld [vmem:[%s43 + $0x38] sm:$0xff]
    %v3501 = vld [vmem:[%s43 + $0x40] sm:$0xff]
    %v3502 = vld [vmem:[%s43 + $0x48] sm:$0xff]
    %v3503 = vld [vmem:[%s43 + $0x50] sm:$0xff]
    %v3504 = vld [vmem:[%s43 + $0x58] sm:$0xff]
    %v3505 = vld [vmem:[%s43 + $0x60] sm:$0xff]
    %v3506 = vld [vmem:[%s43 + $0x68] sm:$0xff]
    %v3507 = vld [vmem:[%s43 + $0x70] sm:$0xff]
    %v3508 = vld [vmem:[%s43 + $0x78] sm:$0xff]
    %v3509 = vld [vmem:[%s45] sm:$0xff]
    %v3510 = vld [vmem:[%s45 + $0x8] sm:$0xff]
    %v3511 = vld [vmem:[%s45 + $0x10] sm:$0xff]
    %v3512 = vld [vmem:[%s45 + $0x18] sm:$0xff]
    %v3513 = vld [vmem:[%s45 + $0x20] sm:$0xff]
    %v3514 = vld [vmem:[%s45 + $0x28] sm:$0xff]
    %v3515 = vld [vmem:[%s45 + $0x30] sm:$0xff]
    %v3516 = vld [vmem:[%s45 + $0x38] sm:$0xff]
    %v3517 = vld [vmem:[%s45 + $0x40] sm:$0xff]
    %v3518 = vld [vmem:[%s45 + $0x48] sm:$0xff]
    %v3519 = vld [vmem:[%s45 + $0x50] sm:$0xff]
    %v3520 = vld [vmem:[%s45 + $0x58] sm:$0xff]
    %v3521 = vld [vmem:[%s45 + $0x60] sm:$0xff]
    %v3522 = vld [vmem:[%s45 + $0x68] sm:$0xff]
    %v3523 = vld [vmem:[%s45 + $0x70] sm:$0xff]
    %v3524 = vld [vmem:[%s45 + $0x78] sm:$0xff]
    %v3525 = vld [vmem:[%s47] sm:$0xff]
    %v3526 = vld [vmem:[%s47 + $0x8] sm:$0xff]
    %v3527 = vld [vmem:[%s47 + $0x10] sm:$0xff]
    %v3528 = vld [vmem:[%s47 + $0x18] sm:$0xff]
    %v3530 = vsel %vm185, %v3475, 0
    %v3533 = vsel %vm185, %v3476, 0
    %3535 = vmatpush.msra.mxu0 0.0
    %3536 = vmatpush.msra.mxu0 0.0
    %3537 = vmatpush.msra.mxu0 0.0
    %3538 = vmatpush.msra.mxu0 0.0
    %3539 = vmatpush.msra.mxu0 0.0
    %3540 = vmatpush.msra.mxu0 0.0
    %3541 = vmatpush.msra.mxu0 0.0
    %3542 = vmatpush.msra.mxu0 0.0
    %3543 = vmatpush.msra.mxu0 0.0
    %3544 = vmatpush.msra.mxu0 0.0
    %3545 = vmatpush.msra.mxu0 0.0
    %3546 = vmatpush.msra.mxu0 0.0
    %3547 = vmatpush.msra.mxu0 %v3480
    %3548 = vmatpush.msra.mxu0 %v3479
    %3549 = vmatpush.msra.mxu0 %v3478
    %3550 = vmatpush.msra.mxu0 %v3477
    %3551 = vmatmul.f32.gmra.mxu0 %v3530
    %v3552 = vpop.f32.mrf.mxu0
    %v3553 = vadd.f32 0.0, %v3552
    %3554 = vmatmul.f32.gmra.mxu0 %v3533
    %v3555 = vpop.f32.mrf.mxu0
    %v3556 = vadd.f32 0.0, %v3555
    %3557 = vdwg.mxu0
    %v3559 = vsel %vm185, %v2418, 0
    %v3562 = vsel %vm185, %v2419, 0
    %3564 = vmatpush.msra.mxu0 0.0
    %3565 = vmatpush.msra.mxu0 0.0
    %3566 = vmatpush.msra.mxu0 0.0
    %3567 = vmatpush.msra.mxu0 0.0
    %3568 = vmatpush.msra.mxu0 0.0
    %3569 = vmatpush.msra.mxu0 0.0
    %3570 = vmatpush.msra.mxu0 0.0
    %3571 = vmatpush.msra.mxu0 0.0
    %3572 = vmatpush.msra.mxu0 0.0
    %3573 = vmatpush.msra.mxu0 0.0
    %3574 = vmatpush.msra.mxu0 0.0
    %3575 = vmatpush.msra.mxu0 0.0
    %3576 = vmatpush.msra.mxu0 %v3496
    %3577 = vmatpush.msra.mxu0 %v3495
    %3578 = vmatpush.msra.mxu0 %v3494
    %3579 = vmatpush.msra.mxu0 %v3493
    %3580 = vmatmul.f32.gmra.mxu0 %v3559
    %v3581 = vpop.f32.mrf.mxu0
    %v3582 = vadd.f32 0.0, %v3581
    %3583 = vmatmul.f32.gmra.mxu0 %v3562
    %v3584 = vpop.f32.mrf.mxu0
    %v3585 = vadd.f32 0.0, %v3584
    %3586 = vdwg.mxu0
    %3587 = vmatpush.msra.mxu0 0.0
    %3588 = vmatpush.msra.mxu0 0.0
    %3589 = vmatpush.msra.mxu0 0.0
    %3590 = vmatpush.msra.mxu0 0.0
    %3591 = vmatpush.msra.mxu0 0.0
    %3592 = vmatpush.msra.mxu0 0.0
    %3593 = vmatpush.msra.mxu0 0.0
    %3594 = vmatpush.msra.mxu0 0.0
    %3595 = vmatpush.msra.mxu0 0.0
    %3596 = vmatpush.msra.mxu0 0.0
    %3597 = vmatpush.msra.mxu0 0.0
    %3598 = vmatpush.msra.mxu0 0.0
    %3599 = vmatpush.msra.mxu0 %v3512
    %3600 = vmatpush.msra.mxu0 %v3511
    %3601 = vmatpush.msra.mxu0 %v3510
    %3602 = vmatpush.msra.mxu0 %v3509
    %3603 = vmatmul.f32.gmra.mxu0 %v3559
    %v3604 = vpop.f32.mrf.mxu0
    %v3605 = vadd.f32 0.0, %v3604
    %3606 = vmatmul.f32.gmra.mxu0 %v3562
    %v3607 = vpop.f32.mrf.mxu0
    %v3608 = vadd.f32 0.0, %v3607
    %3609 = vdwg.mxu0
    %v3611 = vsel %vm357, %v3553, 0
    %v3614 = vsel %vm357, %v3582, 0
    %3616 = vmatpush.xpose.msra.mxu0 0.0
    %3617 = vmatpush.xpose.msra.mxu0 0.0
    %3618 = vmatpush.xpose.msra.mxu0 0.0
    %3619 = vmatpush.xpose.msra.mxu0 0.0
    %3620 = vmatpush.xpose.msra.mxu0 0.0
    %3621 = vmatpush.xpose.msra.mxu0 0.0
    %3622 = vmatpush.xpose.msra.mxu0 0.0
    %3623 = vmatpush.xpose.msra.mxu0 0.0
    %3624 = vmatpush.xpose.msra.mxu0 0.0
    %3625 = vmatpush.xpose.msra.mxu0 0.0
    %3626 = vmatpush.xpose.msra.mxu0 0.0
    %3627 = vmatpush.xpose.msra.mxu0 0.0
    %3628 = vmatpush.xpose.msra.mxu0 0.0
    %3629 = vmatpush.xpose.msra.mxu0 0.0
    %3630 = vmatpush.xpose.msra.mxu0 0.0
    %3631 = vmatpush.xpose.msra.mxu0 %v3614
    %3632 = vmatmul.f32.gmra.mxu0 %v3611
    %v3633 = vpop.f32.mrf.mxu0
    %v3634 = vadd.f32 0.0, %v3633
    %3635 = vdwg.mxu0
    %v3637 = vsel %vm357, %v3556, 0
    %v3640 = vsel %vm357, %v3585, 0
    %3642 = vmatpush.xpose.msra.mxu0 0.0
    %3643 = vmatpush.xpose.msra.mxu0 0.0
    %3644 = vmatpush.xpose.msra.mxu0 0.0
    %3645 = vmatpush.xpose.msra.mxu0 0.0
    %3646 = vmatpush.xpose.msra.mxu0 0.0
    %3647 = vmatpush.xpose.msra.mxu0 0.0
    %3648 = vmatpush.xpose.msra.mxu0 0.0
    %3649 = vmatpush.xpose.msra.mxu0 0.0
    %3650 = vmatpush.xpose.msra.mxu0 0.0
    %3651 = vmatpush.xpose.msra.mxu0 0.0
    %3652 = vmatpush.xpose.msra.mxu0 0.0
    %3653 = vmatpush.xpose.msra.mxu0 0.0
    %3654 = vmatpush.xpose.msra.mxu0 0.0
    %3655 = vmatpush.xpose.msra.mxu0 0.0
    %3656 = vmatpush.xpose.msra.mxu0 0.0
    %3657 = vmatpush.xpose.msra.mxu0 %v3640
    %3658 = vmatmul.f32.gmra.mxu0 %v3637
    %v3659 = vpop.f32.mrf.mxu0
    %v3660 = vadd.f32 0.0, %v3659
    %3661 = vdwg.mxu0
    %v3662 = vsel %vm357, %v3634, -inf
    %3663 = vmax.xlane.f32.xlu0 %v3662
    %v3664 = vpop.xlane.xlu0 %3663
    %v3665 = vsel %vm357, %v3660, -inf
    %3666 = vmax.xlane.f32.xlu0 %v3665
    %v3667 = vpop.xlane.xlu0 %3666
    %v3668 = vsub.f32 %v3634, %v3664
    %v3669 = vsub.f32 %v3660, %v3667
    %v3670 = vmul.f32 %v3668, 1.442695
    %v3671 = vpow.pop %v3670
    %v3672 = vmul.f32 %v3669, 1.442695
    %v3673 = vpow.pop %v3672
    %v3674 = vsel %vm357, %v3671, 0.0
    %3675 = vadd.xlane.f32.xlu0 %v3674
    %v3676 = vpop.xlane.xlu0 %3675
    %v3677 = vsel %vm357, %v3673, 0.0
    %3678 = vadd.xlane.f32.xlu0 %v3677
    %v3679 = vpop.xlane.xlu0 %3678
    %v3680 = vrcp.pop %v3676
    %v3681 = vrcp.pop %v3679
    %v3682 = vmul.f32 %v3671, %v3680
    %v3683 = vmul.f32 %v3673, %v3681
    %v3685 = vsel %vm357, %v3682, 0
    %3687 = vmatpush.msra.mxu0 0.0
    %3688 = vmatpush.msra.mxu0 0.0
    %3689 = vmatpush.msra.mxu0 0.0
    %3690 = vmatpush.msra.mxu0 0.0
    %3691 = vmatpush.msra.mxu0 0.0
    %3692 = vmatpush.msra.mxu0 0.0
    %3693 = vmatpush.msra.mxu0 0.0
    %3694 = vmatpush.msra.mxu0 0.0
    %3695 = vmatpush.msra.mxu0 0.0
    %3696 = vmatpush.msra.mxu0 0.0
    %3697 = vmatpush.msra.mxu0 0.0
    %3698 = vmatpush.msra.mxu0 0.0
    %3699 = vmatpush.msra.mxu0 0.0
    %3700 = vmatpush.msra.mxu0 0.0
    %3701 = vmatpush.msra.mxu0 0.0
    %3702 = vmatpush.msra.mxu0 %v3605
    %3703 = vmatmul.f32.gmra.mxu0 %v3685
    %v3704 = vpop.f32.mrf.mxu0
    %v3705 = vadd.f32 0.0, %v3704
    %3706 = vdwg.mxu0
    %v3708 = vsel %vm357, %v3683, 0
    %3710 = vmatpush.msra.mxu0 0.0
    %3711 = vmatpush.msra.mxu0 0.0
    %3712 = vmatpush.msra.mxu0 0.0
    %3713 = vmatpush.msra.mxu0 0.0
    %3714 = vmatpush.msra.mxu0 0.0
    %3715 = vmatpush.msra.mxu0 0.0
    %3716 = vmatpush.msra.mxu0 0.0
    %3717 = vmatpush.msra.mxu0 0.0
    %3718 = vmatpush.msra.mxu0 0.0
    %3719 = vmatpush.msra.mxu0 0.0
    %3720 = vmatpush.msra.mxu0 0.0
    %3721 = vmatpush.msra.mxu0 0.0
    %3722 = vmatpush.msra.mxu0 0.0
    %3723 = vmatpush.msra.mxu0 0.0
    %3724 = vmatpush.msra.mxu0 0.0
    %3725 = vmatpush.msra.mxu0 %v3608
    %3726 = vmatmul.f32.gmra.mxu0 %v3708
    %v3727 = vpop.f32.mrf.mxu0
    %v3728 = vadd.f32 0.0, %v3727
    %3729 = vdwg.mxu0
    %3730 = vmatpush.msra.mxu0 0.0
    %3731 = vmatpush.msra.mxu0 0.0
    %3732 = vmatpush.msra.mxu0 0.0
    %3733 = vmatpush.msra.mxu0 0.0
    %3734 = vmatpush.msra.mxu0 0.0
    %3735 = vmatpush.msra.mxu0 0.0
    %3736 = vmatpush.msra.mxu0 0.0
    %3737 = vmatpush.msra.mxu0 0.0
    %3738 = vmatpush.msra.mxu0 0.0
    %3739 = vmatpush.msra.mxu0 0.0
    %3740 = vmatpush.msra.mxu0 0.0
    %3741 = vmatpush.msra.mxu0 0.0
    %3742 = vmatpush.msra.mxu0 %v3484
    %3743 = vmatpush.msra.mxu0 %v3483
    %3744 = vmatpush.msra.mxu0 %v3482
    %3745 = vmatpush.msra.mxu0 %v3481
    %3746 = vmatmul.f32.gmra.mxu0 %v3530
    %v3747 = vpop.f32.mrf.mxu0
    %v3748 = vadd.f32 0.0, %v3747
    %3749 = vmatmul.f32.gmra.mxu0 %v3533
    %v3750 = vpop.f32.mrf.mxu0
    %v3751 = vadd.f32 0.0, %v3750
    %3752 = vdwg.mxu0
    %3753 = vmatpush.msra.mxu0 0.0
    %3754 = vmatpush.msra.mxu0 0.0
    %3755 = vmatpush.msra.mxu0 0.0
    %3756 = vmatpush.msra.mxu0 0.0
    %3757 = vmatpush.msra.mxu0 0.0
    %3758 = vmatpush.msra.mxu0 0.0
    %3759 = vmatpush.msra.mxu0 0.0
    %3760 = vmatpush.msra.mxu0 0.0
    %3761 = vmatpush.msra.mxu0 0.0
    %3762 = vmatpush.msra.mxu0 0.0
    %3763 = vmatpush.msra.mxu0 0.0
    %3764 = vmatpush.msra.mxu0 0.0
    %3765 = vmatpush.msra.mxu0 %v3500
    %3766 = vmatpush.msra.mxu0 %v3499
    %3767 = vmatpush.msra.mxu0 %v3498
    %3768 = vmatpush.msra.mxu0 %v3497
    %3769 = vmatmul.f32.gmra.mxu0 %v3559
    %v3770 = vpop.f32.mrf.mxu0
    %v3771 = vadd.f32 0.0, %v3770
    %3772 = vmatmul.f32.gmra.mxu0 %v3562
    %v3773 = vpop.f32.mrf.mxu0
    %v3774 = vadd.f32 0.0, %v3773
    %3775 = vdwg.mxu0
    %3776 = vmatpush.msra.mxu0 0.0
    %3777 = vmatpush.msra.mxu0 0.0
    %3778 = vmatpush.msra.mxu0 0.0
    %3779 = vmatpush.msra.mxu0 0.0
    %3780 = vmatpush.msra.mxu0 0.0
    %3781 = vmatpush.msra.mxu0 0.0
    %3782 = vmatpush.msra.mxu0 0.0
    %3783 = vmatpush.msra.mxu0 0.0
    %3784 = vmatpush.msra.mxu0 0.0
    %3785 = vmatpush.msra.mxu0 0.0
    %3786 = vmatpush.msra.mxu0 0.0
    %3787 = vmatpush.msra.mxu0 0.0
    %3788 = vmatpush.msra.mxu0 %v3516
    %3789 = vmatpush.msra.mxu0 %v3515
    %3790 = vmatpush.msra.mxu0 %v3514
    %3791 = vmatpush.msra.mxu0 %v3513
    %3792 = vmatmul.f32.gmra.mxu0 %v3559
    %v3793 = vpop.f32.mrf.mxu0
    %v3794 = vadd.f32 0.0, %v3793
    %3795 = vmatmul.f32.gmra.mxu0 %v3562
    %v3796 = vpop.f32.mrf.mxu0
    %v3797 = vadd.f32 0.0, %v3796
    %3798 = vdwg.mxu0
    %v3800 = vsel %vm357, %v3748, 0
    %v3803 = vsel %vm357, %v3771, 0
    %3805 = vmatpush.xpose.msra.mxu0 0.0
    %3806 = vmatpush.xpose.msra.mxu0 0.0
    %3807 = vmatpush.xpose.msra.mxu0 0.0
    %3808 = vmatpush.xpose.msra.mxu0 0.0
    %3809 = vmatpush.xpose.msra.mxu0 0.0
    %3810 = vmatpush.xpose.msra.mxu0 0.0
    %3811 = vmatpush.xpose.msra.mxu0 0.0
    %3812 = vmatpush.xpose.msra.mxu0 0.0
    %3813 = vmatpush.xpose.msra.mxu0 0.0
    %3814 = vmatpush.xpose.msra.mxu0 0.0
    %3815 = vmatpush.xpose.msra.mxu0 0.0
    %3816 = vmatpush.xpose.msra.mxu0 0.0
    %3817 = vmatpush.xpose.msra.mxu0 0.0
    %3818 = vmatpush.xpose.msra.mxu0 0.0
    %3819 = vmatpush.xpose.msra.mxu0 0.0
    %3820 = vmatpush.xpose.msra.mxu0 %v3803
    %3821 = vmatmul.f32.gmra.mxu0 %v3800
    %v3822 = vpop.f32.mrf.mxu0
    %v3823 = vadd.f32 0.0, %v3822
    %3824 = vdwg.mxu0
    %v3826 = vsel %vm357, %v3751, 0
    %v3829 = vsel %vm357, %v3774, 0
    %3831 = vmatpush.xpose.msra.mxu0 0.0
    %3832 = vmatpush.xpose.msra.mxu0 0.0
    %3833 = vmatpush.xpose.msra.mxu0 0.0
    %3834 = vmatpush.xpose.msra.mxu0 0.0
    %3835 = vmatpush.xpose.msra.mxu0 0.0
    %3836 = vmatpush.xpose.msra.mxu0 0.0
    %3837 = vmatpush.xpose.msra.mxu0 0.0
    %3838 = vmatpush.xpose.msra.mxu0 0.0
    %3839 = vmatpush.xpose.msra.mxu0 0.0
    %3840 = vmatpush.xpose.msra.mxu0 0.0
    %3841 = vmatpush.xpose.msra.mxu0 0.0
    %3842 = vmatpush.xpose.msra.mxu0 0.0
    %3843 = vmatpush.xpose.msra.mxu0 0.0
    %3844 = vmatpush.xpose.msra.mxu0 0.0
    %3845 = vmatpush.xpose.msra.mxu0 0.0
    %3846 = vmatpush.xpose.msra.mxu0 %v3829
    %3847 = vmatmul.f32.gmra.mxu0 %v3826
    %v3848 = vpop.f32.mrf.mxu0
    %v3849 = vadd.f32 0.0, %v3848
    %3850 = vdwg.mxu0
    %v3851 = vsel %vm357, %v3823, -inf
    %3852 = vmax.xlane.f32.xlu0 %v3851
    %v3853 = vpop.xlane.xlu0 %3852
    %v3854 = vsel %vm357, %v3849, -inf
    %3855 = vmax.xlane.f32.xlu0 %v3854
    %v3856 = vpop.xlane.xlu0 %3855
    %v3857 = vsub.f32 %v3823, %v3853
    %v3858 = vsub.f32 %v3849, %v3856
    %v3859 = vmul.f32 %v3857, 1.442695
    %v3860 = vpow.pop %v3859
    %v3861 = vmul.f32 %v3858, 1.442695
    %v3862 = vpow.pop %v3861
    %v3863 = vsel %vm357, %v3860, 0.0
    %3864 = vadd.xlane.f32.xlu0 %v3863
    %v3865 = vpop.xlane.xlu0 %3864
    %v3866 = vsel %vm357, %v3862, 0.0
    %3867 = vadd.xlane.f32.xlu0 %v3866
    %v3868 = vpop.xlane.xlu0 %3867
    %v3869 = vrcp.pop %v3865
    %v3870 = vrcp.pop %v3868
    %v3871 = vmul.f32 %v3860, %v3869
    %v3872 = vmul.f32 %v3862, %v3870
    %v3874 = vsel %vm357, %v3871, 0
    %3876 = vmatpush.msra.mxu0 0.0
    %3877 = vmatpush.msra.mxu0 0.0
    %3878 = vmatpush.msra.mxu0 0.0
    %3879 = vmatpush.msra.mxu0 0.0
    %3880 = vmatpush.msra.mxu0 0.0
    %3881 = vmatpush.msra.mxu0 0.0
    %3882 = vmatpush.msra.mxu0 0.0
    %3883 = vmatpush.msra.mxu0 0.0
    %3884 = vmatpush.msra.mxu0 0.0
    %3885 = vmatpush.msra.mxu0 0.0
    %3886 = vmatpush.msra.mxu0 0.0
    %3887 = vmatpush.msra.mxu0 0.0
    %3888 = vmatpush.msra.mxu0 0.0
    %3889 = vmatpush.msra.mxu0 0.0
    %3890 = vmatpush.msra.mxu0 0.0
    %3891 = vmatpush.msra.mxu0 %v3794
    %3892 = vmatmul.f32.gmra.mxu0 %v3874
    %v3893 = vpop.f32.mrf.mxu0
    %v3894 = vadd.f32 0.0, %v3893
    %3895 = vdwg.mxu0
    %v3897 = vsel %vm357, %v3872, 0
    %3899 = vmatpush.msra.mxu0 0.0
    %3900 = vmatpush.msra.mxu0 0.0
    %3901 = vmatpush.msra.mxu0 0.0
    %3902 = vmatpush.msra.mxu0 0.0
    %3903 = vmatpush.msra.mxu0 0.0
    %3904 = vmatpush.msra.mxu0 0.0
    %3905 = vmatpush.msra.mxu0 0.0
    %3906 = vmatpush.msra.mxu0 0.0
    %3907 = vmatpush.msra.mxu0 0.0
    %3908 = vmatpush.msra.mxu0 0.0
    %3909 = vmatpush.msra.mxu0 0.0
    %3910 = vmatpush.msra.mxu0 0.0
    %3911 = vmatpush.msra.mxu0 0.0
    %3912 = vmatpush.msra.mxu0 0.0
    %3913 = vmatpush.msra.mxu0 0.0
    %3914 = vmatpush.msra.mxu0 %v3797
    %3915 = vmatmul.f32.gmra.mxu0 %v3897
    %v3916 = vpop.f32.mrf.mxu0
    %v3917 = vadd.f32 0.0, %v3916
    %3918 = vdwg.mxu0
    %v3920 = vsel %vm357, %v3894, 0
    %v3923 = vsel %vm357, %v3917, 0
    %3925 = vmatpush.msra.mxu0 0.0
    %3926 = vmatpush.msra.mxu0 0.0
    %3927 = vmatpush.msra.mxu0 0.0
    %3928 = vmatpush.msra.mxu0 0.0
    %3929 = vmatpush.msra.mxu0 0.0
    %3930 = vmatpush.msra.mxu0 0.0
    %3931 = vmatpush.msra.mxu0 0.0
    %3932 = vmatpush.msra.mxu0 0.0
    %3933 = vmatpush.msra.mxu0 0.0
    %3934 = vmatpush.msra.mxu0 0.0
    %3935 = vmatpush.msra.mxu0 0.0
    %3936 = vmatpush.msra.mxu0 0.0
    %3937 = vmatpush.msra.mxu0 0.0
    %3938 = vmatpush.msra.mxu0 0.0
    %3939 = vmatpush.msra.mxu0 0.0
    %3940 = vmatpush.msra.mxu0 %v3526
    %3941 = vmatmul.f32.gmra.mxu0 %v3920
    %v3942 = vpop.f32.mrf.mxu0
    %v3943 = vadd.f32 0.0, %v3942
    %3944 = vmatmul.f32.gmra.mxu0 %v3923
    %v3945 = vpop.f32.mrf.mxu0
    %v3946 = vadd.f32 0.0, %v3945
    %3947 = vdwg.mxu0
    %v3949 = vsel %vm357, %v3705, 0
    %v3952 = vsel %vm357, %v3728, 0
    %3954 = vmatpush.msra.mxu0 0.0
    %3955 = vmatpush.msra.mxu0 0.0
    %3956 = vmatpush.msra.mxu0 0.0
    %3957 = vmatpush.msra.mxu0 0.0
    %3958 = vmatpush.msra.mxu0 0.0
    %3959 = vmatpush.msra.mxu0 0.0
    %3960 = vmatpush.msra.mxu0 0.0
    %3961 = vmatpush.msra.mxu0 0.0
    %3962 = vmatpush.msra.mxu0 0.0
    %3963 = vmatpush.msra.mxu0 0.0
    %3964 = vmatpush.msra.mxu0 0.0
    %3965 = vmatpush.msra.mxu0 0.0
    %3966 = vmatpush.msra.mxu0 0.0
    %3967 = vmatpush.msra.mxu0 0.0
    %3968 = vmatpush.msra.mxu0 0.0
    %3969 = vmatpush.msra.mxu0 %v3525
    %3970 = vmatmul.f32.gmra.mxu0 %v3949
    %v3971 = vpop.f32.mrf.mxu0
    %v3972 = vadd.f32 %v3943, %v3971
    %3973 = vmatmul.f32.gmra.mxu0 %v3952
    %v3974 = vpop.f32.mrf.mxu0
    %v3975 = vadd.f32 %v3946, %v3974
    %3976 = vdwg.mxu0
    %3977 = vmatpush.msra.mxu0 0.0
    %3978 = vmatpush.msra.mxu0 0.0
    %3979 = vmatpush.msra.mxu0 0.0
    %3980 = vmatpush.msra.mxu0 0.0
    %3981 = vmatpush.msra.mxu0 0.0
    %3982 = vmatpush.msra.mxu0 0.0
    %3983 = vmatpush.msra.mxu0 0.0
    %3984 = vmatpush.msra.mxu0 0.0
    %3985 = vmatpush.msra.mxu0 0.0
    %3986 = vmatpush.msra.mxu0 0.0
    %3987 = vmatpush.msra.mxu0 0.0
    %3988 = vmatpush.msra.mxu0 0.0
    %3989 = vmatpush.msra.mxu0 %v3488
    %3990 = vmatpush.msra.mxu0 %v3487
    %3991 = vmatpush.msra.mxu0 %v3486
    %3992 = vmatpush.msra.mxu0 %v3485
    %3993 = vmatmul.f32.gmra.mxu0 %v3530
    %v3994 = vpop.f32.mrf.mxu0
    %v3995 = vadd.f32 0.0, %v3994
    %3996 = vmatmul.f32.gmra.mxu0 %v3533
    %v3997 = vpop.f32.mrf.mxu0
    %v3998 = vadd.f32 0.0, %v3997
    %3999 = vdwg.mxu0
    %4000 = vmatpush.msra.mxu0 0.0
    %4001 = vmatpush.msra.mxu0 0.0
    %4002 = vmatpush.msra.mxu0 0.0
    %4003 = vmatpush.msra.mxu0 0.0
    %4004 = vmatpush.msra.mxu0 0.0
    %4005 = vmatpush.msra.mxu0 0.0
    %4006 = vmatpush.msra.mxu0 0.0
    %4007 = vmatpush.msra.mxu0 0.0
    %4008 = vmatpush.msra.mxu0 0.0
    %4009 = vmatpush.msra.mxu0 0.0
    %4010 = vmatpush.msra.mxu0 0.0
    %4011 = vmatpush.msra.mxu0 0.0
    %4012 = vmatpush.msra.mxu0 %v3504
    %4013 = vmatpush.msra.mxu0 %v3503
    %4014 = vmatpush.msra.mxu0 %v3502
    %4015 = vmatpush.msra.mxu0 %v3501
    %4016 = vmatmul.f32.gmra.mxu0 %v3559
    %v4017 = vpop.f32.mrf.mxu0
    %v4018 = vadd.f32 0.0, %v4017
    %4019 = vmatmul.f32.gmra.mxu0 %v3562
    %v4020 = vpop.f32.mrf.mxu0
    %v4021 = vadd.f32 0.0, %v4020
    %4022 = vdwg.mxu0
    %4023 = vmatpush.msra.mxu0 0.0
    %4024 = vmatpush.msra.mxu0 0.0
    %4025 = vmatpush.msra.mxu0 0.0
    %4026 = vmatpush.msra.mxu0 0.0
    %4027 = vmatpush.msra.mxu0 0.0
    %4028 = vmatpush.msra.mxu0 0.0
    %4029 = vmatpush.msra.mxu0 0.0
    %4030 = vmatpush.msra.mxu0 0.0
    %4031 = vmatpush.msra.mxu0 0.0
    %4032 = vmatpush.msra.mxu0 0.0
    %4033 = vmatpush.msra.mxu0 0.0
    %4034 = vmatpush.msra.mxu0 0.0
    %4035 = vmatpush.msra.mxu0 %v3520
    %4036 = vmatpush.msra.mxu0 %v3519
    %4037 = vmatpush.msra.mxu0 %v3518
    %4038 = vmatpush.msra.mxu0 %v3517
    %4039 = vmatmul.f32.gmra.mxu0 %v3559
    %v4040 = vpop.f32.mrf.mxu0
    %v4041 = vadd.f32 0.0, %v4040
    %4042 = vmatmul.f32.gmra.mxu0 %v3562
    %v4043 = vpop.f32.mrf.mxu0
    %v4044 = vadd.f32 0.0, %v4043
    %4045 = vdwg.mxu0
    %v4047 = vsel %vm357, %v3995, 0
    %v4050 = vsel %vm357, %v4018, 0
    %4052 = vmatpush.xpose.msra.mxu0 0.0
    %4053 = vmatpush.xpose.msra.mxu0 0.0
    %4054 = vmatpush.xpose.msra.mxu0 0.0
    %4055 = vmatpush.xpose.msra.mxu0 0.0
    %4056 = vmatpush.xpose.msra.mxu0 0.0
    %4057 = vmatpush.xpose.msra.mxu0 0.0
    %4058 = vmatpush.xpose.msra.mxu0 0.0
    %4059 = vmatpush.xpose.msra.mxu0 0.0
    %4060 = vmatpush.xpose.msra.mxu0 0.0
    %4061 = vmatpush.xpose.msra.mxu0 0.0
    %4062 = vmatpush.xpose.msra.mxu0 0.0
    %4063 = vmatpush.xpose.msra.mxu0 0.0
    %4064 = vmatpush.xpose.msra.mxu0 0.0
    %4065 = vmatpush.xpose.msra.mxu0 0.0
    %4066 = vmatpush.xpose.msra.mxu0 0.0
    %4067 = vmatpush.xpose.msra.mxu0 %v4050
    %4068 = vmatmul.f32.gmra.mxu0 %v4047
    %v4069 = vpop.f32.mrf.mxu0
    %v4070 = vadd.f32 0.0, %v4069
    %4071 = vdwg.mxu0
    %v4073 = vsel %vm357, %v3998, 0
    %v4076 = vsel %vm357, %v4021, 0
    %4078 = vmatpush.xpose.msra.mxu0 0.0
    %4079 = vmatpush.xpose.msra.mxu0 0.0
    %4080 = vmatpush.xpose.msra.mxu0 0.0
    %4081 = vmatpush.xpose.msra.mxu0 0.0
    %4082 = vmatpush.xpose.msra.mxu0 0.0
    %4083 = vmatpush.xpose.msra.mxu0 0.0
    %4084 = vmatpush.xpose.msra.mxu0 0.0
    %4085 = vmatpush.xpose.msra.mxu0 0.0
    %4086 = vmatpush.xpose.msra.mxu0 0.0
    %4087 = vmatpush.xpose.msra.mxu0 0.0
    %4088 = vmatpush.xpose.msra.mxu0 0.0
    %4089 = vmatpush.xpose.msra.mxu0 0.0
    %4090 = vmatpush.xpose.msra.mxu0 0.0
    %4091 = vmatpush.xpose.msra.mxu0 0.0
    %4092 = vmatpush.xpose.msra.mxu0 0.0
    %4093 = vmatpush.xpose.msra.mxu0 %v4076
    %4094 = vmatmul.f32.gmra.mxu0 %v4073
    %v4095 = vpop.f32.mrf.mxu0
    %v4096 = vadd.f32 0.0, %v4095
    %4097 = vdwg.mxu0
    %v4098 = vsel %vm357, %v4070, -inf
    %4099 = vmax.xlane.f32.xlu0 %v4098
    %v4100 = vpop.xlane.xlu0 %4099
    %v4101 = vsel %vm357, %v4096, -inf
    %4102 = vmax.xlane.f32.xlu0 %v4101
    %v4103 = vpop.xlane.xlu0 %4102
    %v4104 = vsub.f32 %v4070, %v4100
    %v4105 = vsub.f32 %v4096, %v4103
    %v4106 = vmul.f32 %v4104, 1.442695
    %v4107 = vpow.pop %v4106
    %v4108 = vmul.f32 %v4105, 1.442695
    %v4109 = vpow.pop %v4108
    %v4110 = vsel %vm357, %v4107, 0.0
    %4111 = vadd.xlane.f32.xlu0 %v4110
    %v4112 = vpop.xlane.xlu0 %4111
    %v4113 = vsel %vm357, %v4109, 0.0
    %4114 = vadd.xlane.f32.xlu0 %v4113
    %v4115 = vpop.xlane.xlu0 %4114
    %v4116 = vrcp.pop %v4112
    %v4117 = vrcp.pop %v4115
    %v4118 = vmul.f32 %v4107, %v4116
    %v4119 = vmul.f32 %v4109, %v4117
    %v4121 = vsel %vm357, %v4118, 0
    %4123 = vmatpush.msra.mxu0 0.0
    %4124 = vmatpush.msra.mxu0 0.0
    %4125 = vmatpush.msra.mxu0 0.0
    %4126 = vmatpush.msra.mxu0 0.0
    %4127 = vmatpush.msra.mxu0 0.0
    %4128 = vmatpush.msra.mxu0 0.0
    %4129 = vmatpush.msra.mxu0 0.0
    %4130 = vmatpush.msra.mxu0 0.0
    %4131 = vmatpush.msra.mxu0 0.0
    %4132 = vmatpush.msra.mxu0 0.0
    %4133 = vmatpush.msra.mxu0 0.0
    %4134 = vmatpush.msra.mxu0 0.0
    %4135 = vmatpush.msra.mxu0 0.0
    %4136 = vmatpush.msra.mxu0 0.0
    %4137 = vmatpush.msra.mxu0 0.0
    %4138 = vmatpush.msra.mxu0 %v4041
    %4139 = vmatmul.f32.gmra.mxu0 %v4121
    %v4140 = vpop.f32.mrf.mxu0
    %v4141 = vadd.f32 0.0, %v4140
    %4142 = vdwg.mxu0
    %v4144 = vsel %vm357, %v4119, 0
    %4146 = vmatpush.msra.mxu0 0.0
    %4147 = vmatpush.msra.mxu0 0.0
    %4148 = vmatpush.msra.mxu0 0.0
    %4149 = vmatpush.msra.mxu0 0.0
    %4150 = vmatpush.msra.mxu0 0.0
    %4151 = vmatpush.msra.mxu0 0.0
    %4152 = vmatpush.msra.mxu0 0.0
    %4153 = vmatpush.msra.mxu0 0.0
    %4154 = vmatpush.msra.mxu0 0.0
    %4155 = vmatpush.msra.mxu0 0.0
    %4156 = vmatpush.msra.mxu0 0.0
    %4157 = vmatpush.msra.mxu0 0.0
    %4158 = vmatpush.msra.mxu0 0.0
    %4159 = vmatpush.msra.mxu0 0.0
    %4160 = vmatpush.msra.mxu0 0.0
    %4161 = vmatpush.msra.mxu0 %v4044
    %4162 = vmatmul.f32.gmra.mxu0 %v4144
    %v4163 = vpop.f32.mrf.mxu0
    %v4164 = vadd.f32 0.0, %v4163
    %4165 = vdwg.mxu0
    %v4167 = vsel %vm357, %v4141, 0
    %v4170 = vsel %vm357, %v4164, 0
    %4172 = vmatpush.msra.mxu0 0.0
    %4173 = vmatpush.msra.mxu0 0.0
    %4174 = vmatpush.msra.mxu0 0.0
    %4175 = vmatpush.msra.mxu0 0.0
    %4176 = vmatpush.msra.mxu0 0.0
    %4177 = vmatpush.msra.mxu0 0.0
    %4178 = vmatpush.msra.mxu0 0.0
    %4179 = vmatpush.msra.mxu0 0.0
    %4180 = vmatpush.msra.mxu0 0.0
    %4181 = vmatpush.msra.mxu0 0.0
    %4182 = vmatpush.msra.mxu0 0.0
    %4183 = vmatpush.msra.mxu0 0.0
    %4184 = vmatpush.msra.mxu0 0.0
    %4185 = vmatpush.msra.mxu0 0.0
    %4186 = vmatpush.msra.mxu0 0.0
    %4187 = vmatpush.msra.mxu0 %v3527
    %4188 = vmatmul.f32.gmra.mxu0 %v4167
    %v4189 = vpop.f32.mrf.mxu0
    %v4190 = vadd.f32 0.0, %v4189
    %4191 = vmatmul.f32.gmra.mxu0 %v4170
    %v4192 = vpop.f32.mrf.mxu0
    %v4193 = vadd.f32 0.0, %v4192
    %4194 = vdwg.mxu0
    %v4195 = vadd.f32 %v3972, %v4190
    %v4196 = vadd.f32 %v3975, %v4193
    %4197 = vmatpush.msra.mxu0 0.0
    %4198 = vmatpush.msra.mxu0 0.0
    %4199 = vmatpush.msra.mxu0 0.0
    %4200 = vmatpush.msra.mxu0 0.0
    %4201 = vmatpush.msra.mxu0 0.0
    %4202 = vmatpush.msra.mxu0 0.0
    %4203 = vmatpush.msra.mxu0 0.0
    %4204 = vmatpush.msra.mxu0 0.0
    %4205 = vmatpush.msra.mxu0 0.0
    %4206 = vmatpush.msra.mxu0 0.0
    %4207 = vmatpush.msra.mxu0 0.0
    %4208 = vmatpush.msra.mxu0 0.0
    %4209 = vmatpush.msra.mxu0 %v3492
    %4210 = vmatpush.msra.mxu0 %v3491
    %4211 = vmatpush.msra.mxu0 %v3490
    %4212 = vmatpush.msra.mxu0 %v3489
    %4213 = vmatmul.f32.gmra.mxu0 %v3530
    %v4214 = vpop.f32.mrf.mxu0
    %v4215 = vadd.f32 0.0, %v4214
    %4216 = vmatmul.f32.gmra.mxu0 %v3533
    %v4217 = vpop.f32.mrf.mxu0
    %v4218 = vadd.f32 0.0, %v4217
    %4219 = vdwg.mxu0
    %4220 = vmatpush.msra.mxu0 0.0
    %4221 = vmatpush.msra.mxu0 0.0
    %4222 = vmatpush.msra.mxu0 0.0
    %4223 = vmatpush.msra.mxu0 0.0
    %4224 = vmatpush.msra.mxu0 0.0
    %4225 = vmatpush.msra.mxu0 0.0
    %4226 = vmatpush.msra.mxu0 0.0
    %4227 = vmatpush.msra.mxu0 0.0
    %4228 = vmatpush.msra.mxu0 0.0
    %4229 = vmatpush.msra.mxu0 0.0
    %4230 = vmatpush.msra.mxu0 0.0
    %4231 = vmatpush.msra.mxu0 0.0
    %4232 = vmatpush.msra.mxu0 %v3508
    %4233 = vmatpush.msra.mxu0 %v3507
    %4234 = vmatpush.msra.mxu0 %v3506
    %4235 = vmatpush.msra.mxu0 %v3505
    %4236 = vmatmul.f32.gmra.mxu0 %v3559
    %v4237 = vpop.f32.mrf.mxu0
    %v4238 = vadd.f32 0.0, %v4237
    %4239 = vmatmul.f32.gmra.mxu0 %v3562
    %v4240 = vpop.f32.mrf.mxu0
    %v4241 = vadd.f32 0.0, %v4240
    %4242 = vdwg.mxu0
    %4243 = vmatpush.msra.mxu0 0.0
    %4244 = vmatpush.msra.mxu0 0.0
    %4245 = vmatpush.msra.mxu0 0.0
    %4246 = vmatpush.msra.mxu0 0.0
    %4247 = vmatpush.msra.mxu0 0.0
    %4248 = vmatpush.msra.mxu0 0.0
    %4249 = vmatpush.msra.mxu0 0.0
    %4250 = vmatpush.msra.mxu0 0.0
    %4251 = vmatpush.msra.mxu0 0.0
    %4252 = vmatpush.msra.mxu0 0.0
    %4253 = vmatpush.msra.mxu0 0.0
    %4254 = vmatpush.msra.mxu0 0.0
    %4255 = vmatpush.msra.mxu0 %v3524
    %4256 = vmatpush.msra.mxu0 %v3523
    %4257 = vmatpush.msra.mxu0 %v3522
    %4258 = vmatpush.msra.mxu0 %v3521
    %4259 = vmatmul.f32.gmra.mxu0 %v3559
    %v4260 = vpop.f32.mrf.mxu0
    %v4261 = vadd.f32 0.0, %v4260
    %4262 = vmatmul.f32.gmra.mxu0 %v3562
    %v4263 = vpop.f32.mrf.mxu0
    %v4264 = vadd.f32 0.0, %v4263
    %4265 = vdwg.mxu0
    %v4267 = vsel %vm357, %v4215, 0
    %v4270 = vsel %vm357, %v4238, 0
    %4272 = vmatpush.xpose.msra.mxu0 0.0
    %4273 = vmatpush.xpose.msra.mxu0 0.0
    %4274 = vmatpush.xpose.msra.mxu0 0.0
    %4275 = vmatpush.xpose.msra.mxu0 0.0
    %4276 = vmatpush.xpose.msra.mxu0 0.0
    %4277 = vmatpush.xpose.msra.mxu0 0.0
    %4278 = vmatpush.xpose.msra.mxu0 0.0
    %4279 = vmatpush.xpose.msra.mxu0 0.0
    %4280 = vmatpush.xpose.msra.mxu0 0.0
    %4281 = vmatpush.xpose.msra.mxu0 0.0
    %4282 = vmatpush.xpose.msra.mxu0 0.0
    %4283 = vmatpush.xpose.msra.mxu0 0.0
    %4284 = vmatpush.xpose.msra.mxu0 0.0
    %4285 = vmatpush.xpose.msra.mxu0 0.0
    %4286 = vmatpush.xpose.msra.mxu0 0.0
    %4287 = vmatpush.xpose.msra.mxu0 %v4270
    %4288 = vmatmul.f32.gmra.mxu0 %v4267
    %v4289 = vpop.f32.mrf.mxu0
    %v4290 = vadd.f32 0.0, %v4289
    %4291 = vdwg.mxu0
    %v4293 = vsel %vm357, %v4218, 0
    %v4296 = vsel %vm357, %v4241, 0
    %4298 = vmatpush.xpose.msra.mxu0 0.0
    %4299 = vmatpush.xpose.msra.mxu0 0.0
    %4300 = vmatpush.xpose.msra.mxu0 0.0
    %4301 = vmatpush.xpose.msra.mxu0 0.0
    %4302 = vmatpush.xpose.msra.mxu0 0.0
    %4303 = vmatpush.xpose.msra.mxu0 0.0
    %4304 = vmatpush.xpose.msra.mxu0 0.0
    %4305 = vmatpush.xpose.msra.mxu0 0.0
    %4306 = vmatpush.xpose.msra.mxu0 0.0
    %4307 = vmatpush.xpose.msra.mxu0 0.0
    %4308 = vmatpush.xpose.msra.mxu0 0.0
    %4309 = vmatpush.xpose.msra.mxu0 0.0
    %4310 = vmatpush.xpose.msra.mxu0 0.0
    %4311 = vmatpush.xpose.msra.mxu0 0.0
    %4312 = vmatpush.xpose.msra.mxu0 0.0
    %4313 = vmatpush.xpose.msra.mxu0 %v4296
    %4314 = vmatmul.f32.gmra.mxu0 %v4293
    %v4315 = vpop.f32.mrf.mxu0
    %v4316 = vadd.f32 0.0, %v4315
    %4317 = vdwg.mxu0
    %v4318 = vsel %vm357, %v4290, -inf
    %4319 = vmax.xlane.f32.xlu0 %v4318
    %v4320 = vpop.xlane.xlu0 %4319
    %v4321 = vsel %vm357, %v4316, -inf
    %4322 = vmax.xlane.f32.xlu0 %v4321
    %v4323 = vpop.xlane.xlu0 %4322
    %v4324 = vsub.f32 %v4290, %v4320
    %v4325 = vsub.f32 %v4316, %v4323
    %v4326 = vmul.f32 %v4324, 1.442695
    %v4327 = vpow.pop %v4326
    %v4328 = vmul.f32 %v4325, 1.442695
    %v4329 = vpow.pop %v4328
    %v4330 = vsel %vm357, %v4327, 0.0
    %4331 = vadd.xlane.f32.xlu0 %v4330
    %v4332 = vpop.xlane.xlu0 %4331
    %v4333 = vsel %vm357, %v4329, 0.0
    %4334 = vadd.xlane.f32.xlu0 %v4333
    %v4335 = vpop.xlane.xlu0 %4334
    %v4336 = vrcp.pop %v4332
    %v4337 = vrcp.pop %v4335
    %v4338 = vmul.f32 %v4327, %v4336
    %v4339 = vmul.f32 %v4329, %v4337
    %v4341 = vsel %vm357, %v4338, 0
    %4343 = vmatpush.msra.mxu0 0.0
    %4344 = vmatpush.msra.mxu0 0.0
    %4345 = vmatpush.msra.mxu0 0.0
    %4346 = vmatpush.msra.mxu0 0.0
    %4347 = vmatpush.msra.mxu0 0.0
    %4348 = vmatpush.msra.mxu0 0.0
    %4349 = vmatpush.msra.mxu0 0.0
    %4350 = vmatpush.msra.mxu0 0.0
    %4351 = vmatpush.msra.mxu0 0.0
    %4352 = vmatpush.msra.mxu0 0.0
    %4353 = vmatpush.msra.mxu0 0.0
    %4354 = vmatpush.msra.mxu0 0.0
    %4355 = vmatpush.msra.mxu0 0.0
    %4356 = vmatpush.msra.mxu0 0.0
    %4357 = vmatpush.msra.mxu0 0.0
    %4358 = vmatpush.msra.mxu0 %v4261
    %4359 = vmatmul.f32.gmra.mxu0 %v4341
    %v4360 = vpop.f32.mrf.mxu0
    %v4361 = vadd.f32 0.0, %v4360
    %4362 = vdwg.mxu0
    %v4364 = vsel %vm357, %v4339, 0
    %4366 = vmatpush.msra.mxu0 0.0
    %4367 = vmatpush.msra.mxu0 0.0
    %4368 = vmatpush.msra.mxu0 0.0
    %4369 = vmatpush.msra.mxu0 0.0
    %4370 = vmatpush.msra.mxu0 0.0
    %4371 = vmatpush.msra.mxu0 0.0
    %4372 = vmatpush.msra.mxu0 0.0
    %4373 = vmatpush.msra.mxu0 0.0
    %4374 = vmatpush.msra.mxu0 0.0
    %4375 = vmatpush.msra.mxu0 0.0
    %4376 = vmatpush.msra.mxu0 0.0
    %4377 = vmatpush.msra.mxu0 0.0
    %4378 = vmatpush.msra.mxu0 0.0
    %4379 = vmatpush.msra.mxu0 0.0
    %4380 = vmatpush.msra.mxu0 0.0
    %4381 = vmatpush.msra.mxu0 %v4264
    %4382 = vmatmul.f32.gmra.mxu0 %v4364
    %v4383 = vpop.f32.mrf.mxu0
    %v4384 = vadd.f32 0.0, %v4383
    %4385 = vdwg.mxu0
    %v4387 = vsel %vm357, %v4361, 0
    %v4390 = vsel %vm357, %v4384, 0
    %4392 = vmatpush.msra.mxu0 0.0
    %4393 = vmatpush.msra.mxu0 0.0
    %4394 = vmatpush.msra.mxu0 0.0
    %4395 = vmatpush.msra.mxu0 0.0
    %4396 = vmatpush.msra.mxu0 0.0
    %4397 = vmatpush.msra.mxu0 0.0
    %4398 = vmatpush.msra.mxu0 0.0
    %4399 = vmatpush.msra.mxu0 0.0
    %4400 = vmatpush.msra.mxu0 0.0
    %4401 = vmatpush.msra.mxu0 0.0
    %4402 = vmatpush.msra.mxu0 0.0
    %4403 = vmatpush.msra.mxu0 0.0
    %4404 = vmatpush.msra.mxu0 0.0
    %4405 = vmatpush.msra.mxu0 0.0
    %4406 = vmatpush.msra.mxu0 0.0
    %4407 = vmatpush.msra.mxu0 %v3528
    %4408 = vmatmul.f32.gmra.mxu0 %v4387
    %v4409 = vpop.f32.mrf.mxu0
    %v4410 = vadd.f32 0.0, %v4409
    %4411 = vmatmul.f32.gmra.mxu0 %v4390
    %v4412 = vpop.f32.mrf.mxu0
    %v4413 = vadd.f32 0.0, %v4412
    %4414 = vdwg.mxu0
    %v4415 = vadd.f32 %v4195, %v4410
    %v4416 = vadd.f32 %v4196, %v4413
    %v4417 = vadd.f32 %v3435, %v4415
    %v4418 = vadd.f32 %v3436, %v4416
    %v4419 = vld [vmem:[%s49] sm:$0x1]
    %v4420 = vmul.f32 %v4417, %v4417
    %v4421 = vmul.f32 %v4418, %v4418
    %v4422 = vsel %vm185, %v4420, 0.0
    %4423 = vadd.xlane.f32.xlu0 %v4422
    %v4424 = vpop.xlane.xlu0 %4423
    %v4425 = vsel %vm185, %v4421, 0.0
    %4426 = vadd.xlane.f32.xlu0 %v4425
    %v4427 = vpop.xlane.xlu0 %4426
    %v4428 = vmul.f32 %v4424, %v198
    %v4429 = vmul.f32 %v4427, %v198
    %v4430 = vadd.f32 %v4428, 1e-06
    %v4431 = vadd.f32 %v4429, 1e-06
    %v4432 = vrsqrt.pop %v4430
    %v4433 = vmul.f32 %v4432, %v4430
    %v4434 = vmul.f32 %v4433, %v4432
    %v4435 = vmul.f32 0.5, %v4434
    %v4436 = vsub.f32 1.5, %v4435
    %v4437 = vmul.f32 %v4432, %v4436
    %vm4438 = vweird.f32 %v4430
    %vm4439 = vweird.f32 %v4432
    %vm4440 = vmor %vm4438, %vm4439
    %v4441 = vsel %vm4440, %v4432, %v4437
    %v4442 = vrsqrt.pop %v4431
    %v4443 = vmul.f32 %v4442, %v4431
    %v4444 = vmul.f32 %v4443, %v4442
    %v4445 = vmul.f32 0.5, %v4444
    %v4446 = vsub.f32 1.5, %v4445
    %v4447 = vmul.f32 %v4442, %v4446
    %vm4448 = vweird.f32 %v4431
    %vm4449 = vweird.f32 %v4442
    %vm4450 = vmor %vm4448, %vm4449
    %v4451 = vsel %vm4450, %v4442, %v4447
    %v4452 = vmul.f32 %v4417, %v4441
    %v4453 = vmul.f32 %v4418, %v4451
    %v4455 = vperm.slane %v4419, 0
    %v4457 = vmul.f32 %v4452, %v4455
    %v4458 = vmul.f32 %v4453, %v4455
    %v4459 = vld [vmem:[%s51] sm:$0xff]
    %v4460 = vld [vmem:[%s51 + $0x8] sm:$0xff]
    %v4461 = vld [vmem:[%s51 + $0x10] sm:$0xff]
    %v4462 = vld [vmem:[%s51 + $0x18] sm:$0xff]
    %v4464 = vsel %vm185, %v4457, 0
    %v4467 = vsel %vm185, %v4458, 0
    %4469 = vmatpush.msra.mxu0 0.0
    %4470 = vmatpush.msra.mxu0 0.0
    %4471 = vmatpush.msra.mxu0 0.0
    %4472 = vmatpush.msra.mxu0 0.0
    %4473 = vmatpush.msra.mxu0 0.0
    %4474 = vmatpush.msra.mxu0 0.0
    %4475 = vmatpush.msra.mxu0 0.0
    %4476 = vmatpush.msra.mxu0 0.0
    %4477 = vmatpush.msra.mxu0 0.0
    %4478 = vmatpush.msra.mxu0 0.0
    %4479 = vmatpush.msra.mxu0 0.0
    %4480 = vmatpush.msra.mxu0 0.0
    %4481 = vmatpush.msra.mxu0 %v4462
    %4482 = vmatpush.msra.mxu0 %v4461
    %4483 = vmatpush.msra.mxu0 %v4460
    %4484 = vmatpush.msra.mxu0 %v4459
    %4485 = vmatmul.f32.gmra.mxu0 %v4464
    %v4486 = vpop.f32.mrf.mxu0
    %v4487 = vadd.f32 0.0, %v4486
    %4488 = vmatmul.f32.gmra.mxu0 %v4467
    %v4489 = vpop.f32.mrf.mxu0
    %v4490 = vadd.f32 0.0, %v4489
    %4491 = vdwg.mxu0
    %v4492 = vmax.f32 %v4487, 0.0
    %v4493 = vmax.f32 %v4490, 0.0
    %v4494 = vld [vmem:[%s53] sm:$0xff]
    %v4495 = vld [vmem:[%s53 + $0x8] sm:$0xff]
    %v4496 = vld [vmem:[%s53 + $0x10] sm:$0xff]
    %v4497 = vld [vmem:[%s53 + $0x18] sm:$0xff]
    %v4498 = vld [vmem:[%s53 + $0x20] sm:$0xff]
    %v4499 = vld [vmem:[%s53 + $0x28] sm:$0xff]
    %v4500 = vld [vmem:[%s53 + $0x30] sm:$0xff]
    %v4501 = vld [vmem:[%s53 + $0x38] sm:$0xff]
    %v4503 = vsel %vm1250, %v4492, 0
    %v4506 = vsel %vm1250, %v4493, 0
    %4508 = vmatpush.msra.mxu0 0.0
    %4509 = vmatpush.msra.mxu0 0.0
    %4510 = vmatpush.msra.mxu0 0.0
    %4511 = vmatpush.msra.mxu0 0.0
    %4512 = vmatpush.msra.mxu0 0.0
    %4513 = vmatpush.msra.mxu0 0.0
    %4514 = vmatpush.msra.mxu0 0.0
    %4515 = vmatpush.msra.mxu0 0.0
    %4516 = vmatpush.msra.mxu0 %v4501
    %4517 = vmatpush.msra.mxu0 %v4500
    %4518 = vmatpush.msra.mxu0 %v4499
    %4519 = vmatpush.msra.mxu0 %v4498
    %4520 = vmatpush.msra.mxu0 %v4497
    %4521 = vmatpush.msra.mxu0 %v4496
    %4522 = vmatpush.msra.mxu0 %v4495
    %4523 = vmatpush.msra.mxu0 %v4494
    %4524 = vmatmul.f32.gmra.mxu0 %v4503
    %v4525 = vpop.f32.mrf.mxu0
    %v4526 = vadd.f32 0.0, %v4525
    %4527 = vmatmul.f32.gmra.mxu0 %v4506
    %v4528 = vpop.f32.mrf.mxu0
    %v4529 = vadd.f32 0.0, %v4528
    %4530 = vdwg.mxu0
    %v4531 = vadd.f32 %v4417, %v4526
    %v4532 = vadd.f32 %v4418, %v4529
    %s4533 = scalar_lea.vmem %s29, 1
    %v4534 = vld [vmem:[%s4533] sm:$0x1]
    %v4535 = vmul.f32 %v4531, %v4531
    %v4536 = vmul.f32 %v4532, %v4532
    %v4537 = vsel %vm185, %v4535, 0.0
    %4538 = vadd.xlane.f32.xlu0 %v4537
    %v4539 = vpop.xlane.xlu0 %4538
    %v4540 = vsel %vm185, %v4536, 0.0
    %4541 = vadd.xlane.f32.xlu0 %v4540
    %v4542 = vpop.xlane.xlu0 %4541
    %v4543 = vmul.f32 %v4539, %v198
    %v4544 = vmul.f32 %v4542, %v198
    %v4545 = vadd.f32 %v4543, 1e-06
    %v4546 = vadd.f32 %v4544, 1e-06
    %v4547 = vrsqrt.pop %v4545
    %v4548 = vmul.f32 %v4547, %v4545
    %v4549 = vmul.f32 %v4548, %v4547
    %v4550 = vmul.f32 0.5, %v4549
    %v4551 = vsub.f32 1.5, %v4550
    %v4552 = vmul.f32 %v4547, %v4551
    %vm4553 = vweird.f32 %v4545
    %vm4554 = vweird.f32 %v4547
    %vm4555 = vmor %vm4553, %vm4554
    %v4556 = vsel %vm4555, %v4547, %v4552
    %v4557 = vrsqrt.pop %v4546
    %v4558 = vmul.f32 %v4557, %v4546
    %v4559 = vmul.f32 %v4558, %v4557
    %v4560 = vmul.f32 0.5, %v4559
    %v4561 = vsub.f32 1.5, %v4560
    %v4562 = vmul.f32 %v4557, %v4561
    %vm4563 = vweird.f32 %v4546
    %vm4564 = vweird.f32 %v4557
    %vm4565 = vmor %vm4563, %vm4564
    %v4566 = vsel %vm4565, %v4557, %v4562
    %v4567 = vmul.f32 %v4531, %v4556
    %v4568 = vmul.f32 %v4532, %v4566
    %v4570 = vperm.slane %v4534, 0
    %v4572 = vmul.f32 %v4567, %v4570
    %v4573 = vmul.f32 %v4568, %v4570
    %s4574 = scalar_lea.vmem %s31, 128
    %v4575 = vld [vmem:[%s4574] sm:$0xff]
    %v4576 = vld [vmem:[%s4574 + $0x8] sm:$0xff]
    %v4577 = vld [vmem:[%s4574 + $0x10] sm:$0xff]
    %v4578 = vld [vmem:[%s4574 + $0x18] sm:$0xff]
    %v4579 = vld [vmem:[%s4574 + $0x20] sm:$0xff]
    %v4580 = vld [vmem:[%s4574 + $0x28] sm:$0xff]
    %v4581 = vld [vmem:[%s4574 + $0x30] sm:$0xff]
    %v4582 = vld [vmem:[%s4574 + $0x38] sm:$0xff]
    %v4583 = vld [vmem:[%s4574 + $0x40] sm:$0xff]
    %v4584 = vld [vmem:[%s4574 + $0x48] sm:$0xff]
    %v4585 = vld [vmem:[%s4574 + $0x50] sm:$0xff]
    %v4586 = vld [vmem:[%s4574 + $0x58] sm:$0xff]
    %v4587 = vld [vmem:[%s4574 + $0x60] sm:$0xff]
    %v4588 = vld [vmem:[%s4574 + $0x68] sm:$0xff]
    %v4589 = vld [vmem:[%s4574 + $0x70] sm:$0xff]
    %v4590 = vld [vmem:[%s4574 + $0x78] sm:$0xff]
    %s4591 = scalar_lea.vmem %s33, 128
    %v4592 = vld [vmem:[%s4591] sm:$0xff]
    %v4593 = vld [vmem:[%s4591 + $0x8] sm:$0xff]
    %v4594 = vld [vmem:[%s4591 + $0x10] sm:$0xff]
    %v4595 = vld [vmem:[%s4591 + $0x18] sm:$0xff]
    %v4596 = vld [vmem:[%s4591 + $0x20] sm:$0xff]
    %v4597 = vld [vmem:[%s4591 + $0x28] sm:$0xff]
    %v4598 = vld [vmem:[%s4591 + $0x30] sm:$0xff]
    %v4599 = vld [vmem:[%s4591 + $0x38] sm:$0xff]
    %v4600 = vld [vmem:[%s4591 + $0x40] sm:$0xff]
    %v4601 = vld [vmem:[%s4591 + $0x48] sm:$0xff]
    %v4602 = vld [vmem:[%s4591 + $0x50] sm:$0xff]
    %v4603 = vld [vmem:[%s4591 + $0x58] sm:$0xff]
    %v4604 = vld [vmem:[%s4591 + $0x60] sm:$0xff]
    %v4605 = vld [vmem:[%s4591 + $0x68] sm:$0xff]
    %v4606 = vld [vmem:[%s4591 + $0x70] sm:$0xff]
    %v4607 = vld [vmem:[%s4591 + $0x78] sm:$0xff]
    %s4608 = scalar_lea.vmem %s35, 128
    %v4609 = vld [vmem:[%s4608] sm:$0xff]
    %v4610 = vld [vmem:[%s4608 + $0x8] sm:$0xff]
    %v4611 = vld [vmem:[%s4608 + $0x10] sm:$0xff]
    %v4612 = vld [vmem:[%s4608 + $0x18] sm:$0xff]
    %v4613 = vld [vmem:[%s4608 + $0x20] sm:$0xff]
    %v4614 = vld [vmem:[%s4608 + $0x28] sm:$0xff]
    %v4615 = vld [vmem:[%s4608 + $0x30] sm:$0xff]
    %v4616 = vld [vmem:[%s4608 + $0x38] sm:$0xff]
    %v4617 = vld [vmem:[%s4608 + $0x40] sm:$0xff]
    %v4618 = vld [vmem:[%s4608 + $0x48] sm:$0xff]
    %v4619 = vld [vmem:[%s4608 + $0x50] sm:$0xff]
    %v4620 = vld [vmem:[%s4608 + $0x58] sm:$0xff]
    %v4621 = vld [vmem:[%s4608 + $0x60] sm:$0xff]
    %v4622 = vld [vmem:[%s4608 + $0x68] sm:$0xff]
    %v4623 = vld [vmem:[%s4608 + $0x70] sm:$0xff]
    %v4624 = vld [vmem:[%s4608 + $0x78] sm:$0xff]
    %s4625 = scalar_lea.vmem %s37, 32
    %v4626 = vld [vmem:[%s4625] sm:$0xff]
    %v4627 = vld [vmem:[%s4625 + $0x8] sm:$0xff]
    %v4628 = vld [vmem:[%s4625 + $0x10] sm:$0xff]
    %v4629 = vld [vmem:[%s4625 + $0x18] sm:$0xff]
    %v4631 = vsel %vm185, %v4572, 0
    %v4634 = vsel %vm185, %v4573, 0
    %4636 = vmatpush.msra.mxu0 0.0
    %4637 = vmatpush.msra.mxu0 0.0
    %4638 = vmatpush.msra.mxu0 0.0
    %4639 = vmatpush.msra.mxu0 0.0
    %4640 = vmatpush.msra.mxu0 0.0
    %4641 = vmatpush.msra.mxu0 0.0
    %4642 = vmatpush.msra.mxu0 0.0
    %4643 = vmatpush.msra.mxu0 0.0
    %4644 = vmatpush.msra.mxu0 0.0
    %4645 = vmatpush.msra.mxu0 0.0
    %4646 = vmatpush.msra.mxu0 0.0
    %4647 = vmatpush.msra.mxu0 0.0
    %4648 = vmatpush.msra.mxu0 %v4578
    %4649 = vmatpush.msra.mxu0 %v4577
    %4650 = vmatpush.msra.mxu0 %v4576
    %4651 = vmatpush.msra.mxu0 %v4575
    %4652 = vmatmul.f32.gmra.mxu0 %v4631
    %v4653 = vpop.f32.mrf.mxu0
    %v4654 = vadd.f32 0.0, %v4653
    %4655 = vmatmul.f32.gmra.mxu0 %v4634
    %v4656 = vpop.f32.mrf.mxu0
    %v4657 = vadd.f32 0.0, %v4656
    %4658 = vdwg.mxu0
    %4659 = vmatpush.msra.mxu0 0.0
    %4660 = vmatpush.msra.mxu0 0.0
    %4661 = vmatpush.msra.mxu0 0.0
    %4662 = vmatpush.msra.mxu0 0.0
    %4663 = vmatpush.msra.mxu0 0.0
    %4664 = vmatpush.msra.mxu0 0.0
    %4665 = vmatpush.msra.mxu0 0.0
    %4666 = vmatpush.msra.mxu0 0.0
    %4667 = vmatpush.msra.mxu0 0.0
    %4668 = vmatpush.msra.mxu0 0.0
    %4669 = vmatpush.msra.mxu0 0.0
    %4670 = vmatpush.msra.mxu0 0.0
    %4671 = vmatpush.msra.mxu0 %v4595
    %4672 = vmatpush.msra.mxu0 %v4594
    %4673 = vmatpush.msra.mxu0 %v4593
    %4674 = vmatpush.msra.mxu0 %v4592
    %4675 = vmatmul.f32.gmra.mxu0 %v4631
    %v4676 = vpop.f32.mrf.mxu0
    %v4677 = vadd.f32 0.0, %v4676
    %4678 = vmatmul.f32.gmra.mxu0 %v4634
    %v4679 = vpop.f32.mrf.mxu0
    %v4680 = vadd.f32 0.0, %v4679
    %4681 = vdwg.mxu0
    %4682 = vmatpush.msra.mxu0 0.0
    %4683 = vmatpush.msra.mxu0 0.0
    %4684 = vmatpush.msra.mxu0 0.0
    %4685 = vmatpush.msra.mxu0 0.0
    %4686 = vmatpush.msra.mxu0 0.0
    %4687 = vmatpush.msra.mxu0 0.0
    %4688 = vmatpush.msra.mxu0 0.0
    %4689 = vmatpush.msra.mxu0 0.0
    %4690 = vmatpush.msra.mxu0 0.0
    %4691 = vmatpush.msra.mxu0 0.0
    %4692 = vmatpush.msra.mxu0 0.0
    %4693 = vmatpush.msra.mxu0 0.0
    %4694 = vmatpush.msra.mxu0 %v4612
    %4695 = vmatpush.msra.mxu0 %v4611
    %4696 = vmatpush.msra.mxu0 %v4610
    %4697 = vmatpush.msra.mxu0 %v4609
    %4698 = vmatmul.f32.gmra.mxu0 %v4631
    %v4699 = vpop.f32.mrf.mxu0
    %v4700 = vadd.f32 0.0, %v4699
    %4701 = vmatmul.f32.gmra.mxu0 %v4634
    %v4702 = vpop.f32.mrf.mxu0
    %v4703 = vadd.f32 0.0, %v4702
    %4704 = vdwg.mxu0
    %v4706 = vsel %vm357, %v4654, 0
    %v4709 = vsel %vm357, %v4677, 0
    %4711 = vmatpush.xpose.msra.mxu0 0.0
    %4712 = vmatpush.xpose.msra.mxu0 0.0
    %4713 = vmatpush.xpose.msra.mxu0 0.0
    %4714 = vmatpush.xpose.msra.mxu0 0.0
    %4715 = vmatpush.xpose.msra.mxu0 0.0
    %4716 = vmatpush.xpose.msra.mxu0 0.0
    %4717 = vmatpush.xpose.msra.mxu0 0.0
    %4718 = vmatpush.xpose.msra.mxu0 0.0
    %4719 = vmatpush.xpose.msra.mxu0 0.0
    %4720 = vmatpush.xpose.msra.mxu0 0.0
    %4721 = vmatpush.xpose.msra.mxu0 0.0
    %4722 = vmatpush.xpose.msra.mxu0 0.0
    %4723 = vmatpush.xpose.msra.mxu0 0.0
    %4724 = vmatpush.xpose.msra.mxu0 0.0
    %4725 = vmatpush.xpose.msra.mxu0 0.0
    %4726 = vmatpush.xpose.msra.mxu0 %v4709
    %4727 = vmatmul.f32.gmra.mxu0 %v4706
    %v4728 = vpop.f32.mrf.mxu0
    %v4729 = vadd.f32 %v2457, %v4728
    %4730 = vdwg.mxu0
    %v4732 = vsel %vm357, %v4657, 0
    %v4735 = vsel %vm357, %v4680, 0
    %4737 = vmatpush.xpose.msra.mxu0 0.0
    %4738 = vmatpush.xpose.msra.mxu0 0.0
    %4739 = vmatpush.xpose.msra.mxu0 0.0
    %4740 = vmatpush.xpose.msra.mxu0 0.0
    %4741 = vmatpush.xpose.msra.mxu0 0.0
    %4742 = vmatpush.xpose.msra.mxu0 0.0
    %4743 = vmatpush.xpose.msra.mxu0 0.0
    %4744 = vmatpush.xpose.msra.mxu0 0.0
    %4745 = vmatpush.xpose.msra.mxu0 0.0
    %4746 = vmatpush.xpose.msra.mxu0 0.0
    %4747 = vmatpush.xpose.msra.mxu0 0.0
    %4748 = vmatpush.xpose.msra.mxu0 0.0
    %4749 = vmatpush.xpose.msra.mxu0 0.0
    %4750 = vmatpush.xpose.msra.mxu0 0.0
    %4751 = vmatpush.xpose.msra.mxu0 0.0
    %4752 = vmatpush.xpose.msra.mxu0 %v4735
    %4753 = vmatmul.f32.gmra.mxu0 %v4732
    %v4754 = vpop.f32.mrf.mxu0
    %v4755 = vadd.f32 %v2457, %v4754
    %4756 = vdwg.mxu0
    %v4757 = vsel %vm357, %v4729, -inf
    %4758 = vmax.xlane.f32.xlu0 %v4757
    %v4759 = vpop.xlane.xlu0 %4758
    %v4760 = vsel %vm357, %v4755, -inf
    %4761 = vmax.xlane.f32.xlu0 %v4760
    %v4762 = vpop.xlane.xlu0 %4761
    %v4763 = vsub.f32 %v4729, %v4759
    %v4764 = vsub.f32 %v4755, %v4762
    %v4765 = vmul.f32 %v4763, 1.442695
    %v4766 = vpow.pop %v4765
    %v4767 = vmul.f32 %v4764, 1.442695
    %v4768 = vpow.pop %v4767
    %v4769 = vsel %vm357, %v4766, 0.0
    %4770 = vadd.xlane.f32.xlu0 %v4769
    %v4771 = vpop.xlane.xlu0 %4770
    %v4772 = vsel %vm357, %v4768, 0.0
    %4773 = vadd.xlane.f32.xlu0 %v4772
    %v4774 = vpop.xlane.xlu0 %4773
    %v4775 = vrcp.pop %v4771
    %v4776 = vrcp.pop %v4774
    %v4777 = vmul.f32 %v4766, %v4775
    %v4778 = vmul.f32 %v4768, %v4776
    %v4780 = vsel %vm357, %v4777, 0
    %4782 = vmatpush.msra.mxu0 0.0
    %4783 = vmatpush.msra.mxu0 0.0
    %4784 = vmatpush.msra.mxu0 0.0
    %4785 = vmatpush.msra.mxu0 0.0
    %4786 = vmatpush.msra.mxu0 0.0
    %4787 = vmatpush.msra.mxu0 0.0
    %4788 = vmatpush.msra.mxu0 0.0
    %4789 = vmatpush.msra.mxu0 0.0
    %4790 = vmatpush.msra.mxu0 0.0
    %4791 = vmatpush.msra.mxu0 0.0
    %4792 = vmatpush.msra.mxu0 0.0
    %4793 = vmatpush.msra.mxu0 0.0
    %4794 = vmatpush.msra.mxu0 0.0
    %4795 = vmatpush.msra.mxu0 0.0
    %4796 = vmatpush.msra.mxu0 0.0
    %4797 = vmatpush.msra.mxu0 %v4700
    %4798 = vmatmul.f32.gmra.mxu0 %v4780
    %v4799 = vpop.f32.mrf.mxu0
    %v4800 = vadd.f32 0.0, %v4799
    %4801 = vdwg.mxu0
    %v4803 = vsel %vm357, %v4778, 0
    %4805 = vmatpush.msra.mxu0 0.0
    %4806 = vmatpush.msra.mxu0 0.0
    %4807 = vmatpush.msra.mxu0 0.0
    %4808 = vmatpush.msra.mxu0 0.0
    %4809 = vmatpush.msra.mxu0 0.0
    %4810 = vmatpush.msra.mxu0 0.0
    %4811 = vmatpush.msra.mxu0 0.0
    %4812 = vmatpush.msra.mxu0 0.0
    %4813 = vmatpush.msra.mxu0 0.0
    %4814 = vmatpush.msra.mxu0 0.0
    %4815 = vmatpush.msra.mxu0 0.0
    %4816 = vmatpush.msra.mxu0 0.0
    %4817 = vmatpush.msra.mxu0 0.0
    %4818 = vmatpush.msra.mxu0 0.0
    %4819 = vmatpush.msra.mxu0 0.0
    %4820 = vmatpush.msra.mxu0 %v4703
    %4821 = vmatmul.f32.gmra.mxu0 %v4803
    %v4822 = vpop.f32.mrf.mxu0
    %v4823 = vadd.f32 0.0, %v4822
    %4824 = vdwg.mxu0
    %4825 = vmatpush.msra.mxu0 0.0
    %4826 = vmatpush.msra.mxu0 0.0
    %4827 = vmatpush.msra.mxu0 0.0
    %4828 = vmatpush.msra.mxu0 0.0
    %4829 = vmatpush.msra.mxu0 0.0
    %4830 = vmatpush.msra.mxu0 0.0
    %4831 = vmatpush.msra.mxu0 0.0
    %4832 = vmatpush.msra.mxu0 0.0
    %4833 = vmatpush.msra.mxu0 0.0
    %4834 = vmatpush.msra.mxu0 0.0
    %4835 = vmatpush.msra.mxu0 0.0
    %4836 = vmatpush.msra.mxu0 0.0
    %4837 = vmatpush.msra.mxu0 %v4582
    %4838 = vmatpush.msra.mxu0 %v4581
    %4839 = vmatpush.msra.mxu0 %v4580
    %4840 = vmatpush.msra.mxu0 %v4579
    %4841 = vmatmul.f32.gmra.mxu0 %v4631
    %v4842 = vpop.f32.mrf.mxu0
    %v4843 = vadd.f32 0.0, %v4842
    %4844 = vmatmul.f32.gmra.mxu0 %v4634
    %v4845 = vpop.f32.mrf.mxu0
    %v4846 = vadd.f32 0.0, %v4845
    %4847 = vdwg.mxu0
    %4848 = vmatpush.msra.mxu0 0.0
    %4849 = vmatpush.msra.mxu0 0.0
    %4850 = vmatpush.msra.mxu0 0.0
    %4851 = vmatpush.msra.mxu0 0.0
    %4852 = vmatpush.msra.mxu0 0.0
    %4853 = vmatpush.msra.mxu0 0.0
    %4854 = vmatpush.msra.mxu0 0.0
    %4855 = vmatpush.msra.mxu0 0.0
    %4856 = vmatpush.msra.mxu0 0.0
    %4857 = vmatpush.msra.mxu0 0.0
    %4858 = vmatpush.msra.mxu0 0.0
    %4859 = vmatpush.msra.mxu0 0.0
    %4860 = vmatpush.msra.mxu0 %v4599
    %4861 = vmatpush.msra.mxu0 %v4598
    %4862 = vmatpush.msra.mxu0 %v4597
    %4863 = vmatpush.msra.mxu0 %v4596
    %4864 = vmatmul.f32.gmra.mxu0 %v4631
    %v4865 = vpop.f32.mrf.mxu0
    %v4866 = vadd.f32 0.0, %v4865
    %4867 = vmatmul.f32.gmra.mxu0 %v4634
    %v4868 = vpop.f32.mrf.mxu0
    %v4869 = vadd.f32 0.0, %v4868
    %4870 = vdwg.mxu0
    %4871 = vmatpush.msra.mxu0 0.0
    %4872 = vmatpush.msra.mxu0 0.0
    %4873 = vmatpush.msra.mxu0 0.0
    %4874 = vmatpush.msra.mxu0 0.0
    %4875 = vmatpush.msra.mxu0 0.0
    %4876 = vmatpush.msra.mxu0 0.0
    %4877 = vmatpush.msra.mxu0 0.0
    %4878 = vmatpush.msra.mxu0 0.0
    %4879 = vmatpush.msra.mxu0 0.0
    %4880 = vmatpush.msra.mxu0 0.0
    %4881 = vmatpush.msra.mxu0 0.0
    %4882 = vmatpush.msra.mxu0 0.0
    %4883 = vmatpush.msra.mxu0 %v4616
    %4884 = vmatpush.msra.mxu0 %v4615
    %4885 = vmatpush.msra.mxu0 %v4614
    %4886 = vmatpush.msra.mxu0 %v4613
    %4887 = vmatmul.f32.gmra.mxu0 %v4631
    %v4888 = vpop.f32.mrf.mxu0
    %v4889 = vadd.f32 0.0, %v4888
    %4890 = vmatmul.f32.gmra.mxu0 %v4634
    %v4891 = vpop.f32.mrf.mxu0
    %v4892 = vadd.f32 0.0, %v4891
    %4893 = vdwg.mxu0
    %v4895 = vsel %vm357, %v4843, 0
    %v4898 = vsel %vm357, %v4866, 0
    %4900 = vmatpush.xpose.msra.mxu0 0.0
    %4901 = vmatpush.xpose.msra.mxu0 0.0
    %4902 = vmatpush.xpose.msra.mxu0 0.0
    %4903 = vmatpush.xpose.msra.mxu0 0.0
    %4904 = vmatpush.xpose.msra.mxu0 0.0
    %4905 = vmatpush.xpose.msra.mxu0 0.0
    %4906 = vmatpush.xpose.msra.mxu0 0.0
    %4907 = vmatpush.xpose.msra.mxu0 0.0
    %4908 = vmatpush.xpose.msra.mxu0 0.0
    %4909 = vmatpush.xpose.msra.mxu0 0.0
    %4910 = vmatpush.xpose.msra.mxu0 0.0
    %4911 = vmatpush.xpose.msra.mxu0 0.0
    %4912 = vmatpush.xpose.msra.mxu0 0.0
    %4913 = vmatpush.xpose.msra.mxu0 0.0
    %4914 = vmatpush.xpose.msra.mxu0 0.0
    %4915 = vmatpush.xpose.msra.mxu0 %v4898
    %4916 = vmatmul.f32.gmra.mxu0 %v4895
    %v4917 = vpop.f32.mrf.mxu0
    %v4918 = vadd.f32 %v2458, %v4917
    %4919 = vdwg.mxu0
    %v4921 = vsel %vm357, %v4846, 0
    %v4924 = vsel %vm357, %v4869, 0
    %4926 = vmatpush.xpose.msra.mxu0 0.0
    %4927 = vmatpush.xpose.msra.mxu0 0.0
    %4928 = vmatpush.xpose.msra.mxu0 0.0
    %4929 = vmatpush.xpose.msra.mxu0 0.0
    %4930 = vmatpush.xpose.msra.mxu0 0.0
    %4931 = vmatpush.xpose.msra.mxu0 0.0
    %4932 = vmatpush.xpose.msra.mxu0 0.0
    %4933 = vmatpush.xpose.msra.mxu0 0.0
    %4934 = vmatpush.xpose.msra.mxu0 0.0
    %4935 = vmatpush.xpose.msra.mxu0 0.0
    %4936 = vmatpush.xpose.msra.mxu0 0.0
    %4937 = vmatpush.xpose.msra.mxu0 0.0
    %4938 = vmatpush.xpose.msra.mxu0 0.0
    %4939 = vmatpush.xpose.msra.mxu0 0.0
    %4940 = vmatpush.xpose.msra.mxu0 0.0
    %4941 = vmatpush.xpose.msra.mxu0 %v4924
    %4942 = vmatmul.f32.gmra.mxu0 %v4921
    %v4943 = vpop.f32.mrf.mxu0
    %v4944 = vadd.f32 %v2458, %v4943
    %4945 = vdwg.mxu0
    %v4946 = vsel %vm357, %v4918, -inf
    %4947 = vmax.xlane.f32.xlu0 %v4946
    %v4948 = vpop.xlane.xlu0 %4947
    %v4949 = vsel %vm357, %v4944, -inf
    %4950 = vmax.xlane.f32.xlu0 %v4949
    %v4951 = vpop.xlane.xlu0 %4950
    %v4952 = vsub.f32 %v4918, %v4948
    %v4953 = vsub.f32 %v4944, %v4951
    %v4954 = vmul.f32 %v4952, 1.442695
    %v4955 = vpow.pop %v4954
    %v4956 = vmul.f32 %v4953, 1.442695
    %v4957 = vpow.pop %v4956
    %v4958 = vsel %vm357, %v4955, 0.0
    %4959 = vadd.xlane.f32.xlu0 %v4958
    %v4960 = vpop.xlane.xlu0 %4959
    %v4961 = vsel %vm357, %v4957, 0.0
    %4962 = vadd.xlane.f32.xlu0 %v4961
    %v4963 = vpop.xlane.xlu0 %4962
    %v4964 = vrcp.pop %v4960
    %v4965 = vrcp.pop %v4963
    %v4966 = vmul.f32 %v4955, %v4964
    %v4967 = vmul.f32 %v4957, %v4965
    %v4969 = vsel %vm357, %v4966, 0
    %4971 = vmatpush.msra.mxu0 0.0
    %4972 = vmatpush.msra.mxu0 0.0
    %4973 = vmatpush.msra.mxu0 0.0
    %4974 = vmatpush.msra.mxu0 0.0
    %4975 = vmatpush.msra.mxu0 0.0
    %4976 = vmatpush.msra.mxu0 0.0
    %4977 = vmatpush.msra.mxu0 0.0
    %4978 = vmatpush.msra.mxu0 0.0
    %4979 = vmatpush.msra.mxu0 0.0
    %4980 = vmatpush.msra.mxu0 0.0
    %4981 = vmatpush.msra.mxu0 0.0
    %4982 = vmatpush.msra.mxu0 0.0
    %4983 = vmatpush.msra.mxu0 0.0
    %4984 = vmatpush.msra.mxu0 0.0
    %4985 = vmatpush.msra.mxu0 0.0
    %4986 = vmatpush.msra.mxu0 %v4889
    %4987 = vmatmul.f32.gmra.mxu0 %v4969
    %v4988 = vpop.f32.mrf.mxu0
    %v4989 = vadd.f32 0.0, %v4988
    %4990 = vdwg.mxu0
    %v4992 = vsel %vm357, %v4967, 0
    %4994 = vmatpush.msra.mxu0 0.0
    %4995 = vmatpush.msra.mxu0 0.0
    %4996 = vmatpush.msra.mxu0 0.0
    %4997 = vmatpush.msra.mxu0 0.0
    %4998 = vmatpush.msra.mxu0 0.0
    %4999 = vmatpush.msra.mxu0 0.0
    %5000 = vmatpush.msra.mxu0 0.0
    %5001 = vmatpush.msra.mxu0 0.0
    %5002 = vmatpush.msra.mxu0 0.0
    %5003 = vmatpush.msra.mxu0 0.0
    %5004 = vmatpush.msra.mxu0 0.0
    %5005 = vmatpush.msra.mxu0 0.0
    %5006 = vmatpush.msra.mxu0 0.0
    %5007 = vmatpush.msra.mxu0 0.0
    %5008 = vmatpush.msra.mxu0 0.0
    %5009 = vmatpush.msra.mxu0 %v4892
    %5010 = vmatmul.f32.gmra.mxu0 %v4992
    %v5011 = vpop.f32.mrf.mxu0
    %v5012 = vadd.f32 0.0, %v5011
    %5013 = vdwg.mxu0
    %v5015 = vsel %vm357, %v4989, 0
    %v5018 = vsel %vm357, %v5012, 0
    %5020 = vmatpush.msra.mxu0 0.0
    %5021 = vmatpush.msra.mxu0 0.0
    %5022 = vmatpush.msra.mxu0 0.0
    %5023 = vmatpush.msra.mxu0 0.0
    %5024 = vmatpush.msra.mxu0 0.0
    %5025 = vmatpush.msra.mxu0 0.0
    %5026 = vmatpush.msra.mxu0 0.0
    %5027 = vmatpush.msra.mxu0 0.0
    %5028 = vmatpush.msra.mxu0 0.0
    %5029 = vmatpush.msra.mxu0 0.0
    %5030 = vmatpush.msra.mxu0 0.0
    %5031 = vmatpush.msra.mxu0 0.0
    %5032 = vmatpush.msra.mxu0 0.0
    %5033 = vmatpush.msra.mxu0 0.0
    %5034 = vmatpush.msra.mxu0 0.0
    %5035 = vmatpush.msra.mxu0 %v4627
    %5036 = vmatmul.f32.gmra.mxu0 %v5015
    %v5037 = vpop.f32.mrf.mxu0
    %v5038 = vadd.f32 0.0, %v5037
    %5039 = vmatmul.f32.gmra.mxu0 %v5018
    %v5040 = vpop.f32.mrf.mxu0
    %v5041 = vadd.f32 0.0, %v5040
    %5042 = vdwg.mxu0
    %v5044 = vsel %vm357, %v4800, 0
    %v5047 = vsel %vm357, %v4823, 0
    %5049 = vmatpush.msra.mxu0 0.0
    %5050 = vmatpush.msra.mxu0 0.0
    %5051 = vmatpush.msra.mxu0 0.0
    %5052 = vmatpush.msra.mxu0 0.0
    %5053 = vmatpush.msra.mxu0 0.0
    %5054 = vmatpush.msra.mxu0 0.0
    %5055 = vmatpush.msra.mxu0 0.0
    %5056 = vmatpush.msra.mxu0 0.0
    %5057 = vmatpush.msra.mxu0 0.0
    %5058 = vmatpush.msra.mxu0 0.0
    %5059 = vmatpush.msra.mxu0 0.0
    %5060 = vmatpush.msra.mxu0 0.0
    %5061 = vmatpush.msra.mxu0 0.0
    %5062 = vmatpush.msra.mxu0 0.0
    %5063 = vmatpush.msra.mxu0 0.0
    %5064 = vmatpush.msra.mxu0 %v4626
    %5065 = vmatmul.f32.gmra.mxu0 %v5044
    %v5066 = vpop.f32.mrf.mxu0
    %v5067 = vadd.f32 %v5038, %v5066
    %5068 = vmatmul.f32.gmra.mxu0 %v5047
    %v5069 = vpop.f32.mrf.mxu0
    %v5070 = vadd.f32 %v5041, %v5069
    %5071 = vdwg.mxu0
    %5072 = vmatpush.msra.mxu0 0.0
    %5073 = vmatpush.msra.mxu0 0.0
    %5074 = vmatpush.msra.mxu0 0.0
    %5075 = vmatpush.msra.mxu0 0.0
    %5076 = vmatpush.msra.mxu0 0.0
    %5077 = vmatpush.msra.mxu0 0.0
    %5078 = vmatpush.msra.mxu0 0.0
    %5079 = vmatpush.msra.mxu0 0.0
    %5080 = vmatpush.msra.mxu0 0.0
    %5081 = vmatpush.msra.mxu0 0.0
    %5082 = vmatpush.msra.mxu0 0.0
    %5083 = vmatpush.msra.mxu0 0.0
    %5084 = vmatpush.msra.mxu0 %v4586
    %5085 = vmatpush.msra.mxu0 %v4585
    %5086 = vmatpush.msra.mxu0 %v4584
    %5087 = vmatpush.msra.mxu0 %v4583
    %5088 = vmatmul.f32.gmra.mxu0 %v4631
    %v5089 = vpop.f32.mrf.mxu0
    %v5090 = vadd.f32 0.0, %v5089
    %5091 = vmatmul.f32.gmra.mxu0 %v4634
    %v5092 = vpop.f32.mrf.mxu0
    %v5093 = vadd.f32 0.0, %v5092
    %5094 = vdwg.mxu0
    %5095 = vmatpush.msra.mxu0 0.0
    %5096 = vmatpush.msra.mxu0 0.0
    %5097 = vmatpush.msra.mxu0 0.0
    %5098 = vmatpush.msra.mxu0 0.0
    %5099 = vmatpush.msra.mxu0 0.0
    %5100 = vmatpush.msra.mxu0 0.0
    %5101 = vmatpush.msra.mxu0 0.0
    %5102 = vmatpush.msra.mxu0 0.0
    %5103 = vmatpush.msra.mxu0 0.0
    %5104 = vmatpush.msra.mxu0 0.0
    %5105 = vmatpush.msra.mxu0 0.0
    %5106 = vmatpush.msra.mxu0 0.0
    %5107 = vmatpush.msra.mxu0 %v4603
    %5108 = vmatpush.msra.mxu0 %v4602
    %5109 = vmatpush.msra.mxu0 %v4601
    %5110 = vmatpush.msra.mxu0 %v4600
    %5111 = vmatmul.f32.gmra.mxu0 %v4631
    %v5112 = vpop.f32.mrf.mxu0
    %v5113 = vadd.f32 0.0, %v5112
    %5114 = vmatmul.f32.gmra.mxu0 %v4634
    %v5115 = vpop.f32.mrf.mxu0
    %v5116 = vadd.f32 0.0, %v5115
    %5117 = vdwg.mxu0
    %5118 = vmatpush.msra.mxu0 0.0
    %5119 = vmatpush.msra.mxu0 0.0
    %5120 = vmatpush.msra.mxu0 0.0
    %5121 = vmatpush.msra.mxu0 0.0
    %5122 = vmatpush.msra.mxu0 0.0
    %5123 = vmatpush.msra.mxu0 0.0
    %5124 = vmatpush.msra.mxu0 0.0
    %5125 = vmatpush.msra.mxu0 0.0
    %5126 = vmatpush.msra.mxu0 0.0
    %5127 = vmatpush.msra.mxu0 0.0
    %5128 = vmatpush.msra.mxu0 0.0
    %5129 = vmatpush.msra.mxu0 0.0
    %5130 = vmatpush.msra.mxu0 %v4620
    %5131 = vmatpush.msra.mxu0 %v4619
    %5132 = vmatpush.msra.mxu0 %v4618
    %5133 = vmatpush.msra.mxu0 %v4617
    %5134 = vmatmul.f32.gmra.mxu0 %v4631
    %v5135 = vpop.f32.mrf.mxu0
    %v5136 = vadd.f32 0.0, %v5135
    %5137 = vmatmul.f32.gmra.mxu0 %v4634
    %v5138 = vpop.f32.mrf.mxu0
    %v5139 = vadd.f32 0.0, %v5138
    %5140 = vdwg.mxu0
    %v5142 = vsel %vm357, %v5090, 0
    %v5145 = vsel %vm357, %v5113, 0
    %5147 = vmatpush.xpose.msra.mxu0 0.0
    %5148 = vmatpush.xpose.msra.mxu0 0.0
    %5149 = vmatpush.xpose.msra.mxu0 0.0
    %5150 = vmatpush.xpose.msra.mxu0 0.0
    %5151 = vmatpush.xpose.msra.mxu0 0.0
    %5152 = vmatpush.xpose.msra.mxu0 0.0
    %5153 = vmatpush.xpose.msra.mxu0 0.0
    %5154 = vmatpush.xpose.msra.mxu0 0.0
    %5155 = vmatpush.xpose.msra.mxu0 0.0
    %5156 = vmatpush.xpose.msra.mxu0 0.0
    %5157 = vmatpush.xpose.msra.mxu0 0.0
    %5158 = vmatpush.xpose.msra.mxu0 0.0
    %5159 = vmatpush.xpose.msra.mxu0 0.0
    %5160 = vmatpush.xpose.msra.mxu0 0.0
    %5161 = vmatpush.xpose.msra.mxu0 0.0
    %5162 = vmatpush.xpose.msra.mxu0 %v5145
    %5163 = vmatmul.f32.gmra.mxu0 %v5142
    %v5164 = vpop.f32.mrf.mxu0
    %v5165 = vadd.f32 %v2459, %v5164
    %5166 = vdwg.mxu0
    %v5168 = vsel %vm357, %v5093, 0
    %v5171 = vsel %vm357, %v5116, 0
    %5173 = vmatpush.xpose.msra.mxu0 0.0
    %5174 = vmatpush.xpose.msra.mxu0 0.0
    %5175 = vmatpush.xpose.msra.mxu0 0.0
    %5176 = vmatpush.xpose.msra.mxu0 0.0
    %5177 = vmatpush.xpose.msra.mxu0 0.0
    %5178 = vmatpush.xpose.msra.mxu0 0.0
    %5179 = vmatpush.xpose.msra.mxu0 0.0
    %5180 = vmatpush.xpose.msra.mxu0 0.0
    %5181 = vmatpush.xpose.msra.mxu0 0.0
    %5182 = vmatpush.xpose.msra.mxu0 0.0
    %5183 = vmatpush.xpose.msra.mxu0 0.0
    %5184 = vmatpush.xpose.msra.mxu0 0.0
    %5185 = vmatpush.xpose.msra.mxu0 0.0
    %5186 = vmatpush.xpose.msra.mxu0 0.0
    %5187 = vmatpush.xpose.msra.mxu0 0.0
    %5188 = vmatpush.xpose.msra.mxu0 %v5171
    %5189 = vmatmul.f32.gmra.mxu0 %v5168
    %v5190 = vpop.f32.mrf.mxu0
    %v5191 = vadd.f32 %v2459, %v5190
    %5192 = vdwg.mxu0
    %v5193 = vsel %vm357, %v5165, -inf
    %5194 = vmax.xlane.f32.xlu0 %v5193
    %v5195 = vpop.xlane.xlu0 %5194
    %v5196 = vsel %vm357, %v5191, -inf
    %5197 = vmax.xlane.f32.xlu0 %v5196
    %v5198 = vpop.xlane.xlu0 %5197
    %v5199 = vsub.f32 %v5165, %v5195
    %v5200 = vsub.f32 %v5191, %v5198
    %v5201 = vmul.f32 %v5199, 1.442695
    %v5202 = vpow.pop %v5201
    %v5203 = vmul.f32 %v5200, 1.442695
    %v5204 = vpow.pop %v5203
    %v5205 = vsel %vm357, %v5202, 0.0
    %5206 = vadd.xlane.f32.xlu0 %v5205
    %v5207 = vpop.xlane.xlu0 %5206
    %v5208 = vsel %vm357, %v5204, 0.0
    %5209 = vadd.xlane.f32.xlu0 %v5208
    %v5210 = vpop.xlane.xlu0 %5209
    %v5211 = vrcp.pop %v5207
    %v5212 = vrcp.pop %v5210
    %v5213 = vmul.f32 %v5202, %v5211
    %v5214 = vmul.f32 %v5204, %v5212
    %v5216 = vsel %vm357, %v5213, 0
    %5218 = vmatpush.msra.mxu0 0.0
    %5219 = vmatpush.msra.mxu0 0.0
    %5220 = vmatpush.msra.mxu0 0.0
    %5221 = vmatpush.msra.mxu0 0.0
    %5222 = vmatpush.msra.mxu0 0.0
    %5223 = vmatpush.msra.mxu0 0.0
    %5224 = vmatpush.msra.mxu0 0.0
    %5225 = vmatpush.msra.mxu0 0.0
    %5226 = vmatpush.msra.mxu0 0.0
    %5227 = vmatpush.msra.mxu0 0.0
    %5228 = vmatpush.msra.mxu0 0.0
    %5229 = vmatpush.msra.mxu0 0.0
    %5230 = vmatpush.msra.mxu0 0.0
    %5231 = vmatpush.msra.mxu0 0.0
    %5232 = vmatpush.msra.mxu0 0.0
    %5233 = vmatpush.msra.mxu0 %v5136
    %5234 = vmatmul.f32.gmra.mxu0 %v5216
    %v5235 = vpop.f32.mrf.mxu0
    %v5236 = vadd.f32 0.0, %v5235
    %5237 = vdwg.mxu0
    %v5239 = vsel %vm357, %v5214, 0
    %5241 = vmatpush.msra.mxu0 0.0
    %5242 = vmatpush.msra.mxu0 0.0
    %5243 = vmatpush.msra.mxu0 0.0
    %5244 = vmatpush.msra.mxu0 0.0
    %5245 = vmatpush.msra.mxu0 0.0
    %5246 = vmatpush.msra.mxu0 0.0
    %5247 = vmatpush.msra.mxu0 0.0
    %5248 = vmatpush.msra.mxu0 0.0
    %5249 = vmatpush.msra.mxu0 0.0
    %5250 = vmatpush.msra.mxu0 0.0
    %5251 = vmatpush.msra.mxu0 0.0
    %5252 = vmatpush.msra.mxu0 0.0
    %5253 = vmatpush.msra.mxu0 0.0
    %5254 = vmatpush.msra.mxu0 0.0
    %5255 = vmatpush.msra.mxu0 0.0
    %5256 = vmatpush.msra.mxu0 %v5139
    %5257 = vmatmul.f32.gmra.mxu0 %v5239
    %v5258 = vpop.f32.mrf.mxu0
    %v5259 = vadd.f32 0.0, %v5258
    %5260 = vdwg.mxu0
    %v5262 = vsel %vm357, %v5236, 0
    %v5265 = vsel %vm357, %v5259, 0
    %5267 = vmatpush.msra.mxu0 0.0
    %5268 = vmatpush.msra.mxu0 0.0
    %5269 = vmatpush.msra.mxu0 0.0
    %5270 = vmatpush.msra.mxu0 0.0
    %5271 = vmatpush.msra.mxu0 0.0
    %5272 = vmatpush.msra.mxu0 0.0
    %5273 = vmatpush.msra.mxu0 0.0
    %5274 = vmatpush.msra.mxu0 0.0
    %5275 = vmatpush.msra.mxu0 0.0
    %5276 = vmatpush.msra.mxu0 0.0
    %5277 = vmatpush.msra.mxu0 0.0
    %5278 = vmatpush.msra.mxu0 0.0
    %5279 = vmatpush.msra.mxu0 0.0
    %5280 = vmatpush.msra.mxu0 0.0
    %5281 = vmatpush.msra.mxu0 0.0
    %5282 = vmatpush.msra.mxu0 %v4628
    %5283 = vmatmul.f32.gmra.mxu0 %v5262
    %v5284 = vpop.f32.mrf.mxu0
    %v5285 = vadd.f32 0.0, %v5284
    %5286 = vmatmul.f32.gmra.mxu0 %v5265
    %v5287 = vpop.f32.mrf.mxu0
    %v5288 = vadd.f32 0.0, %v5287
    %5289 = vdwg.mxu0
    %v5290 = vadd.f32 %v5067, %v5285
    %v5291 = vadd.f32 %v5070, %v5288
    %5292 = vmatpush.msra.mxu0 0.0
    %5293 = vmatpush.msra.mxu0 0.0
    %5294 = vmatpush.msra.mxu0 0.0
    %5295 = vmatpush.msra.mxu0 0.0
    %5296 = vmatpush.msra.mxu0 0.0
    %5297 = vmatpush.msra.mxu0 0.0
    %5298 = vmatpush.msra.mxu0 0.0
    %5299 = vmatpush.msra.mxu0 0.0
    %5300 = vmatpush.msra.mxu0 0.0
    %5301 = vmatpush.msra.mxu0 0.0
    %5302 = vmatpush.msra.mxu0 0.0
    %5303 = vmatpush.msra.mxu0 0.0
    %5304 = vmatpush.msra.mxu0 %v4590
    %5305 = vmatpush.msra.mxu0 %v4589
    %5306 = vmatpush.msra.mxu0 %v4588
    %5307 = vmatpush.msra.mxu0 %v4587
    %5308 = vmatmul.f32.gmra.mxu0 %v4631
    %v5309 = vpop.f32.mrf.mxu0
    %v5310 = vadd.f32 0.0, %v5309
    %5311 = vmatmul.f32.gmra.mxu0 %v4634
    %v5312 = vpop.f32.mrf.mxu0
    %v5313 = vadd.f32 0.0, %v5312
    %5314 = vdwg.mxu0
    %5315 = vmatpush.msra.mxu0 0.0
    %5316 = vmatpush.msra.mxu0 0.0
    %5317 = vmatpush.msra.mxu0 0.0
    %5318 = vmatpush.msra.mxu0 0.0
    %5319 = vmatpush.msra.mxu0 0.0
    %5320 = vmatpush.msra.mxu0 0.0
    %5321 = vmatpush.msra.mxu0 0.0
    %5322 = vmatpush.msra.mxu0 0.0
    %5323 = vmatpush.msra.mxu0 0.0
    %5324 = vmatpush.msra.mxu0 0.0
    %5325 = vmatpush.msra.mxu0 0.0
    %5326 = vmatpush.msra.mxu0 0.0
    %5327 = vmatpush.msra.mxu0 %v4607
    %5328 = vmatpush.msra.mxu0 %v4606
    %5329 = vmatpush.msra.mxu0 %v4605
    %5330 = vmatpush.msra.mxu0 %v4604
    %5331 = vmatmul.f32.gmra.mxu0 %v4631
    %v5332 = vpop.f32.mrf.mxu0
    %v5333 = vadd.f32 0.0, %v5332
    %5334 = vmatmul.f32.gmra.mxu0 %v4634
    %v5335 = vpop.f32.mrf.mxu0
    %v5336 = vadd.f32 0.0, %v5335
    %5337 = vdwg.mxu0
    %5338 = vmatpush.msra.mxu0 0.0
    %5339 = vmatpush.msra.mxu0 0.0
    %5340 = vmatpush.msra.mxu0 0.0
    %5341 = vmatpush.msra.mxu0 0.0
    %5342 = vmatpush.msra.mxu0 0.0
    %5343 = vmatpush.msra.mxu0 0.0
    %5344 = vmatpush.msra.mxu0 0.0
    %5345 = vmatpush.msra.mxu0 0.0
    %5346 = vmatpush.msra.mxu0 0.0
    %5347 = vmatpush.msra.mxu0 0.0
    %5348 = vmatpush.msra.mxu0 0.0
    %5349 = vmatpush.msra.mxu0 0.0
    %5350 = vmatpush.msra.mxu0 %v4624
    %5351 = vmatpush.msra.mxu0 %v4623
    %5352 = vmatpush.msra.mxu0 %v4622
    %5353 = vmatpush.msra.mxu0 %v4621
    %5354 = vmatmul.f32.gmra.mxu0 %v4631
    %v5355 = vpop.f32.mrf.mxu0
    %v5356 = vadd.f32 0.0, %v5355
    %5357 = vmatmul.f32.gmra.mxu0 %v4634
    %v5358 = vpop.f32.mrf.mxu0
    %v5359 = vadd.f32 0.0, %v5358
    %5360 = vdwg.mxu0
    %v5362 = vsel %vm357, %v5310, 0
    %v5365 = vsel %vm357, %v5333, 0
    %5367 = vmatpush.xpose.msra.mxu0 0.0
    %5368 = vmatpush.xpose.msra.mxu0 0.0
    %5369 = vmatpush.xpose.msra.mxu0 0.0
    %5370 = vmatpush.xpose.msra.mxu0 0.0
    %5371 = vmatpush.xpose.msra.mxu0 0.0
    %5372 = vmatpush.xpose.msra.mxu0 0.0
    %5373 = vmatpush.xpose.msra.mxu0 0.0
    %5374 = vmatpush.xpose.msra.mxu0 0.0
    %5375 = vmatpush.xpose.msra.mxu0 0.0
    %5376 = vmatpush.xpose.msra.mxu0 0.0
    %5377 = vmatpush.xpose.msra.mxu0 0.0
    %5378 = vmatpush.xpose.msra.mxu0 0.0
    %5379 = vmatpush.xpose.msra.mxu0 0.0
    %5380 = vmatpush.xpose.msra.mxu0 0.0
    %5381 = vmatpush.xpose.msra.mxu0 0.0
    %5382 = vmatpush.xpose.msra.mxu0 %v5365
    %5383 = vmatmul.f32.gmra.mxu0 %v5362
    %v5384 = vpop.f32.mrf.mxu0
    %v5385 = vadd.f32 %v2460, %v5384
    %5386 = vdwg.mxu0
    %v5388 = vsel %vm357, %v5313, 0
    %v5391 = vsel %vm357, %v5336, 0
    %5393 = vmatpush.xpose.msra.mxu0 0.0
    %5394 = vmatpush.xpose.msra.mxu0 0.0
    %5395 = vmatpush.xpose.msra.mxu0 0.0
    %5396 = vmatpush.xpose.msra.mxu0 0.0
    %5397 = vmatpush.xpose.msra.mxu0 0.0
    %5398 = vmatpush.xpose.msra.mxu0 0.0
    %5399 = vmatpush.xpose.msra.mxu0 0.0
    %5400 = vmatpush.xpose.msra.mxu0 0.0
    %5401 = vmatpush.xpose.msra.mxu0 0.0
    %5402 = vmatpush.xpose.msra.mxu0 0.0
    %5403 = vmatpush.xpose.msra.mxu0 0.0
    %5404 = vmatpush.xpose.msra.mxu0 0.0
    %5405 = vmatpush.xpose.msra.mxu0 0.0
    %5406 = vmatpush.xpose.msra.mxu0 0.0
    %5407 = vmatpush.xpose.msra.mxu0 0.0
    %5408 = vmatpush.xpose.msra.mxu0 %v5391
    %5409 = vmatmul.f32.gmra.mxu0 %v5388
    %v5410 = vpop.f32.mrf.mxu0
    %v5411 = vadd.f32 %v2460, %v5410
    %5412 = vdwg.mxu0
    %v5413 = vsel %vm357, %v5385, -inf
    %5414 = vmax.xlane.f32.xlu0 %v5413
    %v5415 = vpop.xlane.xlu0 %5414
    %v5416 = vsel %vm357, %v5411, -inf
    %5417 = vmax.xlane.f32.xlu0 %v5416
    %v5418 = vpop.xlane.xlu0 %5417
    %v5419 = vsub.f32 %v5385, %v5415
    %v5420 = vsub.f32 %v5411, %v5418
    %v5421 = vmul.f32 %v5419, 1.442695
    %v5422 = vpow.pop %v5421
    %v5423 = vmul.f32 %v5420, 1.442695
    %v5424 = vpow.pop %v5423
    %v5425 = vsel %vm357, %v5422, 0.0
    %5426 = vadd.xlane.f32.xlu0 %v5425
    %v5427 = vpop.xlane.xlu0 %5426
    %v5428 = vsel %vm357, %v5424, 0.0
    %5429 = vadd.xlane.f32.xlu0 %v5428
    %v5430 = vpop.xlane.xlu0 %5429
    %v5431 = vrcp.pop %v5427
    %v5432 = vrcp.pop %v5430
    %v5433 = vmul.f32 %v5422, %v5431
    %v5434 = vmul.f32 %v5424, %v5432
    %v5436 = vsel %vm357, %v5433, 0
    %5438 = vmatpush.msra.mxu0 0.0
    %5439 = vmatpush.msra.mxu0 0.0
    %5440 = vmatpush.msra.mxu0 0.0
    %5441 = vmatpush.msra.mxu0 0.0
    %5442 = vmatpush.msra.mxu0 0.0
    %5443 = vmatpush.msra.mxu0 0.0
    %5444 = vmatpush.msra.mxu0 0.0
    %5445 = vmatpush.msra.mxu0 0.0
    %5446 = vmatpush.msra.mxu0 0.0
    %5447 = vmatpush.msra.mxu0 0.0
    %5448 = vmatpush.msra.mxu0 0.0
    %5449 = vmatpush.msra.mxu0 0.0
    %5450 = vmatpush.msra.mxu0 0.0
    %5451 = vmatpush.msra.mxu0 0.0
    %5452 = vmatpush.msra.mxu0 0.0
    %5453 = vmatpush.msra.mxu0 %v5356
    %5454 = vmatmul.f32.gmra.mxu0 %v5436
    %v5455 = vpop.f32.mrf.mxu0
    %v5456 = vadd.f32 0.0, %v5455
    %5457 = vdwg.mxu0
    %v5459 = vsel %vm357, %v5434, 0
    %5461 = vmatpush.msra.mxu0 0.0
    %5462 = vmatpush.msra.mxu0 0.0
    %5463 = vmatpush.msra.mxu0 0.0
    %5464 = vmatpush.msra.mxu0 0.0
    %5465 = vmatpush.msra.mxu0 0.0
    %5466 = vmatpush.msra.mxu0 0.0
    %5467 = vmatpush.msra.mxu0 0.0
    %5468 = vmatpush.msra.mxu0 0.0
    %5469 = vmatpush.msra.mxu0 0.0
    %5470 = vmatpush.msra.mxu0 0.0
    %5471 = vmatpush.msra.mxu0 0.0
    %5472 = vmatpush.msra.mxu0 0.0
    %5473 = vmatpush.msra.mxu0 0.0
    %5474 = vmatpush.msra.mxu0 0.0
    %5475 = vmatpush.msra.mxu0 0.0
    %5476 = vmatpush.msra.mxu0 %v5359
    %5477 = vmatmul.f32.gmra.mxu0 %v5459
    %v5478 = vpop.f32.mrf.mxu0
    %v5479 = vadd.f32 0.0, %v5478
    %5480 = vdwg.mxu0
    %v5482 = vsel %vm357, %v5456, 0
    %v5485 = vsel %vm357, %v5479, 0
    %5487 = vmatpush.msra.mxu0 0.0
    %5488 = vmatpush.msra.mxu0 0.0
    %5489 = vmatpush.msra.mxu0 0.0
    %5490 = vmatpush.msra.mxu0 0.0
    %5491 = vmatpush.msra.mxu0 0.0
    %5492 = vmatpush.msra.mxu0 0.0
    %5493 = vmatpush.msra.mxu0 0.0
    %5494 = vmatpush.msra.mxu0 0.0
    %5495 = vmatpush.msra.mxu0 0.0
    %5496 = vmatpush.msra.mxu0 0.0
    %5497 = vmatpush.msra.mxu0 0.0
    %5498 = vmatpush.msra.mxu0 0.0
    %5499 = vmatpush.msra.mxu0 0.0
    %5500 = vmatpush.msra.mxu0 0.0
    %5501 = vmatpush.msra.mxu0 0.0
    %5502 = vmatpush.msra.mxu0 %v4629
    %5503 = vmatmul.f32.gmra.mxu0 %v5482
    %v5504 = vpop.f32.mrf.mxu0
    %v5505 = vadd.f32 0.0, %v5504
    %5506 = vmatmul.f32.gmra.mxu0 %v5485
    %v5507 = vpop.f32.mrf.mxu0
    %v5508 = vadd.f32 0.0, %v5507
    %5509 = vdwg.mxu0
    %v5510 = vadd.f32 %v5290, %v5505
    %v5511 = vadd.f32 %v5291, %v5508
    %v5512 = vadd.f32 %v4531, %v5510
    %v5513 = vadd.f32 %v4532, %v5511
    %s5514 = scalar_lea.vmem %s39, 1
    %v5515 = vld [vmem:[%s5514] sm:$0x1]
    %v5516 = vmul.f32 %v5512, %v5512
    %v5517 = vmul.f32 %v5513, %v5513
    %v5518 = vsel %vm185, %v5516, 0.0
    %5519 = vadd.xlane.f32.xlu0 %v5518
    %v5520 = vpop.xlane.xlu0 %5519
    %v5521 = vsel %vm185, %v5517, 0.0
    %5522 = vadd.xlane.f32.xlu0 %v5521
    %v5523 = vpop.xlane.xlu0 %5522
    %v5524 = vmul.f32 %v5520, %v198
    %v5525 = vmul.f32 %v5523, %v198
    %v5526 = vadd.f32 %v5524, 1e-06
    %v5527 = vadd.f32 %v5525, 1e-06
    %v5528 = vrsqrt.pop %v5526
    %v5529 = vmul.f32 %v5528, %v5526
    %v5530 = vmul.f32 %v5529, %v5528
    %v5531 = vmul.f32 0.5, %v5530
    %v5532 = vsub.f32 1.5, %v5531
    %v5533 = vmul.f32 %v5528, %v5532
    %vm5534 = vweird.f32 %v5526
    %vm5535 = vweird.f32 %v5528
    %vm5536 = vmor %vm5534, %vm5535
    %v5537 = vsel %vm5536, %v5528, %v5533
    %v5538 = vrsqrt.pop %v5527
    %v5539 = vmul.f32 %v5538, %v5527
    %v5540 = vmul.f32 %v5539, %v5538
    %v5541 = vmul.f32 0.5, %v5540
    %v5542 = vsub.f32 1.5, %v5541
    %v5543 = vmul.f32 %v5538, %v5542
    %vm5544 = vweird.f32 %v5527
    %vm5545 = vweird.f32 %v5538
    %vm5546 = vmor %vm5544, %vm5545
    %v5547 = vsel %vm5546, %v5538, %v5543
    %v5548 = vmul.f32 %v5512, %v5537
    %v5549 = vmul.f32 %v5513, %v5547
    %v5551 = vperm.slane %v5515, 0
    %v5553 = vmul.f32 %v5548, %v5551
    %v5554 = vmul.f32 %v5549, %v5551
    %s5555 = scalar_lea.vmem %s41, 128
    %v5556 = vld [vmem:[%s5555] sm:$0xff]
    %v5557 = vld [vmem:[%s5555 + $0x8] sm:$0xff]
    %v5558 = vld [vmem:[%s5555 + $0x10] sm:$0xff]
    %v5559 = vld [vmem:[%s5555 + $0x18] sm:$0xff]
    %v5560 = vld [vmem:[%s5555 + $0x20] sm:$0xff]
    %v5561 = vld [vmem:[%s5555 + $0x28] sm:$0xff]
    %v5562 = vld [vmem:[%s5555 + $0x30] sm:$0xff]
    %v5563 = vld [vmem:[%s5555 + $0x38] sm:$0xff]
    %v5564 = vld [vmem:[%s5555 + $0x40] sm:$0xff]
    %v5565 = vld [vmem:[%s5555 + $0x48] sm:$0xff]
    %v5566 = vld [vmem:[%s5555 + $0x50] sm:$0xff]
    %v5567 = vld [vmem:[%s5555 + $0x58] sm:$0xff]
    %v5568 = vld [vmem:[%s5555 + $0x60] sm:$0xff]
    %v5569 = vld [vmem:[%s5555 + $0x68] sm:$0xff]
    %v5570 = vld [vmem:[%s5555 + $0x70] sm:$0xff]
    %v5571 = vld [vmem:[%s5555 + $0x78] sm:$0xff]
    %s5572 = scalar_lea.vmem %s43, 128
    %v5573 = vld [vmem:[%s5572] sm:$0xff]
    %v5574 = vld [vmem:[%s5572 + $0x8] sm:$0xff]
    %v5575 = vld [vmem:[%s5572 + $0x10] sm:$0xff]
    %v5576 = vld [vmem:[%s5572 + $0x18] sm:$0xff]
    %v5577 = vld [vmem:[%s5572 + $0x20] sm:$0xff]
    %v5578 = vld [vmem:[%s5572 + $0x28] sm:$0xff]
    %v5579 = vld [vmem:[%s5572 + $0x30] sm:$0xff]
    %v5580 = vld [vmem:[%s5572 + $0x38] sm:$0xff]
    %v5581 = vld [vmem:[%s5572 + $0x40] sm:$0xff]
    %v5582 = vld [vmem:[%s5572 + $0x48] sm:$0xff]
    %v5583 = vld [vmem:[%s5572 + $0x50] sm:$0xff]
    %v5584 = vld [vmem:[%s5572 + $0x58] sm:$0xff]
    %v5585 = vld [vmem:[%s5572 + $0x60] sm:$0xff]
    %v5586 = vld [vmem:[%s5572 + $0x68] sm:$0xff]
    %v5587 = vld [vmem:[%s5572 + $0x70] sm:$0xff]
    %v5588 = vld [vmem:[%s5572 + $0x78] sm:$0xff]
    %s5589 = scalar_lea.vmem %s45, 128
    %v5590 = vld [vmem:[%s5589] sm:$0xff]
    %v5591 = vld [vmem:[%s5589 + $0x8] sm:$0xff]
    %v5592 = vld [vmem:[%s5589 + $0x10] sm:$0xff]
    %v5593 = vld [vmem:[%s5589 + $0x18] sm:$0xff]
    %v5594 = vld [vmem:[%s5589 + $0x20] sm:$0xff]
    %v5595 = vld [vmem:[%s5589 + $0x28] sm:$0xff]
    %v5596 = vld [vmem:[%s5589 + $0x30] sm:$0xff]
    %v5597 = vld [vmem:[%s5589 + $0x38] sm:$0xff]
    %v5598 = vld [vmem:[%s5589 + $0x40] sm:$0xff]
    %v5599 = vld [vmem:[%s5589 + $0x48] sm:$0xff]
    %v5600 = vld [vmem:[%s5589 + $0x50] sm:$0xff]
    %v5601 = vld [vmem:[%s5589 + $0x58] sm:$0xff]
    %v5602 = vld [vmem:[%s5589 + $0x60] sm:$0xff]
    %v5603 = vld [vmem:[%s5589 + $0x68] sm:$0xff]
    %v5604 = vld [vmem:[%s5589 + $0x70] sm:$0xff]
    %v5605 = vld [vmem:[%s5589 + $0x78] sm:$0xff]
    %s5606 = scalar_lea.vmem %s47, 32
    %v5607 = vld [vmem:[%s5606] sm:$0xff]
    %v5608 = vld [vmem:[%s5606 + $0x8] sm:$0xff]
    %v5609 = vld [vmem:[%s5606 + $0x10] sm:$0xff]
    %v5610 = vld [vmem:[%s5606 + $0x18] sm:$0xff]
    %v5612 = vsel %vm185, %v5553, 0
    %v5615 = vsel %vm185, %v5554, 0
    %5617 = vmatpush.msra.mxu0 0.0
    %5618 = vmatpush.msra.mxu0 0.0
    %5619 = vmatpush.msra.mxu0 0.0
    %5620 = vmatpush.msra.mxu0 0.0
    %5621 = vmatpush.msra.mxu0 0.0
    %5622 = vmatpush.msra.mxu0 0.0
    %5623 = vmatpush.msra.mxu0 0.0
    %5624 = vmatpush.msra.mxu0 0.0
    %5625 = vmatpush.msra.mxu0 0.0
    %5626 = vmatpush.msra.mxu0 0.0
    %5627 = vmatpush.msra.mxu0 0.0
    %5628 = vmatpush.msra.mxu0 0.0
    %5629 = vmatpush.msra.mxu0 %v5559
    %5630 = vmatpush.msra.mxu0 %v5558
    %5631 = vmatpush.msra.mxu0 %v5557
    %5632 = vmatpush.msra.mxu0 %v5556
    %5633 = vmatmul.f32.gmra.mxu0 %v5612
    %v5634 = vpop.f32.mrf.mxu0
    %v5635 = vadd.f32 0.0, %v5634
    %5636 = vmatmul.f32.gmra.mxu0 %v5615
    %v5637 = vpop.f32.mrf.mxu0
    %v5638 = vadd.f32 0.0, %v5637
    %5639 = vdwg.mxu0
    %5640 = vmatpush.msra.mxu0 0.0
    %5641 = vmatpush.msra.mxu0 0.0
    %5642 = vmatpush.msra.mxu0 0.0
    %5643 = vmatpush.msra.mxu0 0.0
    %5644 = vmatpush.msra.mxu0 0.0
    %5645 = vmatpush.msra.mxu0 0.0
    %5646 = vmatpush.msra.mxu0 0.0
    %5647 = vmatpush.msra.mxu0 0.0
    %5648 = vmatpush.msra.mxu0 0.0
    %5649 = vmatpush.msra.mxu0 0.0
    %5650 = vmatpush.msra.mxu0 0.0
    %5651 = vmatpush.msra.mxu0 0.0
    %5652 = vmatpush.msra.mxu0 %v5576
    %5653 = vmatpush.msra.mxu0 %v5575
    %5654 = vmatpush.msra.mxu0 %v5574
    %5655 = vmatpush.msra.mxu0 %v5573
    %5656 = vmatmul.f32.gmra.mxu0 %v3559
    %v5657 = vpop.f32.mrf.mxu0
    %v5658 = vadd.f32 0.0, %v5657
    %5659 = vmatmul.f32.gmra.mxu0 %v3562
    %v5660 = vpop.f32.mrf.mxu0
    %v5661 = vadd.f32 0.0, %v5660
    %5662 = vdwg.mxu0
    %5663 = vmatpush.msra.mxu0 0.0
    %5664 = vmatpush.msra.mxu0 0.0
    %5665 = vmatpush.msra.mxu0 0.0
    %5666 = vmatpush.msra.mxu0 0.0
    %5667 = vmatpush.msra.mxu0 0.0
    %5668 = vmatpush.msra.mxu0 0.0
    %5669 = vmatpush.msra.mxu0 0.0
    %5670 = vmatpush.msra.mxu0 0.0
    %5671 = vmatpush.msra.mxu0 0.0
    %5672 = vmatpush.msra.mxu0 0.0
    %5673 = vmatpush.msra.mxu0 0.0
    %5674 = vmatpush.msra.mxu0 0.0
    %5675 = vmatpush.msra.mxu0 %v5593
    %5676 = vmatpush.msra.mxu0 %v5592
    %5677 = vmatpush.msra.mxu0 %v5591
    %5678 = vmatpush.msra.mxu0 %v5590
    %5679 = vmatmul.f32.gmra.mxu0 %v3559
    %v5680 = vpop.f32.mrf.mxu0
    %v5681 = vadd.f32 0.0, %v5680
    %5682 = vmatmul.f32.gmra.mxu0 %v3562
    %v5683 = vpop.f32.mrf.mxu0
    %v5684 = vadd.f32 0.0, %v5683
    %5685 = vdwg.mxu0
    %v5687 = vsel %vm357, %v5635, 0
    %v5690 = vsel %vm357, %v5658, 0
    %5692 = vmatpush.xpose.msra.mxu0 0.0
    %5693 = vmatpush.xpose.msra.mxu0 0.0
    %5694 = vmatpush.xpose.msra.mxu0 0.0
    %5695 = vmatpush.xpose.msra.mxu0 0.0
    %5696 = vmatpush.xpose.msra.mxu0 0.0
    %5697 = vmatpush.xpose.msra.mxu0 0.0
    %5698 = vmatpush.xpose.msra.mxu0 0.0
    %5699 = vmatpush.xpose.msra.mxu0 0.0
    %5700 = vmatpush.xpose.msra.mxu0 0.0
    %5701 = vmatpush.xpose.msra.mxu0 0.0
    %5702 = vmatpush.xpose.msra.mxu0 0.0
    %5703 = vmatpush.xpose.msra.mxu0 0.0
    %5704 = vmatpush.xpose.msra.mxu0 0.0
    %5705 = vmatpush.xpose.msra.mxu0 0.0
    %5706 = vmatpush.xpose.msra.mxu0 0.0
    %5707 = vmatpush.xpose.msra.mxu0 %v5690
    %5708 = vmatmul.f32.gmra.mxu0 %v5687
    %v5709 = vpop.f32.mrf.mxu0
    %v5710 = vadd.f32 0.0, %v5709
    %5711 = vdwg.mxu0
    %v5713 = vsel %vm357, %v5638, 0
    %v5716 = vsel %vm357, %v5661, 0
    %5718 = vmatpush.xpose.msra.mxu0 0.0
    %5719 = vmatpush.xpose.msra.mxu0 0.0
    %5720 = vmatpush.xpose.msra.mxu0 0.0
    %5721 = vmatpush.xpose.msra.mxu0 0.0
    %5722 = vmatpush.xpose.msra.mxu0 0.0
    %5723 = vmatpush.xpose.msra.mxu0 0.0
    %5724 = vmatpush.xpose.msra.mxu0 0.0
    %5725 = vmatpush.xpose.msra.mxu0 0.0
    %5726 = vmatpush.xpose.msra.mxu0 0.0
    %5727 = vmatpush.xpose.msra.mxu0 0.0
    %5728 = vmatpush.xpose.msra.mxu0 0.0
    %5729 = vmatpush.xpose.msra.mxu0 0.0
    %5730 = vmatpush.xpose.msra.mxu0 0.0
    %5731 = vmatpush.xpose.msra.mxu0 0.0
    %5732 = vmatpush.xpose.msra.mxu0 0.0
    %5733 = vmatpush.xpose.msra.mxu0 %v5716
    %5734 = vmatmul.f32.gmra.mxu0 %v5713
    %v5735 = vpop.f32.mrf.mxu0
    %v5736 = vadd.f32 0.0, %v5735
    %5737 = vdwg.mxu0
    %v5738 = vsel %vm357, %v5710, -inf
    %5739 = vmax.xlane.f32.xlu0 %v5738
    %v5740 = vpop.xlane.xlu0 %5739
    %v5741 = vsel %vm357, %v5736, -inf
    %5742 = vmax.xlane.f32.xlu0 %v5741
    %v5743 = vpop.xlane.xlu0 %5742
    %v5744 = vsub.f32 %v5710, %v5740
    %v5745 = vsub.f32 %v5736, %v5743
    %v5746 = vmul.f32 %v5744, 1.442695
    %v5747 = vpow.pop %v5746
    %v5748 = vmul.f32 %v5745, 1.442695
    %v5749 = vpow.pop %v5748
    %v5750 = vsel %vm357, %v5747, 0.0
    %5751 = vadd.xlane.f32.xlu0 %v5750
    %v5752 = vpop.xlane.xlu0 %5751
    %v5753 = vsel %vm357, %v5749, 0.0
    %5754 = vadd.xlane.f32.xlu0 %v5753
    %v5755 = vpop.xlane.xlu0 %5754
    %v5756 = vrcp.pop %v5752
    %v5757 = vrcp.pop %v5755
    %v5758 = vmul.f32 %v5747, %v5756
    %v5759 = vmul.f32 %v5749, %v5757
    %v5761 = vsel %vm357, %v5758, 0
    %5763 = vmatpush.msra.mxu0 0.0
    %5764 = vmatpush.msra.mxu0 0.0
    %5765 = vmatpush.msra.mxu0 0.0
    %5766 = vmatpush.msra.mxu0 0.0
    %5767 = vmatpush.msra.mxu0 0.0
    %5768 = vmatpush.msra.mxu0 0.0
    %5769 = vmatpush.msra.mxu0 0.0
    %5770 = vmatpush.msra.mxu0 0.0
    %5771 = vmatpush.msra.mxu0 0.0
    %5772 = vmatpush.msra.mxu0 0.0
    %5773 = vmatpush.msra.mxu0 0.0
    %5774 = vmatpush.msra.mxu0 0.0
    %5775 = vmatpush.msra.mxu0 0.0
    %5776 = vmatpush.msra.mxu0 0.0
    %5777 = vmatpush.msra.mxu0 0.0
    %5778 = vmatpush.msra.mxu0 %v5681
    %5779 = vmatmul.f32.gmra.mxu0 %v5761
    %v5780 = vpop.f32.mrf.mxu0
    %v5781 = vadd.f32 0.0, %v5780
    %5782 = vdwg.mxu0
    %v5784 = vsel %vm357, %v5759, 0
    %5786 = vmatpush.msra.mxu0 0.0
    %5787 = vmatpush.msra.mxu0 0.0
    %5788 = vmatpush.msra.mxu0 0.0
    %5789 = vmatpush.msra.mxu0 0.0
    %5790 = vmatpush.msra.mxu0 0.0
    %5791 = vmatpush.msra.mxu0 0.0
    %5792 = vmatpush.msra.mxu0 0.0
    %5793 = vmatpush.msra.mxu0 0.0
    %5794 = vmatpush.msra.mxu0 0.0
    %5795 = vmatpush.msra.mxu0 0.0
    %5796 = vmatpush.msra.mxu0 0.0
    %5797 = vmatpush.msra.mxu0 0.0
    %5798 = vmatpush.msra.mxu0 0.0
    %5799 = vmatpush.msra.mxu0 0.0
    %5800 = vmatpush.msra.mxu0 0.0
    %5801 = vmatpush.msra.mxu0 %v5684
    %5802 = vmatmul.f32.gmra.mxu0 %v5784
    %v5803 = vpop.f32.mrf.mxu0
    %v5804 = vadd.f32 0.0, %v5803
    %5805 = vdwg.mxu0
    %5806 = vmatpush.msra.mxu0 0.0
    %5807 = vmatpush.msra.mxu0 0.0
    %5808 = vmatpush.msra.mxu0 0.0
    %5809 = vmatpush.msra.mxu0 0.0
    %5810 = vmatpush.msra.mxu0 0.0
    %5811 = vmatpush.msra.mxu0 0.0
    %5812 = vmatpush.msra.mxu0 0.0
    %5813 = vmatpush.msra.mxu0 0.0
    %5814 = vmatpush.msra.mxu0 0.0
    %5815 = vmatpush.msra.mxu0 0.0
    %5816 = vmatpush.msra.mxu0 0.0
    %5817 = vmatpush.msra.mxu0 0.0
    %5818 = vmatpush.msra.mxu0 %v5563
    %5819 = vmatpush.msra.mxu0 %v5562
    %5820 = vmatpush.msra.mxu0 %v5561
    %5821 = vmatpush.msra.mxu0 %v5560
    %5822 = vmatmul.f32.gmra.mxu0 %v5612
    %v5823 = vpop.f32.mrf.mxu0
    %v5824 = vadd.f32 0.0, %v5823
    %5825 = vmatmul.f32.gmra.mxu0 %v5615
    %v5826 = vpop.f32.mrf.mxu0
    %v5827 = vadd.f32 0.0, %v5826
    %5828 = vdwg.mxu0
    %5829 = vmatpush.msra.mxu0 0.0
    %5830 = vmatpush.msra.mxu0 0.0
    %5831 = vmatpush.msra.mxu0 0.0
    %5832 = vmatpush.msra.mxu0 0.0
    %5833 = vmatpush.msra.mxu0 0.0
    %5834 = vmatpush.msra.mxu0 0.0
    %5835 = vmatpush.msra.mxu0 0.0
    %5836 = vmatpush.msra.mxu0 0.0
    %5837 = vmatpush.msra.mxu0 0.0
    %5838 = vmatpush.msra.mxu0 0.0
    %5839 = vmatpush.msra.mxu0 0.0
    %5840 = vmatpush.msra.mxu0 0.0
    %5841 = vmatpush.msra.mxu0 %v5580
    %5842 = vmatpush.msra.mxu0 %v5579
    %5843 = vmatpush.msra.mxu0 %v5578
    %5844 = vmatpush.msra.mxu0 %v5577
    %5845 = vmatmul.f32.gmra.mxu0 %v3559
    %v5846 = vpop.f32.mrf.mxu0
    %v5847 = vadd.f32 0.0, %v5846
    %5848 = vmatmul.f32.gmra.mxu0 %v3562
    %v5849 = vpop.f32.mrf.mxu0
    %v5850 = vadd.f32 0.0, %v5849
    %5851 = vdwg.mxu0
    %5852 = vmatpush.msra.mxu0 0.0
    %5853 = vmatpush.msra.mxu0 0.0
    %5854 = vmatpush.msra.mxu0 0.0
    %5855 = vmatpush.msra.mxu0 0.0
    %5856 = vmatpush.msra.mxu0 0.0
    %5857 = vmatpush.msra.mxu0 0.0
    %5858 = vmatpush.msra.mxu0 0.0
    %5859 = vmatpush.msra.mxu0 0.0
    %5860 = vmatpush.msra.mxu0 0.0
    %5861 = vmatpush.msra.mxu0 0.0
    %5862 = vmatpush.msra.mxu0 0.0
    %5863 = vmatpush.msra.mxu0 0.0
    %5864 = vmatpush.msra.mxu0 %v5597
    %5865 = vmatpush.msra.mxu0 %v5596
    %5866 = vmatpush.msra.mxu0 %v5595
    %5867 = vmatpush.msra.mxu0 %v5594
    %5868 = vmatmul.f32.gmra.mxu0 %v3559
    %v5869 = vpop.f32.mrf.mxu0
    %v5870 = vadd.f32 0.0, %v5869
    %5871 = vmatmul.f32.gmra.mxu0 %v3562
    %v5872 = vpop.f32.mrf.mxu0
    %v5873 = vadd.f32 0.0, %v5872
    %5874 = vdwg.mxu0
    %v5876 = vsel %vm357, %v5824, 0
    %v5879 = vsel %vm357, %v5847, 0
    %5881 = vmatpush.xpose.msra.mxu0 0.0
    %5882 = vmatpush.xpose.msra.mxu0 0.0
    %5883 = vmatpush.xpose.msra.mxu0 0.0
    %5884 = vmatpush.xpose.msra.mxu0 0.0
    %5885 = vmatpush.xpose.msra.mxu0 0.0
    %5886 = vmatpush.xpose.msra.mxu0 0.0
    %5887 = vmatpush.xpose.msra.mxu0 0.0
    %5888 = vmatpush.xpose.msra.mxu0 0.0
    %5889 = vmatpush.xpose.msra.mxu0 0.0
    %5890 = vmatpush.xpose.msra.mxu0 0.0
    %5891 = vmatpush.xpose.msra.mxu0 0.0
    %5892 = vmatpush.xpose.msra.mxu0 0.0
    %5893 = vmatpush.xpose.msra.mxu0 0.0
    %5894 = vmatpush.xpose.msra.mxu0 0.0
    %5895 = vmatpush.xpose.msra.mxu0 0.0
    %5896 = vmatpush.xpose.msra.mxu0 %v5879
    %5897 = vmatmul.f32.gmra.mxu0 %v5876
    %v5898 = vpop.f32.mrf.mxu0
    %v5899 = vadd.f32 0.0, %v5898
    %5900 = vdwg.mxu0
    %v5902 = vsel %vm357, %v5827, 0
    %v5905 = vsel %vm357, %v5850, 0
    %5907 = vmatpush.xpose.msra.mxu0 0.0
    %5908 = vmatpush.xpose.msra.mxu0 0.0
    %5909 = vmatpush.xpose.msra.mxu0 0.0
    %5910 = vmatpush.xpose.msra.mxu0 0.0
    %5911 = vmatpush.xpose.msra.mxu0 0.0
    %5912 = vmatpush.xpose.msra.mxu0 0.0
    %5913 = vmatpush.xpose.msra.mxu0 0.0
    %5914 = vmatpush.xpose.msra.mxu0 0.0
    %5915 = vmatpush.xpose.msra.mxu0 0.0
    %5916 = vmatpush.xpose.msra.mxu0 0.0
    %5917 = vmatpush.xpose.msra.mxu0 0.0
    %5918 = vmatpush.xpose.msra.mxu0 0.0
    %5919 = vmatpush.xpose.msra.mxu0 0.0
    %5920 = vmatpush.xpose.msra.mxu0 0.0
    %5921 = vmatpush.xpose.msra.mxu0 0.0
    %5922 = vmatpush.xpose.msra.mxu0 %v5905
    %5923 = vmatmul.f32.gmra.mxu0 %v5902
    %v5924 = vpop.f32.mrf.mxu0
    %v5925 = vadd.f32 0.0, %v5924
    %5926 = vdwg.mxu0
    %v5927 = vsel %vm357, %v5899, -inf
    %5928 = vmax.xlane.f32.xlu0 %v5927
    %v5929 = vpop.xlane.xlu0 %5928
    %v5930 = vsel %vm357, %v5925, -inf
    %5931 = vmax.xlane.f32.xlu0 %v5930
    %v5932 = vpop.xlane.xlu0 %5931
    %v5933 = vsub.f32 %v5899, %v5929
    %v5934 = vsub.f32 %v5925, %v5932
    %v5935 = vmul.f32 %v5933, 1.442695
    %v5936 = vpow.pop %v5935
    %v5937 = vmul.f32 %v5934, 1.442695
    %v5938 = vpow.pop %v5937
    %v5939 = vsel %vm357, %v5936, 0.0
    %5940 = vadd.xlane.f32.xlu0 %v5939
    %v5941 = vpop.xlane.xlu0 %5940
    %v5942 = vsel %vm357, %v5938, 0.0
    %5943 = vadd.xlane.f32.xlu0 %v5942
    %v5944 = vpop.xlane.xlu0 %5943
    %v5945 = vrcp.pop %v5941
    %v5946 = vrcp.pop %v5944
    %v5947 = vmul.f32 %v5936, %v5945
    %v5948 = vmul.f32 %v5938, %v5946
    %v5950 = vsel %vm357, %v5947, 0
    %5952 = vmatpush.msra.mxu0 0.0
    %5953 = vmatpush.msra.mxu0 0.0
    %5954 = vmatpush.msra.mxu0 0.0
    %5955 = vmatpush.msra.mxu0 0.0
    %5956 = vmatpush.msra.mxu0 0.0
    %5957 = vmatpush.msra.mxu0 0.0
    %5958 = vmatpush.msra.mxu0 0.0
    %5959 = vmatpush.msra.mxu0 0.0
    %5960 = vmatpush.msra.mxu0 0.0
    %5961 = vmatpush.msra.mxu0 0.0
    %5962 = vmatpush.msra.mxu0 0.0
    %5963 = vmatpush.msra.mxu0 0.0
    %5964 = vmatpush.msra.mxu0 0.0
    %5965 = vmatpush.msra.mxu0 0.0
    %5966 = vmatpush.msra.mxu0 0.0
    %5967 = vmatpush.msra.mxu0 %v5870
    %5968 = vmatmul.f32.gmra.mxu0 %v5950
    %v5969 = vpop.f32.mrf.mxu0
    %v5970 = vadd.f32 0.0, %v5969
    %5971 = vdwg.mxu0
    %v5973 = vsel %vm357, %v5948, 0
    %5975 = vmatpush.msra.mxu0 0.0
    %5976 = vmatpush.msra.mxu0 0.0
    %5977 = vmatpush.msra.mxu0 0.0
    %5978 = vmatpush.msra.mxu0 0.0
    %5979 = vmatpush.msra.mxu0 0.0
    %5980 = vmatpush.msra.mxu0 0.0
    %5981 = vmatpush.msra.mxu0 0.0
    %5982 = vmatpush.msra.mxu0 0.0
    %5983 = vmatpush.msra.mxu0 0.0
    %5984 = vmatpush.msra.mxu0 0.0
    %5985 = vmatpush.msra.mxu0 0.0
    %5986 = vmatpush.msra.mxu0 0.0
    %5987 = vmatpush.msra.mxu0 0.0
    %5988 = vmatpush.msra.mxu0 0.0
    %5989 = vmatpush.msra.mxu0 0.0
    %5990 = vmatpush.msra.mxu0 %v5873
    %5991 = vmatmul.f32.gmra.mxu0 %v5973
    %v5992 = vpop.f32.mrf.mxu0
    %v5993 = vadd.f32 0.0, %v5992
    %5994 = vdwg.mxu0
    %v5996 = vsel %vm357, %v5970, 0
    %v5999 = vsel %vm357, %v5993, 0
    %6001 = vmatpush.msra.mxu0 0.0
    %6002 = vmatpush.msra.mxu0 0.0
    %6003 = vmatpush.msra.mxu0 0.0
    %6004 = vmatpush.msra.mxu0 0.0
    %6005 = vmatpush.msra.mxu0 0.0
    %6006 = vmatpush.msra.mxu0 0.0
    %6007 = vmatpush.msra.mxu0 0.0
    %6008 = vmatpush.msra.mxu0 0.0
    %6009 = vmatpush.msra.mxu0 0.0
    %6010 = vmatpush.msra.mxu0 0.0
    %6011 = vmatpush.msra.mxu0 0.0
    %6012 = vmatpush.msra.mxu0 0.0
    %6013 = vmatpush.msra.mxu0 0.0
    %6014 = vmatpush.msra.mxu0 0.0
    %6015 = vmatpush.msra.mxu0 0.0
    %6016 = vmatpush.msra.mxu0 %v5608
    %6017 = vmatmul.f32.gmra.mxu0 %v5996
    %v6018 = vpop.f32.mrf.mxu0
    %v6019 = vadd.f32 0.0, %v6018
    %6020 = vmatmul.f32.gmra.mxu0 %v5999
    %v6021 = vpop.f32.mrf.mxu0
    %v6022 = vadd.f32 0.0, %v6021
    %6023 = vdwg.mxu0
    %v6025 = vsel %vm357, %v5781, 0
    %v6028 = vsel %vm357, %v5804, 0
    %6030 = vmatpush.msra.mxu0 0.0
    %6031 = vmatpush.msra.mxu0 0.0
    %6032 = vmatpush.msra.mxu0 0.0
    %6033 = vmatpush.msra.mxu0 0.0
    %6034 = vmatpush.msra.mxu0 0.0
    %6035 = vmatpush.msra.mxu0 0.0
    %6036 = vmatpush.msra.mxu0 0.0
    %6037 = vmatpush.msra.mxu0 0.0
    %6038 = vmatpush.msra.mxu0 0.0
    %6039 = vmatpush.msra.mxu0 0.0
    %6040 = vmatpush.msra.mxu0 0.0
    %6041 = vmatpush.msra.mxu0 0.0
    %6042 = vmatpush.msra.mxu0 0.0
    %6043 = vmatpush.msra.mxu0 0.0
    %6044 = vmatpush.msra.mxu0 0.0
    %6045 = vmatpush.msra.mxu0 %v5607
    %6046 = vmatmul.f32.gmra.mxu0 %v6025
    %v6047 = vpop.f32.mrf.mxu0
    %v6048 = vadd.f32 %v6019, %v6047
    %6049 = vmatmul.f32.gmra.mxu0 %v6028
    %v6050 = vpop.f32.mrf.mxu0
    %v6051 = vadd.f32 %v6022, %v6050
    %6052 = vdwg.mxu0
    %6053 = vmatpush.msra.mxu0 0.0
    %6054 = vmatpush.msra.mxu0 0.0
    %6055 = vmatpush.msra.mxu0 0.0
    %6056 = vmatpush.msra.mxu0 0.0
    %6057 = vmatpush.msra.mxu0 0.0
    %6058 = vmatpush.msra.mxu0 0.0
    %6059 = vmatpush.msra.mxu0 0.0
    %6060 = vmatpush.msra.mxu0 0.0
    %6061 = vmatpush.msra.mxu0 0.0
    %6062 = vmatpush.msra.mxu0 0.0
    %6063 = vmatpush.msra.mxu0 0.0
    %6064 = vmatpush.msra.mxu0 0.0
    %6065 = vmatpush.msra.mxu0 %v5567
    %6066 = vmatpush.msra.mxu0 %v5566
    %6067 = vmatpush.msra.mxu0 %v5565
    %6068 = vmatpush.msra.mxu0 %v5564
    %6069 = vmatmul.f32.gmra.mxu0 %v5612
    %v6070 = vpop.f32.mrf.mxu0
    %v6071 = vadd.f32 0.0, %v6070
    %6072 = vmatmul.f32.gmra.mxu0 %v5615
    %v6073 = vpop.f32.mrf.mxu0
    %v6074 = vadd.f32 0.0, %v6073
    %6075 = vdwg.mxu0
    %6076 = vmatpush.msra.mxu0 0.0
    %6077 = vmatpush.msra.mxu0 0.0
    %6078 = vmatpush.msra.mxu0 0.0
    %6079 = vmatpush.msra.mxu0 0.0
    %6080 = vmatpush.msra.mxu0 0.0
    %6081 = vmatpush.msra.mxu0 0.0
    %6082 = vmatpush.msra.mxu0 0.0
    %6083 = vmatpush.msra.mxu0 0.0
    %6084 = vmatpush.msra.mxu0 0.0
    %6085 = vmatpush.msra.mxu0 0.0
    %6086 = vmatpush.msra.mxu0 0.0
    %6087 = vmatpush.msra.mxu0 0.0
    %6088 = vmatpush.msra.mxu0 %v5584
    %6089 = vmatpush.msra.mxu0 %v5583
    %6090 = vmatpush.msra.mxu0 %v5582
    %6091 = vmatpush.msra.mxu0 %v5581
    %6092 = vmatmul.f32.gmra.mxu0 %v3559
    %v6093 = vpop.f32.mrf.mxu0
    %v6094 = vadd.f32 0.0, %v6093
    %6095 = vmatmul.f32.gmra.mxu0 %v3562
    %v6096 = vpop.f32.mrf.mxu0
    %v6097 = vadd.f32 0.0, %v6096
    %6098 = vdwg.mxu0
    %6099 = vmatpush.msra.mxu0 0.0
    %6100 = vmatpush.msra.mxu0 0.0
    %6101 = vmatpush.msra.mxu0 0.0
    %6102 = vmatpush.msra.mxu0 0.0
    %6103 = vmatpush.msra.mxu0 0.0
    %6104 = vmatpush.msra.mxu0 0.0
    %6105 = vmatpush.msra.mxu0 0.0
    %6106 = vmatpush.msra.mxu0 0.0
    %6107 = vmatpush.msra.mxu0 0.0
    %6108 = vmatpush.msra.mxu0 0.0
    %6109 = vmatpush.msra.mxu0 0.0
    %6110 = vmatpush.msra.mxu0 0.0
    %6111 = vmatpush.msra.mxu0 %v5601
    %6112 = vmatpush.msra.mxu0 %v5600
    %6113 = vmatpush.msra.mxu0 %v5599
    %6114 = vmatpush.msra.mxu0 %v5598
    %6115 = vmatmul.f32.gmra.mxu0 %v3559
    %v6116 = vpop.f32.mrf.mxu0
    %v6117 = vadd.f32 0.0, %v6116
    %6118 = vmatmul.f32.gmra.mxu0 %v3562
    %v6119 = vpop.f32.mrf.mxu0
    %v6120 = vadd.f32 0.0, %v6119
    %6121 = vdwg.mxu0
    %v6123 = vsel %vm357, %v6071, 0
    %v6126 = vsel %vm357, %v6094, 0
    %6128 = vmatpush.xpose.msra.mxu0 0.0
    %6129 = vmatpush.xpose.msra.mxu0 0.0
    %6130 = vmatpush.xpose.msra.mxu0 0.0
    %6131 = vmatpush.xpose.msra.mxu0 0.0
    %6132 = vmatpush.xpose.msra.mxu0 0.0
    %6133 = vmatpush.xpose.msra.mxu0 0.0
    %6134 = vmatpush.xpose.msra.mxu0 0.0
    %6135 = vmatpush.xpose.msra.mxu0 0.0
    %6136 = vmatpush.xpose.msra.mxu0 0.0
    %6137 = vmatpush.xpose.msra.mxu0 0.0
    %6138 = vmatpush.xpose.msra.mxu0 0.0
    %6139 = vmatpush.xpose.msra.mxu0 0.0
    %6140 = vmatpush.xpose.msra.mxu0 0.0
    %6141 = vmatpush.xpose.msra.mxu0 0.0
    %6142 = vmatpush.xpose.msra.mxu0 0.0
    %6143 = vmatpush.xpose.msra.mxu0 %v6126
    %6144 = vmatmul.f32.gmra.mxu0 %v6123
    %v6145 = vpop.f32.mrf.mxu0
    %v6146 = vadd.f32 0.0, %v6145
    %6147 = vdwg.mxu0
    %v6149 = vsel %vm357, %v6074, 0
    %v6152 = vsel %vm357, %v6097, 0
    %6154 = vmatpush.xpose.msra.mxu0 0.0
    %6155 = vmatpush.xpose.msra.mxu0 0.0
    %6156 = vmatpush.xpose.msra.mxu0 0.0
    %6157 = vmatpush.xpose.msra.mxu0 0.0
    %6158 = vmatpush.xpose.msra.mxu0 0.0
    %6159 = vmatpush.xpose.msra.mxu0 0.0
    %6160 = vmatpush.xpose.msra.mxu0 0.0
    %6161 = vmatpush.xpose.msra.mxu0 0.0
    %6162 = vmatpush.xpose.msra.mxu0 0.0
    %6163 = vmatpush.xpose.msra.mxu0 0.0
    %6164 = vmatpush.xpose.msra.mxu0 0.0
    %6165 = vmatpush.xpose.msra.mxu0 0.0
    %6166 = vmatpush.xpose.msra.mxu0 0.0
    %6167 = vmatpush.xpose.msra.mxu0 0.0
    %6168 = vmatpush.xpose.msra.mxu0 0.0
    %6169 = vmatpush.xpose.msra.mxu0 %v6152
    %6170 = vmatmul.f32.gmra.mxu0 %v6149
    %v6171 = vpop.f32.mrf.mxu0
    %v6172 = vadd.f32 0.0, %v6171
    %6173 = vdwg.mxu0
    %v6174 = vsel %vm357, %v6146, -inf
    %6175 = vmax.xlane.f32.xlu0 %v6174
    %v6176 = vpop.xlane.xlu0 %6175
    %v6177 = vsel %vm357, %v6172, -inf
    %6178 = vmax.xlane.f32.xlu0 %v6177
    %v6179 = vpop.xlane.xlu0 %6178
    %v6180 = vsub.f32 %v6146, %v6176
    %v6181 = vsub.f32 %v6172, %v6179
    %v6182 = vmul.f32 %v6180, 1.442695
    %v6183 = vpow.pop %v6182
    %v6184 = vmul.f32 %v6181, 1.442695
    %v6185 = vpow.pop %v6184
    %v6186 = vsel %vm357, %v6183, 0.0
    %6187 = vadd.xlane.f32.xlu0 %v6186
    %v6188 = vpop.xlane.xlu0 %6187
    %v6189 = vsel %vm357, %v6185, 0.0
    %6190 = vadd.xlane.f32.xlu0 %v6189
    %v6191 = vpop.xlane.xlu0 %6190
    %v6192 = vrcp.pop %v6188
    %v6193 = vrcp.pop %v6191
    %v6194 = vmul.f32 %v6183, %v6192
    %v6195 = vmul.f32 %v6185, %v6193
    %v6197 = vsel %vm357, %v6194, 0
    %6199 = vmatpush.msra.mxu0 0.0
    %6200 = vmatpush.msra.mxu0 0.0
    %6201 = vmatpush.msra.mxu0 0.0
    %6202 = vmatpush.msra.mxu0 0.0
    %6203 = vmatpush.msra.mxu0 0.0
    %6204 = vmatpush.msra.mxu0 0.0
    %6205 = vmatpush.msra.mxu0 0.0
    %6206 = vmatpush.msra.mxu0 0.0
    %6207 = vmatpush.msra.mxu0 0.0
    %6208 = vmatpush.msra.mxu0 0.0
    %6209 = vmatpush.msra.mxu0 0.0
    %6210 = vmatpush.msra.mxu0 0.0
    %6211 = vmatpush.msra.mxu0 0.0
    %6212 = vmatpush.msra.mxu0 0.0
    %6213 = vmatpush.msra.mxu0 0.0
    %6214 = vmatpush.msra.mxu0 %v6117
    %6215 = vmatmul.f32.gmra.mxu0 %v6197
    %v6216 = vpop.f32.mrf.mxu0
    %v6217 = vadd.f32 0.0, %v6216
    %6218 = vdwg.mxu0
    %v6220 = vsel %vm357, %v6195, 0
    %6222 = vmatpush.msra.mxu0 0.0
    %6223 = vmatpush.msra.mxu0 0.0
    %6224 = vmatpush.msra.mxu0 0.0
    %6225 = vmatpush.msra.mxu0 0.0
    %6226 = vmatpush.msra.mxu0 0.0
    %6227 = vmatpush.msra.mxu0 0.0
    %6228 = vmatpush.msra.mxu0 0.0
    %6229 = vmatpush.msra.mxu0 0.0
    %6230 = vmatpush.msra.mxu0 0.0
    %6231 = vmatpush.msra.mxu0 0.0
    %6232 = vmatpush.msra.mxu0 0.0
    %6233 = vmatpush.msra.mxu0 0.0
    %6234 = vmatpush.msra.mxu0 0.0
    %6235 = vmatpush.msra.mxu0 0.0
    %6236 = vmatpush.msra.mxu0 0.0
    %6237 = vmatpush.msra.mxu0 %v6120
    %6238 = vmatmul.f32.gmra.mxu0 %v6220
    %v6239 = vpop.f32.mrf.mxu0
    %v6240 = vadd.f32 0.0, %v6239
    %6241 = vdwg.mxu0
    %v6243 = vsel %vm357, %v6217, 0
    %v6246 = vsel %vm357, %v6240, 0
    %6248 = vmatpush.msra.mxu0 0.0
    %6249 = vmatpush.msra.mxu0 0.0
    %6250 = vmatpush.msra.mxu0 0.0
    %6251 = vmatpush.msra.mxu0 0.0
    %6252 = vmatpush.msra.mxu0 0.0
    %6253 = vmatpush.msra.mxu0 0.0
    %6254 = vmatpush.msra.mxu0 0.0
    %6255 = vmatpush.msra.mxu0 0.0
    %6256 = vmatpush.msra.mxu0 0.0
    %6257 = vmatpush.msra.mxu0 0.0
    %6258 = vmatpush.msra.mxu0 0.0
    %6259 = vmatpush.msra.mxu0 0.0
    %6260 = vmatpush.msra.mxu0 0.0
    %6261 = vmatpush.msra.mxu0 0.0
    %6262 = vmatpush.msra.mxu0 0.0
    %6263 = vmatpush.msra.mxu0 %v5609
    %6264 = vmatmul.f32.gmra.mxu0 %v6243
    %v6265 = vpop.f32.mrf.mxu0
    %v6266 = vadd.f32 0.0, %v6265
    %6267 = vmatmul.f32.gmra.mxu0 %v6246
    %v6268 = vpop.f32.mrf.mxu0
    %v6269 = vadd.f32 0.0, %v6268
    %6270 = vdwg.mxu0
    %v6271 = vadd.f32 %v6048, %v6266
    %v6272 = vadd.f32 %v6051, %v6269
    %6273 = vmatpush.msra.mxu0 0.0
    %6274 = vmatpush.msra.mxu0 0.0
    %6275 = vmatpush.msra.mxu0 0.0
    %6276 = vmatpush.msra.mxu0 0.0
    %6277 = vmatpush.msra.mxu0 0.0
    %6278 = vmatpush.msra.mxu0 0.0
    %6279 = vmatpush.msra.mxu0 0.0
    %6280 = vmatpush.msra.mxu0 0.0
    %6281 = vmatpush.msra.mxu0 0.0
    %6282 = vmatpush.msra.mxu0 0.0
    %6283 = vmatpush.msra.mxu0 0.0
    %6284 = vmatpush.msra.mxu0 0.0
    %6285 = vmatpush.msra.mxu0 %v5571
    %6286 = vmatpush.msra.mxu0 %v5570
    %6287 = vmatpush.msra.mxu0 %v5569
    %6288 = vmatpush.msra.mxu0 %v5568
    %6289 = vmatmul.f32.gmra.mxu0 %v5612
    %v6290 = vpop.f32.mrf.mxu0
    %v6291 = vadd.f32 0.0, %v6290
    %6292 = vmatmul.f32.gmra.mxu0 %v5615
    %v6293 = vpop.f32.mrf.mxu0
    %v6294 = vadd.f32 0.0, %v6293
    %6295 = vdwg.mxu0
    %6296 = vmatpush.msra.mxu0 0.0
    %6297 = vmatpush.msra.mxu0 0.0
    %6298 = vmatpush.msra.mxu0 0.0
    %6299 = vmatpush.msra.mxu0 0.0
    %6300 = vmatpush.msra.mxu0 0.0
    %6301 = vmatpush.msra.mxu0 0.0
    %6302 = vmatpush.msra.mxu0 0.0
    %6303 = vmatpush.msra.mxu0 0.0
    %6304 = vmatpush.msra.mxu0 0.0
    %6305 = vmatpush.msra.mxu0 0.0
    %6306 = vmatpush.msra.mxu0 0.0
    %6307 = vmatpush.msra.mxu0 0.0
    %6308 = vmatpush.msra.mxu0 %v5588
    %6309 = vmatpush.msra.mxu0 %v5587
    %6310 = vmatpush.msra.mxu0 %v5586
    %6311 = vmatpush.msra.mxu0 %v5585
    %6312 = vmatmul.f32.gmra.mxu0 %v3559
    %v6313 = vpop.f32.mrf.mxu0
    %v6314 = vadd.f32 0.0, %v6313
    %6315 = vmatmul.f32.gmra.mxu0 %v3562
    %v6316 = vpop.f32.mrf.mxu0
    %v6317 = vadd.f32 0.0, %v6316
    %6318 = vdwg.mxu0
    %6319 = vmatpush.msra.mxu0 0.0
    %6320 = vmatpush.msra.mxu0 0.0
    %6321 = vmatpush.msra.mxu0 0.0
    %6322 = vmatpush.msra.mxu0 0.0
    %6323 = vmatpush.msra.mxu0 0.0
    %6324 = vmatpush.msra.mxu0 0.0
    %6325 = vmatpush.msra.mxu0 0.0
    %6326 = vmatpush.msra.mxu0 0.0
    %6327 = vmatpush.msra.mxu0 0.0
    %6328 = vmatpush.msra.mxu0 0.0
    %6329 = vmatpush.msra.mxu0 0.0
    %6330 = vmatpush.msra.mxu0 0.0
    %6331 = vmatpush.msra.mxu0 %v5605
    %6332 = vmatpush.msra.mxu0 %v5604
    %6333 = vmatpush.msra.mxu0 %v5603
    %6334 = vmatpush.msra.mxu0 %v5602
    %6335 = vmatmul.f32.gmra.mxu0 %v3559
    %v6336 = vpop.f32.mrf.mxu0
    %v6337 = vadd.f32 0.0, %v6336
    %6338 = vmatmul.f32.gmra.mxu0 %v3562
    %v6339 = vpop.f32.mrf.mxu0
    %v6340 = vadd.f32 0.0, %v6339
    %6341 = vdwg.mxu0
    %v6343 = vsel %vm357, %v6291, 0
    %v6346 = vsel %vm357, %v6314, 0
    %6348 = vmatpush.xpose.msra.mxu0 0.0
    %6349 = vmatpush.xpose.msra.mxu0 0.0
    %6350 = vmatpush.xpose.msra.mxu0 0.0
    %6351 = vmatpush.xpose.msra.mxu0 0.0
    %6352 = vmatpush.xpose.msra.mxu0 0.0
    %6353 = vmatpush.xpose.msra.mxu0 0.0
    %6354 = vmatpush.xpose.msra.mxu0 0.0
    %6355 = vmatpush.xpose.msra.mxu0 0.0
    %6356 = vmatpush.xpose.msra.mxu0 0.0
    %6357 = vmatpush.xpose.msra.mxu0 0.0
    %6358 = vmatpush.xpose.msra.mxu0 0.0
    %6359 = vmatpush.xpose.msra.mxu0 0.0
    %6360 = vmatpush.xpose.msra.mxu0 0.0
    %6361 = vmatpush.xpose.msra.mxu0 0.0
    %6362 = vmatpush.xpose.msra.mxu0 0.0
    %6363 = vmatpush.xpose.msra.mxu0 %v6346
    %6364 = vmatmul.f32.gmra.mxu0 %v6343
    %v6365 = vpop.f32.mrf.mxu0
    %v6366 = vadd.f32 0.0, %v6365
    %6367 = vdwg.mxu0
    %v6369 = vsel %vm357, %v6294, 0
    %v6372 = vsel %vm357, %v6317, 0
    %6374 = vmatpush.xpose.msra.mxu0 0.0
    %6375 = vmatpush.xpose.msra.mxu0 0.0
    %6376 = vmatpush.xpose.msra.mxu0 0.0
    %6377 = vmatpush.xpose.msra.mxu0 0.0
    %6378 = vmatpush.xpose.msra.mxu0 0.0
    %6379 = vmatpush.xpose.msra.mxu0 0.0
    %6380 = vmatpush.xpose.msra.mxu0 0.0
    %6381 = vmatpush.xpose.msra.mxu0 0.0
    %6382 = vmatpush.xpose.msra.mxu0 0.0
    %6383 = vmatpush.xpose.msra.mxu0 0.0
    %6384 = vmatpush.xpose.msra.mxu0 0.0
    %6385 = vmatpush.xpose.msra.mxu0 0.0
    %6386 = vmatpush.xpose.msra.mxu0 0.0
    %6387 = vmatpush.xpose.msra.mxu0 0.0
    %6388 = vmatpush.xpose.msra.mxu0 0.0
    %6389 = vmatpush.xpose.msra.mxu0 %v6372
    %6390 = vmatmul.f32.gmra.mxu0 %v6369
    %v6391 = vpop.f32.mrf.mxu0
    %v6392 = vadd.f32 0.0, %v6391
    %6393 = vdwg.mxu0
    %v6394 = vsel %vm357, %v6366, -inf
    %6395 = vmax.xlane.f32.xlu0 %v6394
    %v6396 = vpop.xlane.xlu0 %6395
    %v6397 = vsel %vm357, %v6392, -inf
    %6398 = vmax.xlane.f32.xlu0 %v6397
    %v6399 = vpop.xlane.xlu0 %6398
    %v6400 = vsub.f32 %v6366, %v6396
    %v6401 = vsub.f32 %v6392, %v6399
    %v6402 = vmul.f32 %v6400, 1.442695
    %v6403 = vpow.pop %v6402
    %v6404 = vmul.f32 %v6401, 1.442695
    %v6405 = vpow.pop %v6404
    %v6406 = vsel %vm357, %v6403, 0.0
    %6407 = vadd.xlane.f32.xlu0 %v6406
    %v6408 = vpop.xlane.xlu0 %6407
    %v6409 = vsel %vm357, %v6405, 0.0
    %6410 = vadd.xlane.f32.xlu0 %v6409
    %v6411 = vpop.xlane.xlu0 %6410
    %v6412 = vrcp.pop %v6408
    %v6413 = vrcp.pop %v6411
    %v6414 = vmul.f32 %v6403, %v6412
    %v6415 = vmul.f32 %v6405, %v6413
    %v6417 = vsel %vm357, %v6414, 0
    %6419 = vmatpush.msra.mxu0 0.0
    %6420 = vmatpush.msra.mxu0 0.0
    %6421 = vmatpush.msra.mxu0 0.0
    %6422 = vmatpush.msra.mxu0 0.0
    %6423 = vmatpush.msra.mxu0 0.0
    %6424 = vmatpush.msra.mxu0 0.0
    %6425 = vmatpush.msra.mxu0 0.0
    %6426 = vmatpush.msra.mxu0 0.0
    %6427 = vmatpush.msra.mxu0 0.0
    %6428 = vmatpush.msra.mxu0 0.0
    %6429 = vmatpush.msra.mxu0 0.0
    %6430 = vmatpush.msra.mxu0 0.0
    %6431 = vmatpush.msra.mxu0 0.0
    %6432 = vmatpush.msra.mxu0 0.0
    %6433 = vmatpush.msra.mxu0 0.0
    %6434 = vmatpush.msra.mxu0 %v6337
    %6435 = vmatmul.f32.gmra.mxu0 %v6417
    %v6436 = vpop.f32.mrf.mxu0
    %v6437 = vadd.f32 0.0, %v6436
    %6438 = vdwg.mxu0
    %v6440 = vsel %vm357, %v6415, 0
    %6442 = vmatpush.msra.mxu0 0.0
    %6443 = vmatpush.msra.mxu0 0.0
    %6444 = vmatpush.msra.mxu0 0.0
    %6445 = vmatpush.msra.mxu0 0.0
    %6446 = vmatpush.msra.mxu0 0.0
    %6447 = vmatpush.msra.mxu0 0.0
    %6448 = vmatpush.msra.mxu0 0.0
    %6449 = vmatpush.msra.mxu0 0.0
    %6450 = vmatpush.msra.mxu0 0.0
    %6451 = vmatpush.msra.mxu0 0.0
    %6452 = vmatpush.msra.mxu0 0.0
    %6453 = vmatpush.msra.mxu0 0.0
    %6454 = vmatpush.msra.mxu0 0.0
    %6455 = vmatpush.msra.mxu0 0.0
    %6456 = vmatpush.msra.mxu0 0.0
    %6457 = vmatpush.msra.mxu0 %v6340
    %6458 = vmatmul.f32.gmra.mxu0 %v6440
    %v6459 = vpop.f32.mrf.mxu0
    %v6460 = vadd.f32 0.0, %v6459
    %6461 = vdwg.mxu0
    %v6463 = vsel %vm357, %v6437, 0
    %v6466 = vsel %vm357, %v6460, 0
    %6468 = vmatpush.msra.mxu0 0.0
    %6469 = vmatpush.msra.mxu0 0.0
    %6470 = vmatpush.msra.mxu0 0.0
    %6471 = vmatpush.msra.mxu0 0.0
    %6472 = vmatpush.msra.mxu0 0.0
    %6473 = vmatpush.msra.mxu0 0.0
    %6474 = vmatpush.msra.mxu0 0.0
    %6475 = vmatpush.msra.mxu0 0.0
    %6476 = vmatpush.msra.mxu0 0.0
    %6477 = vmatpush.msra.mxu0 0.0
    %6478 = vmatpush.msra.mxu0 0.0
    %6479 = vmatpush.msra.mxu0 0.0
    %6480 = vmatpush.msra.mxu0 0.0
    %6481 = vmatpush.msra.mxu0 0.0
    %6482 = vmatpush.msra.mxu0 0.0
    %6483 = vmatpush.msra.mxu0 %v5610
    %6484 = vmatmul.f32.gmra.mxu0 %v6463
    %v6485 = vpop.f32.mrf.mxu0
    %v6486 = vadd.f32 0.0, %v6485
    %6487 = vmatmul.f32.gmra.mxu0 %v6466
    %v6488 = vpop.f32.mrf.mxu0
    %v6489 = vadd.f32 0.0, %v6488
    %6490 = vdwg.mxu0
    %v6491 = vadd.f32 %v6271, %v6486
    %v6492 = vadd.f32 %v6272, %v6489
    %v6493 = vadd.f32 %v5512, %v6491
    %v6494 = vadd.f32 %v5513, %v6492
    %s6495 = scalar_lea.vmem %s49, 1
    %v6496 = vld [vmem:[%s6495] sm:$0x1]
    %v6497 = vmul.f32 %v6493, %v6493
    %v6498 = vmul.f32 %v6494, %v6494
    %v6499 = vsel %vm185, %v6497, 0.0
    %6500 = vadd.xlane.f32.xlu0 %v6499
    %v6501 = vpop.xlane.xlu0 %6500
    %v6502 = vsel %vm185, %v6498, 0.0
    %6503 = vadd.xlane.f32.xlu0 %v6502
    %v6504 = vpop.xlane.xlu0 %6503
    %v6505 = vmul.f32 %v6501, %v198
    %v6506 = vmul.f32 %v6504, %v198
    %v6507 = vadd.f32 %v6505, 1e-06
    %v6508 = vadd.f32 %v6506, 1e-06
    %v6509 = vrsqrt.pop %v6507
    %v6510 = vmul.f32 %v6509, %v6507
    %v6511 = vmul.f32 %v6510, %v6509
    %v6512 = vmul.f32 0.5, %v6511
    %v6513 = vsub.f32 1.5, %v6512
    %v6514 = vmul.f32 %v6509, %v6513
    %vm6515 = vweird.f32 %v6507
    %vm6516 = vweird.f32 %v6509
    %vm6517 = vmor %vm6515, %vm6516
    %v6518 = vsel %vm6517, %v6509, %v6514
    %v6519 = vrsqrt.pop %v6508
    %v6520 = vmul.f32 %v6519, %v6508
    %v6521 = vmul.f32 %v6520, %v6519
    %v6522 = vmul.f32 0.5, %v6521
    %v6523 = vsub.f32 1.5, %v6522
    %v6524 = vmul.f32 %v6519, %v6523
    %vm6525 = vweird.f32 %v6508
    %vm6526 = vweird.f32 %v6519
    %vm6527 = vmor %vm6525, %vm6526
    %v6528 = vsel %vm6527, %v6519, %v6524
    %v6529 = vmul.f32 %v6493, %v6518
    %v6530 = vmul.f32 %v6494, %v6528
    %v6532 = vperm.slane %v6496, 0
    %v6534 = vmul.f32 %v6529, %v6532
    %v6535 = vmul.f32 %v6530, %v6532
    %s6536 = scalar_lea.vmem %s51, 32
    %v6537 = vld [vmem:[%s6536] sm:$0xff]
    %v6538 = vld [vmem:[%s6536 + $0x8] sm:$0xff]
    %v6539 = vld [vmem:[%s6536 + $0x10] sm:$0xff]
    %v6540 = vld [vmem:[%s6536 + $0x18] sm:$0xff]
    %v6542 = vsel %vm185, %v6534, 0
    %v6545 = vsel %vm185, %v6535, 0
    %6547 = vmatpush.msra.mxu0 0.0
    %6548 = vmatpush.msra.mxu0 0.0
    %6549 = vmatpush.msra.mxu0 0.0
    %6550 = vmatpush.msra.mxu0 0.0
    %6551 = vmatpush.msra.mxu0 0.0
    %6552 = vmatpush.msra.mxu0 0.0
    %6553 = vmatpush.msra.mxu0 0.0
    %6554 = vmatpush.msra.mxu0 0.0
    %6555 = vmatpush.msra.mxu0 0.0
    %6556 = vmatpush.msra.mxu0 0.0
    %6557 = vmatpush.msra.mxu0 0.0
    %6558 = vmatpush.msra.mxu0 0.0
    %6559 = vmatpush.msra.mxu0 %v6540
    %6560 = vmatpush.msra.mxu0 %v6539
    %6561 = vmatpush.msra.mxu0 %v6538
    %6562 = vmatpush.msra.mxu0 %v6537
    %6563 = vmatmul.f32.gmra.mxu0 %v6542
    %v6564 = vpop.f32.mrf.mxu0
    %v6565 = vadd.f32 0.0, %v6564
    %6566 = vmatmul.f32.gmra.mxu0 %v6545
    %v6567 = vpop.f32.mrf.mxu0
    %v6568 = vadd.f32 0.0, %v6567
    %6569 = vdwg.mxu0
    %v6570 = vmax.f32 %v6565, 0.0
    %v6571 = vmax.f32 %v6568, 0.0
    %s6572 = scalar_lea.vmem %s53, 64
    %v6573 = vld [vmem:[%s6572] sm:$0xff]
    %v6574 = vld [vmem:[%s6572 + $0x8] sm:$0xff]
    %v6575 = vld [vmem:[%s6572 + $0x10] sm:$0xff]
    %v6576 = vld [vmem:[%s6572 + $0x18] sm:$0xff]
    %v6577 = vld [vmem:[%s6572 + $0x20] sm:$0xff]
    %v6578 = vld [vmem:[%s6572 + $0x28] sm:$0xff]
    %v6579 = vld [vmem:[%s6572 + $0x30] sm:$0xff]
    %v6580 = vld [vmem:[%s6572 + $0x38] sm:$0xff]
    %v6582 = vsel %vm1250, %v6570, 0
    %v6585 = vsel %vm1250, %v6571, 0
    %6587 = vmatpush.msra.mxu0 0.0
    %6588 = vmatpush.msra.mxu0 0.0
    %6589 = vmatpush.msra.mxu0 0.0
    %6590 = vmatpush.msra.mxu0 0.0
    %6591 = vmatpush.msra.mxu0 0.0
    %6592 = vmatpush.msra.mxu0 0.0
    %6593 = vmatpush.msra.mxu0 0.0
    %6594 = vmatpush.msra.mxu0 0.0
    %6595 = vmatpush.msra.mxu0 %v6580
    %6596 = vmatpush.msra.mxu0 %v6579
    %6597 = vmatpush.msra.mxu0 %v6578
    %6598 = vmatpush.msra.mxu0 %v6577
    %6599 = vmatpush.msra.mxu0 %v6576
    %6600 = vmatpush.msra.mxu0 %v6575
    %6601 = vmatpush.msra.mxu0 %v6574
    %6602 = vmatpush.msra.mxu0 %v6573
    %6603 = vmatmul.f32.gmra.mxu0 %v6582
    %v6604 = vpop.f32.mrf.mxu0
    %v6605 = vadd.f32 0.0, %v6604
    %6606 = vmatmul.f32.gmra.mxu0 %v6585
    %v6607 = vpop.f32.mrf.mxu0
    %v6608 = vadd.f32 0.0, %v6607
    %6609 = vdwg.mxu0
    %v6610 = vadd.f32 %v6493, %v6605
    %v6611 = vadd.f32 %v6494, %v6608
    %v6612 = vld [vmem:[%s55] sm:$0x1]
    %v6613 = vmul.f32 %v6610, %v6610
    %v6614 = vmul.f32 %v6611, %v6611
    %v6615 = vsel %vm185, %v6613, 0.0
    %6616 = vadd.xlane.f32.xlu0 %v6615
    %v6617 = vpop.xlane.xlu0 %6616
    %v6618 = vsel %vm185, %v6614, 0.0
    %6619 = vadd.xlane.f32.xlu0 %v6618
    %v6620 = vpop.xlane.xlu0 %6619
    %v6621 = vmul.f32 %v6617, %v198
    %v6622 = vmul.f32 %v6620, %v198
    %v6623 = vadd.f32 %v6621, 1e-06
    %v6624 = vadd.f32 %v6622, 1e-06
    %v6625 = vrsqrt.pop %v6623
    %v6626 = vmul.f32 %v6625, %v6623
    %v6627 = vmul.f32 %v6626, %v6625
    %v6628 = vmul.f32 0.5, %v6627
    %v6629 = vsub.f32 1.5, %v6628
    %v6630 = vmul.f32 %v6625, %v6629
    %vm6631 = vweird.f32 %v6623
    %vm6632 = vweird.f32 %v6625
    %vm6633 = vmor %vm6631, %vm6632
    %v6634 = vsel %vm6633, %v6625, %v6630
    %v6635 = vrsqrt.pop %v6624
    %v6636 = vmul.f32 %v6635, %v6624
    %v6637 = vmul.f32 %v6636, %v6635
    %v6638 = vmul.f32 0.5, %v6637
    %v6639 = vsub.f32 1.5, %v6638
    %v6640 = vmul.f32 %v6635, %v6639
    %vm6641 = vweird.f32 %v6624
    %vm6642 = vweird.f32 %v6635
    %vm6643 = vmor %vm6641, %vm6642
    %v6644 = vsel %vm6643, %v6635, %v6640
    %v6645 = vmul.f32 %v6610, %v6634
    %v6646 = vmul.f32 %v6611, %v6644
    %v6648 = vperm.slane %v6612, 0
    %v6650 = vmul.f32 %v6645, %v6648
    %v6651 = vmul.f32 %v6646, %v6648
    %v6652 = vmul.f32 %v6650, 0.17677669
    %v6653 = vmul.f32 %v6651, 0.17677669
    %v6654 = vld [vmem:[%s57] sm:$0xff]
    %v6655 = vld [vmem:[%s57 + $0x8] sm:$0xff]
    %v6656 = vld [vmem:[%s57 + $0x10] sm:$0xff]
    %v6657 = vld [vmem:[%s57 + $0x18] sm:$0xff]
    %v6659 = vsel %vm185, %v6652, 0
    %v6662 = vsel %vm185, %v6653, 0
    %6664 = vmatpush.msra.mxu0 0.0
    %6665 = vmatpush.msra.mxu0 0.0
    %6666 = vmatpush.msra.mxu0 0.0
    %6667 = vmatpush.msra.mxu0 0.0
    %6668 = vmatpush.msra.mxu0 0.0
    %6669 = vmatpush.msra.mxu0 0.0
    %6670 = vmatpush.msra.mxu0 0.0
    %6671 = vmatpush.msra.mxu0 0.0
    %6672 = vmatpush.msra.mxu0 0.0
    %6673 = vmatpush.msra.mxu0 0.0
    %6674 = vmatpush.msra.mxu0 0.0
    %6675 = vmatpush.msra.mxu0 0.0
    %6676 = vmatpush.msra.mxu0 %v6657
    %6677 = vmatpush.msra.mxu0 %v6656
    %6678 = vmatpush.msra.mxu0 %v6655
    %6679 = vmatpush.msra.mxu0 %v6654
    %6680 = vmatmul.f32.gmra.mxu0 %v6659
    %v6681 = vpop.f32.mrf.mxu0
    %v6682 = vadd.f32 0.0, %v6681
    %6683 = vmatmul.f32.gmra.mxu0 %v6662
    %v6684 = vpop.f32.mrf.mxu0
    %v6685 = vadd.f32 0.0, %v6684
    %6686 = vdwg.mxu0
    %6687 = vst [vmem:[#allocation2] sm:$0xff] %v6682
    %6688 = vst [vmem:[#allocation2 + $0x8] sm:$0xff] %v6685
    // Predicated region
    $region118: #{tpu_custom_call.1} parent=1 // pred_check
      _
    $region119: #{tpu_custom_call.1} parent=1 // pred_check_branch
      %6690 = sbr.rel (0) target = $region121
    $region120: #{tpu_custom_call.1} parent=1 // pred_region
      %6692 = vsyncadd [#allocation3], 0
      %s6693 = sshll.u32 [#allocation2], 4
      %s6694 = int_to_ptr.vmem [resolvable:$true] %s6693
      %s6695 = sshll.u32 %s59, 4
      %s6696 = int_to_ptr.hbm [resolvable:$true] %s6695
      %6701 = dma.vmem_to_hbm [thread:$0]  %s6694, 256, %s6696, [#allocation3], 128, 128, 8
    $region121: #{tpu_custom_call.1} parent=1 // pred_fallthru
      _
    // Predicated region
    $region122: #{tpu_custom_call.1} parent=1 // pred_check
      _
    $region123: #{tpu_custom_call.1} parent=1 // pred_check_branch
      %6703 = sbr.rel (0) target = $region125
    $region124: #{tpu_custom_call.1} parent=1 // pred_region
      %6705 = dma.done [#allocation3], 256
    $region125: #{tpu_custom_call.1} parent=1 // pred_fallthru
      _
    %6706 = vsyncpa [#allocation3], 1

</llo_original>
